<compile_context>
chip_gen: v7x
topology: tpu7x:2x2x1
jax: 0.10.0
libtpu: 0.0.40
codegen_flags: <defaults>
</compile_context>

<pallas_src>
import jax
import jax.numpy as jnp
from jax.experimental import pallas as pl
from jax.experimental.pallas import tpu as pltpu

_EPS = 1e-5  # PyTorch BatchNorm2d default eps


def _batchnorm(y, gamma, beta, count):
    """Training-mode BatchNorm over (N, H, W) in a single pass."""
    inv = 1.0 / float(count)
    s = jnp.sum(y, axis=(0, 1, 2), keepdims=True)
    ss = jnp.sum(y * y, axis=(0, 1, 2), keepdims=True)
    mean = s * inv
    var = ss * inv - mean * mean
    return gamma * (y - mean) * jax.lax.rsqrt(var + _EPS) + beta


def _make_fused_kernel(N, H, W, Cin, D, stride, Ho, Wo, sc_conv):
    def strided_win(ref, kh, kw):
        # 3x3 tap window of a padded (N, H+2, W+2, C) buffer, at the conv stride.
        if stride == 1:
            return ref[:, kh:kh + Ho, kw:kw + Wo, :]
        return ref[:, pl.ds(kh, Ho, stride=stride), pl.ds(kw, Wo, stride=stride), :]

    def kernel(*refs):
        if sc_conv:
            (x_ref, bn1_g, bn1_b, w1_ref, alpha_ref, w2_ref, bn2_g, bn2_b,
             scw_ref, scg_ref, scb_ref, o_ref, pad1, pad2) = refs
        else:
            (x_ref, bn1_g, bn1_b, w1_ref, alpha_ref, w2_ref, bn2_g, bn2_b,
             o_ref, pad1, pad2) = refs

        # ---- BN1 over the input (training-mode batch stats) ----
        x = x_ref[...]
        xbn = _batchnorm(x, bn1_g[...], bn1_b[...], N * H * W)

        # ---- conv1: 3x3, stride 1, pad 1 (VMEM halo scratch) + PReLU ----
        pad1[...] = jnp.zeros_like(pad1)
        pad1[:, 1:H + 1, 1:W + 1, :] = xbn
        acc1 = jnp.zeros((N * H * W, D), jnp.float32)
        for kh in range(3):
            for kw in range(3):
                patch = pad1[:, kh:kh + H, kw:kw + W, :]          # (N, H, W, Cin)
                acc1 = acc1 + jnp.dot(
                    patch.reshape(N * H * W, Cin).astype(jnp.bfloat16),
                    w1_ref[kh * 3 + kw],
                    preferred_element_type=jnp.float32)
        r1 = acc1.reshape(N, H, W, D)
        r1 = jnp.where(r1 > 0, r1, r1 * alpha_ref[...])           # PReLU(depth)

        # ---- conv2: 3x3, stride `stride`, pad 1 -- computed at its true stride ----
        pad2[...] = jnp.zeros_like(pad2)
        pad2[:, 1:H + 1, 1:W + 1, :] = r1
        acc2 = jnp.zeros((N * Ho * Wo, D), jnp.float32)
        for kh in range(3):
            for kw in range(3):
                patch = strided_win(pad2, kh, kw)                 # (N, Ho, Wo, D)
                acc2 = acc2 + jnp.dot(
                    patch.reshape(N * Ho * Wo, D).astype(jnp.bfloat16),
                    w2_ref[kh * 3 + kw],
                    preferred_element_type=jnp.float32)
        y = acc2.reshape(N, Ho, Wo, D)

        # ---- BN2 ----
        res = _batchnorm(y, bn2_g[...], bn2_b[...], N * Ho * Wo)

        # ---- shortcut branch (subsample folded into the kernel) ----
        if stride == 1:
            x_sub = x
        else:
            x_sub = x_ref[:, pl.ds(0, Ho, stride=stride),
                          pl.ds(0, Wo, stride=stride), :]
        if sc_conv:
            sc_y = jnp.dot(x_sub.reshape(N * Ho * Wo, Cin).astype(jnp.bfloat16),
                           scw_ref[...],
                           preferred_element_type=jnp.float32).reshape(N, Ho, Wo, D)
            sc = _batchnorm(sc_y, scg_ref[...], scb_ref[...], N * Ho * Wo)
        else:
            sc = x_sub                                            # MaxPool2d(1, stride)

        o_ref[...] = res + sc

    return kernel


def bottleneck_ir(x_nchw, params, stride):
    x = jnp.transpose(x_nchw, (0, 2, 3, 1)).astype(jnp.float32)   # NCHW -> NHWC
    N, H, W, Cin = x.shape
    D = params["conv1_w"].shape[-1]
    Ho = (H - 1) // stride + 1
    Wo = (W - 1) // stride + 1
    sc_conv = (Cin != D)

    args = [x, params["bn1_g"], params["bn1_b"], params["conv1_w"],
            params["prelu_a"], params["conv2_w"], params["bn2_g"], params["bn2_b"]]
    if sc_conv:
        args += [params["sc_w"], params["sc_bn_g"], params["sc_bn_b"]]

    # TODO(synk): for realistic IR sizes (e.g. 112x112, N>=8) grid this kernel
    # over batch / output rows with a 2-row halo so tiles fit v7x's 64 MiB VMEM,
    # and mark the batch axis "parallel" for its 2 TensorCores; at these small
    # shapes everything fits in VMEM and a single un-gridded call is fastest
    # (BN batch stats also need the whole tensor).
    out = pl.pallas_call(
        _make_fused_kernel(N, H, W, Cin, D, stride, Ho, Wo, sc_conv),
        out_shape=jax.ShapeDtypeStruct((N, Ho, Wo, D), jnp.float32),
        in_specs=[pl.BlockSpec(memory_space=pltpu.MemorySpace.VMEM) for _ in args],
        out_specs=pl.BlockSpec(memory_space=pltpu.MemorySpace.VMEM),
        scratch_shapes=[pltpu.VMEM((N, H + 2, W + 2, Cin), jnp.float32),
                        pltpu.VMEM((N, H + 2, W + 2, D), jnp.float32)],
        compiler_params=pltpu.CompilerParams(vmem_limit_bytes=32 * 1024 * 1024),
    )(*args)
    return jnp.transpose(out, (0, 3, 1, 2))                       # NHWC -> NCHW


# --------------------------- deterministic params ---------------------------

def init_params(key, in_channel, depth):
    k = jax.random.split(key, 3)

    def xavier(rng, shape, fan_in, fan_out):
        limit = (6.0 / (fan_in + fan_out)) ** 0.5
        return jax.random.uniform(rng, shape, jnp.float32, -limit, limit)

    # Weights built in PyTorch (Cout, Cin, kh, kw) layout, then re-laid-out for
    # NHWC matmuls as (9, Cin, Cout); bf16 for the MXU (f32 accumulate in-kernel).
    w1_t = xavier(k[0], (depth, in_channel, 3, 3), in_channel * 9, depth * 9)
    w2_t = xavier(k[1], (depth, depth, 3, 3), depth * 9, depth * 9)
    sc_t = xavier(k[2], (depth, in_channel, 1, 1), in_channel, depth)

    return {
        "bn1_g": jnp.ones((1, in_channel), jnp.float32),
        "bn1_b": jnp.zeros((1, in_channel), jnp.float32),
        "conv1_w": jnp.transpose(w1_t, (2, 3, 1, 0))
                      .reshape(9, in_channel, depth).astype(jnp.bfloat16),
        "prelu_a": jnp.full((1, depth), 0.25, jnp.float32),       # PReLU default init
        "conv2_w": jnp.transpose(w2_t, (2, 3, 1, 0))
                      .reshape(9, depth, depth).astype(jnp.bfloat16),
        "bn2_g": jnp.ones((1, depth), jnp.float32),
        "bn2_b": jnp.zeros((1, depth), jnp.float32),
        "sc_w": sc_t.reshape(depth, in_channel).T.astype(jnp.bfloat16),  # (Cin, depth)
        "sc_bn_g": jnp.ones((1, depth), jnp.float32),
        "sc_bn_b": jnp.zeros((1, depth), jnp.float32),
    }


if __name__ == "__main__":
    key = jax.random.PRNGKey(0)
    kx, kp = jax.random.split(key)

    N, Cin, H, W = 2, 16, 16, 16
    depth, stride = 32, 2

    x = jax.random.normal(kx, (N, Cin, H, W), jnp.float32)        # NCHW like PyTorch
    params = init_params(kp, Cin, depth)

    out = bottleneck_ir(x, params, stride)
    out = jax.block_until_ready(out)

    Ho = (H - 1) // stride + 1
    assert out.shape == (N, depth, Ho, Ho), out.shape
    assert bool(jnp.all(jnp.isfinite(out)))
    print("KERNEL_OK")
</pallas_src>

<mosaic_0001>
module attributes {stable_mosaic.version = 11 : i64} {
  func.func @kernel(%arg0: memref<2x16x16x16xf32, #tpu.memory_space<vmem>>, %arg1: memref<1x16xf32, #tpu.memory_space<vmem>>, %arg2: memref<1x16xf32, #tpu.memory_space<vmem>>, %arg3: memref<9x16x32xbf16, #tpu.memory_space<vmem>>, %arg4: memref<1x32xf32, #tpu.memory_space<vmem>>, %arg5: memref<9x32x32xbf16, #tpu.memory_space<vmem>>, %arg6: memref<1x32xf32, #tpu.memory_space<vmem>>, %arg7: memref<1x32xf32, #tpu.memory_space<vmem>>, %arg8: memref<16x32xbf16, #tpu.memory_space<vmem>>, %arg9: memref<1x32xf32, #tpu.memory_space<vmem>>, %arg10: memref<1x32xf32, #tpu.memory_space<vmem>>, %arg11: memref<2x8x8x32xf32, #tpu.memory_space<vmem>>, %arg12: memref<2x18x18x16xf32, #tpu.memory_space<vmem>>, %arg13: memref<2x18x18x32xf32, #tpu.memory_space<vmem>>) attributes {dimension_semantics = [], scalar_prefetch = 0 : i64, scratch_operands = 2 : i64, tpu.core_type = #tpu.core_type<tc>} {
    %c0 = arith.constant 0 : index
    %c0_0 = arith.constant 0 : index
    %c0_1 = arith.constant 0 : index
    %c0_2 = arith.constant 0 : index
    %0 = vector.load %arg0[%c0, %c0_0, %c0_1, %c0_2] : memref<2x16x16x16xf32, #tpu.memory_space<vmem>>, vector<2x16x16x16xf32>
    %c0_3 = arith.constant 0 : index
    %c0_4 = arith.constant 0 : index
    %1 = vector.load %arg1[%c0_3, %c0_4] : memref<1x16xf32, #tpu.memory_space<vmem>>, vector<1x16xf32>
    %c0_5 = arith.constant 0 : index
    %c0_6 = arith.constant 0 : index
    %2 = vector.load %arg2[%c0_5, %c0_6] : memref<1x16xf32, #tpu.memory_space<vmem>>, vector<1x16xf32>
    %cst = arith.constant dense<0.000000e+00> : vector<16xf32>
    %3 = vector.multi_reduction <add>, %0, %cst [0, 1, 2] : vector<2x16x16x16xf32> to vector<16xf32>
    %4 = vector.shape_cast %3 : vector<16xf32> to vector<1x1x1x16xf32>
    %5 = arith.mulf %0, %0 : vector<2x16x16x16xf32>
    %cst_7 = arith.constant dense<0.000000e+00> : vector<16xf32>
    %6 = vector.multi_reduction <add>, %5, %cst_7 [0, 1, 2] : vector<2x16x16x16xf32> to vector<16xf32>
    %7 = vector.shape_cast %6 : vector<16xf32> to vector<1x1x1x16xf32>
    %cst_8 = arith.constant 0.001953125 : f32
    %8 = vector.broadcast %cst_8 : f32 to vector<1x1x1x16xf32>
    %9 = arith.mulf %4, %8 : vector<1x1x1x16xf32>
    %cst_9 = arith.constant 0.001953125 : f32
    %10 = vector.broadcast %cst_9 : f32 to vector<1x1x1x16xf32>
    %11 = arith.mulf %7, %10 : vector<1x1x1x16xf32>
    %12 = arith.mulf %9, %9 : vector<1x1x1x16xf32>
    %13 = arith.subf %11, %12 : vector<1x1x1x16xf32>
    %14 = vector.broadcast %9 : vector<1x1x1x16xf32> to vector<2x16x16x16xf32>
    %15 = arith.subf %0, %14 : vector<2x16x16x16xf32>
    %16 = vector.shape_cast %1 : vector<1x16xf32> to vector<1x1x1x16xf32>
    %17 = vector.broadcast %16 : vector<1x1x1x16xf32> to vector<2x16x16x16xf32>
    %18 = arith.mulf %17, %15 : vector<2x16x16x16xf32>
    %cst_10 = arith.constant 9.99999974E-6 : f32
    %19 = vector.broadcast %cst_10 : f32 to vector<1x1x1x16xf32>
    %20 = arith.addf %13, %19 : vector<1x1x1x16xf32>
    %21 = math.rsqrt %20 : vector<1x1x1x16xf32>
    %22 = vector.broadcast %21 : vector<1x1x1x16xf32> to vector<2x16x16x16xf32>
    %23 = arith.mulf %18, %22 : vector<2x16x16x16xf32>
    %24 = vector.shape_cast %2 : vector<1x16xf32> to vector<1x1x1x16xf32>
    %25 = vector.broadcast %24 : vector<1x1x1x16xf32> to vector<2x16x16x16xf32>
    %26 = arith.addf %23, %25 : vector<2x16x16x16xf32>
    %cst_11 = arith.constant 0.000000e+00 : f32
    %27 = vector.broadcast %cst_11 : f32 to vector<2x18x18x16xf32>
    %c0_12 = arith.constant 0 : index
    %c0_13 = arith.constant 0 : index
    %c0_14 = arith.constant 0 : index
    %c0_15 = arith.constant 0 : index
    %28 = vector.load %arg12[%c0_12, %c0_13, %c0_14, %c0_15] : memref<2x18x18x16xf32, #tpu.memory_space<vmem>>, vector<2x18x18x16xf32>
    tpu.vector_store %arg12[%c0_12, %c0_13, %c0_14, %c0_15], %27 {strides = array<i32>} : memref<2x18x18x16xf32, #tpu.memory_space<vmem>>, vector<2x18x18x16xf32>,
    %c0_16 = arith.constant 0 : index
    %c1 = arith.constant 1 : index
    %c1_17 = arith.constant 1 : index
    %c0_18 = arith.constant 0 : index
    %29 = vector.load %arg12[%c0_16, %c1, %c1_17, %c0_18] : memref<2x18x18x16xf32, #tpu.memory_space<vmem>>, vector<2x16x16x16xf32>
    tpu.vector_store %arg12[%c0_16, %c1, %c1_17, %c0_18], %26 {strides = array<i32>} : memref<2x18x18x16xf32, #tpu.memory_space<vmem>>, vector<2x16x16x16xf32>,
    %cst_19 = arith.constant 0.000000e+00 : f32
    %30 = vector.broadcast %cst_19 : f32 to vector<512x32xf32>
    %c0_20 = arith.constant 0 : index
    %c0_21 = arith.constant 0 : index
    %c0_22 = arith.constant 0 : index
    %c0_23 = arith.constant 0 : index
    %31 = vector.load %arg12[%c0_20, %c0_21, %c0_22, %c0_23] : memref<2x18x18x16xf32, #tpu.memory_space<vmem>>, vector<2x16x16x16xf32>
    %32 = vector.shape_cast %31 : vector<2x16x16x16xf32> to vector<512x16xf32>
    %33 = arith.truncf %32 : vector<512x16xf32> to vector<512x16xbf16>
    %c0_24 = arith.constant 0 : index
    %c0_25 = arith.constant 0 : index
    %c0_26 = arith.constant 0 : index
    %34 = vector.load %arg3[%c0_24, %c0_25, %c0_26] : memref<9x16x32xbf16, #tpu.memory_space<vmem>>, vector<1x16x32xbf16>
    %35 = vector.shape_cast %34 : vector<1x16x32xbf16> to vector<16x32xbf16>
    %cst_27 = arith.constant dense<0.000000e+00> : vector<512x32xf32>
    %36 = tpu.matmul %33, %35, %cst_27 {dimension_numbers = #tpu.dot_dimension_numbers<[1], [0], [0], [1], [0, 0, 1, 1], [], []>} : vector<512x16xbf16>, vector<16x32xbf16>, vector<512x32xf32> -> vector<512x32xf32>
    %37 = arith.addf %30, %36 : vector<512x32xf32>
    %c0_28 = arith.constant 0 : index
    %c0_29 = arith.constant 0 : index
    %c1_30 = arith.constant 1 : index
    %c0_31 = arith.constant 0 : index
    %38 = vector.load %arg12[%c0_28, %c0_29, %c1_30, %c0_31] : memref<2x18x18x16xf32, #tpu.memory_space<vmem>>, vector<2x16x16x16xf32>
    %39 = vector.shape_cast %38 : vector<2x16x16x16xf32> to vector<512x16xf32>
    %40 = arith.truncf %39 : vector<512x16xf32> to vector<512x16xbf16>
    %c1_32 = arith.constant 1 : index
    %c0_33 = arith.constant 0 : index
    %c0_34 = arith.constant 0 : index
    %41 = vector.load %arg3[%c1_32, %c0_33, %c0_34] : memref<9x16x32xbf16, #tpu.memory_space<vmem>>, vector<1x16x32xbf16>
    %42 = vector.shape_cast %41 : vector<1x16x32xbf16> to vector<16x32xbf16>
    %cst_35 = arith.constant dense<0.000000e+00> : vector<512x32xf32>
    %43 = tpu.matmul %40, %42, %cst_35 {dimension_numbers = #tpu.dot_dimension_numbers<[1], [0], [0], [1], [0, 0, 1, 1], [], []>} : vector<512x16xbf16>, vector<16x32xbf16>, vector<512x32xf32> -> vector<512x32xf32>
    %44 = arith.addf %37, %43 : vector<512x32xf32>
    %c0_36 = arith.constant 0 : index
    %c0_37 = arith.constant 0 : index
    %c2 = arith.constant 2 : index
    %c0_38 = arith.constant 0 : index
    %45 = vector.load %arg12[%c0_36, %c0_37, %c2, %c0_38] : memref<2x18x18x16xf32, #tpu.memory_space<vmem>>, vector<2x16x16x16xf32>
    %46 = vector.shape_cast %45 : vector<2x16x16x16xf32> to vector<512x16xf32>
    %47 = arith.truncf %46 : vector<512x16xf32> to vector<512x16xbf16>
    %c2_39 = arith.constant 2 : index
    %c0_40 = arith.constant 0 : index
    %c0_41 = arith.constant 0 : index
    %48 = vector.load %arg3[%c2_39, %c0_40, %c0_41] : memref<9x16x32xbf16, #tpu.memory_space<vmem>>, vector<1x16x32xbf16>
    %49 = vector.shape_cast %48 : vector<1x16x32xbf16> to vector<16x32xbf16>
    %cst_42 = arith.constant dense<0.000000e+00> : vector<512x32xf32>
    %50 = tpu.matmul %47, %49, %cst_42 {dimension_numbers = #tpu.dot_dimension_numbers<[1], [0], [0], [1], [0, 0, 1, 1], [], []>} : vector<512x16xbf16>, vector<16x32xbf16>, vector<512x32xf32> -> vector<512x32xf32>
    %51 = arith.addf %44, %50 : vector<512x32xf32>
    %c0_43 = arith.constant 0 : index
    %c1_44 = arith.constant 1 : index
    %c0_45 = arith.constant 0 : index
    %c0_46 = arith.constant 0 : index
    %52 = vector.load %arg12[%c0_43, %c1_44, %c0_45, %c0_46] : memref<2x18x18x16xf32, #tpu.memory_space<vmem>>, vector<2x16x16x16xf32>
    %53 = vector.shape_cast %52 : vector<2x16x16x16xf32> to vector<512x16xf32>
    %54 = arith.truncf %53 : vector<512x16xf32> to vector<512x16xbf16>
    %c3 = arith.constant 3 : index
    %c0_47 = arith.constant 0 : index
    %c0_48 = arith.constant 0 : index
    %55 = vector.load %arg3[%c3, %c0_47, %c0_48] : memref<9x16x32xbf16, #tpu.memory_space<vmem>>, vector<1x16x32xbf16>
    %56 = vector.shape_cast %55 : vector<1x16x32xbf16> to vector<16x32xbf16>
    %cst_49 = arith.constant dense<0.000000e+00> : vector<512x32xf32>
    %57 = tpu.matmul %54, %56, %cst_49 {dimension_numbers = #tpu.dot_dimension_numbers<[1], [0], [0], [1], [0, 0, 1, 1], [], []>} : vector<512x16xbf16>, vector<16x32xbf16>, vector<512x32xf32> -> vector<512x32xf32>
    %58 = arith.addf %51, %57 : vector<512x32xf32>
    %c0_50 = arith.constant 0 : index
    %c1_51 = arith.constant 1 : index
    %c1_52 = arith.constant 1 : index
    %c0_53 = arith.constant 0 : index
    %59 = vector.load %arg12[%c0_50, %c1_51, %c1_52, %c0_53] : memref<2x18x18x16xf32, #tpu.memory_space<vmem>>, vector<2x16x16x16xf32>
    %60 = vector.shape_cast %59 : vector<2x16x16x16xf32> to vector<512x16xf32>
    %61 = arith.truncf %60 : vector<512x16xf32> to vector<512x16xbf16>
    %c4 = arith.constant 4 : index
    %c0_54 = arith.constant 0 : index
    %c0_55 = arith.constant 0 : index
    %62 = vector.load %arg3[%c4, %c0_54, %c0_55] : memref<9x16x32xbf16, #tpu.memory_space<vmem>>, vector<1x16x32xbf16>
    %63 = vector.shape_cast %62 : vector<1x16x32xbf16> to vector<16x32xbf16>
    %cst_56 = arith.constant dense<0.000000e+00> : vector<512x32xf32>
    %64 = tpu.matmul %61, %63, %cst_56 {dimension_numbers = #tpu.dot_dimension_numbers<[1], [0], [0], [1], [0, 0, 1, 1], [], []>} : vector<512x16xbf16>, vector<16x32xbf16>, vector<512x32xf32> -> vector<512x32xf32>
    %65 = arith.addf %58, %64 : vector<512x32xf32>
    %c0_57 = arith.constant 0 : index
    %c1_58 = arith.constant 1 : index
    %c2_59 = arith.constant 2 : index
    %c0_60 = arith.constant 0 : index
    %66 = vector.load %arg12[%c0_57, %c1_58, %c2_59, %c0_60] : memref<2x18x18x16xf32, #tpu.memory_space<vmem>>, vector<2x16x16x16xf32>
    %67 = vector.shape_cast %66 : vector<2x16x16x16xf32> to vector<512x16xf32>
    %68 = arith.truncf %67 : vector<512x16xf32> to vector<512x16xbf16>
    %c5 = arith.constant 5 : index
    %c0_61 = arith.constant 0 : index
    %c0_62 = arith.constant 0 : index
    %69 = vector.load %arg3[%c5, %c0_61, %c0_62] : memref<9x16x32xbf16, #tpu.memory_space<vmem>>, vector<1x16x32xbf16>
    %70 = vector.shape_cast %69 : vector<1x16x32xbf16> to vector<16x32xbf16>
    %cst_63 = arith.constant dense<0.000000e+00> : vector<512x32xf32>
    %71 = tpu.matmul %68, %70, %cst_63 {dimension_numbers = #tpu.dot_dimension_numbers<[1], [0], [0], [1], [0, 0, 1, 1], [], []>} : vector<512x16xbf16>, vector<16x32xbf16>, vector<512x32xf32> -> vector<512x32xf32>
    %72 = arith.addf %65, %71 : vector<512x32xf32>
    %c0_64 = arith.constant 0 : index
    %c2_65 = arith.constant 2 : index
    %c0_66 = arith.constant 0 : index
    %c0_67 = arith.constant 0 : index
    %73 = vector.load %arg12[%c0_64, %c2_65, %c0_66, %c0_67] : memref<2x18x18x16xf32, #tpu.memory_space<vmem>>, vector<2x16x16x16xf32>
    %74 = vector.shape_cast %73 : vector<2x16x16x16xf32> to vector<512x16xf32>
    %75 = arith.truncf %74 : vector<512x16xf32> to vector<512x16xbf16>
    %c6 = arith.constant 6 : index
    %c0_68 = arith.constant 0 : index
    %c0_69 = arith.constant 0 : index
    %76 = vector.load %arg3[%c6, %c0_68, %c0_69] : memref<9x16x32xbf16, #tpu.memory_space<vmem>>, vector<1x16x32xbf16>
    %77 = vector.shape_cast %76 : vector<1x16x32xbf16> to vector<16x32xbf16>
    %cst_70 = arith.constant dense<0.000000e+00> : vector<512x32xf32>
    %78 = tpu.matmul %75, %77, %cst_70 {dimension_numbers = #tpu.dot_dimension_numbers<[1], [0], [0], [1], [0, 0, 1, 1], [], []>} : vector<512x16xbf16>, vector<16x32xbf16>, vector<512x32xf32> -> vector<512x32xf32>
    %79 = arith.addf %72, %78 : vector<512x32xf32>
    %c0_71 = arith.constant 0 : index
    %c2_72 = arith.constant 2 : index
    %c1_73 = arith.constant 1 : index
    %c0_74 = arith.constant 0 : index
    %80 = vector.load %arg12[%c0_71, %c2_72, %c1_73, %c0_74] : memref<2x18x18x16xf32, #tpu.memory_space<vmem>>, vector<2x16x16x16xf32>
    %81 = vector.shape_cast %80 : vector<2x16x16x16xf32> to vector<512x16xf32>
    %82 = arith.truncf %81 : vector<512x16xf32> to vector<512x16xbf16>
    %c7 = arith.constant 7 : index
    %c0_75 = arith.constant 0 : index
    %c0_76 = arith.constant 0 : index
    %83 = vector.load %arg3[%c7, %c0_75, %c0_76] : memref<9x16x32xbf16, #tpu.memory_space<vmem>>, vector<1x16x32xbf16>
    %84 = vector.shape_cast %83 : vector<1x16x32xbf16> to vector<16x32xbf16>
    %cst_77 = arith.constant dense<0.000000e+00> : vector<512x32xf32>
    %85 = tpu.matmul %82, %84, %cst_77 {dimension_numbers = #tpu.dot_dimension_numbers<[1], [0], [0], [1], [0, 0, 1, 1], [], []>} : vector<512x16xbf16>, vector<16x32xbf16>, vector<512x32xf32> -> vector<512x32xf32>
    %86 = arith.addf %79, %85 : vector<512x32xf32>
    %c0_78 = arith.constant 0 : index
    %c2_79 = arith.constant 2 : index
    %c2_80 = arith.constant 2 : index
    %c0_81 = arith.constant 0 : index
    %87 = vector.load %arg12[%c0_78, %c2_79, %c2_80, %c0_81] : memref<2x18x18x16xf32, #tpu.memory_space<vmem>>, vector<2x16x16x16xf32>
    %88 = vector.shape_cast %87 : vector<2x16x16x16xf32> to vector<512x16xf32>
    %89 = arith.truncf %88 : vector<512x16xf32> to vector<512x16xbf16>
    %c8 = arith.constant 8 : index
    %c0_82 = arith.constant 0 : index
    %c0_83 = arith.constant 0 : index
    %90 = vector.load %arg3[%c8, %c0_82, %c0_83] : memref<9x16x32xbf16, #tpu.memory_space<vmem>>, vector<1x16x32xbf16>
    %91 = vector.shape_cast %90 : vector<1x16x32xbf16> to vector<16x32xbf16>
    %cst_84 = arith.constant dense<0.000000e+00> : vector<512x32xf32>
    %92 = tpu.matmul %89, %91, %cst_84 {dimension_numbers = #tpu.dot_dimension_numbers<[1], [0], [0], [1], [0, 0, 1, 1], [], []>} : vector<512x16xbf16>, vector<16x32xbf16>, vector<512x32xf32> -> vector<512x32xf32>
    %93 = arith.addf %86, %92 : vector<512x32xf32>
    %94 = vector.shape_cast %93 : vector<512x32xf32> to vector<2x16x16x32xf32>
    %cst_85 = arith.constant 0.000000e+00 : f32
    %95 = vector.broadcast %cst_85 : f32 to vector<2x16x16x32xf32>
    %96 = arith.cmpf ogt, %94, %95 : vector<2x16x16x32xf32>
    %c0_86 = arith.constant 0 : index
    %c0_87 = arith.constant 0 : index
    %97 = vector.load %arg4[%c0_86, %c0_87] : memref<1x32xf32, #tpu.memory_space<vmem>>, vector<1x32xf32>
    %98 = vector.shape_cast %97 : vector<1x32xf32> to vector<1x1x1x32xf32>
    %99 = vector.broadcast %98 : vector<1x1x1x32xf32> to vector<2x16x16x32xf32>
    %100 = arith.mulf %94, %99 : vector<2x16x16x32xf32>
    %101 = arith.select %96, %94, %100 : vector<2x16x16x32xi1>, vector<2x16x16x32xf32>
    %cst_88 = arith.constant 0.000000e+00 : f32
    %102 = vector.broadcast %cst_88 : f32 to vector<2x18x18x32xf32>
    %c0_89 = arith.constant 0 : index
    %c0_90 = arith.constant 0 : index
    %c0_91 = arith.constant 0 : index
    %c0_92 = arith.constant 0 : index
    %103 = vector.load %arg13[%c0_89, %c0_90, %c0_91, %c0_92] : memref<2x18x18x32xf32, #tpu.memory_space<vmem>>, vector<2x18x18x32xf32>
    tpu.vector_store %arg13[%c0_89, %c0_90, %c0_91, %c0_92], %102 {strides = array<i32>} : memref<2x18x18x32xf32, #tpu.memory_space<vmem>>, vector<2x18x18x32xf32>,
    %c0_93 = arith.constant 0 : index
    %c1_94 = arith.constant 1 : index
    %c1_95 = arith.constant 1 : index
    %c0_96 = arith.constant 0 : index
    %104 = vector.load %arg13[%c0_93, %c1_94, %c1_95, %c0_96] : memref<2x18x18x32xf32, #tpu.memory_space<vmem>>, vector<2x16x16x32xf32>
    tpu.vector_store %arg13[%c0_93, %c1_94, %c1_95, %c0_96], %101 {strides = array<i32>} : memref<2x18x18x32xf32, #tpu.memory_space<vmem>>, vector<2x16x16x32xf32>,
    %cst_97 = arith.constant 0.000000e+00 : f32
    %105 = vector.broadcast %cst_97 : f32 to vector<128x32xf32>
    %c0_98 = arith.constant 0 : index
    %c0_99 = arith.constant 0 : index
    %c0_100 = arith.constant 0 : index
    %c0_101 = arith.constant 0 : index
    %106 = tpu.strided_load %arg13[%c0_98, %c0_99, %c0_100, %c0_101] {strides = array<i32: 1, 2, 2, 1>} : memref<2x18x18x32xf32, #tpu.memory_space<vmem>>, vector<2x8x8x32xf32>
    %107 = vector.shape_cast %106 : vector<2x8x8x32xf32> to vector<128x32xf32>
    %108 = arith.truncf %107 : vector<128x32xf32> to vector<128x32xbf16>
    %c0_102 = arith.constant 0 : index
    %c0_103 = arith.constant 0 : index
    %c0_104 = arith.constant 0 : index
    %109 = vector.load %arg5[%c0_102, %c0_103, %c0_104] : memref<9x32x32xbf16, #tpu.memory_space<vmem>>, vector<1x32x32xbf16>
    %110 = vector.shape_cast %109 : vector<1x32x32xbf16> to vector<32x32xbf16>
    %cst_105 = arith.constant dense<0.000000e+00> : vector<128x32xf32>
    %111 = tpu.matmul %108, %110, %cst_105 {dimension_numbers = #tpu.dot_dimension_numbers<[1], [0], [0], [1], [0, 0, 1, 1], [], []>} : vector<128x32xbf16>, vector<32x32xbf16>, vector<128x32xf32> -> vector<128x32xf32>
    %112 = arith.addf %105, %111 : vector<128x32xf32>
    %c0_106 = arith.constant 0 : index
    %c0_107 = arith.constant 0 : index
    %c1_108 = arith.constant 1 : index
    %c0_109 = arith.constant 0 : index
    %113 = tpu.strided_load %arg13[%c0_106, %c0_107, %c1_108, %c0_109] {strides = array<i32: 1, 2, 2, 1>} : memref<2x18x18x32xf32, #tpu.memory_space<vmem>>, vector<2x8x8x32xf32>
    %114 = vector.shape_cast %113 : vector<2x8x8x32xf32> to vector<128x32xf32>
    %115 = arith.truncf %114 : vector<128x32xf32> to vector<128x32xbf16>
    %c1_110 = arith.constant 1 : index
    %c0_111 = arith.constant 0 : index
    %c0_112 = arith.constant 0 : index
    %116 = vector.load %arg5[%c1_110, %c0_111, %c0_112] : memref<9x32x32xbf16, #tpu.memory_space<vmem>>, vector<1x32x32xbf16>
    %117 = vector.shape_cast %116 : vector<1x32x32xbf16> to vector<32x32xbf16>
    %cst_113 = arith.constant dense<0.000000e+00> : vector<128x32xf32>
    %118 = tpu.matmul %115, %117, %cst_113 {dimension_numbers = #tpu.dot_dimension_numbers<[1], [0], [0], [1], [0, 0, 1, 1], [], []>} : vector<128x32xbf16>, vector<32x32xbf16>, vector<128x32xf32> -> vector<128x32xf32>
    %119 = arith.addf %112, %118 : vector<128x32xf32>
    %c0_114 = arith.constant 0 : index
    %c0_115 = arith.constant 0 : index
    %c2_116 = arith.constant 2 : index
    %c0_117 = arith.constant 0 : index
    %120 = tpu.strided_load %arg13[%c0_114, %c0_115, %c2_116, %c0_117] {strides = array<i32: 1, 2, 2, 1>} : memref<2x18x18x32xf32, #tpu.memory_space<vmem>>, vector<2x8x8x32xf32>
    %121 = vector.shape_cast %120 : vector<2x8x8x32xf32> to vector<128x32xf32>
    %122 = arith.truncf %121 : vector<128x32xf32> to vector<128x32xbf16>
    %c2_118 = arith.constant 2 : index
    %c0_119 = arith.constant 0 : index
    %c0_120 = arith.constant 0 : index
    %123 = vector.load %arg5[%c2_118, %c0_119, %c0_120] : memref<9x32x32xbf16, #tpu.memory_space<vmem>>, vector<1x32x32xbf16>
    %124 = vector.shape_cast %123 : vector<1x32x32xbf16> to vector<32x32xbf16>
    %cst_121 = arith.constant dense<0.000000e+00> : vector<128x32xf32>
    %125 = tpu.matmul %122, %124, %cst_121 {dimension_numbers = #tpu.dot_dimension_numbers<[1], [0], [0], [1], [0, 0, 1, 1], [], []>} : vector<128x32xbf16>, vector<32x32xbf16>, vector<128x32xf32> -> vector<128x32xf32>
    %126 = arith.addf %119, %125 : vector<128x32xf32>
    %c0_122 = arith.constant 0 : index
    %c1_123 = arith.constant 1 : index
    %c0_124 = arith.constant 0 : index
    %c0_125 = arith.constant 0 : index
    %127 = tpu.strided_load %arg13[%c0_122, %c1_123, %c0_124, %c0_125] {strides = array<i32: 1, 2, 2, 1>} : memref<2x18x18x32xf32, #tpu.memory_space<vmem>>, vector<2x8x8x32xf32>
    %128 = vector.shape_cast %127 : vector<2x8x8x32xf32> to vector<128x32xf32>
    %129 = arith.truncf %128 : vector<128x32xf32> to vector<128x32xbf16>
    %c3_126 = arith.constant 3 : index
    %c0_127 = arith.constant 0 : index
    %c0_128 = arith.constant 0 : index
    %130 = vector.load %arg5[%c3_126, %c0_127, %c0_128] : memref<9x32x32xbf16, #tpu.memory_space<vmem>>, vector<1x32x32xbf16>
    %131 = vector.shape_cast %130 : vector<1x32x32xbf16> to vector<32x32xbf16>
    %cst_129 = arith.constant dense<0.000000e+00> : vector<128x32xf32>
    %132 = tpu.matmul %129, %131, %cst_129 {dimension_numbers = #tpu.dot_dimension_numbers<[1], [0], [0], [1], [0, 0, 1, 1], [], []>} : vector<128x32xbf16>, vector<32x32xbf16>, vector<128x32xf32> -> vector<128x32xf32>
    %133 = arith.addf %126, %132 : vector<128x32xf32>
    %c0_130 = arith.constant 0 : index
    %c1_131 = arith.constant 1 : index
    %c1_132 = arith.constant 1 : index
    %c0_133 = arith.constant 0 : index
    %134 = tpu.strided_load %arg13[%c0_130, %c1_131, %c1_132, %c0_133] {strides = array<i32: 1, 2, 2, 1>} : memref<2x18x18x32xf32, #tpu.memory_space<vmem>>, vector<2x8x8x32xf32>
    %135 = vector.shape_cast %134 : vector<2x8x8x32xf32> to vector<128x32xf32>
    %136 = arith.truncf %135 : vector<128x32xf32> to vector<128x32xbf16>
    %c4_134 = arith.constant 4 : index
    %c0_135 = arith.constant 0 : index
    %c0_136 = arith.constant 0 : index
    %137 = vector.load %arg5[%c4_134, %c0_135, %c0_136] : memref<9x32x32xbf16, #tpu.memory_space<vmem>>, vector<1x32x32xbf16>
    %138 = vector.shape_cast %137 : vector<1x32x32xbf16> to vector<32x32xbf16>
    %cst_137 = arith.constant dense<0.000000e+00> : vector<128x32xf32>
    %139 = tpu.matmul %136, %138, %cst_137 {dimension_numbers = #tpu.dot_dimension_numbers<[1], [0], [0], [1], [0, 0, 1, 1], [], []>} : vector<128x32xbf16>, vector<32x32xbf16>, vector<128x32xf32> -> vector<128x32xf32>
    %140 = arith.addf %133, %139 : vector<128x32xf32>
    %c0_138 = arith.constant 0 : index
    %c1_139 = arith.constant 1 : index
    %c2_140 = arith.constant 2 : index
    %c0_141 = arith.constant 0 : index
    %141 = tpu.strided_load %arg13[%c0_138, %c1_139, %c2_140, %c0_141] {strides = array<i32: 1, 2, 2, 1>} : memref<2x18x18x32xf32, #tpu.memory_space<vmem>>, vector<2x8x8x32xf32>
    %142 = vector.shape_cast %141 : vector<2x8x8x32xf32> to vector<128x32xf32>
    %143 = arith.truncf %142 : vector<128x32xf32> to vector<128x32xbf16>
    %c5_142 = arith.constant 5 : index
    %c0_143 = arith.constant 0 : index
    %c0_144 = arith.constant 0 : index
    %144 = vector.load %arg5[%c5_142, %c0_143, %c0_144] : memref<9x32x32xbf16, #tpu.memory_space<vmem>>, vector<1x32x32xbf16>
    %145 = vector.shape_cast %144 : vector<1x32x32xbf16> to vector<32x32xbf16>
    %cst_145 = arith.constant dense<0.000000e+00> : vector<128x32xf32>
    %146 = tpu.matmul %143, %145, %cst_145 {dimension_numbers = #tpu.dot_dimension_numbers<[1], [0], [0], [1], [0, 0, 1, 1], [], []>} : vector<128x32xbf16>, vector<32x32xbf16>, vector<128x32xf32> -> vector<128x32xf32>
    %147 = arith.addf %140, %146 : vector<128x32xf32>
    %c0_146 = arith.constant 0 : index
    %c2_147 = arith.constant 2 : index
    %c0_148 = arith.constant 0 : index
    %c0_149 = arith.constant 0 : index
    %148 = tpu.strided_load %arg13[%c0_146, %c2_147, %c0_148, %c0_149] {strides = array<i32: 1, 2, 2, 1>} : memref<2x18x18x32xf32, #tpu.memory_space<vmem>>, vector<2x8x8x32xf32>
    %149 = vector.shape_cast %148 : vector<2x8x8x32xf32> to vector<128x32xf32>
    %150 = arith.truncf %149 : vector<128x32xf32> to vector<128x32xbf16>
    %c6_150 = arith.constant 6 : index
    %c0_151 = arith.constant 0 : index
    %c0_152 = arith.constant 0 : index
    %151 = vector.load %arg5[%c6_150, %c0_151, %c0_152] : memref<9x32x32xbf16, #tpu.memory_space<vmem>>, vector<1x32x32xbf16>
    %152 = vector.shape_cast %151 : vector<1x32x32xbf16> to vector<32x32xbf16>
    %cst_153 = arith.constant dense<0.000000e+00> : vector<128x32xf32>
    %153 = tpu.matmul %150, %152, %cst_153 {dimension_numbers = #tpu.dot_dimension_numbers<[1], [0], [0], [1], [0, 0, 1, 1], [], []>} : vector<128x32xbf16>, vector<32x32xbf16>, vector<128x32xf32> -> vector<128x32xf32>
    %154 = arith.addf %147, %153 : vector<128x32xf32>
    %c0_154 = arith.constant 0 : index
    %c2_155 = arith.constant 2 : index
    %c1_156 = arith.constant 1 : index
    %c0_157 = arith.constant 0 : index
    %155 = tpu.strided_load %arg13[%c0_154, %c2_155, %c1_156, %c0_157] {strides = array<i32: 1, 2, 2, 1>} : memref<2x18x18x32xf32, #tpu.memory_space<vmem>>, vector<2x8x8x32xf32>
    %156 = vector.shape_cast %155 : vector<2x8x8x32xf32> to vector<128x32xf32>
    %157 = arith.truncf %156 : vector<128x32xf32> to vector<128x32xbf16>
    %c7_158 = arith.constant 7 : index
    %c0_159 = arith.constant 0 : index
    %c0_160 = arith.constant 0 : index
    %158 = vector.load %arg5[%c7_158, %c0_159, %c0_160] : memref<9x32x32xbf16, #tpu.memory_space<vmem>>, vector<1x32x32xbf16>
    %159 = vector.shape_cast %158 : vector<1x32x32xbf16> to vector<32x32xbf16>
    %cst_161 = arith.constant dense<0.000000e+00> : vector<128x32xf32>
    %160 = tpu.matmul %157, %159, %cst_161 {dimension_numbers = #tpu.dot_dimension_numbers<[1], [0], [0], [1], [0, 0, 1, 1], [], []>} : vector<128x32xbf16>, vector<32x32xbf16>, vector<128x32xf32> -> vector<128x32xf32>
    %161 = arith.addf %154, %160 : vector<128x32xf32>
    %c0_162 = arith.constant 0 : index
    %c2_163 = arith.constant 2 : index
    %c2_164 = arith.constant 2 : index
    %c0_165 = arith.constant 0 : index
    %162 = tpu.strided_load %arg13[%c0_162, %c2_163, %c2_164, %c0_165] {strides = array<i32: 1, 2, 2, 1>} : memref<2x18x18x32xf32, #tpu.memory_space<vmem>>, vector<2x8x8x32xf32>
    %163 = vector.shape_cast %162 : vector<2x8x8x32xf32> to vector<128x32xf32>
    %164 = arith.truncf %163 : vector<128x32xf32> to vector<128x32xbf16>
    %c8_166 = arith.constant 8 : index
    %c0_167 = arith.constant 0 : index
    %c0_168 = arith.constant 0 : index
    %165 = vector.load %arg5[%c8_166, %c0_167, %c0_168] : memref<9x32x32xbf16, #tpu.memory_space<vmem>>, vector<1x32x32xbf16>
    %166 = vector.shape_cast %165 : vector<1x32x32xbf16> to vector<32x32xbf16>
    %cst_169 = arith.constant dense<0.000000e+00> : vector<128x32xf32>
    %167 = tpu.matmul %164, %166, %cst_169 {dimension_numbers = #tpu.dot_dimension_numbers<[1], [0], [0], [1], [0, 0, 1, 1], [], []>} : vector<128x32xbf16>, vector<32x32xbf16>, vector<128x32xf32> -> vector<128x32xf32>
    %168 = arith.addf %161, %167 : vector<128x32xf32>
    %169 = vector.shape_cast %168 : vector<128x32xf32> to vector<2x8x8x32xf32>
    %c0_170 = arith.constant 0 : index
    %c0_171 = arith.constant 0 : index
    %170 = vector.load %arg6[%c0_170, %c0_171] : memref<1x32xf32, #tpu.memory_space<vmem>>, vector<1x32xf32>
    %c0_172 = arith.constant 0 : index
    %c0_173 = arith.constant 0 : index
    %171 = vector.load %arg7[%c0_172, %c0_173] : memref<1x32xf32, #tpu.memory_space<vmem>>, vector<1x32xf32>
    %cst_174 = arith.constant dense<0.000000e+00> : vector<32xf32>
    %172 = vector.multi_reduction <add>, %169, %cst_174 [0, 1, 2] : vector<2x8x8x32xf32> to vector<32xf32>
    %173 = vector.shape_cast %172 : vector<32xf32> to vector<1x1x1x32xf32>
    %174 = arith.mulf %169, %169 : vector<2x8x8x32xf32>
    %cst_175 = arith.constant dense<0.000000e+00> : vector<32xf32>
    %175 = vector.multi_reduction <add>, %174, %cst_175 [0, 1, 2] : vector<2x8x8x32xf32> to vector<32xf32>
    %176 = vector.shape_cast %175 : vector<32xf32> to vector<1x1x1x32xf32>
    %cst_176 = arith.constant 7.812500e-03 : f32
    %177 = vector.broadcast %cst_176 : f32 to vector<1x1x1x32xf32>
    %178 = arith.mulf %173, %177 : vector<1x1x1x32xf32>
    %cst_177 = arith.constant 7.812500e-03 : f32
    %179 = vector.broadcast %cst_177 : f32 to vector<1x1x1x32xf32>
    %180 = arith.mulf %176, %179 : vector<1x1x1x32xf32>
    %181 = arith.mulf %178, %178 : vector<1x1x1x32xf32>
    %182 = arith.subf %180, %181 : vector<1x1x1x32xf32>
    %183 = vector.broadcast %178 : vector<1x1x1x32xf32> to vector<2x8x8x32xf32>
    %184 = arith.subf %169, %183 : vector<2x8x8x32xf32>
    %185 = vector.shape_cast %170 : vector<1x32xf32> to vector<1x1x1x32xf32>
    %186 = vector.broadcast %185 : vector<1x1x1x32xf32> to vector<2x8x8x32xf32>
    %187 = arith.mulf %186, %184 : vector<2x8x8x32xf32>
    %cst_178 = arith.constant 9.99999974E-6 : f32
    %188 = vector.broadcast %cst_178 : f32 to vector<1x1x1x32xf32>
    %189 = arith.addf %182, %188 : vector<1x1x1x32xf32>
    %190 = math.rsqrt %189 : vector<1x1x1x32xf32>
    %191 = vector.broadcast %190 : vector<1x1x1x32xf32> to vector<2x8x8x32xf32>
    %192 = arith.mulf %187, %191 : vector<2x8x8x32xf32>
    %193 = vector.shape_cast %171 : vector<1x32xf32> to vector<1x1x1x32xf32>
    %194 = vector.broadcast %193 : vector<1x1x1x32xf32> to vector<2x8x8x32xf32>
    %195 = arith.addf %192, %194 : vector<2x8x8x32xf32>
    %c0_179 = arith.constant 0 : index
    %c0_180 = arith.constant 0 : index
    %c0_181 = arith.constant 0 : index
    %c0_182 = arith.constant 0 : index
    %196 = tpu.strided_load %arg0[%c0_179, %c0_180, %c0_181, %c0_182] {strides = array<i32: 1, 2, 2, 1>} : memref<2x16x16x16xf32, #tpu.memory_space<vmem>>, vector<2x8x8x16xf32>
    %197 = vector.shape_cast %196 : vector<2x8x8x16xf32> to vector<128x16xf32>
    %198 = arith.truncf %197 : vector<128x16xf32> to vector<128x16xbf16>
    %c0_183 = arith.constant 0 : index
    %c0_184 = arith.constant 0 : index
    %199 = vector.load %arg8[%c0_183, %c0_184] : memref<16x32xbf16, #tpu.memory_space<vmem>>, vector<16x32xbf16>
    %cst_185 = arith.constant dense<0.000000e+00> : vector<128x32xf32>
    %200 = tpu.matmul %198, %199, %cst_185 {dimension_numbers = #tpu.dot_dimension_numbers<[1], [0], [0], [1], [0, 0, 1, 1], [], []>} : vector<128x16xbf16>, vector<16x32xbf16>, vector<128x32xf32> -> vector<128x32xf32>
    %201 = vector.shape_cast %200 : vector<128x32xf32> to vector<2x8x8x32xf32>
    %c0_186 = arith.constant 0 : index
    %c0_187 = arith.constant 0 : index
    %202 = vector.load %arg9[%c0_186, %c0_187] : memref<1x32xf32, #tpu.memory_space<vmem>>, vector<1x32xf32>
    %c0_188 = arith.constant 0 : index
    %c0_189 = arith.constant 0 : index
    %203 = vector.load %arg10[%c0_188, %c0_189] : memref<1x32xf32, #tpu.memory_space<vmem>>, vector<1x32xf32>
    %cst_190 = arith.constant dense<0.000000e+00> : vector<32xf32>
    %204 = vector.multi_reduction <add>, %201, %cst_190 [0, 1, 2] : vector<2x8x8x32xf32> to vector<32xf32>
    %205 = vector.shape_cast %204 : vector<32xf32> to vector<1x1x1x32xf32>
    %206 = arith.mulf %201, %201 : vector<2x8x8x32xf32>
    %cst_191 = arith.constant dense<0.000000e+00> : vector<32xf32>
    %207 = vector.multi_reduction <add>, %206, %cst_191 [0, 1, 2] : vector<2x8x8x32xf32> to vector<32xf32>
    %208 = vector.shape_cast %207 : vector<32xf32> to vector<1x1x1x32xf32>
    %cst_192 = arith.constant 7.812500e-03 : f32
    %209 = vector.broadcast %cst_192 : f32 to vector<1x1x1x32xf32>
    %210 = arith.mulf %205, %209 : vector<1x1x1x32xf32>
    %cst_193 = arith.constant 7.812500e-03 : f32
    %211 = vector.broadcast %cst_193 : f32 to vector<1x1x1x32xf32>
    %212 = arith.mulf %208, %211 : vector<1x1x1x32xf32>
    %213 = arith.mulf %210, %210 : vector<1x1x1x32xf32>
    %214 = arith.subf %212, %213 : vector<1x1x1x32xf32>
    %215 = vector.broadcast %210 : vector<1x1x1x32xf32> to vector<2x8x8x32xf32>
    %216 = arith.subf %201, %215 : vector<2x8x8x32xf32>
    %217 = vector.shape_cast %202 : vector<1x32xf32> to vector<1x1x1x32xf32>
    %218 = vector.broadcast %217 : vector<1x1x1x32xf32> to vector<2x8x8x32xf32>
    %219 = arith.mulf %218, %216 : vector<2x8x8x32xf32>
    %cst_194 = arith.constant 9.99999974E-6 : f32
    %220 = vector.broadcast %cst_194 : f32 to vector<1x1x1x32xf32>
    %221 = arith.addf %214, %220 : vector<1x1x1x32xf32>
    %222 = math.rsqrt %221 : vector<1x1x1x32xf32>
    %223 = vector.broadcast %222 : vector<1x1x1x32xf32> to vector<2x8x8x32xf32>
    %224 = arith.mulf %219, %223 : vector<2x8x8x32xf32>
    %225 = vector.shape_cast %203 : vector<1x32xf32> to vector<1x1x1x32xf32>
    %226 = vector.broadcast %225 : vector<1x1x1x32xf32> to vector<2x8x8x32xf32>
    %227 = arith.addf %224, %226 : vector<2x8x8x32xf32>
    %228 = arith.addf %195, %227 : vector<2x8x8x32xf32>
    %c0_195 = arith.constant 0 : index
    %c0_196 = arith.constant 0 : index
    %c0_197 = arith.constant 0 : index
    %c0_198 = arith.constant 0 : index
    %229 = vector.load %arg11[%c0_195, %c0_196, %c0_197, %c0_198] : memref<2x8x8x32xf32, #tpu.memory_space<vmem>>, vector<2x8x8x32xf32>
    tpu.vector_store %arg11[%c0_195, %c0_196, %c0_197, %c0_198], %228 {strides = array<i32>} : memref<2x8x8x32xf32, #tpu.memory_space<vmem>>, vector<2x8x8x32xf32>,
    return
  }
}

</mosaic_0001>

<llo_original>
// kernel: tpu_custom_call.1
$region0: #{tpu_custom_call.1}
  #allocation0 [shape = 'u32[]', space=smem, size = 0x4, offset = 0x4, fixed_abs, tag = 'smem constant byte address 0x4 - core index']
  #allocation1 [shape = 'u32[144,128]{1,0:T(1,128)}', space=vmem, size = 0x12000, scoped, tag = 'internal scratch']
  #allocation2 [shape = 'f32[2,18,18,16]{3,2,1,0:T(8,128)}', space=vmem, size = 0x6c000, scoped, tag = 'scratch operand']
  #allocation3 [shape = 'f32[2,18,18,32]{3,2,1,0:T(8,128)}', space=vmem, size = 0x6c000, scoped, tag = 'scratch operand']
  %s0 = inlined_call_operand.hbm [shape: f32[2,16,16,16], index: 0, kind: input, shape index: {}]
  %s1 = inlined_call_operand.vmem [shape: f32[1,16], index: 1, kind: input, shape index: {}]
  %s2 = inlined_call_operand.vmem [shape: f32[1,16], index: 2, kind: input, shape index: {}]
  %s3 = inlined_call_operand.hbm [shape: bf16[9,16,32], index: 3, kind: input, shape index: {}]
  %s4 = inlined_call_operand.vmem [shape: f32[1,32], index: 4, kind: input, shape index: {}]
  %s5 = inlined_call_operand.hbm [shape: bf16[9,32,32], index: 5, kind: input, shape index: {}]
  %s6 = inlined_call_operand.vmem [shape: f32[1,32], index: 6, kind: input, shape index: {}]
  %s7 = inlined_call_operand.vmem [shape: f32[1,32], index: 7, kind: input, shape index: {}]
  %s8 = inlined_call_operand.vmem [shape: bf16[16,32], index: 8, kind: input, shape index: {}]
  %s9 = inlined_call_operand.vmem [shape: f32[1,32], index: 9, kind: input, shape index: {}]
  %s10 = inlined_call_operand.vmem [shape: f32[1,32], index: 10, kind: input, shape index: {}]
  %s11 = inlined_call_operand.hbm [shape: f32[2,8,8,32], index: 11, kind: output, shape index: {}]
  %s12 = sld [smem:[#allocation0]]
  $region66: #{tpu_custom_call.1} parent=0
    _
  %s14 = ssub.s32 1, %s12
  %s15 = scalar_select 0, %s14, %s12
  $region1: #{tpu_custom_call.1} parent=0
    #allocation4 [shape = 'u8[262144]{0}', space=vmem, size = 0x40000, scoped, tag = 'input window, operand 0, single buffered']
    #allocation5 [shape = 's32[1]{0}', space=sflag, size = 0x4, scoped, tag = 'scoped memory for tpu_custom_call.1']
    #allocation6 [shape = 's32[1]{0}', space=sflag, size = 0x4, scoped, tag = 'scoped memory for tpu_custom_call.1']
    #allocation7 [shape = 'u8[36864]{0}', space=vmem, size = 0x9000, scoped, tag = 'input window, operand 3, single buffered']
    #allocation8 [shape = 's32[1]{0}', space=sflag, size = 0x4, scoped, tag = 'scoped memory for tpu_custom_call.1']
    #allocation9 [shape = 'u8[73728]{0}', space=vmem, size = 0x12000, scoped, tag = 'input window, operand 5, single buffered']
    #allocation10 [shape = 'u8[65536]{0}', space=vmem, size = 0x10000, scoped, tag = 'output window, operand 0, single buffered']
    %16 = vsyncpa [#allocation5], 0
    %17 = vsyncpa [#allocation8], 0
    %18 = vsyncpa [#allocation6], 0
    // Predicated region
    $region2: #{tpu_custom_call.1} parent=1 // pred_check
      _
    $region3: #{tpu_custom_call.1} parent=1 // pred_check_branch
      %20 = sbr.rel (0) target = $region5
    $region4: #{tpu_custom_call.1} parent=1 // pred_region
      %s22 = ssub.s32 8192, 8192
      %23 = vsyncadd [#allocation5], %s22
      %s24 = sshll.u32 [#allocation4], 4
      %s25 = int_to_ptr.vmem [resolvable:$true] %s24
      %30 = dma.hbm_to_vmem [thread:$0]  %s0, 8192, %s25, [#allocation5], 128, 128, 8
    $region5: #{tpu_custom_call.1} parent=1 // pred_fallthru
      _
    // Predicated region
    $region6: #{tpu_custom_call.1} parent=1 // pred_check
      _
    $region7: #{tpu_custom_call.1} parent=1 // pred_check_branch
      %32 = sbr.rel (0) target = $region9
    $region8: #{tpu_custom_call.1} parent=1 // pred_region
      _
    $region9: #{tpu_custom_call.1} parent=1 // pred_fallthru
      _
    // Predicated region
    $region10: #{tpu_custom_call.1} parent=1 // pred_check
      _
    $region11: #{tpu_custom_call.1} parent=1 // pred_check_branch
      %34 = sbr.rel (0) target = $region13
    $region12: #{tpu_custom_call.1} parent=1 // pred_region
      _
    $region13: #{tpu_custom_call.1} parent=1 // pred_fallthru
      _
    // Predicated region
    $region14: #{tpu_custom_call.1} parent=1 // pred_check
      _
    $region15: #{tpu_custom_call.1} parent=1 // pred_check_branch
      %36 = sbr.rel (0) target = $region17
    $region16: #{tpu_custom_call.1} parent=1 // pred_region
      %s38 = ssub.s32 1152, 1152
      %39 = vsyncadd [#allocation8], %s38
      %s40 = sshll.u32 [#allocation7], 4
      %s41 = int_to_ptr.vmem [resolvable:$true] %s40
      %46 = dma.hbm_to_vmem [thread:$0]  %s3, 1152, %s41, [#allocation8], 64, 64, 4
    $region17: #{tpu_custom_call.1} parent=1 // pred_fallthru
      _
    // Predicated region
    $region18: #{tpu_custom_call.1} parent=1 // pred_check
      _
    $region19: #{tpu_custom_call.1} parent=1 // pred_check_branch
      %48 = sbr.rel (0) target = $region21
    $region20: #{tpu_custom_call.1} parent=1 // pred_region
      _
    $region21: #{tpu_custom_call.1} parent=1 // pred_fallthru
      _
    // Predicated region
    $region22: #{tpu_custom_call.1} parent=1 // pred_check
      _
    $region23: #{tpu_custom_call.1} parent=1 // pred_check_branch
      %50 = sbr.rel (0) target = $region25
    $region24: #{tpu_custom_call.1} parent=1 // pred_region
      %s52 = ssub.s32 2304, 2304
      %53 = vsyncadd [#allocation8], %s52
      %s54 = sshll.u32 [#allocation9], 4
      %s55 = int_to_ptr.vmem [resolvable:$true] %s54
      %60 = dma.hbm_to_vmem [thread:$0]  %s5, 2304, %s55, [#allocation8], 64, 64, 4
    $region25: #{tpu_custom_call.1} parent=1 // pred_fallthru
      _
    // Predicated region
    $region26: #{tpu_custom_call.1} parent=1 // pred_check
      _
    $region27: #{tpu_custom_call.1} parent=1 // pred_check_branch
      %62 = sbr.rel (0) target = $region29
    $region28: #{tpu_custom_call.1} parent=1 // pred_region
      _
    $region29: #{tpu_custom_call.1} parent=1 // pred_fallthru
      _
    // Predicated region
    $region30: #{tpu_custom_call.1} parent=1 // pred_check
      _
    $region31: #{tpu_custom_call.1} parent=1 // pred_check_branch
      %64 = sbr.rel (0) target = $region33
    $region32: #{tpu_custom_call.1} parent=1 // pred_region
      _
    $region33: #{tpu_custom_call.1} parent=1 // pred_fallthru
      _
    // Predicated region
    $region34: #{tpu_custom_call.1} parent=1 // pred_check
      _
    $region35: #{tpu_custom_call.1} parent=1 // pred_check_branch
      %66 = sbr.rel (0) target = $region37
    $region36: #{tpu_custom_call.1} parent=1 // pred_region
      _
    $region37: #{tpu_custom_call.1} parent=1 // pred_fallthru
      _
    // Predicated region
    $region38: #{tpu_custom_call.1} parent=1 // pred_check
      _
    $region39: #{tpu_custom_call.1} parent=1 // pred_check_branch
      %68 = sbr.rel (0) target = $region41
    $region40: #{tpu_custom_call.1} parent=1 // pred_region
      _
    $region41: #{tpu_custom_call.1} parent=1 // pred_fallthru
      _
    // Predicated region
    $region42: #{tpu_custom_call.1} parent=1 // pred_check
      _
    $region43: #{tpu_custom_call.1} parent=1 // pred_check_branch
      %70 = sbr.rel (0) target = $region45
    $region44: #{tpu_custom_call.1} parent=1 // pred_region
      _
    $region45: #{tpu_custom_call.1} parent=1 // pred_fallthru
      _
    // Predicated region
    $region46: #{tpu_custom_call.1} parent=1 // pred_check
      _
    $region47: #{tpu_custom_call.1} parent=1 // pred_check_branch
      %72 = sbr.rel (0) target = $region49
    $region48: #{tpu_custom_call.1} parent=1 // pred_region
      %73 = dma.done [#allocation5], 8192
    $region49: #{tpu_custom_call.1} parent=1 // pred_fallthru
      _
    // Predicated region
    $region50: #{tpu_custom_call.1} parent=1 // pred_check
      _
    $region51: #{tpu_custom_call.1} parent=1 // pred_check_branch
      %75 = sbr.rel (0) target = $region53
    $region52: #{tpu_custom_call.1} parent=1 // pred_region
      %76 = dma.done [#allocation8], 1152
    $region53: #{tpu_custom_call.1} parent=1 // pred_fallthru
      _
    // Predicated region
    $region54: #{tpu_custom_call.1} parent=1 // pred_check
      _
    $region55: #{tpu_custom_call.1} parent=1 // pred_check_branch
      %78 = sbr.rel (0) target = $region57
    $region56: #{tpu_custom_call.1} parent=1 // pred_region
      %79 = dma.done [#allocation8], 2304
    $region57: #{tpu_custom_call.1} parent=1 // pred_fallthru
      _
    %v81 = vld [vmem:[#allocation4] sm:$0xff]
    %v82 = vld [vmem:[#allocation4 + $0x8] sm:$0xff]
    %v83 = vld [vmem:[#allocation4 + $0x10] sm:$0xff]
    %v84 = vld [vmem:[#allocation4 + $0x18] sm:$0xff]
    %v85 = vld [vmem:[#allocation4 + $0x20] sm:$0xff]
    %v86 = vld [vmem:[#allocation4 + $0x28] sm:$0xff]
    %v87 = vld [vmem:[#allocation4 + $0x30] sm:$0xff]
    %v88 = vld [vmem:[#allocation4 + $0x38] sm:$0xff]
    %v89 = vld [vmem:[#allocation4 + $0x40] sm:$0xff]
    %v90 = vld [vmem:[#allocation4 + $0x48] sm:$0xff]
    %v91 = vld [vmem:[#allocation4 + $0x50] sm:$0xff]
    %v92 = vld [vmem:[#allocation4 + $0x58] sm:$0xff]
    %v93 = vld [vmem:[#allocation4 + $0x60] sm:$0xff]
    %v94 = vld [vmem:[#allocation4 + $0x68] sm:$0xff]
    %v95 = vld [vmem:[#allocation4 + $0x70] sm:$0xff]
    %v96 = vld [vmem:[#allocation4 + $0x78] sm:$0xff]
    %v97 = vld [vmem:[#allocation4 + $0x80] sm:$0xff]
    %v98 = vld [vmem:[#allocation4 + $0x88] sm:$0xff]
    %v99 = vld [vmem:[#allocation4 + $0x90] sm:$0xff]
    %v100 = vld [vmem:[#allocation4 + $0x98] sm:$0xff]
    %v101 = vld [vmem:[#allocation4 + $0xa0] sm:$0xff]
    %v102 = vld [vmem:[#allocation4 + $0xa8] sm:$0xff]
    %v103 = vld [vmem:[#allocation4 + $0xb0] sm:$0xff]
    %v104 = vld [vmem:[#allocation4 + $0xb8] sm:$0xff]
    %v105 = vld [vmem:[#allocation4 + $0xc0] sm:$0xff]
    %v106 = vld [vmem:[#allocation4 + $0xc8] sm:$0xff]
    %v107 = vld [vmem:[#allocation4 + $0xd0] sm:$0xff]
    %v108 = vld [vmem:[#allocation4 + $0xd8] sm:$0xff]
    %v109 = vld [vmem:[#allocation4 + $0xe0] sm:$0xff]
    %v110 = vld [vmem:[#allocation4 + $0xe8] sm:$0xff]
    %v111 = vld [vmem:[#allocation4 + $0xf0] sm:$0xff]
    %v112 = vld [vmem:[#allocation4 + $0xf8] sm:$0xff]
    %v113 = vld [vmem:[#allocation4 + $0x100] sm:$0xff]
    %v114 = vld [vmem:[#allocation4 + $0x108] sm:$0xff]
    %v115 = vld [vmem:[#allocation4 + $0x110] sm:$0xff]
    %v116 = vld [vmem:[#allocation4 + $0x118] sm:$0xff]
    %v117 = vld [vmem:[#allocation4 + $0x120] sm:$0xff]
    %v118 = vld [vmem:[#allocation4 + $0x128] sm:$0xff]
    %v119 = vld [vmem:[#allocation4 + $0x130] sm:$0xff]
    %v120 = vld [vmem:[#allocation4 + $0x138] sm:$0xff]
    %v121 = vld [vmem:[#allocation4 + $0x140] sm:$0xff]
    %v122 = vld [vmem:[#allocation4 + $0x148] sm:$0xff]
    %v123 = vld [vmem:[#allocation4 + $0x150] sm:$0xff]
    %v124 = vld [vmem:[#allocation4 + $0x158] sm:$0xff]
    %v125 = vld [vmem:[#allocation4 + $0x160] sm:$0xff]
    %v126 = vld [vmem:[#allocation4 + $0x168] sm:$0xff]
    %v127 = vld [vmem:[#allocation4 + $0x170] sm:$0xff]
    %v128 = vld [vmem:[#allocation4 + $0x178] sm:$0xff]
    %v129 = vld [vmem:[#allocation4 + $0x180] sm:$0xff]
    %v130 = vld [vmem:[#allocation4 + $0x188] sm:$0xff]
    %v131 = vld [vmem:[#allocation4 + $0x190] sm:$0xff]
    %v132 = vld [vmem:[#allocation4 + $0x198] sm:$0xff]
    %v133 = vld [vmem:[#allocation4 + $0x1a0] sm:$0xff]
    %v134 = vld [vmem:[#allocation4 + $0x1a8] sm:$0xff]
    %v135 = vld [vmem:[#allocation4 + $0x1b0] sm:$0xff]
    %v136 = vld [vmem:[#allocation4 + $0x1b8] sm:$0xff]
    %v137 = vld [vmem:[#allocation4 + $0x1c0] sm:$0xff]
    %v138 = vld [vmem:[#allocation4 + $0x1c8] sm:$0xff]
    %v139 = vld [vmem:[#allocation4 + $0x1d0] sm:$0xff]
    %v140 = vld [vmem:[#allocation4 + $0x1d8] sm:$0xff]
    %v141 = vld [vmem:[#allocation4 + $0x1e0] sm:$0xff]
    %v142 = vld [vmem:[#allocation4 + $0x1e8] sm:$0xff]
    %v143 = vld [vmem:[#allocation4 + $0x1f0] sm:$0xff]
    %v144 = vld [vmem:[#allocation4 + $0x1f8] sm:$0xff]
    %v145 = vld [vmem:[%s1] sm:$0x1]
    %v146 = vld [vmem:[%s2] sm:$0x1]
    %vm147 = vcmask 130048
    %v148 = vsel %vm147, %v81, 0.0
    %v149 = vsel %vm147, %v82, 0.0
    %v150 = vadd.f32 %v148, %v149
    %v151 = vsel %vm147, %v83, 0.0
    %v152 = vadd.f32 %v150, %v151
    %v153 = vsel %vm147, %v84, 0.0
    %v154 = vadd.f32 %v152, %v153
    %v155 = vsel %vm147, %v85, 0.0
    %v156 = vadd.f32 %v154, %v155
    %v157 = vsel %vm147, %v86, 0.0
    %v158 = vadd.f32 %v156, %v157
    %v159 = vsel %vm147, %v87, 0.0
    %v160 = vadd.f32 %v158, %v159
    %v161 = vsel %vm147, %v88, 0.0
    %v162 = vadd.f32 %v160, %v161
    %v163 = vsel %vm147, %v89, 0.0
    %v164 = vadd.f32 %v162, %v163
    %v165 = vsel %vm147, %v90, 0.0
    %v166 = vadd.f32 %v164, %v165
    %v167 = vsel %vm147, %v91, 0.0
    %v168 = vadd.f32 %v166, %v167
    %v169 = vsel %vm147, %v92, 0.0
    %v170 = vadd.f32 %v168, %v169
    %v171 = vsel %vm147, %v93, 0.0
    %v172 = vadd.f32 %v170, %v171
    %v173 = vsel %vm147, %v94, 0.0
    %v174 = vadd.f32 %v172, %v173
    %v175 = vsel %vm147, %v95, 0.0
    %v176 = vadd.f32 %v174, %v175
    %v177 = vsel %vm147, %v96, 0.0
    %v178 = vadd.f32 %v176, %v177
    %v179 = vsel %vm147, %v97, 0.0
    %v180 = vadd.f32 %v178, %v179
    %v181 = vsel %vm147, %v98, 0.0
    %v182 = vadd.f32 %v180, %v181
    %v183 = vsel %vm147, %v99, 0.0
    %v184 = vadd.f32 %v182, %v183
    %v185 = vsel %vm147, %v100, 0.0
    %v186 = vadd.f32 %v184, %v185
    %v187 = vsel %vm147, %v101, 0.0
    %v188 = vadd.f32 %v186, %v187
    %v189 = vsel %vm147, %v102, 0.0
    %v190 = vadd.f32 %v188, %v189
    %v191 = vsel %vm147, %v103, 0.0
    %v192 = vadd.f32 %v190, %v191
    %v193 = vsel %vm147, %v104, 0.0
    %v194 = vadd.f32 %v192, %v193
    %v195 = vsel %vm147, %v105, 0.0
    %v196 = vadd.f32 %v194, %v195
    %v197 = vsel %vm147, %v106, 0.0
    %v198 = vadd.f32 %v196, %v197
    %v199 = vsel %vm147, %v107, 0.0
    %v200 = vadd.f32 %v198, %v199
    %v201 = vsel %vm147, %v108, 0.0
    %v202 = vadd.f32 %v200, %v201
    %v203 = vsel %vm147, %v109, 0.0
    %v204 = vadd.f32 %v202, %v203
    %v205 = vsel %vm147, %v110, 0.0
    %v206 = vadd.f32 %v204, %v205
    %v207 = vsel %vm147, %v111, 0.0
    %v208 = vadd.f32 %v206, %v207
    %v209 = vsel %vm147, %v112, 0.0
    %v210 = vadd.f32 %v208, %v209
    %v211 = vsel %vm147, %v113, 0.0
    %v212 = vadd.f32 %v210, %v211
    %v213 = vsel %vm147, %v114, 0.0
    %v214 = vadd.f32 %v212, %v213
    %v215 = vsel %vm147, %v115, 0.0
    %v216 = vadd.f32 %v214, %v215
    %v217 = vsel %vm147, %v116, 0.0
    %v218 = vadd.f32 %v216, %v217
    %v219 = vsel %vm147, %v117, 0.0
    %v220 = vadd.f32 %v218, %v219
    %v221 = vsel %vm147, %v118, 0.0
    %v222 = vadd.f32 %v220, %v221
    %v223 = vsel %vm147, %v119, 0.0
    %v224 = vadd.f32 %v222, %v223
    %v225 = vsel %vm147, %v120, 0.0
    %v226 = vadd.f32 %v224, %v225
    %v227 = vsel %vm147, %v121, 0.0
    %v228 = vadd.f32 %v226, %v227
    %v229 = vsel %vm147, %v122, 0.0
    %v230 = vadd.f32 %v228, %v229
    %v231 = vsel %vm147, %v123, 0.0
    %v232 = vadd.f32 %v230, %v231
    %v233 = vsel %vm147, %v124, 0.0
    %v234 = vadd.f32 %v232, %v233
    %v235 = vsel %vm147, %v125, 0.0
    %v236 = vadd.f32 %v234, %v235
    %v237 = vsel %vm147, %v126, 0.0
    %v238 = vadd.f32 %v236, %v237
    %v239 = vsel %vm147, %v127, 0.0
    %v240 = vadd.f32 %v238, %v239
    %v241 = vsel %vm147, %v128, 0.0
    %v242 = vadd.f32 %v240, %v241
    %v243 = vsel %vm147, %v129, 0.0
    %v244 = vadd.f32 %v242, %v243
    %v245 = vsel %vm147, %v130, 0.0
    %v246 = vadd.f32 %v244, %v245
    %v247 = vsel %vm147, %v131, 0.0
    %v248 = vadd.f32 %v246, %v247
    %v249 = vsel %vm147, %v132, 0.0
    %v250 = vadd.f32 %v248, %v249
    %v251 = vsel %vm147, %v133, 0.0
    %v252 = vadd.f32 %v250, %v251
    %v253 = vsel %vm147, %v134, 0.0
    %v254 = vadd.f32 %v252, %v253
    %v255 = vsel %vm147, %v135, 0.0
    %v256 = vadd.f32 %v254, %v255
    %v257 = vsel %vm147, %v136, 0.0
    %v258 = vadd.f32 %v256, %v257
    %v259 = vsel %vm147, %v137, 0.0
    %v260 = vadd.f32 %v258, %v259
    %v261 = vsel %vm147, %v138, 0.0
    %v262 = vadd.f32 %v260, %v261
    %v263 = vsel %vm147, %v139, 0.0
    %v264 = vadd.f32 %v262, %v263
    %v265 = vsel %vm147, %v140, 0.0
    %v266 = vadd.f32 %v264, %v265
    %v267 = vsel %vm147, %v141, 0.0
    %v268 = vadd.f32 %v266, %v267
    %v269 = vsel %vm147, %v142, 0.0
    %v270 = vadd.f32 %v268, %v269
    %v271 = vsel %vm147, %v143, 0.0
    %v272 = vadd.f32 %v270, %v271
    %v273 = vsel %vm147, %v144, 0.0
    %v274 = vadd.f32 %v272, %v273
    %v275 = vrot.slane %v274, 4
    %v276 = vadd.f32 %v274, %v275
    %v277 = vrot.slane %v276, 2
    %v278 = vadd.f32 %v276, %v277
    %v279 = vrot.slane %v278, 1
    %v280 = vadd.f32 %v278, %v279
    %v281 = vmul.f32 %v81, %v81
    %v282 = vmul.f32 %v82, %v82
    %v283 = vmul.f32 %v83, %v83
    %v284 = vmul.f32 %v84, %v84
    %v285 = vmul.f32 %v85, %v85
    %v286 = vmul.f32 %v86, %v86
    %v287 = vmul.f32 %v87, %v87
    %v288 = vmul.f32 %v88, %v88
    %v289 = vmul.f32 %v89, %v89
    %v290 = vmul.f32 %v90, %v90
    %v291 = vmul.f32 %v91, %v91
    %v292 = vmul.f32 %v92, %v92
    %v293 = vmul.f32 %v93, %v93
    %v294 = vmul.f32 %v94, %v94
    %v295 = vmul.f32 %v95, %v95
    %v296 = vmul.f32 %v96, %v96
    %v297 = vmul.f32 %v97, %v97
    %v298 = vmul.f32 %v98, %v98
    %v299 = vmul.f32 %v99, %v99
    %v300 = vmul.f32 %v100, %v100
    %v301 = vmul.f32 %v101, %v101
    %v302 = vmul.f32 %v102, %v102
    %v303 = vmul.f32 %v103, %v103
    %v304 = vmul.f32 %v104, %v104
    %v305 = vmul.f32 %v105, %v105
    %v306 = vmul.f32 %v106, %v106
    %v307 = vmul.f32 %v107, %v107
    %v308 = vmul.f32 %v108, %v108
    %v309 = vmul.f32 %v109, %v109
    %v310 = vmul.f32 %v110, %v110
    %v311 = vmul.f32 %v111, %v111
    %v312 = vmul.f32 %v112, %v112
    %v313 = vmul.f32 %v113, %v113
    %v314 = vmul.f32 %v114, %v114
    %v315 = vmul.f32 %v115, %v115
    %v316 = vmul.f32 %v116, %v116
    %v317 = vmul.f32 %v117, %v117
    %v318 = vmul.f32 %v118, %v118
    %v319 = vmul.f32 %v119, %v119
    %v320 = vmul.f32 %v120, %v120
    %v321 = vmul.f32 %v121, %v121
    %v322 = vmul.f32 %v122, %v122
    %v323 = vmul.f32 %v123, %v123
    %v324 = vmul.f32 %v124, %v124
    %v325 = vmul.f32 %v125, %v125
    %v326 = vmul.f32 %v126, %v126
    %v327 = vmul.f32 %v127, %v127
    %v328 = vmul.f32 %v128, %v128
    %v329 = vmul.f32 %v129, %v129
    %v330 = vmul.f32 %v130, %v130
    %v331 = vmul.f32 %v131, %v131
    %v332 = vmul.f32 %v132, %v132
    %v333 = vmul.f32 %v133, %v133
    %v334 = vmul.f32 %v134, %v134
    %v335 = vmul.f32 %v135, %v135
    %v336 = vmul.f32 %v136, %v136
    %v337 = vmul.f32 %v137, %v137
    %v338 = vmul.f32 %v138, %v138
    %v339 = vmul.f32 %v139, %v139
    %v340 = vmul.f32 %v140, %v140
    %v341 = vmul.f32 %v141, %v141
    %v342 = vmul.f32 %v142, %v142
    %v343 = vmul.f32 %v143, %v143
    %v344 = vmul.f32 %v144, %v144
    %v345 = vsel %vm147, %v281, 0.0
    %v346 = vsel %vm147, %v282, 0.0
    %v347 = vadd.f32 %v345, %v346
    %v348 = vsel %vm147, %v283, 0.0
    %v349 = vadd.f32 %v347, %v348
    %v350 = vsel %vm147, %v284, 0.0
    %v351 = vadd.f32 %v349, %v350
    %v352 = vsel %vm147, %v285, 0.0
    %v353 = vadd.f32 %v351, %v352
    %v354 = vsel %vm147, %v286, 0.0
    %v355 = vadd.f32 %v353, %v354
    %v356 = vsel %vm147, %v287, 0.0
    %v357 = vadd.f32 %v355, %v356
    %v358 = vsel %vm147, %v288, 0.0
    %v359 = vadd.f32 %v357, %v358
    %v360 = vsel %vm147, %v289, 0.0
    %v361 = vadd.f32 %v359, %v360
    %v362 = vsel %vm147, %v290, 0.0
    %v363 = vadd.f32 %v361, %v362
    %v364 = vsel %vm147, %v291, 0.0
    %v365 = vadd.f32 %v363, %v364
    %v366 = vsel %vm147, %v292, 0.0
    %v367 = vadd.f32 %v365, %v366
    %v368 = vsel %vm147, %v293, 0.0
    %v369 = vadd.f32 %v367, %v368
    %v370 = vsel %vm147, %v294, 0.0
    %v371 = vadd.f32 %v369, %v370
    %v372 = vsel %vm147, %v295, 0.0
    %v373 = vadd.f32 %v371, %v372
    %v374 = vsel %vm147, %v296, 0.0
    %v375 = vadd.f32 %v373, %v374
    %v376 = vsel %vm147, %v297, 0.0
    %v377 = vadd.f32 %v375, %v376
    %v378 = vsel %vm147, %v298, 0.0
    %v379 = vadd.f32 %v377, %v378
    %v380 = vsel %vm147, %v299, 0.0
    %v381 = vadd.f32 %v379, %v380
    %v382 = vsel %vm147, %v300, 0.0
    %v383 = vadd.f32 %v381, %v382
    %v384 = vsel %vm147, %v301, 0.0
    %v385 = vadd.f32 %v383, %v384
    %v386 = vsel %vm147, %v302, 0.0
    %v387 = vadd.f32 %v385, %v386
    %v388 = vsel %vm147, %v303, 0.0
    %v389 = vadd.f32 %v387, %v388
    %v390 = vsel %vm147, %v304, 0.0
    %v391 = vadd.f32 %v389, %v390
    %v392 = vsel %vm147, %v305, 0.0
    %v393 = vadd.f32 %v391, %v392
    %v394 = vsel %vm147, %v306, 0.0
    %v395 = vadd.f32 %v393, %v394
    %v396 = vsel %vm147, %v307, 0.0
    %v397 = vadd.f32 %v395, %v396
    %v398 = vsel %vm147, %v308, 0.0
    %v399 = vadd.f32 %v397, %v398
    %v400 = vsel %vm147, %v309, 0.0
    %v401 = vadd.f32 %v399, %v400
    %v402 = vsel %vm147, %v310, 0.0
    %v403 = vadd.f32 %v401, %v402
    %v404 = vsel %vm147, %v311, 0.0
    %v405 = vadd.f32 %v403, %v404
    %v406 = vsel %vm147, %v312, 0.0
    %v407 = vadd.f32 %v405, %v406
    %v408 = vsel %vm147, %v313, 0.0
    %v409 = vadd.f32 %v407, %v408
    %v410 = vsel %vm147, %v314, 0.0
    %v411 = vadd.f32 %v409, %v410
    %v412 = vsel %vm147, %v315, 0.0
    %v413 = vadd.f32 %v411, %v412
    %v414 = vsel %vm147, %v316, 0.0
    %v415 = vadd.f32 %v413, %v414
    %v416 = vsel %vm147, %v317, 0.0
    %v417 = vadd.f32 %v415, %v416
    %v418 = vsel %vm147, %v318, 0.0
    %v419 = vadd.f32 %v417, %v418
    %v420 = vsel %vm147, %v319, 0.0
    %v421 = vadd.f32 %v419, %v420
    %v422 = vsel %vm147, %v320, 0.0
    %v423 = vadd.f32 %v421, %v422
    %v424 = vsel %vm147, %v321, 0.0
    %v425 = vadd.f32 %v423, %v424
    %v426 = vsel %vm147, %v322, 0.0
    %v427 = vadd.f32 %v425, %v426
    %v428 = vsel %vm147, %v323, 0.0
    %v429 = vadd.f32 %v427, %v428
    %v430 = vsel %vm147, %v324, 0.0
    %v431 = vadd.f32 %v429, %v430
    %v432 = vsel %vm147, %v325, 0.0
    %v433 = vadd.f32 %v431, %v432
    %v434 = vsel %vm147, %v326, 0.0
    %v435 = vadd.f32 %v433, %v434
    %v436 = vsel %vm147, %v327, 0.0
    %v437 = vadd.f32 %v435, %v436
    %v438 = vsel %vm147, %v328, 0.0
    %v439 = vadd.f32 %v437, %v438
    %v440 = vsel %vm147, %v329, 0.0
    %v441 = vadd.f32 %v439, %v440
    %v442 = vsel %vm147, %v330, 0.0
    %v443 = vadd.f32 %v441, %v442
    %v444 = vsel %vm147, %v331, 0.0
    %v445 = vadd.f32 %v443, %v444
    %v446 = vsel %vm147, %v332, 0.0
    %v447 = vadd.f32 %v445, %v446
    %v448 = vsel %vm147, %v333, 0.0
    %v449 = vadd.f32 %v447, %v448
    %v450 = vsel %vm147, %v334, 0.0
    %v451 = vadd.f32 %v449, %v450
    %v452 = vsel %vm147, %v335, 0.0
    %v453 = vadd.f32 %v451, %v452
    %v454 = vsel %vm147, %v336, 0.0
    %v455 = vadd.f32 %v453, %v454
    %v456 = vsel %vm147, %v337, 0.0
    %v457 = vadd.f32 %v455, %v456
    %v458 = vsel %vm147, %v338, 0.0
    %v459 = vadd.f32 %v457, %v458
    %v460 = vsel %vm147, %v339, 0.0
    %v461 = vadd.f32 %v459, %v460
    %v462 = vsel %vm147, %v340, 0.0
    %v463 = vadd.f32 %v461, %v462
    %v464 = vsel %vm147, %v341, 0.0
    %v465 = vadd.f32 %v463, %v464
    %v466 = vsel %vm147, %v342, 0.0
    %v467 = vadd.f32 %v465, %v466
    %v468 = vsel %vm147, %v343, 0.0
    %v469 = vadd.f32 %v467, %v468
    %v470 = vsel %vm147, %v344, 0.0
    %v471 = vadd.f32 %v469, %v470
    %v472 = vrot.slane %v471, 4
    %v473 = vadd.f32 %v471, %v472
    %v474 = vrot.slane %v473, 2
    %v475 = vadd.f32 %v473, %v474
    %v476 = vrot.slane %v475, 1
    %v477 = vadd.f32 %v475, %v476
    %v478 = vmul.f32 %v280, 0.001953125
    %v479 = vmul.f32 %v477, 0.001953125
    %v480 = vmul.f32 %v478, %v478
    %v481 = vsub.f32 %v479, %v480
    %v482 = vsub.f32 %v81, %v478
    %v483 = vsub.f32 %v82, %v478
    %v484 = vsub.f32 %v83, %v478
    %v485 = vsub.f32 %v84, %v478
    %v486 = vsub.f32 %v85, %v478
    %v487 = vsub.f32 %v86, %v478
    %v488 = vsub.f32 %v87, %v478
    %v489 = vsub.f32 %v88, %v478
    %v490 = vsub.f32 %v89, %v478
    %v491 = vsub.f32 %v90, %v478
    %v492 = vsub.f32 %v91, %v478
    %v493 = vsub.f32 %v92, %v478
    %v494 = vsub.f32 %v93, %v478
    %v495 = vsub.f32 %v94, %v478
    %v496 = vsub.f32 %v95, %v478
    %v497 = vsub.f32 %v96, %v478
    %v498 = vsub.f32 %v97, %v478
    %v499 = vsub.f32 %v98, %v478
    %v500 = vsub.f32 %v99, %v478
    %v501 = vsub.f32 %v100, %v478
    %v502 = vsub.f32 %v101, %v478
    %v503 = vsub.f32 %v102, %v478
    %v504 = vsub.f32 %v103, %v478
    %v505 = vsub.f32 %v104, %v478
    %v506 = vsub.f32 %v105, %v478
    %v507 = vsub.f32 %v106, %v478
    %v508 = vsub.f32 %v107, %v478
    %v509 = vsub.f32 %v108, %v478
    %v510 = vsub.f32 %v109, %v478
    %v511 = vsub.f32 %v110, %v478
    %v512 = vsub.f32 %v111, %v478
    %v513 = vsub.f32 %v112, %v478
    %v514 = vsub.f32 %v113, %v478
    %v515 = vsub.f32 %v114, %v478
    %v516 = vsub.f32 %v115, %v478
    %v517 = vsub.f32 %v116, %v478
    %v518 = vsub.f32 %v117, %v478
    %v519 = vsub.f32 %v118, %v478
    %v520 = vsub.f32 %v119, %v478
    %v521 = vsub.f32 %v120, %v478
    %v522 = vsub.f32 %v121, %v478
    %v523 = vsub.f32 %v122, %v478
    %v524 = vsub.f32 %v123, %v478
    %v525 = vsub.f32 %v124, %v478
    %v526 = vsub.f32 %v125, %v478
    %v527 = vsub.f32 %v126, %v478
    %v528 = vsub.f32 %v127, %v478
    %v529 = vsub.f32 %v128, %v478
    %v530 = vsub.f32 %v129, %v478
    %v531 = vsub.f32 %v130, %v478
    %v532 = vsub.f32 %v131, %v478
    %v533 = vsub.f32 %v132, %v478
    %v534 = vsub.f32 %v133, %v478
    %v535 = vsub.f32 %v134, %v478
    %v536 = vsub.f32 %v135, %v478
    %v537 = vsub.f32 %v136, %v478
    %v538 = vsub.f32 %v137, %v478
    %v539 = vsub.f32 %v138, %v478
    %v540 = vsub.f32 %v139, %v478
    %v541 = vsub.f32 %v140, %v478
    %v542 = vsub.f32 %v141, %v478
    %v543 = vsub.f32 %v142, %v478
    %v544 = vsub.f32 %v143, %v478
    %v545 = vsub.f32 %v144, %v478
    %v547 = vlaneseq
    %v548 = vshrl.u32 %v547, 7
    %v549 = vsub.s32 0, %v548
    %v550 = vrot.slane %v145, %v549
    %v552 = vmul.f32 %v550, %v482
    %v553 = vmul.f32 %v550, %v483
    %v554 = vmul.f32 %v550, %v484
    %v555 = vmul.f32 %v550, %v485
    %v556 = vmul.f32 %v550, %v486
    %v557 = vmul.f32 %v550, %v487
    %v558 = vmul.f32 %v550, %v488
    %v559 = vmul.f32 %v550, %v489
    %v560 = vmul.f32 %v550, %v490
    %v561 = vmul.f32 %v550, %v491
    %v562 = vmul.f32 %v550, %v492
    %v563 = vmul.f32 %v550, %v493
    %v564 = vmul.f32 %v550, %v494
    %v565 = vmul.f32 %v550, %v495
    %v566 = vmul.f32 %v550, %v496
    %v567 = vmul.f32 %v550, %v497
    %v568 = vmul.f32 %v550, %v498
    %v569 = vmul.f32 %v550, %v499
    %v570 = vmul.f32 %v550, %v500
    %v571 = vmul.f32 %v550, %v501
    %v572 = vmul.f32 %v550, %v502
    %v573 = vmul.f32 %v550, %v503
    %v574 = vmul.f32 %v550, %v504
    %v575 = vmul.f32 %v550, %v505
    %v576 = vmul.f32 %v550, %v506
    %v577 = vmul.f32 %v550, %v507
    %v578 = vmul.f32 %v550, %v508
    %v579 = vmul.f32 %v550, %v509
    %v580 = vmul.f32 %v550, %v510
    %v581 = vmul.f32 %v550, %v511
    %v582 = vmul.f32 %v550, %v512
    %v583 = vmul.f32 %v550, %v513
    %v584 = vmul.f32 %v550, %v514
    %v585 = vmul.f32 %v550, %v515
    %v586 = vmul.f32 %v550, %v516
    %v587 = vmul.f32 %v550, %v517
    %v588 = vmul.f32 %v550, %v518
    %v589 = vmul.f32 %v550, %v519
    %v590 = vmul.f32 %v550, %v520
    %v591 = vmul.f32 %v550, %v521
    %v592 = vmul.f32 %v550, %v522
    %v593 = vmul.f32 %v550, %v523
    %v594 = vmul.f32 %v550, %v524
    %v595 = vmul.f32 %v550, %v525
    %v596 = vmul.f32 %v550, %v526
    %v597 = vmul.f32 %v550, %v527
    %v598 = vmul.f32 %v550, %v528
    %v599 = vmul.f32 %v550, %v529
    %v600 = vmul.f32 %v550, %v530
    %v601 = vmul.f32 %v550, %v531
    %v602 = vmul.f32 %v550, %v532
    %v603 = vmul.f32 %v550, %v533
    %v604 = vmul.f32 %v550, %v534
    %v605 = vmul.f32 %v550, %v535
    %v606 = vmul.f32 %v550, %v536
    %v607 = vmul.f32 %v550, %v537
    %v608 = vmul.f32 %v550, %v538
    %v609 = vmul.f32 %v550, %v539
    %v610 = vmul.f32 %v550, %v540
    %v611 = vmul.f32 %v550, %v541
    %v612 = vmul.f32 %v550, %v542
    %v613 = vmul.f32 %v550, %v543
    %v614 = vmul.f32 %v550, %v544
    %v615 = vmul.f32 %v550, %v545
    %v616 = vadd.f32 %v481, 1e-05
    %v617 = vrsqrt.pop %v616
    %v618 = vmul.f32 %v552, %v617
    %v619 = vmul.f32 %v553, %v617
    %v620 = vmul.f32 %v554, %v617
    %v621 = vmul.f32 %v555, %v617
    %v622 = vmul.f32 %v556, %v617
    %v623 = vmul.f32 %v557, %v617
    %v624 = vmul.f32 %v558, %v617
    %v625 = vmul.f32 %v559, %v617
    %v626 = vmul.f32 %v560, %v617
    %v627 = vmul.f32 %v561, %v617
    %v628 = vmul.f32 %v562, %v617
    %v629 = vmul.f32 %v563, %v617
    %v630 = vmul.f32 %v564, %v617
    %v631 = vmul.f32 %v565, %v617
    %v632 = vmul.f32 %v566, %v617
    %v633 = vmul.f32 %v567, %v617
    %v634 = vmul.f32 %v568, %v617
    %v635 = vmul.f32 %v569, %v617
    %v636 = vmul.f32 %v570, %v617
    %v637 = vmul.f32 %v571, %v617
    %v638 = vmul.f32 %v572, %v617
    %v639 = vmul.f32 %v573, %v617
    %v640 = vmul.f32 %v574, %v617
    %v641 = vmul.f32 %v575, %v617
    %v642 = vmul.f32 %v576, %v617
    %v643 = vmul.f32 %v577, %v617
    %v644 = vmul.f32 %v578, %v617
    %v645 = vmul.f32 %v579, %v617
    %v646 = vmul.f32 %v580, %v617
    %v647 = vmul.f32 %v581, %v617
    %v648 = vmul.f32 %v582, %v617
    %v649 = vmul.f32 %v583, %v617
    %v650 = vmul.f32 %v584, %v617
    %v651 = vmul.f32 %v585, %v617
    %v652 = vmul.f32 %v586, %v617
    %v653 = vmul.f32 %v587, %v617
    %v654 = vmul.f32 %v588, %v617
    %v655 = vmul.f32 %v589, %v617
    %v656 = vmul.f32 %v590, %v617
    %v657 = vmul.f32 %v591, %v617
    %v658 = vmul.f32 %v592, %v617
    %v659 = vmul.f32 %v593, %v617
    %v660 = vmul.f32 %v594, %v617
    %v661 = vmul.f32 %v595, %v617
    %v662 = vmul.f32 %v596, %v617
    %v663 = vmul.f32 %v597, %v617
    %v664 = vmul.f32 %v598, %v617
    %v665 = vmul.f32 %v599, %v617
    %v666 = vmul.f32 %v600, %v617
    %v667 = vmul.f32 %v601, %v617
    %v668 = vmul.f32 %v602, %v617
    %v669 = vmul.f32 %v603, %v617
    %v670 = vmul.f32 %v604, %v617
    %v671 = vmul.f32 %v605, %v617
    %v672 = vmul.f32 %v606, %v617
    %v673 = vmul.f32 %v607, %v617
    %v674 = vmul.f32 %v608, %v617
    %v675 = vmul.f32 %v609, %v617
    %v676 = vmul.f32 %v610, %v617
    %v677 = vmul.f32 %v611, %v617
    %v678 = vmul.f32 %v612, %v617
    %v679 = vmul.f32 %v613, %v617
    %v680 = vmul.f32 %v614, %v617
    %v681 = vmul.f32 %v615, %v617
    %v683 = vlaneseq
    %v684 = vshrl.u32 %v683, 7
    %v685 = vsub.s32 0, %v684
    %v686 = vrot.slane %v146, %v685
    %v688 = vadd.f32 %v618, %v686
    %v689 = vadd.f32 %v619, %v686
    %v690 = vadd.f32 %v620, %v686
    %v691 = vadd.f32 %v621, %v686
    %v692 = vadd.f32 %v622, %v686
    %v693 = vadd.f32 %v623, %v686
    %v694 = vadd.f32 %v624, %v686
    %v695 = vadd.f32 %v625, %v686
    %v696 = vadd.f32 %v626, %v686
    %v697 = vadd.f32 %v627, %v686
    %v698 = vadd.f32 %v628, %v686
    %v699 = vadd.f32 %v629, %v686
    %v700 = vadd.f32 %v630, %v686
    %v701 = vadd.f32 %v631, %v686
    %v702 = vadd.f32 %v632, %v686
    %v703 = vadd.f32 %v633, %v686
    %v704 = vadd.f32 %v634, %v686
    %v705 = vadd.f32 %v635, %v686
    %v706 = vadd.f32 %v636, %v686
    %v707 = vadd.f32 %v637, %v686
    %v708 = vadd.f32 %v638, %v686
    %v709 = vadd.f32 %v639, %v686
    %v710 = vadd.f32 %v640, %v686
    %v711 = vadd.f32 %v641, %v686
    %v712 = vadd.f32 %v642, %v686
    %v713 = vadd.f32 %v643, %v686
    %v714 = vadd.f32 %v644, %v686
    %v715 = vadd.f32 %v645, %v686
    %v716 = vadd.f32 %v646, %v686
    %v717 = vadd.f32 %v647, %v686
    %v718 = vadd.f32 %v648, %v686
    %v719 = vadd.f32 %v649, %v686
    %v720 = vadd.f32 %v650, %v686
    %v721 = vadd.f32 %v651, %v686
    %v722 = vadd.f32 %v652, %v686
    %v723 = vadd.f32 %v653, %v686
    %v724 = vadd.f32 %v654, %v686
    %v725 = vadd.f32 %v655, %v686
    %v726 = vadd.f32 %v656, %v686
    %v727 = vadd.f32 %v657, %v686
    %v728 = vadd.f32 %v658, %v686
    %v729 = vadd.f32 %v659, %v686
    %v730 = vadd.f32 %v660, %v686
    %v731 = vadd.f32 %v661, %v686
    %v732 = vadd.f32 %v662, %v686
    %v733 = vadd.f32 %v663, %v686
    %v734 = vadd.f32 %v664, %v686
    %v735 = vadd.f32 %v665, %v686
    %v736 = vadd.f32 %v666, %v686
    %v737 = vadd.f32 %v667, %v686
    %v738 = vadd.f32 %v668, %v686
    %v739 = vadd.f32 %v669, %v686
    %v740 = vadd.f32 %v670, %v686
    %v741 = vadd.f32 %v671, %v686
    %v742 = vadd.f32 %v672, %v686
    %v743 = vadd.f32 %v673, %v686
    %v744 = vadd.f32 %v674, %v686
    %v745 = vadd.f32 %v675, %v686
    %v746 = vadd.f32 %v676, %v686
    %v747 = vadd.f32 %v677, %v686
    %v748 = vadd.f32 %v678, %v686
    %v749 = vadd.f32 %v679, %v686
    %v750 = vadd.f32 %v680, %v686
    %v751 = vadd.f32 %v681, %v686
    %752 = vst.msk [vmem:[#allocation2] sm:$0xff] %vm147, 0.0
    %753 = vst.msk [vmem:[#allocation2 + $0x8] sm:$0xff] %vm147, 0.0
    %vm754 = vcmask 123904
    %755 = vst.msk [vmem:[#allocation2 + $0x10] sm:$0x3] %vm754, 0.0
    %756 = vst.msk [vmem:[#allocation2 + $0x18] sm:$0xff] %vm147, 0.0
    %757 = vst.msk [vmem:[#allocation2 + $0x20] sm:$0xff] %vm147, 0.0
    %758 = vst.msk [vmem:[#allocation2 + $0x28] sm:$0x3] %vm754, 0.0
    %759 = vst.msk [vmem:[#allocation2 + $0x30] sm:$0xff] %vm147, 0.0
    %760 = vst.msk [vmem:[#allocation2 + $0x38] sm:$0xff] %vm147, 0.0
    %761 = vst.msk [vmem:[#allocation2 + $0x40] sm:$0x3] %vm754, 0.0
    %762 = vst.msk [vmem:[#allocation2 + $0x48] sm:$0xff] %vm147, 0.0
    %763 = vst.msk [vmem:[#allocation2 + $0x50] sm:$0xff] %vm147, 0.0
    %764 = vst.msk [vmem:[#allocation2 + $0x58] sm:$0x3] %vm754, 0.0
    %765 = vst.msk [vmem:[#allocation2 + $0x60] sm:$0xff] %vm147, 0.0
    %766 = vst.msk [vmem:[#allocation2 + $0x68] sm:$0xff] %vm147, 0.0
    %767 = vst.msk [vmem:[#allocation2 + $0x70] sm:$0x3] %vm754, 0.0
    %768 = vst.msk [vmem:[#allocation2 + $0x78] sm:$0xff] %vm147, 0.0
    %769 = vst.msk [vmem:[#allocation2 + $0x80] sm:$0xff] %vm147, 0.0
    %770 = vst.msk [vmem:[#allocation2 + $0x88] sm:$0x3] %vm754, 0.0
    %771 = vst.msk [vmem:[#allocation2 + $0x90] sm:$0xff] %vm147, 0.0
    %772 = vst.msk [vmem:[#allocation2 + $0x98] sm:$0xff] %vm147, 0.0
    %773 = vst.msk [vmem:[#allocation2 + $0xa0] sm:$0x3] %vm754, 0.0
    %774 = vst.msk [vmem:[#allocation2 + $0xa8] sm:$0xff] %vm147, 0.0
    %775 = vst.msk [vmem:[#allocation2 + $0xb0] sm:$0xff] %vm147, 0.0
    %776 = vst.msk [vmem:[#allocation2 + $0xb8] sm:$0x3] %vm754, 0.0
    %777 = vst.msk [vmem:[#allocation2 + $0xc0] sm:$0xff] %vm147, 0.0
    %778 = vst.msk [vmem:[#allocation2 + $0xc8] sm:$0xff] %vm147, 0.0
    %779 = vst.msk [vmem:[#allocation2 + $0xd0] sm:$0x3] %vm754, 0.0
    %780 = vst.msk [vmem:[#allocation2 + $0xd8] sm:$0xff] %vm147, 0.0
    %781 = vst.msk [vmem:[#allocation2 + $0xe0] sm:$0xff] %vm147, 0.0
    %782 = vst.msk [vmem:[#allocation2 + $0xe8] sm:$0x3] %vm754, 0.0
    %783 = vst.msk [vmem:[#allocation2 + $0xf0] sm:$0xff] %vm147, 0.0
    %784 = vst.msk [vmem:[#allocation2 + $0xf8] sm:$0xff] %vm147, 0.0
    %785 = vst.msk [vmem:[#allocation2 + $0x100] sm:$0x3] %vm754, 0.0
    %786 = vst.msk [vmem:[#allocation2 + $0x108] sm:$0xff] %vm147, 0.0
    %787 = vst.msk [vmem:[#allocation2 + $0x110] sm:$0xff] %vm147, 0.0
    %788 = vst.msk [vmem:[#allocation2 + $0x118] sm:$0x3] %vm754, 0.0
    %789 = vst.msk [vmem:[#allocation2 + $0x120] sm:$0xff] %vm147, 0.0
    %790 = vst.msk [vmem:[#allocation2 + $0x128] sm:$0xff] %vm147, 0.0
    %791 = vst.msk [vmem:[#allocation2 + $0x130] sm:$0x3] %vm754, 0.0
    %792 = vst.msk [vmem:[#allocation2 + $0x138] sm:$0xff] %vm147, 0.0
    %793 = vst.msk [vmem:[#allocation2 + $0x140] sm:$0xff] %vm147, 0.0
    %794 = vst.msk [vmem:[#allocation2 + $0x148] sm:$0x3] %vm754, 0.0
    %795 = vst.msk [vmem:[#allocation2 + $0x150] sm:$0xff] %vm147, 0.0
    %796 = vst.msk [vmem:[#allocation2 + $0x158] sm:$0xff] %vm147, 0.0
    %797 = vst.msk [vmem:[#allocation2 + $0x160] sm:$0x3] %vm754, 0.0
    %798 = vst.msk [vmem:[#allocation2 + $0x168] sm:$0xff] %vm147, 0.0
    %799 = vst.msk [vmem:[#allocation2 + $0x170] sm:$0xff] %vm147, 0.0
    %800 = vst.msk [vmem:[#allocation2 + $0x178] sm:$0x3] %vm754, 0.0
    %801 = vst.msk [vmem:[#allocation2 + $0x180] sm:$0xff] %vm147, 0.0
    %802 = vst.msk [vmem:[#allocation2 + $0x188] sm:$0xff] %vm147, 0.0
    %803 = vst.msk [vmem:[#allocation2 + $0x190] sm:$0x3] %vm754, 0.0
    %804 = vst.msk [vmem:[#allocation2 + $0x198] sm:$0xff] %vm147, 0.0
    %805 = vst.msk [vmem:[#allocation2 + $0x1a0] sm:$0xff] %vm147, 0.0
    %806 = vst.msk [vmem:[#allocation2 + $0x1a8] sm:$0x3] %vm754, 0.0
    %807 = vst.msk [vmem:[#allocation2 + $0x1b0] sm:$0xff] %vm147, 0.0
    %808 = vst.msk [vmem:[#allocation2 + $0x1b8] sm:$0xff] %vm147, 0.0
    %809 = vst.msk [vmem:[#allocation2 + $0x1c0] sm:$0x3] %vm754, 0.0
    %810 = vst.msk [vmem:[#allocation2 + $0x1c8] sm:$0xff] %vm147, 0.0
    %811 = vst.msk [vmem:[#allocation2 + $0x1d0] sm:$0xff] %vm147, 0.0
    %812 = vst.msk [vmem:[#allocation2 + $0x1d8] sm:$0x3] %vm754, 0.0
    %813 = vst.msk [vmem:[#allocation2 + $0x1e0] sm:$0xff] %vm147, 0.0
    %814 = vst.msk [vmem:[#allocation2 + $0x1e8] sm:$0xff] %vm147, 0.0
    %815 = vst.msk [vmem:[#allocation2 + $0x1f0] sm:$0x3] %vm754, 0.0
    %816 = vst.msk [vmem:[#allocation2 + $0x1f8] sm:$0xff] %vm147, 0.0
    %817 = vst.msk [vmem:[#allocation2 + $0x200] sm:$0xff] %vm147, 0.0
    %818 = vst.msk [vmem:[#allocation2 + $0x208] sm:$0x3] %vm754, 0.0
    %819 = vst.msk [vmem:[#allocation2 + $0x210] sm:$0xff] %vm147, 0.0
    %820 = vst.msk [vmem:[#allocation2 + $0x218] sm:$0xff] %vm147, 0.0
    %821 = vst.msk [vmem:[#allocation2 + $0x220] sm:$0x3] %vm754, 0.0
    %822 = vst.msk [vmem:[#allocation2 + $0x228] sm:$0xff] %vm147, 0.0
    %823 = vst.msk [vmem:[#allocation2 + $0x230] sm:$0xff] %vm147, 0.0
    %824 = vst.msk [vmem:[#allocation2 + $0x238] sm:$0x3] %vm754, 0.0
    %825 = vst.msk [vmem:[#allocation2 + $0x240] sm:$0xff] %vm147, 0.0
    %826 = vst.msk [vmem:[#allocation2 + $0x248] sm:$0xff] %vm147, 0.0
    %827 = vst.msk [vmem:[#allocation2 + $0x250] sm:$0x3] %vm754, 0.0
    %828 = vst.msk [vmem:[#allocation2 + $0x258] sm:$0xff] %vm147, 0.0
    %829 = vst.msk [vmem:[#allocation2 + $0x260] sm:$0xff] %vm147, 0.0
    %830 = vst.msk [vmem:[#allocation2 + $0x268] sm:$0x3] %vm754, 0.0
    %831 = vst.msk [vmem:[#allocation2 + $0x270] sm:$0xff] %vm147, 0.0
    %832 = vst.msk [vmem:[#allocation2 + $0x278] sm:$0xff] %vm147, 0.0
    %833 = vst.msk [vmem:[#allocation2 + $0x280] sm:$0x3] %vm754, 0.0
    %834 = vst.msk [vmem:[#allocation2 + $0x288] sm:$0xff] %vm147, 0.0
    %835 = vst.msk [vmem:[#allocation2 + $0x290] sm:$0xff] %vm147, 0.0
    %836 = vst.msk [vmem:[#allocation2 + $0x298] sm:$0x3] %vm754, 0.0
    %837 = vst.msk [vmem:[#allocation2 + $0x2a0] sm:$0xff] %vm147, 0.0
    %838 = vst.msk [vmem:[#allocation2 + $0x2a8] sm:$0xff] %vm147, 0.0
    %839 = vst.msk [vmem:[#allocation2 + $0x2b0] sm:$0x3] %vm754, 0.0
    %840 = vst.msk [vmem:[#allocation2 + $0x2b8] sm:$0xff] %vm147, 0.0
    %841 = vst.msk [vmem:[#allocation2 + $0x2c0] sm:$0xff] %vm147, 0.0
    %842 = vst.msk [vmem:[#allocation2 + $0x2c8] sm:$0x3] %vm754, 0.0
    %843 = vst.msk [vmem:[#allocation2 + $0x2d0] sm:$0xff] %vm147, 0.0
    %844 = vst.msk [vmem:[#allocation2 + $0x2d8] sm:$0xff] %vm147, 0.0
    %845 = vst.msk [vmem:[#allocation2 + $0x2e0] sm:$0x3] %vm754, 0.0
    %846 = vst.msk [vmem:[#allocation2 + $0x2e8] sm:$0xff] %vm147, 0.0
    %847 = vst.msk [vmem:[#allocation2 + $0x2f0] sm:$0xff] %vm147, 0.0
    %848 = vst.msk [vmem:[#allocation2 + $0x2f8] sm:$0x3] %vm754, 0.0
    %849 = vst.msk [vmem:[#allocation2 + $0x300] sm:$0xff] %vm147, 0.0
    %850 = vst.msk [vmem:[#allocation2 + $0x308] sm:$0xff] %vm147, 0.0
    %851 = vst.msk [vmem:[#allocation2 + $0x310] sm:$0x3] %vm754, 0.0
    %852 = vst.msk [vmem:[#allocation2 + $0x318] sm:$0xff] %vm147, 0.0
    %853 = vst.msk [vmem:[#allocation2 + $0x320] sm:$0xff] %vm147, 0.0
    %854 = vst.msk [vmem:[#allocation2 + $0x328] sm:$0x3] %vm754, 0.0
    %855 = vst.msk [vmem:[#allocation2 + $0x330] sm:$0xff] %vm147, 0.0
    %856 = vst.msk [vmem:[#allocation2 + $0x338] sm:$0xff] %vm147, 0.0
    %857 = vst.msk [vmem:[#allocation2 + $0x340] sm:$0x3] %vm754, 0.0
    %858 = vst.msk [vmem:[#allocation2 + $0x348] sm:$0xff] %vm147, 0.0
    %859 = vst.msk [vmem:[#allocation2 + $0x350] sm:$0xff] %vm147, 0.0
    %860 = vst.msk [vmem:[#allocation2 + $0x358] sm:$0x3] %vm754, 0.0
    %s861 = scalar_lea.vmem [#allocation2], 24
    %862 = vst.msk [vmem:[%s861 + $0x1] sm:$0xff] %vm147, %v688
    %863 = vst.msk [vmem:[%s861 + $0x9] sm:$0xff] %vm147, %v689
    %864 = vst.msk [vmem:[%s861 + $0x19] sm:$0xff] %vm147, %v690
    %865 = vst.msk [vmem:[%s861 + $0x21] sm:$0xff] %vm147, %v691
    %866 = vst.msk [vmem:[%s861 + $0x31] sm:$0xff] %vm147, %v692
    %867 = vst.msk [vmem:[%s861 + $0x39] sm:$0xff] %vm147, %v693
    %868 = vst.msk [vmem:[%s861 + $0x49] sm:$0xff] %vm147, %v694
    %869 = vst.msk [vmem:[%s861 + $0x51] sm:$0xff] %vm147, %v695
    %870 = vst.msk [vmem:[%s861 + $0x61] sm:$0xff] %vm147, %v696
    %871 = vst.msk [vmem:[%s861 + $0x69] sm:$0xff] %vm147, %v697
    %872 = vst.msk [vmem:[%s861 + $0x79] sm:$0xff] %vm147, %v698
    %873 = vst.msk [vmem:[%s861 + $0x81] sm:$0xff] %vm147, %v699
    %874 = vst.msk [vmem:[%s861 + $0x91] sm:$0xff] %vm147, %v700
    %875 = vst.msk [vmem:[%s861 + $0x99] sm:$0xff] %vm147, %v701
    %876 = vst.msk [vmem:[%s861 + $0xa9] sm:$0xff] %vm147, %v702
    %877 = vst.msk [vmem:[%s861 + $0xb1] sm:$0xff] %vm147, %v703
    %878 = vst.msk [vmem:[%s861 + $0xc1] sm:$0xff] %vm147, %v704
    %879 = vst.msk [vmem:[%s861 + $0xc9] sm:$0xff] %vm147, %v705
    %880 = vst.msk [vmem:[%s861 + $0xd9] sm:$0xff] %vm147, %v706
    %881 = vst.msk [vmem:[%s861 + $0xe1] sm:$0xff] %vm147, %v707
    %882 = vst.msk [vmem:[%s861 + $0xf1] sm:$0xff] %vm147, %v708
    %883 = vst.msk [vmem:[%s861 + $0xf9] sm:$0xff] %vm147, %v709
    %884 = vst.msk [vmem:[%s861 + $0x109] sm:$0xff] %vm147, %v710
    %885 = vst.msk [vmem:[%s861 + $0x111] sm:$0xff] %vm147, %v711
    %886 = vst.msk [vmem:[%s861 + $0x121] sm:$0xff] %vm147, %v712
    %887 = vst.msk [vmem:[%s861 + $0x129] sm:$0xff] %vm147, %v713
    %888 = vst.msk [vmem:[%s861 + $0x139] sm:$0xff] %vm147, %v714
    %889 = vst.msk [vmem:[%s861 + $0x141] sm:$0xff] %vm147, %v715
    %890 = vst.msk [vmem:[%s861 + $0x151] sm:$0xff] %vm147, %v716
    %891 = vst.msk [vmem:[%s861 + $0x159] sm:$0xff] %vm147, %v717
    %892 = vst.msk [vmem:[%s861 + $0x169] sm:$0xff] %vm147, %v718
    %893 = vst.msk [vmem:[%s861 + $0x171] sm:$0xff] %vm147, %v719
    %894 = vst.msk [vmem:[%s861 + $0x1b1] sm:$0xff] %vm147, %v720
    %895 = vst.msk [vmem:[%s861 + $0x1b9] sm:$0xff] %vm147, %v721
    %896 = vst.msk [vmem:[%s861 + $0x1c9] sm:$0xff] %vm147, %v722
    %897 = vst.msk [vmem:[%s861 + $0x1d1] sm:$0xff] %vm147, %v723
    %898 = vst.msk [vmem:[%s861 + $0x1e1] sm:$0xff] %vm147, %v724
    %899 = vst.msk [vmem:[%s861 + $0x1e9] sm:$0xff] %vm147, %v725
    %900 = vst.msk [vmem:[%s861 + $0x1f9] sm:$0xff] %vm147, %v726
    %901 = vst.msk [vmem:[%s861 + $0x201] sm:$0xff] %vm147, %v727
    %902 = vst.msk [vmem:[%s861 + $0x211] sm:$0xff] %vm147, %v728
    %903 = vst.msk [vmem:[%s861 + $0x219] sm:$0xff] %vm147, %v729
    %904 = vst.msk [vmem:[%s861 + $0x229] sm:$0xff] %vm147, %v730
    %905 = vst.msk [vmem:[%s861 + $0x231] sm:$0xff] %vm147, %v731
    %906 = vst.msk [vmem:[%s861 + $0x241] sm:$0xff] %vm147, %v732
    %907 = vst.msk [vmem:[%s861 + $0x249] sm:$0xff] %vm147, %v733
    %908 = vst.msk [vmem:[%s861 + $0x259] sm:$0xff] %vm147, %v734
    %909 = vst.msk [vmem:[%s861 + $0x261] sm:$0xff] %vm147, %v735
    %910 = vst.msk [vmem:[%s861 + $0x271] sm:$0xff] %vm147, %v736
    %911 = vst.msk [vmem:[%s861 + $0x279] sm:$0xff] %vm147, %v737
    %912 = vst.msk [vmem:[%s861 + $0x289] sm:$0xff] %vm147, %v738
    %913 = vst.msk [vmem:[%s861 + $0x291] sm:$0xff] %vm147, %v739
    %914 = vst.msk [vmem:[%s861 + $0x2a1] sm:$0xff] %vm147, %v740
    %915 = vst.msk [vmem:[%s861 + $0x2a9] sm:$0xff] %vm147, %v741
    %916 = vst.msk [vmem:[%s861 + $0x2b9] sm:$0xff] %vm147, %v742
    %917 = vst.msk [vmem:[%s861 + $0x2c1] sm:$0xff] %vm147, %v743
    %918 = vst.msk [vmem:[%s861 + $0x2d1] sm:$0xff] %vm147, %v744
    %919 = vst.msk [vmem:[%s861 + $0x2d9] sm:$0xff] %vm147, %v745
    %920 = vst.msk [vmem:[%s861 + $0x2e9] sm:$0xff] %vm147, %v746
    %921 = vst.msk [vmem:[%s861 + $0x2f1] sm:$0xff] %vm147, %v747
    %922 = vst.msk [vmem:[%s861 + $0x301] sm:$0xff] %vm147, %v748
    %923 = vst.msk [vmem:[%s861 + $0x309] sm:$0xff] %vm147, %v749
    %924 = vst.msk [vmem:[%s861 + $0x319] sm:$0xff] %vm147, %v750
    %925 = vst.msk [vmem:[%s861 + $0x321] sm:$0xff] %vm147, %v751
    %v926 = vld [vmem:[#allocation2] sm:$0xff]
    %v927 = vld [vmem:[#allocation2 + $0x8] sm:$0xff]
    %v928 = vld [vmem:[#allocation2 + $0x18] sm:$0xff]
    %v929 = vld [vmem:[#allocation2 + $0x20] sm:$0xff]
    %v930 = vld [vmem:[#allocation2 + $0x30] sm:$0xff]
    %v931 = vld [vmem:[#allocation2 + $0x38] sm:$0xff]
    %v932 = vld [vmem:[#allocation2 + $0x48] sm:$0xff]
    %v933 = vld [vmem:[#allocation2 + $0x50] sm:$0xff]
    %v934 = vld [vmem:[#allocation2 + $0x60] sm:$0xff]
    %v935 = vld [vmem:[#allocation2 + $0x68] sm:$0xff]
    %v936 = vld [vmem:[#allocation2 + $0x78] sm:$0xff]
    %v937 = vld [vmem:[#allocation2 + $0x80] sm:$0xff]
    %v938 = vld [vmem:[#allocation2 + $0x90] sm:$0xff]
    %v939 = vld [vmem:[#allocation2 + $0x98] sm:$0xff]
    %v940 = vld [vmem:[#allocation2 + $0xa8] sm:$0xff]
    %v941 = vld [vmem:[#allocation2 + $0xb0] sm:$0xff]
    %v942 = vld [vmem:[#allocation2 + $0xc0] sm:$0xff]
    %v943 = vld [vmem:[#allocation2 + $0xc8] sm:$0xff]
    %v944 = vld [vmem:[#allocation2 + $0xd8] sm:$0xff]
    %v945 = vld [vmem:[#allocation2 + $0xe0] sm:$0xff]
    %v946 = vld [vmem:[#allocation2 + $0xf0] sm:$0xff]
    %v947 = vld [vmem:[#allocation2 + $0xf8] sm:$0xff]
    %v948 = vld [vmem:[#allocation2 + $0x108] sm:$0xff]
    %v949 = vld [vmem:[#allocation2 + $0x110] sm:$0xff]
    %v950 = vld [vmem:[#allocation2 + $0x120] sm:$0xff]
    %v951 = vld [vmem:[#allocation2 + $0x128] sm:$0xff]
    %v952 = vld [vmem:[#allocation2 + $0x138] sm:$0xff]
    %v953 = vld [vmem:[#allocation2 + $0x140] sm:$0xff]
    %v954 = vld [vmem:[#allocation2 + $0x150] sm:$0xff]
    %v955 = vld [vmem:[#allocation2 + $0x158] sm:$0xff]
    %v956 = vld [vmem:[#allocation2 + $0x168] sm:$0xff]
    %v957 = vld [vmem:[#allocation2 + $0x170] sm:$0xff]
    %v958 = vld [vmem:[#allocation2 + $0x1b0] sm:$0xff]
    %v959 = vld [vmem:[#allocation2 + $0x1b8] sm:$0xff]
    %v960 = vld [vmem:[#allocation2 + $0x1c8] sm:$0xff]
    %v961 = vld [vmem:[#allocation2 + $0x1d0] sm:$0xff]
    %v962 = vld [vmem:[#allocation2 + $0x1e0] sm:$0xff]
    %v963 = vld [vmem:[#allocation2 + $0x1e8] sm:$0xff]
    %v964 = vld [vmem:[#allocation2 + $0x1f8] sm:$0xff]
    %v965 = vld [vmem:[#allocation2 + $0x200] sm:$0xff]
    %v966 = vld [vmem:[#allocation2 + $0x210] sm:$0xff]
    %v967 = vld [vmem:[#allocation2 + $0x218] sm:$0xff]
    %v968 = vld [vmem:[#allocation2 + $0x228] sm:$0xff]
    %v969 = vld [vmem:[#allocation2 + $0x230] sm:$0xff]
    %v970 = vld [vmem:[#allocation2 + $0x240] sm:$0xff]
    %v971 = vld [vmem:[#allocation2 + $0x248] sm:$0xff]
    %v972 = vld [vmem:[#allocation2 + $0x258] sm:$0xff]
    %v973 = vld [vmem:[#allocation2 + $0x260] sm:$0xff]
    %v974 = vld [vmem:[#allocation2 + $0x270] sm:$0xff]
    %v975 = vld [vmem:[#allocation2 + $0x278] sm:$0xff]
    %v976 = vld [vmem:[#allocation2 + $0x288] sm:$0xff]
    %v977 = vld [vmem:[#allocation2 + $0x290] sm:$0xff]
    %v978 = vld [vmem:[#allocation2 + $0x2a0] sm:$0xff]
    %v979 = vld [vmem:[#allocation2 + $0x2a8] sm:$0xff]
    %v980 = vld [vmem:[#allocation2 + $0x2b8] sm:$0xff]
    %v981 = vld [vmem:[#allocation2 + $0x2c0] sm:$0xff]
    %v982 = vld [vmem:[#allocation2 + $0x2d0] sm:$0xff]
    %v983 = vld [vmem:[#allocation2 + $0x2d8] sm:$0xff]
    %v984 = vld [vmem:[#allocation2 + $0x2e8] sm:$0xff]
    %v985 = vld [vmem:[#allocation2 + $0x2f0] sm:$0xff]
    %v986 = vld [vmem:[#allocation2 + $0x300] sm:$0xff]
    %v987 = vld [vmem:[#allocation2 + $0x308] sm:$0xff]
    %v988 = vld [vmem:[#allocation2 + $0x318] sm:$0xff]
    %v989 = vld [vmem:[#allocation2 + $0x320] sm:$0xff]
    %v990 = vpack.c.bf16 %v927, %v926
    %v991 = vpack.c.bf16 %v929, %v928
    %v992 = vpack.c.bf16 %v931, %v930
    %v993 = vpack.c.bf16 %v933, %v932
    %v994 = vpack.c.bf16 %v935, %v934
    %v995 = vpack.c.bf16 %v937, %v936
    %v996 = vpack.c.bf16 %v939, %v938
    %v997 = vpack.c.bf16 %v941, %v940
    %v998 = vpack.c.bf16 %v943, %v942
    %v999 = vpack.c.bf16 %v945, %v944
    %v1000 = vpack.c.bf16 %v947, %v946
    %v1001 = vpack.c.bf16 %v949, %v948
    %v1002 = vpack.c.bf16 %v951, %v950
    %v1003 = vpack.c.bf16 %v953, %v952
    %v1004 = vpack.c.bf16 %v955, %v954
    %v1005 = vpack.c.bf16 %v957, %v956
    %v1006 = vpack.c.bf16 %v959, %v958
    %v1007 = vpack.c.bf16 %v961, %v960
    %v1008 = vpack.c.bf16 %v963, %v962
    %v1009 = vpack.c.bf16 %v965, %v964
    %v1010 = vpack.c.bf16 %v967, %v966
    %v1011 = vpack.c.bf16 %v969, %v968
    %v1012 = vpack.c.bf16 %v971, %v970
    %v1013 = vpack.c.bf16 %v973, %v972
    %v1014 = vpack.c.bf16 %v975, %v974
    %v1015 = vpack.c.bf16 %v977, %v976
    %v1016 = vpack.c.bf16 %v979, %v978
    %v1017 = vpack.c.bf16 %v981, %v980
    %v1018 = vpack.c.bf16 %v983, %v982
    %v1019 = vpack.c.bf16 %v985, %v984
    %v1020 = vpack.c.bf16 %v987, %v986
    %v1021 = vpack.c.bf16 %v989, %v988
    %v1022 = vld [vmem:[#allocation7] sm:$0xf]
    %v1023 = vld [vmem:[#allocation7 + $0x4] sm:$0xf]
    %v1024 = vld [vmem:[#allocation2 + $0x1] sm:$0xff]
    %v1025 = vld [vmem:[#allocation2 + $0x9] sm:$0xff]
    %v1026 = vld [vmem:[#allocation2 + $0x19] sm:$0xff]
    %v1027 = vld [vmem:[#allocation2 + $0x21] sm:$0xff]
    %v1028 = vld [vmem:[#allocation2 + $0x31] sm:$0xff]
    %v1029 = vld [vmem:[#allocation2 + $0x39] sm:$0xff]
    %v1030 = vld [vmem:[#allocation2 + $0x49] sm:$0xff]
    %v1031 = vld [vmem:[#allocation2 + $0x51] sm:$0xff]
    %v1032 = vld [vmem:[#allocation2 + $0x61] sm:$0xff]
    %v1033 = vld [vmem:[#allocation2 + $0x69] sm:$0xff]
    %v1034 = vld [vmem:[#allocation2 + $0x79] sm:$0xff]
    %v1035 = vld [vmem:[#allocation2 + $0x81] sm:$0xff]
    %v1036 = vld [vmem:[#allocation2 + $0x91] sm:$0xff]
    %v1037 = vld [vmem:[#allocation2 + $0x99] sm:$0xff]
    %v1038 = vld [vmem:[#allocation2 + $0xa9] sm:$0xff]
    %v1039 = vld [vmem:[#allocation2 + $0xb1] sm:$0xff]
    %v1040 = vld [vmem:[#allocation2 + $0xc1] sm:$0xff]
    %v1041 = vld [vmem:[#allocation2 + $0xc9] sm:$0xff]
    %v1042 = vld [vmem:[#allocation2 + $0xd9] sm:$0xff]
    %v1043 = vld [vmem:[#allocation2 + $0xe1] sm:$0xff]
    %v1044 = vld [vmem:[#allocation2 + $0xf1] sm:$0xff]
    %v1045 = vld [vmem:[#allocation2 + $0xf9] sm:$0xff]
    %v1046 = vld [vmem:[#allocation2 + $0x109] sm:$0xff]
    %v1047 = vld [vmem:[#allocation2 + $0x111] sm:$0xff]
    %v1048 = vld [vmem:[#allocation2 + $0x121] sm:$0xff]
    %v1049 = vld [vmem:[#allocation2 + $0x129] sm:$0xff]
    %v1050 = vld [vmem:[#allocation2 + $0x139] sm:$0xff]
    %v1051 = vld [vmem:[#allocation2 + $0x141] sm:$0xff]
    %v1052 = vld [vmem:[#allocation2 + $0x151] sm:$0xff]
    %v1053 = vld [vmem:[#allocation2 + $0x159] sm:$0xff]
    %v1054 = vld [vmem:[#allocation2 + $0x169] sm:$0xff]
    %v1055 = vld [vmem:[#allocation2 + $0x171] sm:$0xff]
    %v1056 = vld [vmem:[#allocation2 + $0x1b1] sm:$0xff]
    %v1057 = vld [vmem:[#allocation2 + $0x1b9] sm:$0xff]
    %v1058 = vld [vmem:[#allocation2 + $0x1c9] sm:$0xff]
    %v1059 = vld [vmem:[#allocation2 + $0x1d1] sm:$0xff]
    %v1060 = vld [vmem:[#allocation2 + $0x1e1] sm:$0xff]
    %v1061 = vld [vmem:[#allocation2 + $0x1e9] sm:$0xff]
    %v1062 = vld [vmem:[#allocation2 + $0x1f9] sm:$0xff]
    %v1063 = vld [vmem:[#allocation2 + $0x201] sm:$0xff]
    %v1064 = vld [vmem:[#allocation2 + $0x211] sm:$0xff]
    %v1065 = vld [vmem:[#allocation2 + $0x219] sm:$0xff]
    %v1066 = vld [vmem:[#allocation2 + $0x229] sm:$0xff]
    %v1067 = vld [vmem:[#allocation2 + $0x231] sm:$0xff]
    %v1068 = vld [vmem:[#allocation2 + $0x241] sm:$0xff]
    %v1069 = vld [vmem:[#allocation2 + $0x249] sm:$0xff]
    %v1070 = vld [vmem:[#allocation2 + $0x259] sm:$0xff]
    %v1071 = vld [vmem:[#allocation2 + $0x261] sm:$0xff]
    %v1072 = vld [vmem:[#allocation2 + $0x271] sm:$0xff]
    %v1073 = vld [vmem:[#allocation2 + $0x279] sm:$0xff]
    %v1074 = vld [vmem:[#allocation2 + $0x289] sm:$0xff]
    %v1075 = vld [vmem:[#allocation2 + $0x291] sm:$0xff]
    %v1076 = vld [vmem:[#allocation2 + $0x2a1] sm:$0xff]
    %v1077 = vld [vmem:[#allocation2 + $0x2a9] sm:$0xff]
    %v1078 = vld [vmem:[#allocation2 + $0x2b9] sm:$0xff]
    %v1079 = vld [vmem:[#allocation2 + $0x2c1] sm:$0xff]
    %v1080 = vld [vmem:[#allocation2 + $0x2d1] sm:$0xff]
    %v1081 = vld [vmem:[#allocation2 + $0x2d9] sm:$0xff]
    %v1082 = vld [vmem:[#allocation2 + $0x2e9] sm:$0xff]
    %v1083 = vld [vmem:[#allocation2 + $0x2f1] sm:$0xff]
    %v1084 = vld [vmem:[#allocation2 + $0x301] sm:$0xff]
    %v1085 = vld [vmem:[#allocation2 + $0x309] sm:$0xff]
    %v1086 = vld [vmem:[#allocation2 + $0x319] sm:$0xff]
    %v1087 = vld [vmem:[#allocation2 + $0x321] sm:$0xff]
    %v1088 = vpack.c.bf16 %v1025, %v1024
    %v1089 = vpack.c.bf16 %v1027, %v1026
    %v1090 = vpack.c.bf16 %v1029, %v1028
    %v1091 = vpack.c.bf16 %v1031, %v1030
    %v1092 = vpack.c.bf16 %v1033, %v1032
    %v1093 = vpack.c.bf16 %v1035, %v1034
    %v1094 = vpack.c.bf16 %v1037, %v1036
    %v1095 = vpack.c.bf16 %v1039, %v1038
    %v1096 = vpack.c.bf16 %v1041, %v1040
    %v1097 = vpack.c.bf16 %v1043, %v1042
    %v1098 = vpack.c.bf16 %v1045, %v1044
    %v1099 = vpack.c.bf16 %v1047, %v1046
    %v1100 = vpack.c.bf16 %v1049, %v1048
    %v1101 = vpack.c.bf16 %v1051, %v1050
    %v1102 = vpack.c.bf16 %v1053, %v1052
    %v1103 = vpack.c.bf16 %v1055, %v1054
    %v1104 = vpack.c.bf16 %v1057, %v1056
    %v1105 = vpack.c.bf16 %v1059, %v1058
    %v1106 = vpack.c.bf16 %v1061, %v1060
    %v1107 = vpack.c.bf16 %v1063, %v1062
    %v1108 = vpack.c.bf16 %v1065, %v1064
    %v1109 = vpack.c.bf16 %v1067, %v1066
    %v1110 = vpack.c.bf16 %v1069, %v1068
    %v1111 = vpack.c.bf16 %v1071, %v1070
    %v1112 = vpack.c.bf16 %v1073, %v1072
    %v1113 = vpack.c.bf16 %v1075, %v1074
    %v1114 = vpack.c.bf16 %v1077, %v1076
    %v1115 = vpack.c.bf16 %v1079, %v1078
    %v1116 = vpack.c.bf16 %v1081, %v1080
    %v1117 = vpack.c.bf16 %v1083, %v1082
    %v1118 = vpack.c.bf16 %v1085, %v1084
    %v1119 = vpack.c.bf16 %v1087, %v1086
    %s1120 = scalar_lea.vmem [#allocation7], 8
    %v1121 = vld [vmem:[%s1120] sm:$0xf]
    %v1122 = vld [vmem:[%s1120 + $0x4] sm:$0xf]
    %v1125 = vunpack.c.l.b16 %v1121
    %v1126 = vunpack.c.l.b16 %v1122
    %v1127 = vpack.c.b16 %v1126, %v1125
    %v1130 = vsel %vm147, %v1088, 0
    %v1133 = vsel %vm147, %v1089, 0
    %v1136 = vsel %vm147, %v1090, 0
    %v1139 = vsel %vm147, %v1091, 0
    %v1142 = vsel %vm147, %v1092, 0
    %v1145 = vsel %vm147, %v1093, 0
    %v1148 = vsel %vm147, %v1094, 0
    %v1151 = vsel %vm147, %v1095, 0
    %v1154 = vsel %vm147, %v1096, 0
    %v1157 = vsel %vm147, %v1097, 0
    %v1160 = vsel %vm147, %v1098, 0
    %v1163 = vsel %vm147, %v1099, 0
    %v1166 = vsel %vm147, %v1100, 0
    %v1169 = vsel %vm147, %v1101, 0
    %v1172 = vsel %vm147, %v1102, 0
    %v1175 = vsel %vm147, %v1103, 0
    %v1178 = vsel %vm147, %v1104, 0
    %v1181 = vsel %vm147, %v1105, 0
    %v1184 = vsel %vm147, %v1106, 0
    %v1187 = vsel %vm147, %v1107, 0
    %v1190 = vsel %vm147, %v1108, 0
    %v1193 = vsel %vm147, %v1109, 0
    %v1196 = vsel %vm147, %v1110, 0
    %v1199 = vsel %vm147, %v1111, 0
    %v1202 = vsel %vm147, %v1112, 0
    %v1205 = vsel %vm147, %v1113, 0
    %v1208 = vsel %vm147, %v1114, 0
    %v1211 = vsel %vm147, %v1115, 0
    %v1214 = vsel %vm147, %v1116, 0
    %v1217 = vsel %vm147, %v1117, 0
    %v1220 = vsel %vm147, %v1118, 0
    %v1223 = vsel %vm147, %v1119, 0
    %1225 = vmatprep.subr.bf16.mxu0 0
    %1226 = vmatpush1.bf16.msra.mxu0 %v1127
    %1227 = vmatprep.subr.bf16.mxu0 0
    %1228 = vmatpush1.bf16.msra.mxu0 0
    %1229 = vmatprep.subr.bf16.mxu0 0
    %1230 = vmatpush1.bf16.msra.mxu0 0
    %1231 = vmatprep.subr.bf16.mxu0 0
    %1232 = vmatpush1.bf16.msra.mxu0 0
    %1233 = vmatprep.subr.bf16.mxu0 0
    %1234 = vmatpush1.bf16.msra.mxu0 0
    %1235 = vmatprep.subr.bf16.mxu0 0
    %1236 = vmatpush1.bf16.msra.mxu0 0
    %1237 = vmatprep.subr.bf16.mxu0 0
    %1238 = vmatpush1.bf16.msra.mxu0 0
    %1239 = vmatprep.subr.bf16.mxu0 0
    %1240 = vmatpush1.bf16.msra.mxu0 0
    %1241 = vmatprep.subr.bf16.mxu0 0
    %1242 = vmatpush1.bf16.msra.mxu0 0
    %1243 = vmatprep.subr.bf16.mxu0 0
    %1244 = vmatpush1.bf16.msra.mxu0 0
    %1245 = vmatprep.subr.bf16.mxu0 0
    %1246 = vmatpush1.bf16.msra.mxu0 0
    %1247 = vmatprep.subr.bf16.mxu0 0
    %1248 = vmatpush1.bf16.msra.mxu0 0
    %1249 = vmatprep.subr.bf16.mxu0 0
    %1250 = vmatpush1.bf16.msra.mxu0 0
    %1251 = vmatprep.subr.bf16.mxu0 0
    %1252 = vmatpush1.bf16.msra.mxu0 0
    %1253 = vmatprep.subr.bf16.mxu0 0
    %1254 = vmatpush1.bf16.msra.mxu0 0
    %1255 = vmatprep.subr.bf16.mxu0 0
    %1256 = vmatpush1.bf16.msra.mxu0 0
    %1257 = vmatprep.mubr.bf16.mxu0 0
    %1258 = vmatmul.mubr.bf16.gmra.mrb[0].mxu0 %v1130
    %v1259 = vpop.f32.mrb[0].mxu0
    %v1260 = vadd.f32 0.0, %v1259
    %v1261 = vpop.f32.mrb[0].mxu0
    %v1262 = vpop.f32.mrb[0].mxu0
    %v1263 = vadd.f32 0.0, %v1262
    %v1264 = vpop.f32.mrb[0].mxu0
    %1265 = vmatprep.mubr.bf16.mxu0 0
    %1266 = vmatmul.mubr.bf16.gmra.mrb[0].mxu0 %v1133
    %v1267 = vpop.f32.mrb[0].mxu0
    %v1268 = vadd.f32 0.0, %v1267
    %v1269 = vpop.f32.mrb[0].mxu0
    %v1270 = vpop.f32.mrb[0].mxu0
    %v1271 = vadd.f32 0.0, %v1270
    %v1272 = vpop.f32.mrb[0].mxu0
    %1273 = vmatprep.mubr.bf16.mxu0 0
    %1274 = vmatmul.mubr.bf16.gmra.mrb[0].mxu0 %v1136
    %v1275 = vpop.f32.mrb[0].mxu0
    %v1276 = vadd.f32 0.0, %v1275
    %v1277 = vpop.f32.mrb[0].mxu0
    %v1278 = vpop.f32.mrb[0].mxu0
    %v1279 = vadd.f32 0.0, %v1278
    %v1280 = vpop.f32.mrb[0].mxu0
    %1281 = vmatprep.mubr.bf16.mxu0 0
    %1282 = vmatmul.mubr.bf16.gmra.mrb[0].mxu0 %v1139
    %v1283 = vpop.f32.mrb[0].mxu0
    %v1284 = vadd.f32 0.0, %v1283
    %v1285 = vpop.f32.mrb[0].mxu0
    %v1286 = vpop.f32.mrb[0].mxu0
    %v1287 = vadd.f32 0.0, %v1286
    %v1288 = vpop.f32.mrb[0].mxu0
    %1289 = vmatprep.mubr.bf16.mxu0 0
    %1290 = vmatmul.mubr.bf16.gmra.mrb[0].mxu0 %v1142
    %v1291 = vpop.f32.mrb[0].mxu0
    %v1292 = vadd.f32 0.0, %v1291
    %v1293 = vpop.f32.mrb[0].mxu0
    %v1294 = vpop.f32.mrb[0].mxu0
    %v1295 = vadd.f32 0.0, %v1294
    %v1296 = vpop.f32.mrb[0].mxu0
    %1297 = vmatprep.mubr.bf16.mxu0 0
    %1298 = vmatmul.mubr.bf16.gmra.mrb[0].mxu0 %v1145
    %v1299 = vpop.f32.mrb[0].mxu0
    %v1300 = vadd.f32 0.0, %v1299
    %v1301 = vpop.f32.mrb[0].mxu0
    %v1302 = vpop.f32.mrb[0].mxu0
    %v1303 = vadd.f32 0.0, %v1302
    %v1304 = vpop.f32.mrb[0].mxu0
    %1305 = vmatprep.mubr.bf16.mxu0 0
    %1306 = vmatmul.mubr.bf16.gmra.mrb[0].mxu0 %v1148
    %v1307 = vpop.f32.mrb[0].mxu0
    %v1308 = vadd.f32 0.0, %v1307
    %v1309 = vpop.f32.mrb[0].mxu0
    %v1310 = vpop.f32.mrb[0].mxu0
    %v1311 = vadd.f32 0.0, %v1310
    %v1312 = vpop.f32.mrb[0].mxu0
    %1313 = vmatprep.mubr.bf16.mxu0 0
    %1314 = vmatmul.mubr.bf16.gmra.mrb[0].mxu0 %v1151
    %v1315 = vpop.f32.mrb[0].mxu0
    %v1316 = vadd.f32 0.0, %v1315
    %v1317 = vpop.f32.mrb[0].mxu0
    %v1318 = vpop.f32.mrb[0].mxu0
    %v1319 = vadd.f32 0.0, %v1318
    %v1320 = vpop.f32.mrb[0].mxu0
    %1321 = vmatprep.mubr.bf16.mxu0 0
    %1322 = vmatmul.mubr.bf16.gmra.mrb[0].mxu0 %v1154
    %v1323 = vpop.f32.mrb[0].mxu0
    %v1324 = vadd.f32 0.0, %v1323
    %v1325 = vpop.f32.mrb[0].mxu0
    %v1326 = vpop.f32.mrb[0].mxu0
    %v1327 = vadd.f32 0.0, %v1326
    %v1328 = vpop.f32.mrb[0].mxu0
    %1329 = vmatprep.mubr.bf16.mxu0 0
    %1330 = vmatmul.mubr.bf16.gmra.mrb[0].mxu0 %v1157
    %v1331 = vpop.f32.mrb[0].mxu0
    %v1332 = vadd.f32 0.0, %v1331
    %v1333 = vpop.f32.mrb[0].mxu0
    %v1334 = vpop.f32.mrb[0].mxu0
    %v1335 = vadd.f32 0.0, %v1334
    %v1336 = vpop.f32.mrb[0].mxu0
    %1337 = vmatprep.mubr.bf16.mxu0 0
    %1338 = vmatmul.mubr.bf16.gmra.mrb[0].mxu0 %v1160
    %v1339 = vpop.f32.mrb[0].mxu0
    %v1340 = vadd.f32 0.0, %v1339
    %v1341 = vpop.f32.mrb[0].mxu0
    %v1342 = vpop.f32.mrb[0].mxu0
    %v1343 = vadd.f32 0.0, %v1342
    %v1344 = vpop.f32.mrb[0].mxu0
    %1345 = vmatprep.mubr.bf16.mxu0 0
    %1346 = vmatmul.mubr.bf16.gmra.mrb[0].mxu0 %v1163
    %v1347 = vpop.f32.mrb[0].mxu0
    %v1348 = vadd.f32 0.0, %v1347
    %v1349 = vpop.f32.mrb[0].mxu0
    %v1350 = vpop.f32.mrb[0].mxu0
    %v1351 = vadd.f32 0.0, %v1350
    %v1352 = vpop.f32.mrb[0].mxu0
    %1353 = vmatprep.mubr.bf16.mxu0 0
    %1354 = vmatmul.mubr.bf16.gmra.mrb[0].mxu0 %v1166
    %v1355 = vpop.f32.mrb[0].mxu0
    %v1356 = vadd.f32 0.0, %v1355
    %v1357 = vpop.f32.mrb[0].mxu0
    %v1358 = vpop.f32.mrb[0].mxu0
    %v1359 = vadd.f32 0.0, %v1358
    %v1360 = vpop.f32.mrb[0].mxu0
    %1361 = vmatprep.mubr.bf16.mxu0 0
    %1362 = vmatmul.mubr.bf16.gmra.mrb[0].mxu0 %v1169
    %v1363 = vpop.f32.mrb[0].mxu0
    %v1364 = vadd.f32 0.0, %v1363
    %v1365 = vpop.f32.mrb[0].mxu0
    %v1366 = vpop.f32.mrb[0].mxu0
    %v1367 = vadd.f32 0.0, %v1366
    %v1368 = vpop.f32.mrb[0].mxu0
    %1369 = vmatprep.mubr.bf16.mxu0 0
    %1370 = vmatmul.mubr.bf16.gmra.mrb[0].mxu0 %v1172
    %v1371 = vpop.f32.mrb[0].mxu0
    %v1372 = vadd.f32 0.0, %v1371
    %v1373 = vpop.f32.mrb[0].mxu0
    %v1374 = vpop.f32.mrb[0].mxu0
    %v1375 = vadd.f32 0.0, %v1374
    %v1376 = vpop.f32.mrb[0].mxu0
    %1377 = vmatprep.mubr.bf16.mxu0 0
    %1378 = vmatmul.mubr.bf16.gmra.mrb[0].mxu0 %v1175
    %v1379 = vpop.f32.mrb[0].mxu0
    %v1380 = vadd.f32 0.0, %v1379
    %v1381 = vpop.f32.mrb[0].mxu0
    %v1382 = vpop.f32.mrb[0].mxu0
    %v1383 = vadd.f32 0.0, %v1382
    %v1384 = vpop.f32.mrb[0].mxu0
    %1385 = vmatprep.mubr.bf16.mxu0 0
    %1386 = vmatmul.mubr.bf16.gmra.mrb[0].mxu0 %v1178
    %v1387 = vpop.f32.mrb[0].mxu0
    %v1388 = vadd.f32 0.0, %v1387
    %v1389 = vpop.f32.mrb[0].mxu0
    %v1390 = vpop.f32.mrb[0].mxu0
    %v1391 = vadd.f32 0.0, %v1390
    %v1392 = vpop.f32.mrb[0].mxu0
    %1393 = vmatprep.mubr.bf16.mxu0 0
    %1394 = vmatmul.mubr.bf16.gmra.mrb[0].mxu0 %v1181
    %v1395 = vpop.f32.mrb[0].mxu0
    %v1396 = vadd.f32 0.0, %v1395
    %v1397 = vpop.f32.mrb[0].mxu0
    %v1398 = vpop.f32.mrb[0].mxu0
    %v1399 = vadd.f32 0.0, %v1398
    %v1400 = vpop.f32.mrb[0].mxu0
    %1401 = vmatprep.mubr.bf16.mxu0 0
    %1402 = vmatmul.mubr.bf16.gmra.mrb[0].mxu0 %v1184
    %v1403 = vpop.f32.mrb[0].mxu0
    %v1404 = vadd.f32 0.0, %v1403
    %v1405 = vpop.f32.mrb[0].mxu0
    %v1406 = vpop.f32.mrb[0].mxu0
    %v1407 = vadd.f32 0.0, %v1406
    %v1408 = vpop.f32.mrb[0].mxu0
    %1409 = vmatprep.mubr.bf16.mxu0 0
    %1410 = vmatmul.mubr.bf16.gmra.mrb[0].mxu0 %v1187
    %v1411 = vpop.f32.mrb[0].mxu0
    %v1412 = vadd.f32 0.0, %v1411
    %v1413 = vpop.f32.mrb[0].mxu0
    %v1414 = vpop.f32.mrb[0].mxu0
    %v1415 = vadd.f32 0.0, %v1414
    %v1416 = vpop.f32.mrb[0].mxu0
    %1417 = vmatprep.mubr.bf16.mxu0 0
    %1418 = vmatmul.mubr.bf16.gmra.mrb[0].mxu0 %v1190
    %v1419 = vpop.f32.mrb[0].mxu0
    %v1420 = vadd.f32 0.0, %v1419
    %v1421 = vpop.f32.mrb[0].mxu0
    %v1422 = vpop.f32.mrb[0].mxu0
    %v1423 = vadd.f32 0.0, %v1422
    %v1424 = vpop.f32.mrb[0].mxu0
    %1425 = vmatprep.mubr.bf16.mxu0 0
    %1426 = vmatmul.mubr.bf16.gmra.mrb[0].mxu0 %v1193
    %v1427 = vpop.f32.mrb[0].mxu0
    %v1428 = vadd.f32 0.0, %v1427
    %v1429 = vpop.f32.mrb[0].mxu0
    %v1430 = vpop.f32.mrb[0].mxu0
    %v1431 = vadd.f32 0.0, %v1430
    %v1432 = vpop.f32.mrb[0].mxu0
    %1433 = vmatprep.mubr.bf16.mxu0 0
    %1434 = vmatmul.mubr.bf16.gmra.mrb[0].mxu0 %v1196
    %v1435 = vpop.f32.mrb[0].mxu0
    %v1436 = vadd.f32 0.0, %v1435
    %v1437 = vpop.f32.mrb[0].mxu0
    %v1438 = vpop.f32.mrb[0].mxu0
    %v1439 = vadd.f32 0.0, %v1438
    %v1440 = vpop.f32.mrb[0].mxu0
    %1441 = vmatprep.mubr.bf16.mxu0 0
    %1442 = vmatmul.mubr.bf16.gmra.mrb[0].mxu0 %v1199
    %v1443 = vpop.f32.mrb[0].mxu0
    %v1444 = vadd.f32 0.0, %v1443
    %v1445 = vpop.f32.mrb[0].mxu0
    %v1446 = vpop.f32.mrb[0].mxu0
    %v1447 = vadd.f32 0.0, %v1446
    %v1448 = vpop.f32.mrb[0].mxu0
    %1449 = vmatprep.mubr.bf16.mxu0 0
    %1450 = vmatmul.mubr.bf16.gmra.mrb[0].mxu0 %v1202
    %v1451 = vpop.f32.mrb[0].mxu0
    %v1452 = vadd.f32 0.0, %v1451
    %v1453 = vpop.f32.mrb[0].mxu0
    %v1454 = vpop.f32.mrb[0].mxu0
    %v1455 = vadd.f32 0.0, %v1454
    %v1456 = vpop.f32.mrb[0].mxu0
    %1457 = vmatprep.mubr.bf16.mxu0 0
    %1458 = vmatmul.mubr.bf16.gmra.mrb[0].mxu0 %v1205
    %v1459 = vpop.f32.mrb[0].mxu0
    %v1460 = vadd.f32 0.0, %v1459
    %v1461 = vpop.f32.mrb[0].mxu0
    %v1462 = vpop.f32.mrb[0].mxu0
    %v1463 = vadd.f32 0.0, %v1462
    %v1464 = vpop.f32.mrb[0].mxu0
    %1465 = vmatprep.mubr.bf16.mxu0 0
    %1466 = vmatmul.mubr.bf16.gmra.mrb[0].mxu0 %v1208
    %v1467 = vpop.f32.mrb[0].mxu0
    %v1468 = vadd.f32 0.0, %v1467
    %v1469 = vpop.f32.mrb[0].mxu0
    %v1470 = vpop.f32.mrb[0].mxu0
    %v1471 = vadd.f32 0.0, %v1470
    %v1472 = vpop.f32.mrb[0].mxu0
    %1473 = vmatprep.mubr.bf16.mxu0 0
    %1474 = vmatmul.mubr.bf16.gmra.mrb[0].mxu0 %v1211
    %v1475 = vpop.f32.mrb[0].mxu0
    %v1476 = vadd.f32 0.0, %v1475
    %v1477 = vpop.f32.mrb[0].mxu0
    %v1478 = vpop.f32.mrb[0].mxu0
    %v1479 = vadd.f32 0.0, %v1478
    %v1480 = vpop.f32.mrb[0].mxu0
    %1481 = vmatprep.mubr.bf16.mxu0 0
    %1482 = vmatmul.mubr.bf16.gmra.mrb[0].mxu0 %v1214
    %v1483 = vpop.f32.mrb[0].mxu0
    %v1484 = vadd.f32 0.0, %v1483
    %v1485 = vpop.f32.mrb[0].mxu0
    %v1486 = vpop.f32.mrb[0].mxu0
    %v1487 = vadd.f32 0.0, %v1486
    %v1488 = vpop.f32.mrb[0].mxu0
    %1489 = vmatprep.mubr.bf16.mxu0 0
    %1490 = vmatmul.mubr.bf16.gmra.mrb[0].mxu0 %v1217
    %v1491 = vpop.f32.mrb[0].mxu0
    %v1492 = vadd.f32 0.0, %v1491
    %v1493 = vpop.f32.mrb[0].mxu0
    %v1494 = vpop.f32.mrb[0].mxu0
    %v1495 = vadd.f32 0.0, %v1494
    %v1496 = vpop.f32.mrb[0].mxu0
    %1497 = vmatprep.mubr.bf16.mxu0 0
    %1498 = vmatmul.mubr.bf16.gmra.mrb[0].mxu0 %v1220
    %v1499 = vpop.f32.mrb[0].mxu0
    %v1500 = vadd.f32 0.0, %v1499
    %v1501 = vpop.f32.mrb[0].mxu0
    %v1502 = vpop.f32.mrb[0].mxu0
    %v1503 = vadd.f32 0.0, %v1502
    %v1504 = vpop.f32.mrb[0].mxu0
    %1505 = vmatprep.mubr.bf16.mxu0 0
    %1506 = vmatmul.mubr.bf16.gmra.mrb[0].mxu0 %v1223
    %v1507 = vpop.f32.mrb[0].mxu0
    %v1508 = vadd.f32 0.0, %v1507
    %v1509 = vpop.f32.mrb[0].mxu0
    %v1510 = vpop.f32.mrb[0].mxu0
    %v1511 = vadd.f32 0.0, %v1510
    %v1512 = vpop.f32.mrb[0].mxu0
    %1513 = vdwg.mxu0
    %v1516 = vunpack.c.l.b16 %v1022
    %v1517 = vunpack.c.l.b16 %v1023
    %v1518 = vpack.c.b16 %v1517, %v1516
    %v1521 = vsel %vm147, %v990, 0
    %v1524 = vsel %vm147, %v991, 0
    %v1527 = vsel %vm147, %v992, 0
    %v1530 = vsel %vm147, %v993, 0
    %v1533 = vsel %vm147, %v994, 0
    %v1536 = vsel %vm147, %v995, 0
    %v1539 = vsel %vm147, %v996, 0
    %v1542 = vsel %vm147, %v997, 0
    %v1545 = vsel %vm147, %v998, 0
    %v1548 = vsel %vm147, %v999, 0
    %v1551 = vsel %vm147, %v1000, 0
    %v1554 = vsel %vm147, %v1001, 0
    %v1557 = vsel %vm147, %v1002, 0
    %v1560 = vsel %vm147, %v1003, 0
    %v1563 = vsel %vm147, %v1004, 0
    %v1566 = vsel %vm147, %v1005, 0
    %v1569 = vsel %vm147, %v1006, 0
    %v1572 = vsel %vm147, %v1007, 0
    %v1575 = vsel %vm147, %v1008, 0
    %v1578 = vsel %vm147, %v1009, 0
    %v1581 = vsel %vm147, %v1010, 0
    %v1584 = vsel %vm147, %v1011, 0
    %v1587 = vsel %vm147, %v1012, 0
    %v1590 = vsel %vm147, %v1013, 0
    %v1593 = vsel %vm147, %v1014, 0
    %v1596 = vsel %vm147, %v1015, 0
    %v1599 = vsel %vm147, %v1016, 0
    %v1602 = vsel %vm147, %v1017, 0
    %v1605 = vsel %vm147, %v1018, 0
    %v1608 = vsel %vm147, %v1019, 0
    %v1611 = vsel %vm147, %v1020, 0
    %v1614 = vsel %vm147, %v1021, 0
    %1616 = vmatprep.subr.bf16.mxu0 0
    %1617 = vmatpush1.bf16.msra.mxu0 %v1518
    %1618 = vmatprep.subr.bf16.mxu0 0
    %1619 = vmatpush1.bf16.msra.mxu0 0
    %1620 = vmatprep.subr.bf16.mxu0 0
    %1621 = vmatpush1.bf16.msra.mxu0 0
    %1622 = vmatprep.subr.bf16.mxu0 0
    %1623 = vmatpush1.bf16.msra.mxu0 0
    %1624 = vmatprep.subr.bf16.mxu0 0
    %1625 = vmatpush1.bf16.msra.mxu0 0
    %1626 = vmatprep.subr.bf16.mxu0 0
    %1627 = vmatpush1.bf16.msra.mxu0 0
    %1628 = vmatprep.subr.bf16.mxu0 0
    %1629 = vmatpush1.bf16.msra.mxu0 0
    %1630 = vmatprep.subr.bf16.mxu0 0
    %1631 = vmatpush1.bf16.msra.mxu0 0
    %1632 = vmatprep.subr.bf16.mxu0 0
    %1633 = vmatpush1.bf16.msra.mxu0 0
    %1634 = vmatprep.subr.bf16.mxu0 0
    %1635 = vmatpush1.bf16.msra.mxu0 0
    %1636 = vmatprep.subr.bf16.mxu0 0
    %1637 = vmatpush1.bf16.msra.mxu0 0
    %1638 = vmatprep.subr.bf16.mxu0 0
    %1639 = vmatpush1.bf16.msra.mxu0 0
    %1640 = vmatprep.subr.bf16.mxu0 0
    %1641 = vmatpush1.bf16.msra.mxu0 0
    %1642 = vmatprep.subr.bf16.mxu0 0
    %1643 = vmatpush1.bf16.msra.mxu0 0
    %1644 = vmatprep.subr.bf16.mxu0 0
    %1645 = vmatpush1.bf16.msra.mxu0 0
    %1646 = vmatprep.subr.bf16.mxu0 0
    %1647 = vmatpush1.bf16.msra.mxu0 0
    %1648 = vmatprep.mubr.bf16.mxu0 0
    %1649 = vmatmul.mubr.bf16.gmra.mrb[0].mxu0 %v1521
    %v1650 = vpop.f32.mrb[0].mxu0
    %v1651 = vadd.f32 %v1260, %v1650
    %v1652 = vpop.f32.mrb[0].mxu0
    %v1653 = vpop.f32.mrb[0].mxu0
    %v1654 = vadd.f32 %v1263, %v1653
    %v1655 = vpop.f32.mrb[0].mxu0
    %1656 = vmatprep.mubr.bf16.mxu0 0
    %1657 = vmatmul.mubr.bf16.gmra.mrb[0].mxu0 %v1524
    %v1658 = vpop.f32.mrb[0].mxu0
    %v1659 = vadd.f32 %v1268, %v1658
    %v1660 = vpop.f32.mrb[0].mxu0
    %v1661 = vpop.f32.mrb[0].mxu0
    %v1662 = vadd.f32 %v1271, %v1661
    %v1663 = vpop.f32.mrb[0].mxu0
    %1664 = vmatprep.mubr.bf16.mxu0 0
    %1665 = vmatmul.mubr.bf16.gmra.mrb[0].mxu0 %v1527
    %v1666 = vpop.f32.mrb[0].mxu0
    %v1667 = vadd.f32 %v1276, %v1666
    %v1668 = vpop.f32.mrb[0].mxu0
    %v1669 = vpop.f32.mrb[0].mxu0
    %v1670 = vadd.f32 %v1279, %v1669
    %v1671 = vpop.f32.mrb[0].mxu0
    %1672 = vmatprep.mubr.bf16.mxu0 0
    %1673 = vmatmul.mubr.bf16.gmra.mrb[0].mxu0 %v1530
    %v1674 = vpop.f32.mrb[0].mxu0
    %v1675 = vadd.f32 %v1284, %v1674
    %v1676 = vpop.f32.mrb[0].mxu0
    %v1677 = vpop.f32.mrb[0].mxu0
    %v1678 = vadd.f32 %v1287, %v1677
    %v1679 = vpop.f32.mrb[0].mxu0
    %1680 = vmatprep.mubr.bf16.mxu0 0
    %1681 = vmatmul.mubr.bf16.gmra.mrb[0].mxu0 %v1533
    %v1682 = vpop.f32.mrb[0].mxu0
    %v1683 = vadd.f32 %v1292, %v1682
    %v1684 = vpop.f32.mrb[0].mxu0
    %v1685 = vpop.f32.mrb[0].mxu0
    %v1686 = vadd.f32 %v1295, %v1685
    %v1687 = vpop.f32.mrb[0].mxu0
    %1688 = vmatprep.mubr.bf16.mxu0 0
    %1689 = vmatmul.mubr.bf16.gmra.mrb[0].mxu0 %v1536
    %v1690 = vpop.f32.mrb[0].mxu0
    %v1691 = vadd.f32 %v1300, %v1690
    %v1692 = vpop.f32.mrb[0].mxu0
    %v1693 = vpop.f32.mrb[0].mxu0
    %v1694 = vadd.f32 %v1303, %v1693
    %v1695 = vpop.f32.mrb[0].mxu0
    %1696 = vmatprep.mubr.bf16.mxu0 0
    %1697 = vmatmul.mubr.bf16.gmra.mrb[0].mxu0 %v1539
    %v1698 = vpop.f32.mrb[0].mxu0
    %v1699 = vadd.f32 %v1308, %v1698
    %v1700 = vpop.f32.mrb[0].mxu0
    %v1701 = vpop.f32.mrb[0].mxu0
    %v1702 = vadd.f32 %v1311, %v1701
    %v1703 = vpop.f32.mrb[0].mxu0
    %1704 = vmatprep.mubr.bf16.mxu0 0
    %1705 = vmatmul.mubr.bf16.gmra.mrb[0].mxu0 %v1542
    %v1706 = vpop.f32.mrb[0].mxu0
    %v1707 = vadd.f32 %v1316, %v1706
    %v1708 = vpop.f32.mrb[0].mxu0
    %v1709 = vpop.f32.mrb[0].mxu0
    %v1710 = vadd.f32 %v1319, %v1709
    %v1711 = vpop.f32.mrb[0].mxu0
    %1712 = vmatprep.mubr.bf16.mxu0 0
    %1713 = vmatmul.mubr.bf16.gmra.mrb[0].mxu0 %v1545
    %v1714 = vpop.f32.mrb[0].mxu0
    %v1715 = vadd.f32 %v1324, %v1714
    %v1716 = vpop.f32.mrb[0].mxu0
    %v1717 = vpop.f32.mrb[0].mxu0
    %v1718 = vadd.f32 %v1327, %v1717
    %v1719 = vpop.f32.mrb[0].mxu0
    %1720 = vmatprep.mubr.bf16.mxu0 0
    %1721 = vmatmul.mubr.bf16.gmra.mrb[0].mxu0 %v1548
    %v1722 = vpop.f32.mrb[0].mxu0
    %v1723 = vadd.f32 %v1332, %v1722
    %v1724 = vpop.f32.mrb[0].mxu0
    %v1725 = vpop.f32.mrb[0].mxu0
    %v1726 = vadd.f32 %v1335, %v1725
    %v1727 = vpop.f32.mrb[0].mxu0
    %1728 = vmatprep.mubr.bf16.mxu0 0
    %1729 = vmatmul.mubr.bf16.gmra.mrb[0].mxu0 %v1551
    %v1730 = vpop.f32.mrb[0].mxu0
    %v1731 = vadd.f32 %v1340, %v1730
    %v1732 = vpop.f32.mrb[0].mxu0
    %v1733 = vpop.f32.mrb[0].mxu0
    %v1734 = vadd.f32 %v1343, %v1733
    %v1735 = vpop.f32.mrb[0].mxu0
    %1736 = vmatprep.mubr.bf16.mxu0 0
    %1737 = vmatmul.mubr.bf16.gmra.mrb[0].mxu0 %v1554
    %v1738 = vpop.f32.mrb[0].mxu0
    %v1739 = vadd.f32 %v1348, %v1738
    %v1740 = vpop.f32.mrb[0].mxu0
    %v1741 = vpop.f32.mrb[0].mxu0
    %v1742 = vadd.f32 %v1351, %v1741
    %v1743 = vpop.f32.mrb[0].mxu0
    %1744 = vmatprep.mubr.bf16.mxu0 0
    %1745 = vmatmul.mubr.bf16.gmra.mrb[0].mxu0 %v1557
    %v1746 = vpop.f32.mrb[0].mxu0
    %v1747 = vadd.f32 %v1356, %v1746
    %v1748 = vpop.f32.mrb[0].mxu0
    %v1749 = vpop.f32.mrb[0].mxu0
    %v1750 = vadd.f32 %v1359, %v1749
    %v1751 = vpop.f32.mrb[0].mxu0
    %1752 = vmatprep.mubr.bf16.mxu0 0
    %1753 = vmatmul.mubr.bf16.gmra.mrb[0].mxu0 %v1560
    %v1754 = vpop.f32.mrb[0].mxu0
    %v1755 = vadd.f32 %v1364, %v1754
    %v1756 = vpop.f32.mrb[0].mxu0
    %v1757 = vpop.f32.mrb[0].mxu0
    %v1758 = vadd.f32 %v1367, %v1757
    %v1759 = vpop.f32.mrb[0].mxu0
    %1760 = vmatprep.mubr.bf16.mxu0 0
    %1761 = vmatmul.mubr.bf16.gmra.mrb[0].mxu0 %v1563
    %v1762 = vpop.f32.mrb[0].mxu0
    %v1763 = vadd.f32 %v1372, %v1762
    %v1764 = vpop.f32.mrb[0].mxu0
    %v1765 = vpop.f32.mrb[0].mxu0
    %v1766 = vadd.f32 %v1375, %v1765
    %v1767 = vpop.f32.mrb[0].mxu0
    %1768 = vmatprep.mubr.bf16.mxu0 0
    %1769 = vmatmul.mubr.bf16.gmra.mrb[0].mxu0 %v1566
    %v1770 = vpop.f32.mrb[0].mxu0
    %v1771 = vadd.f32 %v1380, %v1770
    %v1772 = vpop.f32.mrb[0].mxu0
    %v1773 = vpop.f32.mrb[0].mxu0
    %v1774 = vadd.f32 %v1383, %v1773
    %v1775 = vpop.f32.mrb[0].mxu0
    %1776 = vmatprep.mubr.bf16.mxu0 0
    %1777 = vmatmul.mubr.bf16.gmra.mrb[0].mxu0 %v1569
    %v1778 = vpop.f32.mrb[0].mxu0
    %v1779 = vadd.f32 %v1388, %v1778
    %v1780 = vpop.f32.mrb[0].mxu0
    %v1781 = vpop.f32.mrb[0].mxu0
    %v1782 = vadd.f32 %v1391, %v1781
    %v1783 = vpop.f32.mrb[0].mxu0
    %1784 = vmatprep.mubr.bf16.mxu0 0
    %1785 = vmatmul.mubr.bf16.gmra.mrb[0].mxu0 %v1572
    %v1786 = vpop.f32.mrb[0].mxu0
    %v1787 = vadd.f32 %v1396, %v1786
    %v1788 = vpop.f32.mrb[0].mxu0
    %v1789 = vpop.f32.mrb[0].mxu0
    %v1790 = vadd.f32 %v1399, %v1789
    %v1791 = vpop.f32.mrb[0].mxu0
    %1792 = vmatprep.mubr.bf16.mxu0 0
    %1793 = vmatmul.mubr.bf16.gmra.mrb[0].mxu0 %v1575
    %v1794 = vpop.f32.mrb[0].mxu0
    %v1795 = vadd.f32 %v1404, %v1794
    %v1796 = vpop.f32.mrb[0].mxu0
    %v1797 = vpop.f32.mrb[0].mxu0
    %v1798 = vadd.f32 %v1407, %v1797
    %v1799 = vpop.f32.mrb[0].mxu0
    %1800 = vmatprep.mubr.bf16.mxu0 0
    %1801 = vmatmul.mubr.bf16.gmra.mrb[0].mxu0 %v1578
    %v1802 = vpop.f32.mrb[0].mxu0
    %v1803 = vadd.f32 %v1412, %v1802
    %v1804 = vpop.f32.mrb[0].mxu0
    %v1805 = vpop.f32.mrb[0].mxu0
    %v1806 = vadd.f32 %v1415, %v1805
    %v1807 = vpop.f32.mrb[0].mxu0
    %1808 = vmatprep.mubr.bf16.mxu0 0
    %1809 = vmatmul.mubr.bf16.gmra.mrb[0].mxu0 %v1581
    %v1810 = vpop.f32.mrb[0].mxu0
    %v1811 = vadd.f32 %v1420, %v1810
    %v1812 = vpop.f32.mrb[0].mxu0
    %v1813 = vpop.f32.mrb[0].mxu0
    %v1814 = vadd.f32 %v1423, %v1813
    %v1815 = vpop.f32.mrb[0].mxu0
    %1816 = vmatprep.mubr.bf16.mxu0 0
    %1817 = vmatmul.mubr.bf16.gmra.mrb[0].mxu0 %v1584
    %v1818 = vpop.f32.mrb[0].mxu0
    %v1819 = vadd.f32 %v1428, %v1818
    %v1820 = vpop.f32.mrb[0].mxu0
    %v1821 = vpop.f32.mrb[0].mxu0
    %v1822 = vadd.f32 %v1431, %v1821
    %v1823 = vpop.f32.mrb[0].mxu0
    %1824 = vmatprep.mubr.bf16.mxu0 0
    %1825 = vmatmul.mubr.bf16.gmra.mrb[0].mxu0 %v1587
    %v1826 = vpop.f32.mrb[0].mxu0
    %v1827 = vadd.f32 %v1436, %v1826
    %v1828 = vpop.f32.mrb[0].mxu0
    %v1829 = vpop.f32.mrb[0].mxu0
    %v1830 = vadd.f32 %v1439, %v1829
    %v1831 = vpop.f32.mrb[0].mxu0
    %1832 = vmatprep.mubr.bf16.mxu0 0
    %1833 = vmatmul.mubr.bf16.gmra.mrb[0].mxu0 %v1590
    %v1834 = vpop.f32.mrb[0].mxu0
    %v1835 = vadd.f32 %v1444, %v1834
    %v1836 = vpop.f32.mrb[0].mxu0
    %v1837 = vpop.f32.mrb[0].mxu0
    %v1838 = vadd.f32 %v1447, %v1837
    %v1839 = vpop.f32.mrb[0].mxu0
    %1840 = vmatprep.mubr.bf16.mxu0 0
    %1841 = vmatmul.mubr.bf16.gmra.mrb[0].mxu0 %v1593
    %v1842 = vpop.f32.mrb[0].mxu0
    %v1843 = vadd.f32 %v1452, %v1842
    %v1844 = vpop.f32.mrb[0].mxu0
    %v1845 = vpop.f32.mrb[0].mxu0
    %v1846 = vadd.f32 %v1455, %v1845
    %v1847 = vpop.f32.mrb[0].mxu0
    %1848 = vmatprep.mubr.bf16.mxu0 0
    %1849 = vmatmul.mubr.bf16.gmra.mrb[0].mxu0 %v1596
    %v1850 = vpop.f32.mrb[0].mxu0
    %v1851 = vadd.f32 %v1460, %v1850
    %v1852 = vpop.f32.mrb[0].mxu0
    %v1853 = vpop.f32.mrb[0].mxu0
    %v1854 = vadd.f32 %v1463, %v1853
    %v1855 = vpop.f32.mrb[0].mxu0
    %1856 = vmatprep.mubr.bf16.mxu0 0
    %1857 = vmatmul.mubr.bf16.gmra.mrb[0].mxu0 %v1599
    %v1858 = vpop.f32.mrb[0].mxu0
    %v1859 = vadd.f32 %v1468, %v1858
    %v1860 = vpop.f32.mrb[0].mxu0
    %v1861 = vpop.f32.mrb[0].mxu0
    %v1862 = vadd.f32 %v1471, %v1861
    %v1863 = vpop.f32.mrb[0].mxu0
    %1864 = vmatprep.mubr.bf16.mxu0 0
    %1865 = vmatmul.mubr.bf16.gmra.mrb[0].mxu0 %v1602
    %v1866 = vpop.f32.mrb[0].mxu0
    %v1867 = vadd.f32 %v1476, %v1866
    %v1868 = vpop.f32.mrb[0].mxu0
    %v1869 = vpop.f32.mrb[0].mxu0
    %v1870 = vadd.f32 %v1479, %v1869
    %v1871 = vpop.f32.mrb[0].mxu0
    %1872 = vmatprep.mubr.bf16.mxu0 0
    %1873 = vmatmul.mubr.bf16.gmra.mrb[0].mxu0 %v1605
    %v1874 = vpop.f32.mrb[0].mxu0
    %v1875 = vadd.f32 %v1484, %v1874
    %v1876 = vpop.f32.mrb[0].mxu0
    %v1877 = vpop.f32.mrb[0].mxu0
    %v1878 = vadd.f32 %v1487, %v1877
    %v1879 = vpop.f32.mrb[0].mxu0
    %1880 = vmatprep.mubr.bf16.mxu0 0
    %1881 = vmatmul.mubr.bf16.gmra.mrb[0].mxu0 %v1608
    %v1882 = vpop.f32.mrb[0].mxu0
    %v1883 = vadd.f32 %v1492, %v1882
    %v1884 = vpop.f32.mrb[0].mxu0
    %v1885 = vpop.f32.mrb[0].mxu0
    %v1886 = vadd.f32 %v1495, %v1885
    %v1887 = vpop.f32.mrb[0].mxu0
    %1888 = vmatprep.mubr.bf16.mxu0 0
    %1889 = vmatmul.mubr.bf16.gmra.mrb[0].mxu0 %v1611
    %v1890 = vpop.f32.mrb[0].mxu0
    %v1891 = vadd.f32 %v1500, %v1890
    %v1892 = vpop.f32.mrb[0].mxu0
    %v1893 = vpop.f32.mrb[0].mxu0
    %v1894 = vadd.f32 %v1503, %v1893
    %v1895 = vpop.f32.mrb[0].mxu0
    %1896 = vmatprep.mubr.bf16.mxu0 0
    %1897 = vmatmul.mubr.bf16.gmra.mrb[0].mxu0 %v1614
    %v1898 = vpop.f32.mrb[0].mxu0
    %v1899 = vadd.f32 %v1508, %v1898
    %v1900 = vpop.f32.mrb[0].mxu0
    %v1901 = vpop.f32.mrb[0].mxu0
    %v1902 = vadd.f32 %v1511, %v1901
    %v1903 = vpop.f32.mrb[0].mxu0
    %1904 = vdwg.mxu0
    %v1905 = vld [vmem:[#allocation2 + $0x2] sm:$0xff]
    %v1906 = vld [vmem:[#allocation2 + $0xa] sm:$0xff]
    %v1907 = vld [vmem:[#allocation2 + $0x1a] sm:$0xff]
    %v1908 = vld [vmem:[#allocation2 + $0x22] sm:$0xff]
    %v1909 = vld [vmem:[#allocation2 + $0x32] sm:$0xff]
    %v1910 = vld [vmem:[#allocation2 + $0x3a] sm:$0xff]
    %v1911 = vld [vmem:[#allocation2 + $0x4a] sm:$0xff]
    %v1912 = vld [vmem:[#allocation2 + $0x52] sm:$0xff]
    %v1913 = vld [vmem:[#allocation2 + $0x62] sm:$0xff]
    %v1914 = vld [vmem:[#allocation2 + $0x6a] sm:$0xff]
    %v1915 = vld [vmem:[#allocation2 + $0x7a] sm:$0xff]
    %v1916 = vld [vmem:[#allocation2 + $0x82] sm:$0xff]
    %v1917 = vld [vmem:[#allocation2 + $0x92] sm:$0xff]
    %v1918 = vld [vmem:[#allocation2 + $0x9a] sm:$0xff]
    %v1919 = vld [vmem:[#allocation2 + $0xaa] sm:$0xff]
    %v1920 = vld [vmem:[#allocation2 + $0xb2] sm:$0xff]
    %v1921 = vld [vmem:[#allocation2 + $0xc2] sm:$0xff]
    %v1922 = vld [vmem:[#allocation2 + $0xca] sm:$0xff]
    %v1923 = vld [vmem:[#allocation2 + $0xda] sm:$0xff]
    %v1924 = vld [vmem:[#allocation2 + $0xe2] sm:$0xff]
    %v1925 = vld [vmem:[#allocation2 + $0xf2] sm:$0xff]
    %v1926 = vld [vmem:[#allocation2 + $0xfa] sm:$0xff]
    %v1927 = vld [vmem:[#allocation2 + $0x10a] sm:$0xff]
    %v1928 = vld [vmem:[#allocation2 + $0x112] sm:$0xff]
    %v1929 = vld [vmem:[#allocation2 + $0x122] sm:$0xff]
    %v1930 = vld [vmem:[#allocation2 + $0x12a] sm:$0xff]
    %v1931 = vld [vmem:[#allocation2 + $0x13a] sm:$0xff]
    %v1932 = vld [vmem:[#allocation2 + $0x142] sm:$0xff]
    %v1933 = vld [vmem:[#allocation2 + $0x152] sm:$0xff]
    %v1934 = vld [vmem:[#allocation2 + $0x15a] sm:$0xff]
    %v1935 = vld [vmem:[#allocation2 + $0x16a] sm:$0xff]
    %v1936 = vld [vmem:[#allocation2 + $0x172] sm:$0xff]
    %v1937 = vld [vmem:[#allocation2 + $0x1b2] sm:$0xff]
    %v1938 = vld [vmem:[#allocation2 + $0x1ba] sm:$0xff]
    %v1939 = vld [vmem:[#allocation2 + $0x1ca] sm:$0xff]
    %v1940 = vld [vmem:[#allocation2 + $0x1d2] sm:$0xff]
    %v1941 = vld [vmem:[#allocation2 + $0x1e2] sm:$0xff]
    %v1942 = vld [vmem:[#allocation2 + $0x1ea] sm:$0xff]
    %v1943 = vld [vmem:[#allocation2 + $0x1fa] sm:$0xff]
    %v1944 = vld [vmem:[#allocation2 + $0x202] sm:$0xff]
    %v1945 = vld [vmem:[#allocation2 + $0x212] sm:$0xff]
    %v1946 = vld [vmem:[#allocation2 + $0x21a] sm:$0xff]
    %v1947 = vld [vmem:[#allocation2 + $0x22a] sm:$0xff]
    %v1948 = vld [vmem:[#allocation2 + $0x232] sm:$0xff]
    %v1949 = vld [vmem:[#allocation2 + $0x242] sm:$0xff]
    %v1950 = vld [vmem:[#allocation2 + $0x24a] sm:$0xff]
    %v1951 = vld [vmem:[#allocation2 + $0x25a] sm:$0xff]
    %v1952 = vld [vmem:[#allocation2 + $0x262] sm:$0xff]
    %v1953 = vld [vmem:[#allocation2 + $0x272] sm:$0xff]
    %v1954 = vld [vmem:[#allocation2 + $0x27a] sm:$0xff]
    %v1955 = vld [vmem:[#allocation2 + $0x28a] sm:$0xff]
    %v1956 = vld [vmem:[#allocation2 + $0x292] sm:$0xff]
    %v1957 = vld [vmem:[#allocation2 + $0x2a2] sm:$0xff]
    %v1958 = vld [vmem:[#allocation2 + $0x2aa] sm:$0xff]
    %v1959 = vld [vmem:[#allocation2 + $0x2ba] sm:$0xff]
    %v1960 = vld [vmem:[#allocation2 + $0x2c2] sm:$0xff]
    %v1961 = vld [vmem:[#allocation2 + $0x2d2] sm:$0xff]
    %v1962 = vld [vmem:[#allocation2 + $0x2da] sm:$0xff]
    %v1963 = vld [vmem:[#allocation2 + $0x2ea] sm:$0xff]
    %v1964 = vld [vmem:[#allocation2 + $0x2f2] sm:$0xff]
    %v1965 = vld [vmem:[#allocation2 + $0x302] sm:$0xff]
    %v1966 = vld [vmem:[#allocation2 + $0x30a] sm:$0xff]
    %v1967 = vld [vmem:[#allocation2 + $0x31a] sm:$0xff]
    %v1968 = vld [vmem:[#allocation2 + $0x322] sm:$0xff]
    %v1969 = vpack.c.bf16 %v1906, %v1905
    %v1970 = vpack.c.bf16 %v1908, %v1907
    %v1971 = vpack.c.bf16 %v1910, %v1909
    %v1972 = vpack.c.bf16 %v1912, %v1911
    %v1973 = vpack.c.bf16 %v1914, %v1913
    %v1974 = vpack.c.bf16 %v1916, %v1915
    %v1975 = vpack.c.bf16 %v1918, %v1917
    %v1976 = vpack.c.bf16 %v1920, %v1919
    %v1977 = vpack.c.bf16 %v1922, %v1921
    %v1978 = vpack.c.bf16 %v1924, %v1923
    %v1979 = vpack.c.bf16 %v1926, %v1925
    %v1980 = vpack.c.bf16 %v1928, %v1927
    %v1981 = vpack.c.bf16 %v1930, %v1929
    %v1982 = vpack.c.bf16 %v1932, %v1931
    %v1983 = vpack.c.bf16 %v1934, %v1933
    %v1984 = vpack.c.bf16 %v1936, %v1935
    %v1985 = vpack.c.bf16 %v1938, %v1937
    %v1986 = vpack.c.bf16 %v1940, %v1939
    %v1987 = vpack.c.bf16 %v1942, %v1941
    %v1988 = vpack.c.bf16 %v1944, %v1943
    %v1989 = vpack.c.bf16 %v1946, %v1945
    %v1990 = vpack.c.bf16 %v1948, %v1947
    %v1991 = vpack.c.bf16 %v1950, %v1949
    %v1992 = vpack.c.bf16 %v1952, %v1951
    %v1993 = vpack.c.bf16 %v1954, %v1953
    %v1994 = vpack.c.bf16 %v1956, %v1955
    %v1995 = vpack.c.bf16 %v1958, %v1957
    %v1996 = vpack.c.bf16 %v1960, %v1959
    %v1997 = vpack.c.bf16 %v1962, %v1961
    %v1998 = vpack.c.bf16 %v1964, %v1963
    %v1999 = vpack.c.bf16 %v1966, %v1965
    %v2000 = vpack.c.bf16 %v1968, %v1967
    %s2001 = scalar_lea.vmem [#allocation7], 16
    %v2002 = vld [vmem:[%s2001] sm:$0xf]
    %v2003 = vld [vmem:[%s2001 + $0x4] sm:$0xf]
    %v2006 = vunpack.c.l.b16 %v2002
    %v2007 = vunpack.c.l.b16 %v2003
    %v2008 = vpack.c.b16 %v2007, %v2006
    %v2011 = vsel %vm147, %v1969, 0
    %v2014 = vsel %vm147, %v1970, 0
    %v2017 = vsel %vm147, %v1971, 0
    %v2020 = vsel %vm147, %v1972, 0
    %v2023 = vsel %vm147, %v1973, 0
    %v2026 = vsel %vm147, %v1974, 0
    %v2029 = vsel %vm147, %v1975, 0
    %v2032 = vsel %vm147, %v1976, 0
    %v2035 = vsel %vm147, %v1977, 0
    %v2038 = vsel %vm147, %v1978, 0
    %v2041 = vsel %vm147, %v1979, 0
    %v2044 = vsel %vm147, %v1980, 0
    %v2047 = vsel %vm147, %v1981, 0
    %v2050 = vsel %vm147, %v1982, 0
    %v2053 = vsel %vm147, %v1983, 0
    %v2056 = vsel %vm147, %v1984, 0
    %v2059 = vsel %vm147, %v1985, 0
    %v2062 = vsel %vm147, %v1986, 0
    %v2065 = vsel %vm147, %v1987, 0
    %v2068 = vsel %vm147, %v1988, 0
    %v2071 = vsel %vm147, %v1989, 0
    %v2074 = vsel %vm147, %v1990, 0
    %v2077 = vsel %vm147, %v1991, 0
    %v2080 = vsel %vm147, %v1992, 0
    %v2083 = vsel %vm147, %v1993, 0
    %v2086 = vsel %vm147, %v1994, 0
    %v2089 = vsel %vm147, %v1995, 0
    %v2092 = vsel %vm147, %v1996, 0
    %v2095 = vsel %vm147, %v1997, 0
    %v2098 = vsel %vm147, %v1998, 0
    %v2101 = vsel %vm147, %v1999, 0
    %v2104 = vsel %vm147, %v2000, 0
    %2106 = vmatprep.subr.bf16.mxu0 0
    %2107 = vmatpush1.bf16.msra.mxu0 %v2008
    %2108 = vmatprep.subr.bf16.mxu0 0
    %2109 = vmatpush1.bf16.msra.mxu0 0
    %2110 = vmatprep.subr.bf16.mxu0 0
    %2111 = vmatpush1.bf16.msra.mxu0 0
    %2112 = vmatprep.subr.bf16.mxu0 0
    %2113 = vmatpush1.bf16.msra.mxu0 0
    %2114 = vmatprep.subr.bf16.mxu0 0
    %2115 = vmatpush1.bf16.msra.mxu0 0
    %2116 = vmatprep.subr.bf16.mxu0 0
    %2117 = vmatpush1.bf16.msra.mxu0 0
    %2118 = vmatprep.subr.bf16.mxu0 0
    %2119 = vmatpush1.bf16.msra.mxu0 0
    %2120 = vmatprep.subr.bf16.mxu0 0
    %2121 = vmatpush1.bf16.msra.mxu0 0
    %2122 = vmatprep.subr.bf16.mxu0 0
    %2123 = vmatpush1.bf16.msra.mxu0 0
    %2124 = vmatprep.subr.bf16.mxu0 0
    %2125 = vmatpush1.bf16.msra.mxu0 0
    %2126 = vmatprep.subr.bf16.mxu0 0
    %2127 = vmatpush1.bf16.msra.mxu0 0
    %2128 = vmatprep.subr.bf16.mxu0 0
    %2129 = vmatpush1.bf16.msra.mxu0 0
    %2130 = vmatprep.subr.bf16.mxu0 0
    %2131 = vmatpush1.bf16.msra.mxu0 0
    %2132 = vmatprep.subr.bf16.mxu0 0
    %2133 = vmatpush1.bf16.msra.mxu0 0
    %2134 = vmatprep.subr.bf16.mxu0 0
    %2135 = vmatpush1.bf16.msra.mxu0 0
    %2136 = vmatprep.subr.bf16.mxu0 0
    %2137 = vmatpush1.bf16.msra.mxu0 0
    %2138 = vmatprep.mubr.bf16.mxu0 0
    %2139 = vmatmul.mubr.bf16.gmra.mrb[0].mxu0 %v2011
    %v2140 = vpop.f32.mrb[0].mxu0
    %v2141 = vadd.f32 0.0, %v2140
    %v2142 = vpop.f32.mrb[0].mxu0
    %v2143 = vpop.f32.mrb[0].mxu0
    %v2144 = vadd.f32 0.0, %v2143
    %v2145 = vpop.f32.mrb[0].mxu0
    %2146 = vmatprep.mubr.bf16.mxu0 0
    %2147 = vmatmul.mubr.bf16.gmra.mrb[0].mxu0 %v2014
    %v2148 = vpop.f32.mrb[0].mxu0
    %v2149 = vadd.f32 0.0, %v2148
    %v2150 = vpop.f32.mrb[0].mxu0
    %v2151 = vpop.f32.mrb[0].mxu0
    %v2152 = vadd.f32 0.0, %v2151
    %v2153 = vpop.f32.mrb[0].mxu0
    %2154 = vmatprep.mubr.bf16.mxu0 0
    %2155 = vmatmul.mubr.bf16.gmra.mrb[0].mxu0 %v2017
    %v2156 = vpop.f32.mrb[0].mxu0
    %v2157 = vadd.f32 0.0, %v2156
    %v2158 = vpop.f32.mrb[0].mxu0
    %v2159 = vpop.f32.mrb[0].mxu0
    %v2160 = vadd.f32 0.0, %v2159
    %v2161 = vpop.f32.mrb[0].mxu0
    %2162 = vmatprep.mubr.bf16.mxu0 0
    %2163 = vmatmul.mubr.bf16.gmra.mrb[0].mxu0 %v2020
    %v2164 = vpop.f32.mrb[0].mxu0
    %v2165 = vadd.f32 0.0, %v2164
    %v2166 = vpop.f32.mrb[0].mxu0
    %v2167 = vpop.f32.mrb[0].mxu0
    %v2168 = vadd.f32 0.0, %v2167
    %v2169 = vpop.f32.mrb[0].mxu0
    %2170 = vmatprep.mubr.bf16.mxu0 0
    %2171 = vmatmul.mubr.bf16.gmra.mrb[0].mxu0 %v2023
    %v2172 = vpop.f32.mrb[0].mxu0
    %v2173 = vadd.f32 0.0, %v2172
    %v2174 = vpop.f32.mrb[0].mxu0
    %v2175 = vpop.f32.mrb[0].mxu0
    %v2176 = vadd.f32 0.0, %v2175
    %v2177 = vpop.f32.mrb[0].mxu0
    %2178 = vmatprep.mubr.bf16.mxu0 0
    %2179 = vmatmul.mubr.bf16.gmra.mrb[0].mxu0 %v2026
    %v2180 = vpop.f32.mrb[0].mxu0
    %v2181 = vadd.f32 0.0, %v2180
    %v2182 = vpop.f32.mrb[0].mxu0
    %v2183 = vpop.f32.mrb[0].mxu0
    %v2184 = vadd.f32 0.0, %v2183
    %v2185 = vpop.f32.mrb[0].mxu0
    %2186 = vmatprep.mubr.bf16.mxu0 0
    %2187 = vmatmul.mubr.bf16.gmra.mrb[0].mxu0 %v2029
    %v2188 = vpop.f32.mrb[0].mxu0
    %v2189 = vadd.f32 0.0, %v2188
    %v2190 = vpop.f32.mrb[0].mxu0
    %v2191 = vpop.f32.mrb[0].mxu0
    %v2192 = vadd.f32 0.0, %v2191
    %v2193 = vpop.f32.mrb[0].mxu0
    %2194 = vmatprep.mubr.bf16.mxu0 0
    %2195 = vmatmul.mubr.bf16.gmra.mrb[0].mxu0 %v2032
    %v2196 = vpop.f32.mrb[0].mxu0
    %v2197 = vadd.f32 0.0, %v2196
    %v2198 = vpop.f32.mrb[0].mxu0
    %v2199 = vpop.f32.mrb[0].mxu0
    %v2200 = vadd.f32 0.0, %v2199
    %v2201 = vpop.f32.mrb[0].mxu0
    %2202 = vmatprep.mubr.bf16.mxu0 0
    %2203 = vmatmul.mubr.bf16.gmra.mrb[0].mxu0 %v2035
    %v2204 = vpop.f32.mrb[0].mxu0
    %v2205 = vadd.f32 0.0, %v2204
    %v2206 = vpop.f32.mrb[0].mxu0
    %v2207 = vpop.f32.mrb[0].mxu0
    %v2208 = vadd.f32 0.0, %v2207
    %v2209 = vpop.f32.mrb[0].mxu0
    %2210 = vmatprep.mubr.bf16.mxu0 0
    %2211 = vmatmul.mubr.bf16.gmra.mrb[0].mxu0 %v2038
    %v2212 = vpop.f32.mrb[0].mxu0
    %v2213 = vadd.f32 0.0, %v2212
    %v2214 = vpop.f32.mrb[0].mxu0
    %v2215 = vpop.f32.mrb[0].mxu0
    %v2216 = vadd.f32 0.0, %v2215
    %v2217 = vpop.f32.mrb[0].mxu0
    %2218 = vmatprep.mubr.bf16.mxu0 0
    %2219 = vmatmul.mubr.bf16.gmra.mrb[0].mxu0 %v2041
    %v2220 = vpop.f32.mrb[0].mxu0
    %v2221 = vadd.f32 0.0, %v2220
    %v2222 = vpop.f32.mrb[0].mxu0
    %v2223 = vpop.f32.mrb[0].mxu0
    %v2224 = vadd.f32 0.0, %v2223
    %v2225 = vpop.f32.mrb[0].mxu0
    %2226 = vmatprep.mubr.bf16.mxu0 0
    %2227 = vmatmul.mubr.bf16.gmra.mrb[0].mxu0 %v2044
    %v2228 = vpop.f32.mrb[0].mxu0
    %v2229 = vadd.f32 0.0, %v2228
    %v2230 = vpop.f32.mrb[0].mxu0
    %v2231 = vpop.f32.mrb[0].mxu0
    %v2232 = vadd.f32 0.0, %v2231
    %v2233 = vpop.f32.mrb[0].mxu0
    %2234 = vmatprep.mubr.bf16.mxu0 0
    %2235 = vmatmul.mubr.bf16.gmra.mrb[0].mxu0 %v2047
    %v2236 = vpop.f32.mrb[0].mxu0
    %v2237 = vadd.f32 0.0, %v2236
    %v2238 = vpop.f32.mrb[0].mxu0
    %v2239 = vpop.f32.mrb[0].mxu0
    %v2240 = vadd.f32 0.0, %v2239
    %v2241 = vpop.f32.mrb[0].mxu0
    %2242 = vmatprep.mubr.bf16.mxu0 0
    %2243 = vmatmul.mubr.bf16.gmra.mrb[0].mxu0 %v2050
    %v2244 = vpop.f32.mrb[0].mxu0
    %v2245 = vadd.f32 0.0, %v2244
    %v2246 = vpop.f32.mrb[0].mxu0
    %v2247 = vpop.f32.mrb[0].mxu0
    %v2248 = vadd.f32 0.0, %v2247
    %v2249 = vpop.f32.mrb[0].mxu0
    %2250 = vmatprep.mubr.bf16.mxu0 0
    %2251 = vmatmul.mubr.bf16.gmra.mrb[0].mxu0 %v2053
    %v2252 = vpop.f32.mrb[0].mxu0
    %v2253 = vadd.f32 0.0, %v2252
    %v2254 = vpop.f32.mrb[0].mxu0
    %v2255 = vpop.f32.mrb[0].mxu0
    %v2256 = vadd.f32 0.0, %v2255
    %v2257 = vpop.f32.mrb[0].mxu0
    %2258 = vmatprep.mubr.bf16.mxu0 0
    %2259 = vmatmul.mubr.bf16.gmra.mrb[0].mxu0 %v2056
    %v2260 = vpop.f32.mrb[0].mxu0
    %v2261 = vadd.f32 0.0, %v2260
    %v2262 = vpop.f32.mrb[0].mxu0
    %v2263 = vpop.f32.mrb[0].mxu0
    %v2264 = vadd.f32 0.0, %v2263
    %v2265 = vpop.f32.mrb[0].mxu0
    %2266 = vmatprep.mubr.bf16.mxu0 0
    %2267 = vmatmul.mubr.bf16.gmra.mrb[0].mxu0 %v2059
    %v2268 = vpop.f32.mrb[0].mxu0
    %v2269 = vadd.f32 0.0, %v2268
    %v2270 = vpop.f32.mrb[0].mxu0
    %v2271 = vpop.f32.mrb[0].mxu0
    %v2272 = vadd.f32 0.0, %v2271
    %v2273 = vpop.f32.mrb[0].mxu0
    %2274 = vmatprep.mubr.bf16.mxu0 0
    %2275 = vmatmul.mubr.bf16.gmra.mrb[0].mxu0 %v2062
    %v2276 = vpop.f32.mrb[0].mxu0
    %v2277 = vadd.f32 0.0, %v2276
    %v2278 = vpop.f32.mrb[0].mxu0
    %v2279 = vpop.f32.mrb[0].mxu0
    %v2280 = vadd.f32 0.0, %v2279
    %v2281 = vpop.f32.mrb[0].mxu0
    %2282 = vmatprep.mubr.bf16.mxu0 0
    %2283 = vmatmul.mubr.bf16.gmra.mrb[0].mxu0 %v2065
    %v2284 = vpop.f32.mrb[0].mxu0
    %v2285 = vadd.f32 0.0, %v2284
    %v2286 = vpop.f32.mrb[0].mxu0
    %v2287 = vpop.f32.mrb[0].mxu0
    %v2288 = vadd.f32 0.0, %v2287
    %v2289 = vpop.f32.mrb[0].mxu0
    %2290 = vmatprep.mubr.bf16.mxu0 0
    %2291 = vmatmul.mubr.bf16.gmra.mrb[0].mxu0 %v2068
    %v2292 = vpop.f32.mrb[0].mxu0
    %v2293 = vadd.f32 0.0, %v2292
    %v2294 = vpop.f32.mrb[0].mxu0
    %v2295 = vpop.f32.mrb[0].mxu0
    %v2296 = vadd.f32 0.0, %v2295
    %v2297 = vpop.f32.mrb[0].mxu0
    %2298 = vmatprep.mubr.bf16.mxu0 0
    %2299 = vmatmul.mubr.bf16.gmra.mrb[0].mxu0 %v2071
    %v2300 = vpop.f32.mrb[0].mxu0
    %v2301 = vadd.f32 0.0, %v2300
    %v2302 = vpop.f32.mrb[0].mxu0
    %v2303 = vpop.f32.mrb[0].mxu0
    %v2304 = vadd.f32 0.0, %v2303
    %v2305 = vpop.f32.mrb[0].mxu0
    %2306 = vmatprep.mubr.bf16.mxu0 0
    %2307 = vmatmul.mubr.bf16.gmra.mrb[0].mxu0 %v2074
    %v2308 = vpop.f32.mrb[0].mxu0
    %v2309 = vadd.f32 0.0, %v2308
    %v2310 = vpop.f32.mrb[0].mxu0
    %v2311 = vpop.f32.mrb[0].mxu0
    %v2312 = vadd.f32 0.0, %v2311
    %v2313 = vpop.f32.mrb[0].mxu0
    %2314 = vmatprep.mubr.bf16.mxu0 0
    %2315 = vmatmul.mubr.bf16.gmra.mrb[0].mxu0 %v2077
    %v2316 = vpop.f32.mrb[0].mxu0
    %v2317 = vadd.f32 0.0, %v2316
    %v2318 = vpop.f32.mrb[0].mxu0
    %v2319 = vpop.f32.mrb[0].mxu0
    %v2320 = vadd.f32 0.0, %v2319
    %v2321 = vpop.f32.mrb[0].mxu0
    %2322 = vmatprep.mubr.bf16.mxu0 0
    %2323 = vmatmul.mubr.bf16.gmra.mrb[0].mxu0 %v2080
    %v2324 = vpop.f32.mrb[0].mxu0
    %v2325 = vadd.f32 0.0, %v2324
    %v2326 = vpop.f32.mrb[0].mxu0
    %v2327 = vpop.f32.mrb[0].mxu0
    %v2328 = vadd.f32 0.0, %v2327
    %v2329 = vpop.f32.mrb[0].mxu0
    %2330 = vmatprep.mubr.bf16.mxu0 0
    %2331 = vmatmul.mubr.bf16.gmra.mrb[0].mxu0 %v2083
    %v2332 = vpop.f32.mrb[0].mxu0
    %v2333 = vadd.f32 0.0, %v2332
    %v2334 = vpop.f32.mrb[0].mxu0
    %v2335 = vpop.f32.mrb[0].mxu0
    %v2336 = vadd.f32 0.0, %v2335
    %v2337 = vpop.f32.mrb[0].mxu0
    %2338 = vmatprep.mubr.bf16.mxu0 0
    %2339 = vmatmul.mubr.bf16.gmra.mrb[0].mxu0 %v2086
    %v2340 = vpop.f32.mrb[0].mxu0
    %v2341 = vadd.f32 0.0, %v2340
    %v2342 = vpop.f32.mrb[0].mxu0
    %v2343 = vpop.f32.mrb[0].mxu0
    %v2344 = vadd.f32 0.0, %v2343
    %v2345 = vpop.f32.mrb[0].mxu0
    %2346 = vmatprep.mubr.bf16.mxu0 0
    %2347 = vmatmul.mubr.bf16.gmra.mrb[0].mxu0 %v2089
    %v2348 = vpop.f32.mrb[0].mxu0
    %v2349 = vadd.f32 0.0, %v2348
    %v2350 = vpop.f32.mrb[0].mxu0
    %v2351 = vpop.f32.mrb[0].mxu0
    %v2352 = vadd.f32 0.0, %v2351
    %v2353 = vpop.f32.mrb[0].mxu0
    %2354 = vmatprep.mubr.bf16.mxu0 0
    %2355 = vmatmul.mubr.bf16.gmra.mrb[0].mxu0 %v2092
    %v2356 = vpop.f32.mrb[0].mxu0
    %v2357 = vadd.f32 0.0, %v2356
    %v2358 = vpop.f32.mrb[0].mxu0
    %v2359 = vpop.f32.mrb[0].mxu0
    %v2360 = vadd.f32 0.0, %v2359
    %v2361 = vpop.f32.mrb[0].mxu0
    %2362 = vmatprep.mubr.bf16.mxu0 0
    %2363 = vmatmul.mubr.bf16.gmra.mrb[0].mxu0 %v2095
    %v2364 = vpop.f32.mrb[0].mxu0
    %v2365 = vadd.f32 0.0, %v2364
    %v2366 = vpop.f32.mrb[0].mxu0
    %v2367 = vpop.f32.mrb[0].mxu0
    %v2368 = vadd.f32 0.0, %v2367
    %v2369 = vpop.f32.mrb[0].mxu0
    %2370 = vmatprep.mubr.bf16.mxu0 0
    %2371 = vmatmul.mubr.bf16.gmra.mrb[0].mxu0 %v2098
    %v2372 = vpop.f32.mrb[0].mxu0
    %v2373 = vadd.f32 0.0, %v2372
    %v2374 = vpop.f32.mrb[0].mxu0
    %v2375 = vpop.f32.mrb[0].mxu0
    %v2376 = vadd.f32 0.0, %v2375
    %v2377 = vpop.f32.mrb[0].mxu0
    %2378 = vmatprep.mubr.bf16.mxu0 0
    %2379 = vmatmul.mubr.bf16.gmra.mrb[0].mxu0 %v2101
    %v2380 = vpop.f32.mrb[0].mxu0
    %v2381 = vadd.f32 0.0, %v2380
    %v2382 = vpop.f32.mrb[0].mxu0
    %v2383 = vpop.f32.mrb[0].mxu0
    %v2384 = vadd.f32 0.0, %v2383
    %v2385 = vpop.f32.mrb[0].mxu0
    %2386 = vmatprep.mubr.bf16.mxu0 0
    %2387 = vmatmul.mubr.bf16.gmra.mrb[0].mxu0 %v2104
    %v2388 = vpop.f32.mrb[0].mxu0
    %v2389 = vadd.f32 0.0, %v2388
    %v2390 = vpop.f32.mrb[0].mxu0
    %v2391 = vpop.f32.mrb[0].mxu0
    %v2392 = vadd.f32 0.0, %v2391
    %v2393 = vpop.f32.mrb[0].mxu0
    %2394 = vdwg.mxu0
    %v2395 = vadd.f32 %v1651, %v2141
    %v2396 = vadd.f32 %v1654, %v2144
    %v2397 = vadd.f32 %v1659, %v2149
    %v2398 = vadd.f32 %v1662, %v2152
    %v2399 = vadd.f32 %v1667, %v2157
    %v2400 = vadd.f32 %v1670, %v2160
    %v2401 = vadd.f32 %v1675, %v2165
    %v2402 = vadd.f32 %v1678, %v2168
    %v2403 = vadd.f32 %v1683, %v2173
    %v2404 = vadd.f32 %v1686, %v2176
    %v2405 = vadd.f32 %v1691, %v2181
    %v2406 = vadd.f32 %v1694, %v2184
    %v2407 = vadd.f32 %v1699, %v2189
    %v2408 = vadd.f32 %v1702, %v2192
    %v2409 = vadd.f32 %v1707, %v2197
    %v2410 = vadd.f32 %v1710, %v2200
    %v2411 = vadd.f32 %v1715, %v2205
    %v2412 = vadd.f32 %v1718, %v2208
    %v2413 = vadd.f32 %v1723, %v2213
    %v2414 = vadd.f32 %v1726, %v2216
    %v2415 = vadd.f32 %v1731, %v2221
    %v2416 = vadd.f32 %v1734, %v2224
    %v2417 = vadd.f32 %v1739, %v2229
    %v2418 = vadd.f32 %v1742, %v2232
    %v2419 = vadd.f32 %v1747, %v2237
    %v2420 = vadd.f32 %v1750, %v2240
    %v2421 = vadd.f32 %v1755, %v2245
    %v2422 = vadd.f32 %v1758, %v2248
    %v2423 = vadd.f32 %v1763, %v2253
    %v2424 = vadd.f32 %v1766, %v2256
    %v2425 = vadd.f32 %v1771, %v2261
    %v2426 = vadd.f32 %v1774, %v2264
    %v2427 = vadd.f32 %v1779, %v2269
    %v2428 = vadd.f32 %v1782, %v2272
    %v2429 = vadd.f32 %v1787, %v2277
    %v2430 = vadd.f32 %v1790, %v2280
    %v2431 = vadd.f32 %v1795, %v2285
    %v2432 = vadd.f32 %v1798, %v2288
    %v2433 = vadd.f32 %v1803, %v2293
    %v2434 = vadd.f32 %v1806, %v2296
    %v2435 = vadd.f32 %v1811, %v2301
    %v2436 = vadd.f32 %v1814, %v2304
    %v2437 = vadd.f32 %v1819, %v2309
    %v2438 = vadd.f32 %v1822, %v2312
    %v2439 = vadd.f32 %v1827, %v2317
    %v2440 = vadd.f32 %v1830, %v2320
    %v2441 = vadd.f32 %v1835, %v2325
    %v2442 = vadd.f32 %v1838, %v2328
    %v2443 = vadd.f32 %v1843, %v2333
    %v2444 = vadd.f32 %v1846, %v2336
    %v2445 = vadd.f32 %v1851, %v2341
    %v2446 = vadd.f32 %v1854, %v2344
    %v2447 = vadd.f32 %v1859, %v2349
    %v2448 = vadd.f32 %v1862, %v2352
    %v2449 = vadd.f32 %v1867, %v2357
    %v2450 = vadd.f32 %v1870, %v2360
    %v2451 = vadd.f32 %v1875, %v2365
    %v2452 = vadd.f32 %v1878, %v2368
    %v2453 = vadd.f32 %v1883, %v2373
    %v2454 = vadd.f32 %v1886, %v2376
    %v2455 = vadd.f32 %v1891, %v2381
    %v2456 = vadd.f32 %v1894, %v2384
    %v2457 = vadd.f32 %v1899, %v2389
    %v2458 = vadd.f32 %v1902, %v2392
    %v2459 = vld [vmem:[%s861] sm:$0xff]
    %v2460 = vld [vmem:[%s861 + $0x8] sm:$0xff]
    %v2461 = vld [vmem:[%s861 + $0x18] sm:$0xff]
    %v2462 = vld [vmem:[%s861 + $0x20] sm:$0xff]
    %v2463 = vld [vmem:[%s861 + $0x30] sm:$0xff]
    %v2464 = vld [vmem:[%s861 + $0x38] sm:$0xff]
    %v2465 = vld [vmem:[%s861 + $0x48] sm:$0xff]
    %v2466 = vld [vmem:[%s861 + $0x50] sm:$0xff]
    %v2467 = vld [vmem:[%s861 + $0x60] sm:$0xff]
    %v2468 = vld [vmem:[%s861 + $0x68] sm:$0xff]
    %v2469 = vld [vmem:[%s861 + $0x78] sm:$0xff]
    %v2470 = vld [vmem:[%s861 + $0x80] sm:$0xff]
    %v2471 = vld [vmem:[%s861 + $0x90] sm:$0xff]
    %v2472 = vld [vmem:[%s861 + $0x98] sm:$0xff]
    %v2473 = vld [vmem:[%s861 + $0xa8] sm:$0xff]
    %v2474 = vld [vmem:[%s861 + $0xb0] sm:$0xff]
    %v2475 = vld [vmem:[%s861 + $0xc0] sm:$0xff]
    %v2476 = vld [vmem:[%s861 + $0xc8] sm:$0xff]
    %v2477 = vld [vmem:[%s861 + $0xd8] sm:$0xff]
    %v2478 = vld [vmem:[%s861 + $0xe0] sm:$0xff]
    %v2479 = vld [vmem:[%s861 + $0xf0] sm:$0xff]
    %v2480 = vld [vmem:[%s861 + $0xf8] sm:$0xff]
    %v2481 = vld [vmem:[%s861 + $0x108] sm:$0xff]
    %v2482 = vld [vmem:[%s861 + $0x110] sm:$0xff]
    %v2483 = vld [vmem:[%s861 + $0x120] sm:$0xff]
    %v2484 = vld [vmem:[%s861 + $0x128] sm:$0xff]
    %v2485 = vld [vmem:[%s861 + $0x138] sm:$0xff]
    %v2486 = vld [vmem:[%s861 + $0x140] sm:$0xff]
    %v2487 = vld [vmem:[%s861 + $0x150] sm:$0xff]
    %v2488 = vld [vmem:[%s861 + $0x158] sm:$0xff]
    %v2489 = vld [vmem:[%s861 + $0x168] sm:$0xff]
    %v2490 = vld [vmem:[%s861 + $0x170] sm:$0xff]
    %v2491 = vld [vmem:[%s861 + $0x1b0] sm:$0xff]
    %v2492 = vld [vmem:[%s861 + $0x1b8] sm:$0xff]
    %v2493 = vld [vmem:[%s861 + $0x1c8] sm:$0xff]
    %v2494 = vld [vmem:[%s861 + $0x1d0] sm:$0xff]
    %v2495 = vld [vmem:[%s861 + $0x1e0] sm:$0xff]
    %v2496 = vld [vmem:[%s861 + $0x1e8] sm:$0xff]
    %v2497 = vld [vmem:[%s861 + $0x1f8] sm:$0xff]
    %v2498 = vld [vmem:[%s861 + $0x200] sm:$0xff]
    %v2499 = vld [vmem:[%s861 + $0x210] sm:$0xff]
    %v2500 = vld [vmem:[%s861 + $0x218] sm:$0xff]
    %v2501 = vld [vmem:[%s861 + $0x228] sm:$0xff]
    %v2502 = vld [vmem:[%s861 + $0x230] sm:$0xff]
    %v2503 = vld [vmem:[%s861 + $0x240] sm:$0xff]
    %v2504 = vld [vmem:[%s861 + $0x248] sm:$0xff]
    %v2505 = vld [vmem:[%s861 + $0x258] sm:$0xff]
    %v2506 = vld [vmem:[%s861 + $0x260] sm:$0xff]
    %v2507 = vld [vmem:[%s861 + $0x270] sm:$0xff]
    %v2508 = vld [vmem:[%s861 + $0x278] sm:$0xff]
    %v2509 = vld [vmem:[%s861 + $0x288] sm:$0xff]
    %v2510 = vld [vmem:[%s861 + $0x290] sm:$0xff]
    %v2511 = vld [vmem:[%s861 + $0x2a0] sm:$0xff]
    %v2512 = vld [vmem:[%s861 + $0x2a8] sm:$0xff]
    %v2513 = vld [vmem:[%s861 + $0x2b8] sm:$0xff]
    %v2514 = vld [vmem:[%s861 + $0x2c0] sm:$0xff]
    %v2515 = vld [vmem:[%s861 + $0x2d0] sm:$0xff]
    %v2516 = vld [vmem:[%s861 + $0x2d8] sm:$0xff]
    %v2517 = vld [vmem:[%s861 + $0x2e8] sm:$0xff]
    %v2518 = vld [vmem:[%s861 + $0x2f0] sm:$0xff]
    %v2519 = vld [vmem:[%s861 + $0x300] sm:$0xff]
    %v2520 = vld [vmem:[%s861 + $0x308] sm:$0xff]
    %v2521 = vld [vmem:[%s861 + $0x318] sm:$0xff]
    %v2522 = vld [vmem:[%s861 + $0x320] sm:$0xff]
    %v2523 = vpack.c.bf16 %v2460, %v2459
    %v2524 = vpack.c.bf16 %v2462, %v2461
    %v2525 = vpack.c.bf16 %v2464, %v2463
    %v2526 = vpack.c.bf16 %v2466, %v2465
    %v2527 = vpack.c.bf16 %v2468, %v2467
    %v2528 = vpack.c.bf16 %v2470, %v2469
    %v2529 = vpack.c.bf16 %v2472, %v2471
    %v2530 = vpack.c.bf16 %v2474, %v2473
    %v2531 = vpack.c.bf16 %v2476, %v2475
    %v2532 = vpack.c.bf16 %v2478, %v2477
    %v2533 = vpack.c.bf16 %v2480, %v2479
    %v2534 = vpack.c.bf16 %v2482, %v2481
    %v2535 = vpack.c.bf16 %v2484, %v2483
    %v2536 = vpack.c.bf16 %v2486, %v2485
    %v2537 = vpack.c.bf16 %v2488, %v2487
    %v2538 = vpack.c.bf16 %v2490, %v2489
    %v2539 = vpack.c.bf16 %v2492, %v2491
    %v2540 = vpack.c.bf16 %v2494, %v2493
    %v2541 = vpack.c.bf16 %v2496, %v2495
    %v2542 = vpack.c.bf16 %v2498, %v2497
    %v2543 = vpack.c.bf16 %v2500, %v2499
    %v2544 = vpack.c.bf16 %v2502, %v2501
    %v2545 = vpack.c.bf16 %v2504, %v2503
    %v2546 = vpack.c.bf16 %v2506, %v2505
    %v2547 = vpack.c.bf16 %v2508, %v2507
    %v2548 = vpack.c.bf16 %v2510, %v2509
    %v2549 = vpack.c.bf16 %v2512, %v2511
    %v2550 = vpack.c.bf16 %v2514, %v2513
    %v2551 = vpack.c.bf16 %v2516, %v2515
    %v2552 = vpack.c.bf16 %v2518, %v2517
    %v2553 = vpack.c.bf16 %v2520, %v2519
    %v2554 = vpack.c.bf16 %v2522, %v2521
    %s2555 = scalar_lea.vmem [#allocation7], 24
    %v2556 = vld [vmem:[%s2555] sm:$0xf]
    %v2557 = vld [vmem:[%s2555 + $0x4] sm:$0xf]
    %v2560 = vunpack.c.l.b16 %v2556
    %v2561 = vunpack.c.l.b16 %v2557
    %v2562 = vpack.c.b16 %v2561, %v2560
    %v2565 = vsel %vm147, %v2523, 0
    %v2568 = vsel %vm147, %v2524, 0
    %v2571 = vsel %vm147, %v2525, 0
    %v2574 = vsel %vm147, %v2526, 0
    %v2577 = vsel %vm147, %v2527, 0
    %v2580 = vsel %vm147, %v2528, 0
    %v2583 = vsel %vm147, %v2529, 0
    %v2586 = vsel %vm147, %v2530, 0
    %v2589 = vsel %vm147, %v2531, 0
    %v2592 = vsel %vm147, %v2532, 0
    %v2595 = vsel %vm147, %v2533, 0
    %v2598 = vsel %vm147, %v2534, 0
    %v2601 = vsel %vm147, %v2535, 0
    %v2604 = vsel %vm147, %v2536, 0
    %v2607 = vsel %vm147, %v2537, 0
    %v2610 = vsel %vm147, %v2538, 0
    %v2613 = vsel %vm147, %v2539, 0
    %v2616 = vsel %vm147, %v2540, 0
    %v2619 = vsel %vm147, %v2541, 0
    %v2622 = vsel %vm147, %v2542, 0
    %v2625 = vsel %vm147, %v2543, 0
    %v2628 = vsel %vm147, %v2544, 0
    %v2631 = vsel %vm147, %v2545, 0
    %v2634 = vsel %vm147, %v2546, 0
    %v2637 = vsel %vm147, %v2547, 0
    %v2640 = vsel %vm147, %v2548, 0
    %v2643 = vsel %vm147, %v2549, 0
    %v2646 = vsel %vm147, %v2550, 0
    %v2649 = vsel %vm147, %v2551, 0
    %v2652 = vsel %vm147, %v2552, 0
    %v2655 = vsel %vm147, %v2553, 0
    %v2658 = vsel %vm147, %v2554, 0
    %2660 = vmatprep.subr.bf16.mxu0 0
    %2661 = vmatpush1.bf16.msra.mxu0 %v2562
    %2662 = vmatprep.subr.bf16.mxu0 0
    %2663 = vmatpush1.bf16.msra.mxu0 0
    %2664 = vmatprep.subr.bf16.mxu0 0
    %2665 = vmatpush1.bf16.msra.mxu0 0
    %2666 = vmatprep.subr.bf16.mxu0 0
    %2667 = vmatpush1.bf16.msra.mxu0 0
    %2668 = vmatprep.subr.bf16.mxu0 0
    %2669 = vmatpush1.bf16.msra.mxu0 0
    %2670 = vmatprep.subr.bf16.mxu0 0
    %2671 = vmatpush1.bf16.msra.mxu0 0
    %2672 = vmatprep.subr.bf16.mxu0 0
    %2673 = vmatpush1.bf16.msra.mxu0 0
    %2674 = vmatprep.subr.bf16.mxu0 0
    %2675 = vmatpush1.bf16.msra.mxu0 0
    %2676 = vmatprep.subr.bf16.mxu0 0
    %2677 = vmatpush1.bf16.msra.mxu0 0
    %2678 = vmatprep.subr.bf16.mxu0 0
    %2679 = vmatpush1.bf16.msra.mxu0 0
    %2680 = vmatprep.subr.bf16.mxu0 0
    %2681 = vmatpush1.bf16.msra.mxu0 0
    %2682 = vmatprep.subr.bf16.mxu0 0
    %2683 = vmatpush1.bf16.msra.mxu0 0
    %2684 = vmatprep.subr.bf16.mxu0 0
    %2685 = vmatpush1.bf16.msra.mxu0 0
    %2686 = vmatprep.subr.bf16.mxu0 0
    %2687 = vmatpush1.bf16.msra.mxu0 0
    %2688 = vmatprep.subr.bf16.mxu0 0
    %2689 = vmatpush1.bf16.msra.mxu0 0
    %2690 = vmatprep.subr.bf16.mxu0 0
    %2691 = vmatpush1.bf16.msra.mxu0 0
    %2692 = vmatprep.mubr.bf16.mxu0 0
    %2693 = vmatmul.mubr.bf16.gmra.mrb[0].mxu0 %v2565
    %v2694 = vpop.f32.mrb[0].mxu0
    %v2695 = vadd.f32 0.0, %v2694
    %v2696 = vpop.f32.mrb[0].mxu0
    %v2697 = vpop.f32.mrb[0].mxu0
    %v2698 = vadd.f32 0.0, %v2697
    %v2699 = vpop.f32.mrb[0].mxu0
    %2700 = vmatprep.mubr.bf16.mxu0 0
    %2701 = vmatmul.mubr.bf16.gmra.mrb[0].mxu0 %v2568
    %v2702 = vpop.f32.mrb[0].mxu0
    %v2703 = vadd.f32 0.0, %v2702
    %v2704 = vpop.f32.mrb[0].mxu0
    %v2705 = vpop.f32.mrb[0].mxu0
    %v2706 = vadd.f32 0.0, %v2705
    %v2707 = vpop.f32.mrb[0].mxu0
    %2708 = vmatprep.mubr.bf16.mxu0 0
    %2709 = vmatmul.mubr.bf16.gmra.mrb[0].mxu0 %v2571
    %v2710 = vpop.f32.mrb[0].mxu0
    %v2711 = vadd.f32 0.0, %v2710
    %v2712 = vpop.f32.mrb[0].mxu0
    %v2713 = vpop.f32.mrb[0].mxu0
    %v2714 = vadd.f32 0.0, %v2713
    %v2715 = vpop.f32.mrb[0].mxu0
    %2716 = vmatprep.mubr.bf16.mxu0 0
    %2717 = vmatmul.mubr.bf16.gmra.mrb[0].mxu0 %v2574
    %v2718 = vpop.f32.mrb[0].mxu0
    %v2719 = vadd.f32 0.0, %v2718
    %v2720 = vpop.f32.mrb[0].mxu0
    %v2721 = vpop.f32.mrb[0].mxu0
    %v2722 = vadd.f32 0.0, %v2721
    %v2723 = vpop.f32.mrb[0].mxu0
    %2724 = vmatprep.mubr.bf16.mxu0 0
    %2725 = vmatmul.mubr.bf16.gmra.mrb[0].mxu0 %v2577
    %v2726 = vpop.f32.mrb[0].mxu0
    %v2727 = vadd.f32 0.0, %v2726
    %v2728 = vpop.f32.mrb[0].mxu0
    %v2729 = vpop.f32.mrb[0].mxu0
    %v2730 = vadd.f32 0.0, %v2729
    %v2731 = vpop.f32.mrb[0].mxu0
    %2732 = vmatprep.mubr.bf16.mxu0 0
    %2733 = vmatmul.mubr.bf16.gmra.mrb[0].mxu0 %v2580
    %v2734 = vpop.f32.mrb[0].mxu0
    %v2735 = vadd.f32 0.0, %v2734
    %v2736 = vpop.f32.mrb[0].mxu0
    %v2737 = vpop.f32.mrb[0].mxu0
    %v2738 = vadd.f32 0.0, %v2737
    %v2739 = vpop.f32.mrb[0].mxu0
    %2740 = vmatprep.mubr.bf16.mxu0 0
    %2741 = vmatmul.mubr.bf16.gmra.mrb[0].mxu0 %v2583
    %v2742 = vpop.f32.mrb[0].mxu0
    %v2743 = vadd.f32 0.0, %v2742
    %v2744 = vpop.f32.mrb[0].mxu0
    %v2745 = vpop.f32.mrb[0].mxu0
    %v2746 = vadd.f32 0.0, %v2745
    %v2747 = vpop.f32.mrb[0].mxu0
    %2748 = vmatprep.mubr.bf16.mxu0 0
    %2749 = vmatmul.mubr.bf16.gmra.mrb[0].mxu0 %v2586
    %v2750 = vpop.f32.mrb[0].mxu0
    %v2751 = vadd.f32 0.0, %v2750
    %v2752 = vpop.f32.mrb[0].mxu0
    %v2753 = vpop.f32.mrb[0].mxu0
    %v2754 = vadd.f32 0.0, %v2753
    %v2755 = vpop.f32.mrb[0].mxu0
    %2756 = vmatprep.mubr.bf16.mxu0 0
    %2757 = vmatmul.mubr.bf16.gmra.mrb[0].mxu0 %v2589
    %v2758 = vpop.f32.mrb[0].mxu0
    %v2759 = vadd.f32 0.0, %v2758
    %v2760 = vpop.f32.mrb[0].mxu0
    %v2761 = vpop.f32.mrb[0].mxu0
    %v2762 = vadd.f32 0.0, %v2761
    %v2763 = vpop.f32.mrb[0].mxu0
    %2764 = vmatprep.mubr.bf16.mxu0 0
    %2765 = vmatmul.mubr.bf16.gmra.mrb[0].mxu0 %v2592
    %v2766 = vpop.f32.mrb[0].mxu0
    %v2767 = vadd.f32 0.0, %v2766
    %v2768 = vpop.f32.mrb[0].mxu0
    %v2769 = vpop.f32.mrb[0].mxu0
    %v2770 = vadd.f32 0.0, %v2769
    %v2771 = vpop.f32.mrb[0].mxu0
    %2772 = vmatprep.mubr.bf16.mxu0 0
    %2773 = vmatmul.mubr.bf16.gmra.mrb[0].mxu0 %v2595
    %v2774 = vpop.f32.mrb[0].mxu0
    %v2775 = vadd.f32 0.0, %v2774
    %v2776 = vpop.f32.mrb[0].mxu0
    %v2777 = vpop.f32.mrb[0].mxu0
    %v2778 = vadd.f32 0.0, %v2777
    %v2779 = vpop.f32.mrb[0].mxu0
    %2780 = vmatprep.mubr.bf16.mxu0 0
    %2781 = vmatmul.mubr.bf16.gmra.mrb[0].mxu0 %v2598
    %v2782 = vpop.f32.mrb[0].mxu0
    %v2783 = vadd.f32 0.0, %v2782
    %v2784 = vpop.f32.mrb[0].mxu0
    %v2785 = vpop.f32.mrb[0].mxu0
    %v2786 = vadd.f32 0.0, %v2785
    %v2787 = vpop.f32.mrb[0].mxu0
    %2788 = vmatprep.mubr.bf16.mxu0 0
    %2789 = vmatmul.mubr.bf16.gmra.mrb[0].mxu0 %v2601
    %v2790 = vpop.f32.mrb[0].mxu0
    %v2791 = vadd.f32 0.0, %v2790
    %v2792 = vpop.f32.mrb[0].mxu0
    %v2793 = vpop.f32.mrb[0].mxu0
    %v2794 = vadd.f32 0.0, %v2793
    %v2795 = vpop.f32.mrb[0].mxu0
    %2796 = vmatprep.mubr.bf16.mxu0 0
    %2797 = vmatmul.mubr.bf16.gmra.mrb[0].mxu0 %v2604
    %v2798 = vpop.f32.mrb[0].mxu0
    %v2799 = vadd.f32 0.0, %v2798
    %v2800 = vpop.f32.mrb[0].mxu0
    %v2801 = vpop.f32.mrb[0].mxu0
    %v2802 = vadd.f32 0.0, %v2801
    %v2803 = vpop.f32.mrb[0].mxu0
    %2804 = vmatprep.mubr.bf16.mxu0 0
    %2805 = vmatmul.mubr.bf16.gmra.mrb[0].mxu0 %v2607
    %v2806 = vpop.f32.mrb[0].mxu0
    %v2807 = vadd.f32 0.0, %v2806
    %v2808 = vpop.f32.mrb[0].mxu0
    %v2809 = vpop.f32.mrb[0].mxu0
    %v2810 = vadd.f32 0.0, %v2809
    %v2811 = vpop.f32.mrb[0].mxu0
    %2812 = vmatprep.mubr.bf16.mxu0 0
    %2813 = vmatmul.mubr.bf16.gmra.mrb[0].mxu0 %v2610
    %v2814 = vpop.f32.mrb[0].mxu0
    %v2815 = vadd.f32 0.0, %v2814
    %v2816 = vpop.f32.mrb[0].mxu0
    %v2817 = vpop.f32.mrb[0].mxu0
    %v2818 = vadd.f32 0.0, %v2817
    %v2819 = vpop.f32.mrb[0].mxu0
    %2820 = vmatprep.mubr.bf16.mxu0 0
    %2821 = vmatmul.mubr.bf16.gmra.mrb[0].mxu0 %v2613
    %v2822 = vpop.f32.mrb[0].mxu0
    %v2823 = vadd.f32 0.0, %v2822
    %v2824 = vpop.f32.mrb[0].mxu0
    %v2825 = vpop.f32.mrb[0].mxu0
    %v2826 = vadd.f32 0.0, %v2825
    %v2827 = vpop.f32.mrb[0].mxu0
    %2828 = vmatprep.mubr.bf16.mxu0 0
    %2829 = vmatmul.mubr.bf16.gmra.mrb[0].mxu0 %v2616
    %v2830 = vpop.f32.mrb[0].mxu0
    %v2831 = vadd.f32 0.0, %v2830
    %v2832 = vpop.f32.mrb[0].mxu0
    %v2833 = vpop.f32.mrb[0].mxu0
    %v2834 = vadd.f32 0.0, %v2833
    %v2835 = vpop.f32.mrb[0].mxu0
    %2836 = vmatprep.mubr.bf16.mxu0 0
    %2837 = vmatmul.mubr.bf16.gmra.mrb[0].mxu0 %v2619
    %v2838 = vpop.f32.mrb[0].mxu0
    %v2839 = vadd.f32 0.0, %v2838
    %v2840 = vpop.f32.mrb[0].mxu0
    %v2841 = vpop.f32.mrb[0].mxu0
    %v2842 = vadd.f32 0.0, %v2841
    %v2843 = vpop.f32.mrb[0].mxu0
    %2844 = vmatprep.mubr.bf16.mxu0 0
    %2845 = vmatmul.mubr.bf16.gmra.mrb[0].mxu0 %v2622
    %v2846 = vpop.f32.mrb[0].mxu0
    %v2847 = vadd.f32 0.0, %v2846
    %v2848 = vpop.f32.mrb[0].mxu0
    %v2849 = vpop.f32.mrb[0].mxu0
    %v2850 = vadd.f32 0.0, %v2849
    %v2851 = vpop.f32.mrb[0].mxu0
    %2852 = vmatprep.mubr.bf16.mxu0 0
    %2853 = vmatmul.mubr.bf16.gmra.mrb[0].mxu0 %v2625
    %v2854 = vpop.f32.mrb[0].mxu0
    %v2855 = vadd.f32 0.0, %v2854
    %v2856 = vpop.f32.mrb[0].mxu0
    %v2857 = vpop.f32.mrb[0].mxu0
    %v2858 = vadd.f32 0.0, %v2857
    %v2859 = vpop.f32.mrb[0].mxu0
    %2860 = vmatprep.mubr.bf16.mxu0 0
    %2861 = vmatmul.mubr.bf16.gmra.mrb[0].mxu0 %v2628
    %v2862 = vpop.f32.mrb[0].mxu0
    %v2863 = vadd.f32 0.0, %v2862
    %v2864 = vpop.f32.mrb[0].mxu0
    %v2865 = vpop.f32.mrb[0].mxu0
    %v2866 = vadd.f32 0.0, %v2865
    %v2867 = vpop.f32.mrb[0].mxu0
    %2868 = vmatprep.mubr.bf16.mxu0 0
    %2869 = vmatmul.mubr.bf16.gmra.mrb[0].mxu0 %v2631
    %v2870 = vpop.f32.mrb[0].mxu0
    %v2871 = vadd.f32 0.0, %v2870
    %v2872 = vpop.f32.mrb[0].mxu0
    %v2873 = vpop.f32.mrb[0].mxu0
    %v2874 = vadd.f32 0.0, %v2873
    %v2875 = vpop.f32.mrb[0].mxu0
    %2876 = vmatprep.mubr.bf16.mxu0 0
    %2877 = vmatmul.mubr.bf16.gmra.mrb[0].mxu0 %v2634
    %v2878 = vpop.f32.mrb[0].mxu0
    %v2879 = vadd.f32 0.0, %v2878
    %v2880 = vpop.f32.mrb[0].mxu0
    %v2881 = vpop.f32.mrb[0].mxu0
    %v2882 = vadd.f32 0.0, %v2881
    %v2883 = vpop.f32.mrb[0].mxu0
    %2884 = vmatprep.mubr.bf16.mxu0 0
    %2885 = vmatmul.mubr.bf16.gmra.mrb[0].mxu0 %v2637
    %v2886 = vpop.f32.mrb[0].mxu0
    %v2887 = vadd.f32 0.0, %v2886
    %v2888 = vpop.f32.mrb[0].mxu0
    %v2889 = vpop.f32.mrb[0].mxu0
    %v2890 = vadd.f32 0.0, %v2889
    %v2891 = vpop.f32.mrb[0].mxu0
    %2892 = vmatprep.mubr.bf16.mxu0 0
    %2893 = vmatmul.mubr.bf16.gmra.mrb[0].mxu0 %v2640
    %v2894 = vpop.f32.mrb[0].mxu0
    %v2895 = vadd.f32 0.0, %v2894
    %v2896 = vpop.f32.mrb[0].mxu0
    %v2897 = vpop.f32.mrb[0].mxu0
    %v2898 = vadd.f32 0.0, %v2897
    %v2899 = vpop.f32.mrb[0].mxu0
    %2900 = vmatprep.mubr.bf16.mxu0 0
    %2901 = vmatmul.mubr.bf16.gmra.mrb[0].mxu0 %v2643
    %v2902 = vpop.f32.mrb[0].mxu0
    %v2903 = vadd.f32 0.0, %v2902
    %v2904 = vpop.f32.mrb[0].mxu0
    %v2905 = vpop.f32.mrb[0].mxu0
    %v2906 = vadd.f32 0.0, %v2905
    %v2907 = vpop.f32.mrb[0].mxu0
    %2908 = vmatprep.mubr.bf16.mxu0 0
    %2909 = vmatmul.mubr.bf16.gmra.mrb[0].mxu0 %v2646
    %v2910 = vpop.f32.mrb[0].mxu0
    %v2911 = vadd.f32 0.0, %v2910
    %v2912 = vpop.f32.mrb[0].mxu0
    %v2913 = vpop.f32.mrb[0].mxu0
    %v2914 = vadd.f32 0.0, %v2913
    %v2915 = vpop.f32.mrb[0].mxu0
    %2916 = vmatprep.mubr.bf16.mxu0 0
    %2917 = vmatmul.mubr.bf16.gmra.mrb[0].mxu0 %v2649
    %v2918 = vpop.f32.mrb[0].mxu0
    %v2919 = vadd.f32 0.0, %v2918
    %v2920 = vpop.f32.mrb[0].mxu0
    %v2921 = vpop.f32.mrb[0].mxu0
    %v2922 = vadd.f32 0.0, %v2921
    %v2923 = vpop.f32.mrb[0].mxu0
    %2924 = vmatprep.mubr.bf16.mxu0 0
    %2925 = vmatmul.mubr.bf16.gmra.mrb[0].mxu0 %v2652
    %v2926 = vpop.f32.mrb[0].mxu0
    %v2927 = vadd.f32 0.0, %v2926
    %v2928 = vpop.f32.mrb[0].mxu0
    %v2929 = vpop.f32.mrb[0].mxu0
    %v2930 = vadd.f32 0.0, %v2929
    %v2931 = vpop.f32.mrb[0].mxu0
    %2932 = vmatprep.mubr.bf16.mxu0 0
    %2933 = vmatmul.mubr.bf16.gmra.mrb[0].mxu0 %v2655
    %v2934 = vpop.f32.mrb[0].mxu0
    %v2935 = vadd.f32 0.0, %v2934
    %v2936 = vpop.f32.mrb[0].mxu0
    %v2937 = vpop.f32.mrb[0].mxu0
    %v2938 = vadd.f32 0.0, %v2937
    %v2939 = vpop.f32.mrb[0].mxu0
    %2940 = vmatprep.mubr.bf16.mxu0 0
    %2941 = vmatmul.mubr.bf16.gmra.mrb[0].mxu0 %v2658
    %v2942 = vpop.f32.mrb[0].mxu0
    %v2943 = vadd.f32 0.0, %v2942
    %v2944 = vpop.f32.mrb[0].mxu0
    %v2945 = vpop.f32.mrb[0].mxu0
    %v2946 = vadd.f32 0.0, %v2945
    %v2947 = vpop.f32.mrb[0].mxu0
    %2948 = vdwg.mxu0
    %v2949 = vadd.f32 %v2395, %v2695
    %v2950 = vadd.f32 %v2396, %v2698
    %v2951 = vadd.f32 %v2397, %v2703
    %v2952 = vadd.f32 %v2398, %v2706
    %v2953 = vadd.f32 %v2399, %v2711
    %v2954 = vadd.f32 %v2400, %v2714
    %v2955 = vadd.f32 %v2401, %v2719
    %v2956 = vadd.f32 %v2402, %v2722
    %v2957 = vadd.f32 %v2403, %v2727
    %v2958 = vadd.f32 %v2404, %v2730
    %v2959 = vadd.f32 %v2405, %v2735
    %v2960 = vadd.f32 %v2406, %v2738
    %v2961 = vadd.f32 %v2407, %v2743
    %v2962 = vadd.f32 %v2408, %v2746
    %v2963 = vadd.f32 %v2409, %v2751
    %v2964 = vadd.f32 %v2410, %v2754
    %v2965 = vadd.f32 %v2411, %v2759
    %v2966 = vadd.f32 %v2412, %v2762
    %v2967 = vadd.f32 %v2413, %v2767
    %v2968 = vadd.f32 %v2414, %v2770
    %v2969 = vadd.f32 %v2415, %v2775
    %v2970 = vadd.f32 %v2416, %v2778
    %v2971 = vadd.f32 %v2417, %v2783
    %v2972 = vadd.f32 %v2418, %v2786
    %v2973 = vadd.f32 %v2419, %v2791
    %v2974 = vadd.f32 %v2420, %v2794
    %v2975 = vadd.f32 %v2421, %v2799
    %v2976 = vadd.f32 %v2422, %v2802
    %v2977 = vadd.f32 %v2423, %v2807
    %v2978 = vadd.f32 %v2424, %v2810
    %v2979 = vadd.f32 %v2425, %v2815
    %v2980 = vadd.f32 %v2426, %v2818
    %v2981 = vadd.f32 %v2427, %v2823
    %v2982 = vadd.f32 %v2428, %v2826
    %v2983 = vadd.f32 %v2429, %v2831
    %v2984 = vadd.f32 %v2430, %v2834
    %v2985 = vadd.f32 %v2431, %v2839
    %v2986 = vadd.f32 %v2432, %v2842
    %v2987 = vadd.f32 %v2433, %v2847
    %v2988 = vadd.f32 %v2434, %v2850
    %v2989 = vadd.f32 %v2435, %v2855
    %v2990 = vadd.f32 %v2436, %v2858
    %v2991 = vadd.f32 %v2437, %v2863
    %v2992 = vadd.f32 %v2438, %v2866
    %v2993 = vadd.f32 %v2439, %v2871
    %v2994 = vadd.f32 %v2440, %v2874
    %v2995 = vadd.f32 %v2441, %v2879
    %v2996 = vadd.f32 %v2442, %v2882
    %v2997 = vadd.f32 %v2443, %v2887
    %v2998 = vadd.f32 %v2444, %v2890
    %v2999 = vadd.f32 %v2445, %v2895
    %v3000 = vadd.f32 %v2446, %v2898
    %v3001 = vadd.f32 %v2447, %v2903
    %v3002 = vadd.f32 %v2448, %v2906
    %v3003 = vadd.f32 %v2449, %v2911
    %v3004 = vadd.f32 %v2450, %v2914
    %v3005 = vadd.f32 %v2451, %v2919
    %v3006 = vadd.f32 %v2452, %v2922
    %v3007 = vadd.f32 %v2453, %v2927
    %v3008 = vadd.f32 %v2454, %v2930
    %v3009 = vadd.f32 %v2455, %v2935
    %v3010 = vadd.f32 %v2456, %v2938
    %v3011 = vadd.f32 %v2457, %v2943
    %v3012 = vadd.f32 %v2458, %v2946
    %v3013 = vld [vmem:[%s861 + $0x1] sm:$0xff]
    %v3014 = vld [vmem:[%s861 + $0x9] sm:$0xff]
    %v3015 = vld [vmem:[%s861 + $0x19] sm:$0xff]
    %v3016 = vld [vmem:[%s861 + $0x21] sm:$0xff]
    %v3017 = vld [vmem:[%s861 + $0x31] sm:$0xff]
    %v3018 = vld [vmem:[%s861 + $0x39] sm:$0xff]
    %v3019 = vld [vmem:[%s861 + $0x49] sm:$0xff]
    %v3020 = vld [vmem:[%s861 + $0x51] sm:$0xff]
    %v3021 = vld [vmem:[%s861 + $0x61] sm:$0xff]
    %v3022 = vld [vmem:[%s861 + $0x69] sm:$0xff]
    %v3023 = vld [vmem:[%s861 + $0x79] sm:$0xff]
    %v3024 = vld [vmem:[%s861 + $0x81] sm:$0xff]
    %v3025 = vld [vmem:[%s861 + $0x91] sm:$0xff]
    %v3026 = vld [vmem:[%s861 + $0x99] sm:$0xff]
    %v3027 = vld [vmem:[%s861 + $0xa9] sm:$0xff]
    %v3028 = vld [vmem:[%s861 + $0xb1] sm:$0xff]
    %v3029 = vld [vmem:[%s861 + $0xc1] sm:$0xff]
    %v3030 = vld [vmem:[%s861 + $0xc9] sm:$0xff]
    %v3031 = vld [vmem:[%s861 + $0xd9] sm:$0xff]
    %v3032 = vld [vmem:[%s861 + $0xe1] sm:$0xff]
    %v3033 = vld [vmem:[%s861 + $0xf1] sm:$0xff]
    %v3034 = vld [vmem:[%s861 + $0xf9] sm:$0xff]
    %v3035 = vld [vmem:[%s861 + $0x109] sm:$0xff]
    %v3036 = vld [vmem:[%s861 + $0x111] sm:$0xff]
    %v3037 = vld [vmem:[%s861 + $0x121] sm:$0xff]
    %v3038 = vld [vmem:[%s861 + $0x129] sm:$0xff]
    %v3039 = vld [vmem:[%s861 + $0x139] sm:$0xff]
    %v3040 = vld [vmem:[%s861 + $0x141] sm:$0xff]
    %v3041 = vld [vmem:[%s861 + $0x151] sm:$0xff]
    %v3042 = vld [vmem:[%s861 + $0x159] sm:$0xff]
    %v3043 = vld [vmem:[%s861 + $0x169] sm:$0xff]
    %v3044 = vld [vmem:[%s861 + $0x171] sm:$0xff]
    %v3045 = vld [vmem:[%s861 + $0x1b1] sm:$0xff]
    %v3046 = vld [vmem:[%s861 + $0x1b9] sm:$0xff]
    %v3047 = vld [vmem:[%s861 + $0x1c9] sm:$0xff]
    %v3048 = vld [vmem:[%s861 + $0x1d1] sm:$0xff]
    %v3049 = vld [vmem:[%s861 + $0x1e1] sm:$0xff]
    %v3050 = vld [vmem:[%s861 + $0x1e9] sm:$0xff]
    %v3051 = vld [vmem:[%s861 + $0x1f9] sm:$0xff]
    %v3052 = vld [vmem:[%s861 + $0x201] sm:$0xff]
    %v3053 = vld [vmem:[%s861 + $0x211] sm:$0xff]
    %v3054 = vld [vmem:[%s861 + $0x219] sm:$0xff]
    %v3055 = vld [vmem:[%s861 + $0x229] sm:$0xff]
    %v3056 = vld [vmem:[%s861 + $0x231] sm:$0xff]
    %v3057 = vld [vmem:[%s861 + $0x241] sm:$0xff]
    %v3058 = vld [vmem:[%s861 + $0x249] sm:$0xff]
    %v3059 = vld [vmem:[%s861 + $0x259] sm:$0xff]
    %v3060 = vld [vmem:[%s861 + $0x261] sm:$0xff]
    %v3061 = vld [vmem:[%s861 + $0x271] sm:$0xff]
    %v3062 = vld [vmem:[%s861 + $0x279] sm:$0xff]
    %v3063 = vld [vmem:[%s861 + $0x289] sm:$0xff]
    %v3064 = vld [vmem:[%s861 + $0x291] sm:$0xff]
    %v3065 = vld [vmem:[%s861 + $0x2a1] sm:$0xff]
    %v3066 = vld [vmem:[%s861 + $0x2a9] sm:$0xff]
    %v3067 = vld [vmem:[%s861 + $0x2b9] sm:$0xff]
    %v3068 = vld [vmem:[%s861 + $0x2c1] sm:$0xff]
    %v3069 = vld [vmem:[%s861 + $0x2d1] sm:$0xff]
    %v3070 = vld [vmem:[%s861 + $0x2d9] sm:$0xff]
    %v3071 = vld [vmem:[%s861 + $0x2e9] sm:$0xff]
    %v3072 = vld [vmem:[%s861 + $0x2f1] sm:$0xff]
    %v3073 = vld [vmem:[%s861 + $0x301] sm:$0xff]
    %v3074 = vld [vmem:[%s861 + $0x309] sm:$0xff]
    %v3075 = vld [vmem:[%s861 + $0x319] sm:$0xff]
    %v3076 = vld [vmem:[%s861 + $0x321] sm:$0xff]
    %v3077 = vpack.c.bf16 %v3014, %v3013
    %v3078 = vpack.c.bf16 %v3016, %v3015
    %v3079 = vpack.c.bf16 %v3018, %v3017
    %v3080 = vpack.c.bf16 %v3020, %v3019
    %v3081 = vpack.c.bf16 %v3022, %v3021
    %v3082 = vpack.c.bf16 %v3024, %v3023
    %v3083 = vpack.c.bf16 %v3026, %v3025
    %v3084 = vpack.c.bf16 %v3028, %v3027
    %v3085 = vpack.c.bf16 %v3030, %v3029
    %v3086 = vpack.c.bf16 %v3032, %v3031
    %v3087 = vpack.c.bf16 %v3034, %v3033
    %v3088 = vpack.c.bf16 %v3036, %v3035
    %v3089 = vpack.c.bf16 %v3038, %v3037
    %v3090 = vpack.c.bf16 %v3040, %v3039
    %v3091 = vpack.c.bf16 %v3042, %v3041
    %v3092 = vpack.c.bf16 %v3044, %v3043
    %v3093 = vpack.c.bf16 %v3046, %v3045
    %v3094 = vpack.c.bf16 %v3048, %v3047
    %v3095 = vpack.c.bf16 %v3050, %v3049
    %v3096 = vpack.c.bf16 %v3052, %v3051
    %v3097 = vpack.c.bf16 %v3054, %v3053
    %v3098 = vpack.c.bf16 %v3056, %v3055
    %v3099 = vpack.c.bf16 %v3058, %v3057
    %v3100 = vpack.c.bf16 %v3060, %v3059
    %v3101 = vpack.c.bf16 %v3062, %v3061
    %v3102 = vpack.c.bf16 %v3064, %v3063
    %v3103 = vpack.c.bf16 %v3066, %v3065
    %v3104 = vpack.c.bf16 %v3068, %v3067
    %v3105 = vpack.c.bf16 %v3070, %v3069
    %v3106 = vpack.c.bf16 %v3072, %v3071
    %v3107 = vpack.c.bf16 %v3074, %v3073
    %v3108 = vpack.c.bf16 %v3076, %v3075
    %s3109 = scalar_lea.vmem [#allocation7], 32
    %v3110 = vld [vmem:[%s3109] sm:$0xf]
    %v3111 = vld [vmem:[%s3109 + $0x4] sm:$0xf]
    %v3114 = vunpack.c.l.b16 %v3110
    %v3115 = vunpack.c.l.b16 %v3111
    %v3116 = vpack.c.b16 %v3115, %v3114
    %v3119 = vsel %vm147, %v3077, 0
    %v3122 = vsel %vm147, %v3078, 0
    %v3125 = vsel %vm147, %v3079, 0
    %v3128 = vsel %vm147, %v3080, 0
    %v3131 = vsel %vm147, %v3081, 0
    %v3134 = vsel %vm147, %v3082, 0
    %v3137 = vsel %vm147, %v3083, 0
    %v3140 = vsel %vm147, %v3084, 0
    %v3143 = vsel %vm147, %v3085, 0
    %v3146 = vsel %vm147, %v3086, 0
    %v3149 = vsel %vm147, %v3087, 0
    %v3152 = vsel %vm147, %v3088, 0
    %v3155 = vsel %vm147, %v3089, 0
    %v3158 = vsel %vm147, %v3090, 0
    %v3161 = vsel %vm147, %v3091, 0
    %v3164 = vsel %vm147, %v3092, 0
    %v3167 = vsel %vm147, %v3093, 0
    %v3170 = vsel %vm147, %v3094, 0
    %v3173 = vsel %vm147, %v3095, 0
    %v3176 = vsel %vm147, %v3096, 0
    %v3179 = vsel %vm147, %v3097, 0
    %v3182 = vsel %vm147, %v3098, 0
    %v3185 = vsel %vm147, %v3099, 0
    %v3188 = vsel %vm147, %v3100, 0
    %v3191 = vsel %vm147, %v3101, 0
    %v3194 = vsel %vm147, %v3102, 0
    %v3197 = vsel %vm147, %v3103, 0
    %v3200 = vsel %vm147, %v3104, 0
    %v3203 = vsel %vm147, %v3105, 0
    %v3206 = vsel %vm147, %v3106, 0
    %v3209 = vsel %vm147, %v3107, 0
    %v3212 = vsel %vm147, %v3108, 0
    %3214 = vmatprep.subr.bf16.mxu0 0
    %3215 = vmatpush1.bf16.msra.mxu0 %v3116
    %3216 = vmatprep.subr.bf16.mxu0 0
    %3217 = vmatpush1.bf16.msra.mxu0 0
    %3218 = vmatprep.subr.bf16.mxu0 0
    %3219 = vmatpush1.bf16.msra.mxu0 0
    %3220 = vmatprep.subr.bf16.mxu0 0
    %3221 = vmatpush1.bf16.msra.mxu0 0
    %3222 = vmatprep.subr.bf16.mxu0 0
    %3223 = vmatpush1.bf16.msra.mxu0 0
    %3224 = vmatprep.subr.bf16.mxu0 0
    %3225 = vmatpush1.bf16.msra.mxu0 0
    %3226 = vmatprep.subr.bf16.mxu0 0
    %3227 = vmatpush1.bf16.msra.mxu0 0
    %3228 = vmatprep.subr.bf16.mxu0 0
    %3229 = vmatpush1.bf16.msra.mxu0 0
    %3230 = vmatprep.subr.bf16.mxu0 0
    %3231 = vmatpush1.bf16.msra.mxu0 0
    %3232 = vmatprep.subr.bf16.mxu0 0
    %3233 = vmatpush1.bf16.msra.mxu0 0
    %3234 = vmatprep.subr.bf16.mxu0 0
    %3235 = vmatpush1.bf16.msra.mxu0 0
    %3236 = vmatprep.subr.bf16.mxu0 0
    %3237 = vmatpush1.bf16.msra.mxu0 0
    %3238 = vmatprep.subr.bf16.mxu0 0
    %3239 = vmatpush1.bf16.msra.mxu0 0
    %3240 = vmatprep.subr.bf16.mxu0 0
    %3241 = vmatpush1.bf16.msra.mxu0 0
    %3242 = vmatprep.subr.bf16.mxu0 0
    %3243 = vmatpush1.bf16.msra.mxu0 0
    %3244 = vmatprep.subr.bf16.mxu0 0
    %3245 = vmatpush1.bf16.msra.mxu0 0
    %3246 = vmatprep.mubr.bf16.mxu0 0
    %3247 = vmatmul.mubr.bf16.gmra.mrb[0].mxu0 %v3119
    %v3248 = vpop.f32.mrb[0].mxu0
    %v3249 = vadd.f32 0.0, %v3248
    %v3250 = vpop.f32.mrb[0].mxu0
    %v3251 = vpop.f32.mrb[0].mxu0
    %v3252 = vadd.f32 0.0, %v3251
    %v3253 = vpop.f32.mrb[0].mxu0
    %3254 = vmatprep.mubr.bf16.mxu0 0
    %3255 = vmatmul.mubr.bf16.gmra.mrb[0].mxu0 %v3122
    %v3256 = vpop.f32.mrb[0].mxu0
    %v3257 = vadd.f32 0.0, %v3256
    %v3258 = vpop.f32.mrb[0].mxu0
    %v3259 = vpop.f32.mrb[0].mxu0
    %v3260 = vadd.f32 0.0, %v3259
    %v3261 = vpop.f32.mrb[0].mxu0
    %3262 = vmatprep.mubr.bf16.mxu0 0
    %3263 = vmatmul.mubr.bf16.gmra.mrb[0].mxu0 %v3125
    %v3264 = vpop.f32.mrb[0].mxu0
    %v3265 = vadd.f32 0.0, %v3264
    %v3266 = vpop.f32.mrb[0].mxu0
    %v3267 = vpop.f32.mrb[0].mxu0
    %v3268 = vadd.f32 0.0, %v3267
    %v3269 = vpop.f32.mrb[0].mxu0
    %3270 = vmatprep.mubr.bf16.mxu0 0
    %3271 = vmatmul.mubr.bf16.gmra.mrb[0].mxu0 %v3128
    %v3272 = vpop.f32.mrb[0].mxu0
    %v3273 = vadd.f32 0.0, %v3272
    %v3274 = vpop.f32.mrb[0].mxu0
    %v3275 = vpop.f32.mrb[0].mxu0
    %v3276 = vadd.f32 0.0, %v3275
    %v3277 = vpop.f32.mrb[0].mxu0
    %3278 = vmatprep.mubr.bf16.mxu0 0
    %3279 = vmatmul.mubr.bf16.gmra.mrb[0].mxu0 %v3131
    %v3280 = vpop.f32.mrb[0].mxu0
    %v3281 = vadd.f32 0.0, %v3280
    %v3282 = vpop.f32.mrb[0].mxu0
    %v3283 = vpop.f32.mrb[0].mxu0
    %v3284 = vadd.f32 0.0, %v3283
    %v3285 = vpop.f32.mrb[0].mxu0
    %3286 = vmatprep.mubr.bf16.mxu0 0
    %3287 = vmatmul.mubr.bf16.gmra.mrb[0].mxu0 %v3134
    %v3288 = vpop.f32.mrb[0].mxu0
    %v3289 = vadd.f32 0.0, %v3288
    %v3290 = vpop.f32.mrb[0].mxu0
    %v3291 = vpop.f32.mrb[0].mxu0
    %v3292 = vadd.f32 0.0, %v3291
    %v3293 = vpop.f32.mrb[0].mxu0
    %3294 = vmatprep.mubr.bf16.mxu0 0
    %3295 = vmatmul.mubr.bf16.gmra.mrb[0].mxu0 %v3137
    %v3296 = vpop.f32.mrb[0].mxu0
    %v3297 = vadd.f32 0.0, %v3296
    %v3298 = vpop.f32.mrb[0].mxu0
    %v3299 = vpop.f32.mrb[0].mxu0
    %v3300 = vadd.f32 0.0, %v3299
    %v3301 = vpop.f32.mrb[0].mxu0
    %3302 = vmatprep.mubr.bf16.mxu0 0
    %3303 = vmatmul.mubr.bf16.gmra.mrb[0].mxu0 %v3140
    %v3304 = vpop.f32.mrb[0].mxu0
    %v3305 = vadd.f32 0.0, %v3304
    %v3306 = vpop.f32.mrb[0].mxu0
    %v3307 = vpop.f32.mrb[0].mxu0
    %v3308 = vadd.f32 0.0, %v3307
    %v3309 = vpop.f32.mrb[0].mxu0
    %3310 = vmatprep.mubr.bf16.mxu0 0
    %3311 = vmatmul.mubr.bf16.gmra.mrb[0].mxu0 %v3143
    %v3312 = vpop.f32.mrb[0].mxu0
    %v3313 = vadd.f32 0.0, %v3312
    %v3314 = vpop.f32.mrb[0].mxu0
    %v3315 = vpop.f32.mrb[0].mxu0
    %v3316 = vadd.f32 0.0, %v3315
    %v3317 = vpop.f32.mrb[0].mxu0
    %3318 = vmatprep.mubr.bf16.mxu0 0
    %3319 = vmatmul.mubr.bf16.gmra.mrb[0].mxu0 %v3146
    %v3320 = vpop.f32.mrb[0].mxu0
    %v3321 = vadd.f32 0.0, %v3320
    %v3322 = vpop.f32.mrb[0].mxu0
    %v3323 = vpop.f32.mrb[0].mxu0
    %v3324 = vadd.f32 0.0, %v3323
    %v3325 = vpop.f32.mrb[0].mxu0
    %3326 = vmatprep.mubr.bf16.mxu0 0
    %3327 = vmatmul.mubr.bf16.gmra.mrb[0].mxu0 %v3149
    %v3328 = vpop.f32.mrb[0].mxu0
    %v3329 = vadd.f32 0.0, %v3328
    %v3330 = vpop.f32.mrb[0].mxu0
    %v3331 = vpop.f32.mrb[0].mxu0
    %v3332 = vadd.f32 0.0, %v3331
    %v3333 = vpop.f32.mrb[0].mxu0
    %3334 = vmatprep.mubr.bf16.mxu0 0
    %3335 = vmatmul.mubr.bf16.gmra.mrb[0].mxu0 %v3152
    %v3336 = vpop.f32.mrb[0].mxu0
    %v3337 = vadd.f32 0.0, %v3336
    %v3338 = vpop.f32.mrb[0].mxu0
    %v3339 = vpop.f32.mrb[0].mxu0
    %v3340 = vadd.f32 0.0, %v3339
    %v3341 = vpop.f32.mrb[0].mxu0
    %3342 = vmatprep.mubr.bf16.mxu0 0
    %3343 = vmatmul.mubr.bf16.gmra.mrb[0].mxu0 %v3155
    %v3344 = vpop.f32.mrb[0].mxu0
    %v3345 = vadd.f32 0.0, %v3344
    %v3346 = vpop.f32.mrb[0].mxu0
    %v3347 = vpop.f32.mrb[0].mxu0
    %v3348 = vadd.f32 0.0, %v3347
    %v3349 = vpop.f32.mrb[0].mxu0
    %3350 = vmatprep.mubr.bf16.mxu0 0
    %3351 = vmatmul.mubr.bf16.gmra.mrb[0].mxu0 %v3158
    %v3352 = vpop.f32.mrb[0].mxu0
    %v3353 = vadd.f32 0.0, %v3352
    %v3354 = vpop.f32.mrb[0].mxu0
    %v3355 = vpop.f32.mrb[0].mxu0
    %v3356 = vadd.f32 0.0, %v3355
    %v3357 = vpop.f32.mrb[0].mxu0
    %3358 = vmatprep.mubr.bf16.mxu0 0
    %3359 = vmatmul.mubr.bf16.gmra.mrb[0].mxu0 %v3161
    %v3360 = vpop.f32.mrb[0].mxu0
    %v3361 = vadd.f32 0.0, %v3360
    %v3362 = vpop.f32.mrb[0].mxu0
    %v3363 = vpop.f32.mrb[0].mxu0
    %v3364 = vadd.f32 0.0, %v3363
    %v3365 = vpop.f32.mrb[0].mxu0
    %3366 = vmatprep.mubr.bf16.mxu0 0
    %3367 = vmatmul.mubr.bf16.gmra.mrb[0].mxu0 %v3164
    %v3368 = vpop.f32.mrb[0].mxu0
    %v3369 = vadd.f32 0.0, %v3368
    %v3370 = vpop.f32.mrb[0].mxu0
    %v3371 = vpop.f32.mrb[0].mxu0
    %v3372 = vadd.f32 0.0, %v3371
    %v3373 = vpop.f32.mrb[0].mxu0
    %3374 = vmatprep.mubr.bf16.mxu0 0
    %3375 = vmatmul.mubr.bf16.gmra.mrb[0].mxu0 %v3167
    %v3376 = vpop.f32.mrb[0].mxu0
    %v3377 = vadd.f32 0.0, %v3376
    %v3378 = vpop.f32.mrb[0].mxu0
    %v3379 = vpop.f32.mrb[0].mxu0
    %v3380 = vadd.f32 0.0, %v3379
    %v3381 = vpop.f32.mrb[0].mxu0
    %3382 = vmatprep.mubr.bf16.mxu0 0
    %3383 = vmatmul.mubr.bf16.gmra.mrb[0].mxu0 %v3170
    %v3384 = vpop.f32.mrb[0].mxu0
    %v3385 = vadd.f32 0.0, %v3384
    %v3386 = vpop.f32.mrb[0].mxu0
    %v3387 = vpop.f32.mrb[0].mxu0
    %v3388 = vadd.f32 0.0, %v3387
    %v3389 = vpop.f32.mrb[0].mxu0
    %3390 = vmatprep.mubr.bf16.mxu0 0
    %3391 = vmatmul.mubr.bf16.gmra.mrb[0].mxu0 %v3173
    %v3392 = vpop.f32.mrb[0].mxu0
    %v3393 = vadd.f32 0.0, %v3392
    %v3394 = vpop.f32.mrb[0].mxu0
    %v3395 = vpop.f32.mrb[0].mxu0
    %v3396 = vadd.f32 0.0, %v3395
    %v3397 = vpop.f32.mrb[0].mxu0
    %3398 = vmatprep.mubr.bf16.mxu0 0
    %3399 = vmatmul.mubr.bf16.gmra.mrb[0].mxu0 %v3176
    %v3400 = vpop.f32.mrb[0].mxu0
    %v3401 = vadd.f32 0.0, %v3400
    %v3402 = vpop.f32.mrb[0].mxu0
    %v3403 = vpop.f32.mrb[0].mxu0
    %v3404 = vadd.f32 0.0, %v3403
    %v3405 = vpop.f32.mrb[0].mxu0
    %3406 = vmatprep.mubr.bf16.mxu0 0
    %3407 = vmatmul.mubr.bf16.gmra.mrb[0].mxu0 %v3179
    %v3408 = vpop.f32.mrb[0].mxu0
    %v3409 = vadd.f32 0.0, %v3408
    %v3410 = vpop.f32.mrb[0].mxu0
    %v3411 = vpop.f32.mrb[0].mxu0
    %v3412 = vadd.f32 0.0, %v3411
    %v3413 = vpop.f32.mrb[0].mxu0
    %3414 = vmatprep.mubr.bf16.mxu0 0
    %3415 = vmatmul.mubr.bf16.gmra.mrb[0].mxu0 %v3182
    %v3416 = vpop.f32.mrb[0].mxu0
    %v3417 = vadd.f32 0.0, %v3416
    %v3418 = vpop.f32.mrb[0].mxu0
    %v3419 = vpop.f32.mrb[0].mxu0
    %v3420 = vadd.f32 0.0, %v3419
    %v3421 = vpop.f32.mrb[0].mxu0
    %3422 = vmatprep.mubr.bf16.mxu0 0
    %3423 = vmatmul.mubr.bf16.gmra.mrb[0].mxu0 %v3185
    %v3424 = vpop.f32.mrb[0].mxu0
    %v3425 = vadd.f32 0.0, %v3424
    %v3426 = vpop.f32.mrb[0].mxu0
    %v3427 = vpop.f32.mrb[0].mxu0
    %v3428 = vadd.f32 0.0, %v3427
    %v3429 = vpop.f32.mrb[0].mxu0
    %3430 = vmatprep.mubr.bf16.mxu0 0
    %3431 = vmatmul.mubr.bf16.gmra.mrb[0].mxu0 %v3188
    %v3432 = vpop.f32.mrb[0].mxu0
    %v3433 = vadd.f32 0.0, %v3432
    %v3434 = vpop.f32.mrb[0].mxu0
    %v3435 = vpop.f32.mrb[0].mxu0
    %v3436 = vadd.f32 0.0, %v3435
    %v3437 = vpop.f32.mrb[0].mxu0
    %3438 = vmatprep.mubr.bf16.mxu0 0
    %3439 = vmatmul.mubr.bf16.gmra.mrb[0].mxu0 %v3191
    %v3440 = vpop.f32.mrb[0].mxu0
    %v3441 = vadd.f32 0.0, %v3440
    %v3442 = vpop.f32.mrb[0].mxu0
    %v3443 = vpop.f32.mrb[0].mxu0
    %v3444 = vadd.f32 0.0, %v3443
    %v3445 = vpop.f32.mrb[0].mxu0
    %3446 = vmatprep.mubr.bf16.mxu0 0
    %3447 = vmatmul.mubr.bf16.gmra.mrb[0].mxu0 %v3194
    %v3448 = vpop.f32.mrb[0].mxu0
    %v3449 = vadd.f32 0.0, %v3448
    %v3450 = vpop.f32.mrb[0].mxu0
    %v3451 = vpop.f32.mrb[0].mxu0
    %v3452 = vadd.f32 0.0, %v3451
    %v3453 = vpop.f32.mrb[0].mxu0
    %3454 = vmatprep.mubr.bf16.mxu0 0
    %3455 = vmatmul.mubr.bf16.gmra.mrb[0].mxu0 %v3197
    %v3456 = vpop.f32.mrb[0].mxu0
    %v3457 = vadd.f32 0.0, %v3456
    %v3458 = vpop.f32.mrb[0].mxu0
    %v3459 = vpop.f32.mrb[0].mxu0
    %v3460 = vadd.f32 0.0, %v3459
    %v3461 = vpop.f32.mrb[0].mxu0
    %3462 = vmatprep.mubr.bf16.mxu0 0
    %3463 = vmatmul.mubr.bf16.gmra.mrb[0].mxu0 %v3200
    %v3464 = vpop.f32.mrb[0].mxu0
    %v3465 = vadd.f32 0.0, %v3464
    %v3466 = vpop.f32.mrb[0].mxu0
    %v3467 = vpop.f32.mrb[0].mxu0
    %v3468 = vadd.f32 0.0, %v3467
    %v3469 = vpop.f32.mrb[0].mxu0
    %3470 = vmatprep.mubr.bf16.mxu0 0
    %3471 = vmatmul.mubr.bf16.gmra.mrb[0].mxu0 %v3203
    %v3472 = vpop.f32.mrb[0].mxu0
    %v3473 = vadd.f32 0.0, %v3472
    %v3474 = vpop.f32.mrb[0].mxu0
    %v3475 = vpop.f32.mrb[0].mxu0
    %v3476 = vadd.f32 0.0, %v3475
    %v3477 = vpop.f32.mrb[0].mxu0
    %3478 = vmatprep.mubr.bf16.mxu0 0
    %3479 = vmatmul.mubr.bf16.gmra.mrb[0].mxu0 %v3206
    %v3480 = vpop.f32.mrb[0].mxu0
    %v3481 = vadd.f32 0.0, %v3480
    %v3482 = vpop.f32.mrb[0].mxu0
    %v3483 = vpop.f32.mrb[0].mxu0
    %v3484 = vadd.f32 0.0, %v3483
    %v3485 = vpop.f32.mrb[0].mxu0
    %3486 = vmatprep.mubr.bf16.mxu0 0
    %3487 = vmatmul.mubr.bf16.gmra.mrb[0].mxu0 %v3209
    %v3488 = vpop.f32.mrb[0].mxu0
    %v3489 = vadd.f32 0.0, %v3488
    %v3490 = vpop.f32.mrb[0].mxu0
    %v3491 = vpop.f32.mrb[0].mxu0
    %v3492 = vadd.f32 0.0, %v3491
    %v3493 = vpop.f32.mrb[0].mxu0
    %3494 = vmatprep.mubr.bf16.mxu0 0
    %3495 = vmatmul.mubr.bf16.gmra.mrb[0].mxu0 %v3212
    %v3496 = vpop.f32.mrb[0].mxu0
    %v3497 = vadd.f32 0.0, %v3496
    %v3498 = vpop.f32.mrb[0].mxu0
    %v3499 = vpop.f32.mrb[0].mxu0
    %v3500 = vadd.f32 0.0, %v3499
    %v3501 = vpop.f32.mrb[0].mxu0
    %3502 = vdwg.mxu0
    %v3503 = vadd.f32 %v2949, %v3249
    %v3504 = vadd.f32 %v2950, %v3252
    %v3505 = vadd.f32 %v2951, %v3257
    %v3506 = vadd.f32 %v2952, %v3260
    %v3507 = vadd.f32 %v2953, %v3265
    %v3508 = vadd.f32 %v2954, %v3268
    %v3509 = vadd.f32 %v2955, %v3273
    %v3510 = vadd.f32 %v2956, %v3276
    %v3511 = vadd.f32 %v2957, %v3281
    %v3512 = vadd.f32 %v2958, %v3284
    %v3513 = vadd.f32 %v2959, %v3289
    %v3514 = vadd.f32 %v2960, %v3292
    %v3515 = vadd.f32 %v2961, %v3297
    %v3516 = vadd.f32 %v2962, %v3300
    %v3517 = vadd.f32 %v2963, %v3305
    %v3518 = vadd.f32 %v2964, %v3308
    %v3519 = vadd.f32 %v2965, %v3313
    %v3520 = vadd.f32 %v2966, %v3316
    %v3521 = vadd.f32 %v2967, %v3321
    %v3522 = vadd.f32 %v2968, %v3324
    %v3523 = vadd.f32 %v2969, %v3329
    %v3524 = vadd.f32 %v2970, %v3332
    %v3525 = vadd.f32 %v2971, %v3337
    %v3526 = vadd.f32 %v2972, %v3340
    %v3527 = vadd.f32 %v2973, %v3345
    %v3528 = vadd.f32 %v2974, %v3348
    %v3529 = vadd.f32 %v2975, %v3353
    %v3530 = vadd.f32 %v2976, %v3356
    %v3531 = vadd.f32 %v2977, %v3361
    %v3532 = vadd.f32 %v2978, %v3364
    %v3533 = vadd.f32 %v2979, %v3369
    %v3534 = vadd.f32 %v2980, %v3372
    %v3535 = vadd.f32 %v2981, %v3377
    %v3536 = vadd.f32 %v2982, %v3380
    %v3537 = vadd.f32 %v2983, %v3385
    %v3538 = vadd.f32 %v2984, %v3388
    %v3539 = vadd.f32 %v2985, %v3393
    %v3540 = vadd.f32 %v2986, %v3396
    %v3541 = vadd.f32 %v2987, %v3401
    %v3542 = vadd.f32 %v2988, %v3404
    %v3543 = vadd.f32 %v2989, %v3409
    %v3544 = vadd.f32 %v2990, %v3412
    %v3545 = vadd.f32 %v2991, %v3417
    %v3546 = vadd.f32 %v2992, %v3420
    %v3547 = vadd.f32 %v2993, %v3425
    %v3548 = vadd.f32 %v2994, %v3428
    %v3549 = vadd.f32 %v2995, %v3433
    %v3550 = vadd.f32 %v2996, %v3436
    %v3551 = vadd.f32 %v2997, %v3441
    %v3552 = vadd.f32 %v2998, %v3444
    %v3553 = vadd.f32 %v2999, %v3449
    %v3554 = vadd.f32 %v3000, %v3452
    %v3555 = vadd.f32 %v3001, %v3457
    %v3556 = vadd.f32 %v3002, %v3460
    %v3557 = vadd.f32 %v3003, %v3465
    %v3558 = vadd.f32 %v3004, %v3468
    %v3559 = vadd.f32 %v3005, %v3473
    %v3560 = vadd.f32 %v3006, %v3476
    %v3561 = vadd.f32 %v3007, %v3481
    %v3562 = vadd.f32 %v3008, %v3484
    %v3563 = vadd.f32 %v3009, %v3489
    %v3564 = vadd.f32 %v3010, %v3492
    %v3565 = vadd.f32 %v3011, %v3497
    %v3566 = vadd.f32 %v3012, %v3500
    %v3567 = vld [vmem:[%s861 + $0x2] sm:$0xff]
    %v3568 = vld [vmem:[%s861 + $0xa] sm:$0xff]
    %v3569 = vld [vmem:[%s861 + $0x1a] sm:$0xff]
    %v3570 = vld [vmem:[%s861 + $0x22] sm:$0xff]
    %v3571 = vld [vmem:[%s861 + $0x32] sm:$0xff]
    %v3572 = vld [vmem:[%s861 + $0x3a] sm:$0xff]
    %v3573 = vld [vmem:[%s861 + $0x4a] sm:$0xff]
    %v3574 = vld [vmem:[%s861 + $0x52] sm:$0xff]
    %v3575 = vld [vmem:[%s861 + $0x62] sm:$0xff]
    %v3576 = vld [vmem:[%s861 + $0x6a] sm:$0xff]
    %v3577 = vld [vmem:[%s861 + $0x7a] sm:$0xff]
    %v3578 = vld [vmem:[%s861 + $0x82] sm:$0xff]
    %v3579 = vld [vmem:[%s861 + $0x92] sm:$0xff]
    %v3580 = vld [vmem:[%s861 + $0x9a] sm:$0xff]
    %v3581 = vld [vmem:[%s861 + $0xaa] sm:$0xff]
    %v3582 = vld [vmem:[%s861 + $0xb2] sm:$0xff]
    %v3583 = vld [vmem:[%s861 + $0xc2] sm:$0xff]
    %v3584 = vld [vmem:[%s861 + $0xca] sm:$0xff]
    %v3585 = vld [vmem:[%s861 + $0xda] sm:$0xff]
    %v3586 = vld [vmem:[%s861 + $0xe2] sm:$0xff]
    %v3587 = vld [vmem:[%s861 + $0xf2] sm:$0xff]
    %v3588 = vld [vmem:[%s861 + $0xfa] sm:$0xff]
    %v3589 = vld [vmem:[%s861 + $0x10a] sm:$0xff]
    %v3590 = vld [vmem:[%s861 + $0x112] sm:$0xff]
    %v3591 = vld [vmem:[%s861 + $0x122] sm:$0xff]
    %v3592 = vld [vmem:[%s861 + $0x12a] sm:$0xff]
    %v3593 = vld [vmem:[%s861 + $0x13a] sm:$0xff]
    %v3594 = vld [vmem:[%s861 + $0x142] sm:$0xff]
    %v3595 = vld [vmem:[%s861 + $0x152] sm:$0xff]
    %v3596 = vld [vmem:[%s861 + $0x15a] sm:$0xff]
    %v3597 = vld [vmem:[%s861 + $0x16a] sm:$0xff]
    %v3598 = vld [vmem:[%s861 + $0x172] sm:$0xff]
    %v3599 = vld [vmem:[%s861 + $0x1b2] sm:$0xff]
    %v3600 = vld [vmem:[%s861 + $0x1ba] sm:$0xff]
    %v3601 = vld [vmem:[%s861 + $0x1ca] sm:$0xff]
    %v3602 = vld [vmem:[%s861 + $0x1d2] sm:$0xff]
    %v3603 = vld [vmem:[%s861 + $0x1e2] sm:$0xff]
    %v3604 = vld [vmem:[%s861 + $0x1ea] sm:$0xff]
    %v3605 = vld [vmem:[%s861 + $0x1fa] sm:$0xff]
    %v3606 = vld [vmem:[%s861 + $0x202] sm:$0xff]
    %v3607 = vld [vmem:[%s861 + $0x212] sm:$0xff]
    %v3608 = vld [vmem:[%s861 + $0x21a] sm:$0xff]
    %v3609 = vld [vmem:[%s861 + $0x22a] sm:$0xff]
    %v3610 = vld [vmem:[%s861 + $0x232] sm:$0xff]
    %v3611 = vld [vmem:[%s861 + $0x242] sm:$0xff]
    %v3612 = vld [vmem:[%s861 + $0x24a] sm:$0xff]
    %v3613 = vld [vmem:[%s861 + $0x25a] sm:$0xff]
    %v3614 = vld [vmem:[%s861 + $0x262] sm:$0xff]
    %v3615 = vld [vmem:[%s861 + $0x272] sm:$0xff]
    %v3616 = vld [vmem:[%s861 + $0x27a] sm:$0xff]
    %v3617 = vld [vmem:[%s861 + $0x28a] sm:$0xff]
    %v3618 = vld [vmem:[%s861 + $0x292] sm:$0xff]
    %v3619 = vld [vmem:[%s861 + $0x2a2] sm:$0xff]
    %v3620 = vld [vmem:[%s861 + $0x2aa] sm:$0xff]
    %v3621 = vld [vmem:[%s861 + $0x2ba] sm:$0xff]
    %v3622 = vld [vmem:[%s861 + $0x2c2] sm:$0xff]
    %v3623 = vld [vmem:[%s861 + $0x2d2] sm:$0xff]
    %v3624 = vld [vmem:[%s861 + $0x2da] sm:$0xff]
    %v3625 = vld [vmem:[%s861 + $0x2ea] sm:$0xff]
    %v3626 = vld [vmem:[%s861 + $0x2f2] sm:$0xff]
    %v3627 = vld [vmem:[%s861 + $0x302] sm:$0xff]
    %v3628 = vld [vmem:[%s861 + $0x30a] sm:$0xff]
    %v3629 = vld [vmem:[%s861 + $0x31a] sm:$0xff]
    %v3630 = vld [vmem:[%s861 + $0x322] sm:$0xff]
    %v3631 = vpack.c.bf16 %v3568, %v3567
    %v3632 = vpack.c.bf16 %v3570, %v3569
    %v3633 = vpack.c.bf16 %v3572, %v3571
    %v3634 = vpack.c.bf16 %v3574, %v3573
    %v3635 = vpack.c.bf16 %v3576, %v3575
    %v3636 = vpack.c.bf16 %v3578, %v3577
    %v3637 = vpack.c.bf16 %v3580, %v3579
    %v3638 = vpack.c.bf16 %v3582, %v3581
    %v3639 = vpack.c.bf16 %v3584, %v3583
    %v3640 = vpack.c.bf16 %v3586, %v3585
    %v3641 = vpack.c.bf16 %v3588, %v3587
    %v3642 = vpack.c.bf16 %v3590, %v3589
    %v3643 = vpack.c.bf16 %v3592, %v3591
    %v3644 = vpack.c.bf16 %v3594, %v3593
    %v3645 = vpack.c.bf16 %v3596, %v3595
    %v3646 = vpack.c.bf16 %v3598, %v3597
    %v3647 = vpack.c.bf16 %v3600, %v3599
    %v3648 = vpack.c.bf16 %v3602, %v3601
    %v3649 = vpack.c.bf16 %v3604, %v3603
    %v3650 = vpack.c.bf16 %v3606, %v3605
    %v3651 = vpack.c.bf16 %v3608, %v3607
    %v3652 = vpack.c.bf16 %v3610, %v3609
    %v3653 = vpack.c.bf16 %v3612, %v3611
    %v3654 = vpack.c.bf16 %v3614, %v3613
    %v3655 = vpack.c.bf16 %v3616, %v3615
    %v3656 = vpack.c.bf16 %v3618, %v3617
    %v3657 = vpack.c.bf16 %v3620, %v3619
    %v3658 = vpack.c.bf16 %v3622, %v3621
    %v3659 = vpack.c.bf16 %v3624, %v3623
    %v3660 = vpack.c.bf16 %v3626, %v3625
    %v3661 = vpack.c.bf16 %v3628, %v3627
    %v3662 = vpack.c.bf16 %v3630, %v3629
    %s3663 = scalar_lea.vmem [#allocation7], 40
    %v3664 = vld [vmem:[%s3663] sm:$0xf]
    %v3665 = vld [vmem:[%s3663 + $0x4] sm:$0xf]
    %v3668 = vunpack.c.l.b16 %v3664
    %v3669 = vunpack.c.l.b16 %v3665
    %v3670 = vpack.c.b16 %v3669, %v3668
    %v3673 = vsel %vm147, %v3631, 0
    %v3676 = vsel %vm147, %v3632, 0
    %v3679 = vsel %vm147, %v3633, 0
    %v3682 = vsel %vm147, %v3634, 0
    %v3685 = vsel %vm147, %v3635, 0
    %v3688 = vsel %vm147, %v3636, 0
    %v3691 = vsel %vm147, %v3637, 0
    %v3694 = vsel %vm147, %v3638, 0
    %v3697 = vsel %vm147, %v3639, 0
    %v3700 = vsel %vm147, %v3640, 0
    %v3703 = vsel %vm147, %v3641, 0
    %v3706 = vsel %vm147, %v3642, 0
    %v3709 = vsel %vm147, %v3643, 0
    %v3712 = vsel %vm147, %v3644, 0
    %v3715 = vsel %vm147, %v3645, 0
    %v3718 = vsel %vm147, %v3646, 0
    %v3721 = vsel %vm147, %v3647, 0
    %v3724 = vsel %vm147, %v3648, 0
    %v3727 = vsel %vm147, %v3649, 0
    %v3730 = vsel %vm147, %v3650, 0
    %v3733 = vsel %vm147, %v3651, 0
    %v3736 = vsel %vm147, %v3652, 0
    %v3739 = vsel %vm147, %v3653, 0
    %v3742 = vsel %vm147, %v3654, 0
    %v3745 = vsel %vm147, %v3655, 0
    %v3748 = vsel %vm147, %v3656, 0
    %v3751 = vsel %vm147, %v3657, 0
    %v3754 = vsel %vm147, %v3658, 0
    %v3757 = vsel %vm147, %v3659, 0
    %v3760 = vsel %vm147, %v3660, 0
    %v3763 = vsel %vm147, %v3661, 0
    %v3766 = vsel %vm147, %v3662, 0
    %3768 = vmatprep.subr.bf16.mxu0 0
    %3769 = vmatpush1.bf16.msra.mxu0 %v3670
    %3770 = vmatprep.subr.bf16.mxu0 0
    %3771 = vmatpush1.bf16.msra.mxu0 0
    %3772 = vmatprep.subr.bf16.mxu0 0
    %3773 = vmatpush1.bf16.msra.mxu0 0
    %3774 = vmatprep.subr.bf16.mxu0 0
    %3775 = vmatpush1.bf16.msra.mxu0 0
    %3776 = vmatprep.subr.bf16.mxu0 0
    %3777 = vmatpush1.bf16.msra.mxu0 0
    %3778 = vmatprep.subr.bf16.mxu0 0
    %3779 = vmatpush1.bf16.msra.mxu0 0
    %3780 = vmatprep.subr.bf16.mxu0 0
    %3781 = vmatpush1.bf16.msra.mxu0 0
    %3782 = vmatprep.subr.bf16.mxu0 0
    %3783 = vmatpush1.bf16.msra.mxu0 0
    %3784 = vmatprep.subr.bf16.mxu0 0
    %3785 = vmatpush1.bf16.msra.mxu0 0
    %3786 = vmatprep.subr.bf16.mxu0 0
    %3787 = vmatpush1.bf16.msra.mxu0 0
    %3788 = vmatprep.subr.bf16.mxu0 0
    %3789 = vmatpush1.bf16.msra.mxu0 0
    %3790 = vmatprep.subr.bf16.mxu0 0
    %3791 = vmatpush1.bf16.msra.mxu0 0
    %3792 = vmatprep.subr.bf16.mxu0 0
    %3793 = vmatpush1.bf16.msra.mxu0 0
    %3794 = vmatprep.subr.bf16.mxu0 0
    %3795 = vmatpush1.bf16.msra.mxu0 0
    %3796 = vmatprep.subr.bf16.mxu0 0
    %3797 = vmatpush1.bf16.msra.mxu0 0
    %3798 = vmatprep.subr.bf16.mxu0 0
    %3799 = vmatpush1.bf16.msra.mxu0 0
    %3800 = vmatprep.mubr.bf16.mxu0 0
    %3801 = vmatmul.mubr.bf16.gmra.mrb[0].mxu0 %v3673
    %v3802 = vpop.f32.mrb[0].mxu0
    %v3803 = vadd.f32 0.0, %v3802
    %v3804 = vpop.f32.mrb[0].mxu0
    %v3805 = vpop.f32.mrb[0].mxu0
    %v3806 = vadd.f32 0.0, %v3805
    %v3807 = vpop.f32.mrb[0].mxu0
    %3808 = vmatprep.mubr.bf16.mxu0 0
    %3809 = vmatmul.mubr.bf16.gmra.mrb[0].mxu0 %v3676
    %v3810 = vpop.f32.mrb[0].mxu0
    %v3811 = vadd.f32 0.0, %v3810
    %v3812 = vpop.f32.mrb[0].mxu0
    %v3813 = vpop.f32.mrb[0].mxu0
    %v3814 = vadd.f32 0.0, %v3813
    %v3815 = vpop.f32.mrb[0].mxu0
    %3816 = vmatprep.mubr.bf16.mxu0 0
    %3817 = vmatmul.mubr.bf16.gmra.mrb[0].mxu0 %v3679
    %v3818 = vpop.f32.mrb[0].mxu0
    %v3819 = vadd.f32 0.0, %v3818
    %v3820 = vpop.f32.mrb[0].mxu0
    %v3821 = vpop.f32.mrb[0].mxu0
    %v3822 = vadd.f32 0.0, %v3821
    %v3823 = vpop.f32.mrb[0].mxu0
    %3824 = vmatprep.mubr.bf16.mxu0 0
    %3825 = vmatmul.mubr.bf16.gmra.mrb[0].mxu0 %v3682
    %v3826 = vpop.f32.mrb[0].mxu0
    %v3827 = vadd.f32 0.0, %v3826
    %v3828 = vpop.f32.mrb[0].mxu0
    %v3829 = vpop.f32.mrb[0].mxu0
    %v3830 = vadd.f32 0.0, %v3829
    %v3831 = vpop.f32.mrb[0].mxu0
    %3832 = vmatprep.mubr.bf16.mxu0 0
    %3833 = vmatmul.mubr.bf16.gmra.mrb[0].mxu0 %v3685
    %v3834 = vpop.f32.mrb[0].mxu0
    %v3835 = vadd.f32 0.0, %v3834
    %v3836 = vpop.f32.mrb[0].mxu0
    %v3837 = vpop.f32.mrb[0].mxu0
    %v3838 = vadd.f32 0.0, %v3837
    %v3839 = vpop.f32.mrb[0].mxu0
    %3840 = vmatprep.mubr.bf16.mxu0 0
    %3841 = vmatmul.mubr.bf16.gmra.mrb[0].mxu0 %v3688
    %v3842 = vpop.f32.mrb[0].mxu0
    %v3843 = vadd.f32 0.0, %v3842
    %v3844 = vpop.f32.mrb[0].mxu0
    %v3845 = vpop.f32.mrb[0].mxu0
    %v3846 = vadd.f32 0.0, %v3845
    %v3847 = vpop.f32.mrb[0].mxu0
    %3848 = vmatprep.mubr.bf16.mxu0 0
    %3849 = vmatmul.mubr.bf16.gmra.mrb[0].mxu0 %v3691
    %v3850 = vpop.f32.mrb[0].mxu0
    %v3851 = vadd.f32 0.0, %v3850
    %v3852 = vpop.f32.mrb[0].mxu0
    %v3853 = vpop.f32.mrb[0].mxu0
    %v3854 = vadd.f32 0.0, %v3853
    %v3855 = vpop.f32.mrb[0].mxu0
    %3856 = vmatprep.mubr.bf16.mxu0 0
    %3857 = vmatmul.mubr.bf16.gmra.mrb[0].mxu0 %v3694
    %v3858 = vpop.f32.mrb[0].mxu0
    %v3859 = vadd.f32 0.0, %v3858
    %v3860 = vpop.f32.mrb[0].mxu0
    %v3861 = vpop.f32.mrb[0].mxu0
    %v3862 = vadd.f32 0.0, %v3861
    %v3863 = vpop.f32.mrb[0].mxu0
    %3864 = vmatprep.mubr.bf16.mxu0 0
    %3865 = vmatmul.mubr.bf16.gmra.mrb[0].mxu0 %v3697
    %v3866 = vpop.f32.mrb[0].mxu0
    %v3867 = vadd.f32 0.0, %v3866
    %v3868 = vpop.f32.mrb[0].mxu0
    %v3869 = vpop.f32.mrb[0].mxu0
    %v3870 = vadd.f32 0.0, %v3869
    %v3871 = vpop.f32.mrb[0].mxu0
    %3872 = vmatprep.mubr.bf16.mxu0 0
    %3873 = vmatmul.mubr.bf16.gmra.mrb[0].mxu0 %v3700
    %v3874 = vpop.f32.mrb[0].mxu0
    %v3875 = vadd.f32 0.0, %v3874
    %v3876 = vpop.f32.mrb[0].mxu0
    %v3877 = vpop.f32.mrb[0].mxu0
    %v3878 = vadd.f32 0.0, %v3877
    %v3879 = vpop.f32.mrb[0].mxu0
    %3880 = vmatprep.mubr.bf16.mxu0 0
    %3881 = vmatmul.mubr.bf16.gmra.mrb[0].mxu0 %v3703
    %v3882 = vpop.f32.mrb[0].mxu0
    %v3883 = vadd.f32 0.0, %v3882
    %v3884 = vpop.f32.mrb[0].mxu0
    %v3885 = vpop.f32.mrb[0].mxu0
    %v3886 = vadd.f32 0.0, %v3885
    %v3887 = vpop.f32.mrb[0].mxu0
    %3888 = vmatprep.mubr.bf16.mxu0 0
    %3889 = vmatmul.mubr.bf16.gmra.mrb[0].mxu0 %v3706
    %v3890 = vpop.f32.mrb[0].mxu0
    %v3891 = vadd.f32 0.0, %v3890
    %v3892 = vpop.f32.mrb[0].mxu0
    %v3893 = vpop.f32.mrb[0].mxu0
    %v3894 = vadd.f32 0.0, %v3893
    %v3895 = vpop.f32.mrb[0].mxu0
    %3896 = vmatprep.mubr.bf16.mxu0 0
    %3897 = vmatmul.mubr.bf16.gmra.mrb[0].mxu0 %v3709
    %v3898 = vpop.f32.mrb[0].mxu0
    %v3899 = vadd.f32 0.0, %v3898
    %v3900 = vpop.f32.mrb[0].mxu0
    %v3901 = vpop.f32.mrb[0].mxu0
    %v3902 = vadd.f32 0.0, %v3901
    %v3903 = vpop.f32.mrb[0].mxu0
    %3904 = vmatprep.mubr.bf16.mxu0 0
    %3905 = vmatmul.mubr.bf16.gmra.mrb[0].mxu0 %v3712
    %v3906 = vpop.f32.mrb[0].mxu0
    %v3907 = vadd.f32 0.0, %v3906
    %v3908 = vpop.f32.mrb[0].mxu0
    %v3909 = vpop.f32.mrb[0].mxu0
    %v3910 = vadd.f32 0.0, %v3909
    %v3911 = vpop.f32.mrb[0].mxu0
    %3912 = vmatprep.mubr.bf16.mxu0 0
    %3913 = vmatmul.mubr.bf16.gmra.mrb[0].mxu0 %v3715
    %v3914 = vpop.f32.mrb[0].mxu0
    %v3915 = vadd.f32 0.0, %v3914
    %v3916 = vpop.f32.mrb[0].mxu0
    %v3917 = vpop.f32.mrb[0].mxu0
    %v3918 = vadd.f32 0.0, %v3917
    %v3919 = vpop.f32.mrb[0].mxu0
    %3920 = vmatprep.mubr.bf16.mxu0 0
    %3921 = vmatmul.mubr.bf16.gmra.mrb[0].mxu0 %v3718
    %v3922 = vpop.f32.mrb[0].mxu0
    %v3923 = vadd.f32 0.0, %v3922
    %v3924 = vpop.f32.mrb[0].mxu0
    %v3925 = vpop.f32.mrb[0].mxu0
    %v3926 = vadd.f32 0.0, %v3925
    %v3927 = vpop.f32.mrb[0].mxu0
    %3928 = vmatprep.mubr.bf16.mxu0 0
    %3929 = vmatmul.mubr.bf16.gmra.mrb[0].mxu0 %v3721
    %v3930 = vpop.f32.mrb[0].mxu0
    %v3931 = vadd.f32 0.0, %v3930
    %v3932 = vpop.f32.mrb[0].mxu0
    %v3933 = vpop.f32.mrb[0].mxu0
    %v3934 = vadd.f32 0.0, %v3933
    %v3935 = vpop.f32.mrb[0].mxu0
    %3936 = vmatprep.mubr.bf16.mxu0 0
    %3937 = vmatmul.mubr.bf16.gmra.mrb[0].mxu0 %v3724
    %v3938 = vpop.f32.mrb[0].mxu0
    %v3939 = vadd.f32 0.0, %v3938
    %v3940 = vpop.f32.mrb[0].mxu0
    %v3941 = vpop.f32.mrb[0].mxu0
    %v3942 = vadd.f32 0.0, %v3941
    %v3943 = vpop.f32.mrb[0].mxu0
    %3944 = vmatprep.mubr.bf16.mxu0 0
    %3945 = vmatmul.mubr.bf16.gmra.mrb[0].mxu0 %v3727
    %v3946 = vpop.f32.mrb[0].mxu0
    %v3947 = vadd.f32 0.0, %v3946
    %v3948 = vpop.f32.mrb[0].mxu0
    %v3949 = vpop.f32.mrb[0].mxu0
    %v3950 = vadd.f32 0.0, %v3949
    %v3951 = vpop.f32.mrb[0].mxu0
    %3952 = vmatprep.mubr.bf16.mxu0 0
    %3953 = vmatmul.mubr.bf16.gmra.mrb[0].mxu0 %v3730
    %v3954 = vpop.f32.mrb[0].mxu0
    %v3955 = vadd.f32 0.0, %v3954
    %v3956 = vpop.f32.mrb[0].mxu0
    %v3957 = vpop.f32.mrb[0].mxu0
    %v3958 = vadd.f32 0.0, %v3957
    %v3959 = vpop.f32.mrb[0].mxu0
    %3960 = vmatprep.mubr.bf16.mxu0 0
    %3961 = vmatmul.mubr.bf16.gmra.mrb[0].mxu0 %v3733
    %v3962 = vpop.f32.mrb[0].mxu0
    %v3963 = vadd.f32 0.0, %v3962
    %v3964 = vpop.f32.mrb[0].mxu0
    %v3965 = vpop.f32.mrb[0].mxu0
    %v3966 = vadd.f32 0.0, %v3965
    %v3967 = vpop.f32.mrb[0].mxu0
    %3968 = vmatprep.mubr.bf16.mxu0 0
    %3969 = vmatmul.mubr.bf16.gmra.mrb[0].mxu0 %v3736
    %v3970 = vpop.f32.mrb[0].mxu0
    %v3971 = vadd.f32 0.0, %v3970
    %v3972 = vpop.f32.mrb[0].mxu0
    %v3973 = vpop.f32.mrb[0].mxu0
    %v3974 = vadd.f32 0.0, %v3973
    %v3975 = vpop.f32.mrb[0].mxu0
    %3976 = vmatprep.mubr.bf16.mxu0 0
    %3977 = vmatmul.mubr.bf16.gmra.mrb[0].mxu0 %v3739
    %v3978 = vpop.f32.mrb[0].mxu0
    %v3979 = vadd.f32 0.0, %v3978
    %v3980 = vpop.f32.mrb[0].mxu0
    %v3981 = vpop.f32.mrb[0].mxu0
    %v3982 = vadd.f32 0.0, %v3981
    %v3983 = vpop.f32.mrb[0].mxu0
    %3984 = vmatprep.mubr.bf16.mxu0 0
    %3985 = vmatmul.mubr.bf16.gmra.mrb[0].mxu0 %v3742
    %v3986 = vpop.f32.mrb[0].mxu0
    %v3987 = vadd.f32 0.0, %v3986
    %v3988 = vpop.f32.mrb[0].mxu0
    %v3989 = vpop.f32.mrb[0].mxu0
    %v3990 = vadd.f32 0.0, %v3989
    %v3991 = vpop.f32.mrb[0].mxu0
    %3992 = vmatprep.mubr.bf16.mxu0 0
    %3993 = vmatmul.mubr.bf16.gmra.mrb[0].mxu0 %v3745
    %v3994 = vpop.f32.mrb[0].mxu0
    %v3995 = vadd.f32 0.0, %v3994
    %v3996 = vpop.f32.mrb[0].mxu0
    %v3997 = vpop.f32.mrb[0].mxu0
    %v3998 = vadd.f32 0.0, %v3997
    %v3999 = vpop.f32.mrb[0].mxu0
    %4000 = vmatprep.mubr.bf16.mxu0 0
    %4001 = vmatmul.mubr.bf16.gmra.mrb[0].mxu0 %v3748
    %v4002 = vpop.f32.mrb[0].mxu0
    %v4003 = vadd.f32 0.0, %v4002
    %v4004 = vpop.f32.mrb[0].mxu0
    %v4005 = vpop.f32.mrb[0].mxu0
    %v4006 = vadd.f32 0.0, %v4005
    %v4007 = vpop.f32.mrb[0].mxu0
    %4008 = vmatprep.mubr.bf16.mxu0 0
    %4009 = vmatmul.mubr.bf16.gmra.mrb[0].mxu0 %v3751
    %v4010 = vpop.f32.mrb[0].mxu0
    %v4011 = vadd.f32 0.0, %v4010
    %v4012 = vpop.f32.mrb[0].mxu0
    %v4013 = vpop.f32.mrb[0].mxu0
    %v4014 = vadd.f32 0.0, %v4013
    %v4015 = vpop.f32.mrb[0].mxu0
    %4016 = vmatprep.mubr.bf16.mxu0 0
    %4017 = vmatmul.mubr.bf16.gmra.mrb[0].mxu0 %v3754
    %v4018 = vpop.f32.mrb[0].mxu0
    %v4019 = vadd.f32 0.0, %v4018
    %v4020 = vpop.f32.mrb[0].mxu0
    %v4021 = vpop.f32.mrb[0].mxu0
    %v4022 = vadd.f32 0.0, %v4021
    %v4023 = vpop.f32.mrb[0].mxu0
    %4024 = vmatprep.mubr.bf16.mxu0 0
    %4025 = vmatmul.mubr.bf16.gmra.mrb[0].mxu0 %v3757
    %v4026 = vpop.f32.mrb[0].mxu0
    %v4027 = vadd.f32 0.0, %v4026
    %v4028 = vpop.f32.mrb[0].mxu0
    %v4029 = vpop.f32.mrb[0].mxu0
    %v4030 = vadd.f32 0.0, %v4029
    %v4031 = vpop.f32.mrb[0].mxu0
    %4032 = vmatprep.mubr.bf16.mxu0 0
    %4033 = vmatmul.mubr.bf16.gmra.mrb[0].mxu0 %v3760
    %v4034 = vpop.f32.mrb[0].mxu0
    %v4035 = vadd.f32 0.0, %v4034
    %v4036 = vpop.f32.mrb[0].mxu0
    %v4037 = vpop.f32.mrb[0].mxu0
    %v4038 = vadd.f32 0.0, %v4037
    %v4039 = vpop.f32.mrb[0].mxu0
    %4040 = vmatprep.mubr.bf16.mxu0 0
    %4041 = vmatmul.mubr.bf16.gmra.mrb[0].mxu0 %v3763
    %v4042 = vpop.f32.mrb[0].mxu0
    %v4043 = vadd.f32 0.0, %v4042
    %v4044 = vpop.f32.mrb[0].mxu0
    %v4045 = vpop.f32.mrb[0].mxu0
    %v4046 = vadd.f32 0.0, %v4045
    %v4047 = vpop.f32.mrb[0].mxu0
    %4048 = vmatprep.mubr.bf16.mxu0 0
    %4049 = vmatmul.mubr.bf16.gmra.mrb[0].mxu0 %v3766
    %v4050 = vpop.f32.mrb[0].mxu0
    %v4051 = vadd.f32 0.0, %v4050
    %v4052 = vpop.f32.mrb[0].mxu0
    %v4053 = vpop.f32.mrb[0].mxu0
    %v4054 = vadd.f32 0.0, %v4053
    %v4055 = vpop.f32.mrb[0].mxu0
    %4056 = vdwg.mxu0
    %v4057 = vadd.f32 %v3503, %v3803
    %v4058 = vadd.f32 %v3504, %v3806
    %v4059 = vadd.f32 %v3505, %v3811
    %v4060 = vadd.f32 %v3506, %v3814
    %v4061 = vadd.f32 %v3507, %v3819
    %v4062 = vadd.f32 %v3508, %v3822
    %v4063 = vadd.f32 %v3509, %v3827
    %v4064 = vadd.f32 %v3510, %v3830
    %v4065 = vadd.f32 %v3511, %v3835
    %v4066 = vadd.f32 %v3512, %v3838
    %v4067 = vadd.f32 %v3513, %v3843
    %v4068 = vadd.f32 %v3514, %v3846
    %v4069 = vadd.f32 %v3515, %v3851
    %v4070 = vadd.f32 %v3516, %v3854
    %v4071 = vadd.f32 %v3517, %v3859
    %v4072 = vadd.f32 %v3518, %v3862
    %v4073 = vadd.f32 %v3519, %v3867
    %v4074 = vadd.f32 %v3520, %v3870
    %v4075 = vadd.f32 %v3521, %v3875
    %v4076 = vadd.f32 %v3522, %v3878
    %v4077 = vadd.f32 %v3523, %v3883
    %v4078 = vadd.f32 %v3524, %v3886
    %v4079 = vadd.f32 %v3525, %v3891
    %v4080 = vadd.f32 %v3526, %v3894
    %v4081 = vadd.f32 %v3527, %v3899
    %v4082 = vadd.f32 %v3528, %v3902
    %v4083 = vadd.f32 %v3529, %v3907
    %v4084 = vadd.f32 %v3530, %v3910
    %v4085 = vadd.f32 %v3531, %v3915
    %v4086 = vadd.f32 %v3532, %v3918
    %v4087 = vadd.f32 %v3533, %v3923
    %v4088 = vadd.f32 %v3534, %v3926
    %v4089 = vadd.f32 %v3535, %v3931
    %v4090 = vadd.f32 %v3536, %v3934
    %v4091 = vadd.f32 %v3537, %v3939
    %v4092 = vadd.f32 %v3538, %v3942
    %v4093 = vadd.f32 %v3539, %v3947
    %v4094 = vadd.f32 %v3540, %v3950
    %v4095 = vadd.f32 %v3541, %v3955
    %v4096 = vadd.f32 %v3542, %v3958
    %v4097 = vadd.f32 %v3543, %v3963
    %v4098 = vadd.f32 %v3544, %v3966
    %v4099 = vadd.f32 %v3545, %v3971
    %v4100 = vadd.f32 %v3546, %v3974
    %v4101 = vadd.f32 %v3547, %v3979
    %v4102 = vadd.f32 %v3548, %v3982
    %v4103 = vadd.f32 %v3549, %v3987
    %v4104 = vadd.f32 %v3550, %v3990
    %v4105 = vadd.f32 %v3551, %v3995
    %v4106 = vadd.f32 %v3552, %v3998
    %v4107 = vadd.f32 %v3553, %v4003
    %v4108 = vadd.f32 %v3554, %v4006
    %v4109 = vadd.f32 %v3555, %v4011
    %v4110 = vadd.f32 %v3556, %v4014
    %v4111 = vadd.f32 %v3557, %v4019
    %v4112 = vadd.f32 %v3558, %v4022
    %v4113 = vadd.f32 %v3559, %v4027
    %v4114 = vadd.f32 %v3560, %v4030
    %v4115 = vadd.f32 %v3561, %v4035
    %v4116 = vadd.f32 %v3562, %v4038
    %v4117 = vadd.f32 %v3563, %v4043
    %v4118 = vadd.f32 %v3564, %v4046
    %v4119 = vadd.f32 %v3565, %v4051
    %v4120 = vadd.f32 %v3566, %v4054
    %s4121 = scalar_lea.vmem [#allocation2], 48
    %v4122 = vld [vmem:[%s4121] sm:$0xff]
    %v4123 = vld [vmem:[%s4121 + $0x8] sm:$0xff]
    %v4124 = vld [vmem:[%s4121 + $0x18] sm:$0xff]
    %v4125 = vld [vmem:[%s4121 + $0x20] sm:$0xff]
    %v4126 = vld [vmem:[%s4121 + $0x30] sm:$0xff]
    %v4127 = vld [vmem:[%s4121 + $0x38] sm:$0xff]
    %v4128 = vld [vmem:[%s4121 + $0x48] sm:$0xff]
    %v4129 = vld [vmem:[%s4121 + $0x50] sm:$0xff]
    %v4130 = vld [vmem:[%s4121 + $0x60] sm:$0xff]
    %v4131 = vld [vmem:[%s4121 + $0x68] sm:$0xff]
    %v4132 = vld [vmem:[%s4121 + $0x78] sm:$0xff]
    %v4133 = vld [vmem:[%s4121 + $0x80] sm:$0xff]
    %v4134 = vld [vmem:[%s4121 + $0x90] sm:$0xff]
    %v4135 = vld [vmem:[%s4121 + $0x98] sm:$0xff]
    %v4136 = vld [vmem:[%s4121 + $0xa8] sm:$0xff]
    %v4137 = vld [vmem:[%s4121 + $0xb0] sm:$0xff]
    %v4138 = vld [vmem:[%s4121 + $0xc0] sm:$0xff]
    %v4139 = vld [vmem:[%s4121 + $0xc8] sm:$0xff]
    %v4140 = vld [vmem:[%s4121 + $0xd8] sm:$0xff]
    %v4141 = vld [vmem:[%s4121 + $0xe0] sm:$0xff]
    %v4142 = vld [vmem:[%s4121 + $0xf0] sm:$0xff]
    %v4143 = vld [vmem:[%s4121 + $0xf8] sm:$0xff]
    %v4144 = vld [vmem:[%s4121 + $0x108] sm:$0xff]
    %v4145 = vld [vmem:[%s4121 + $0x110] sm:$0xff]
    %v4146 = vld [vmem:[%s4121 + $0x120] sm:$0xff]
    %v4147 = vld [vmem:[%s4121 + $0x128] sm:$0xff]
    %v4148 = vld [vmem:[%s4121 + $0x138] sm:$0xff]
    %v4149 = vld [vmem:[%s4121 + $0x140] sm:$0xff]
    %v4150 = vld [vmem:[%s4121 + $0x150] sm:$0xff]
    %v4151 = vld [vmem:[%s4121 + $0x158] sm:$0xff]
    %v4152 = vld [vmem:[%s4121 + $0x168] sm:$0xff]
    %v4153 = vld [vmem:[%s4121 + $0x170] sm:$0xff]
    %v4154 = vld [vmem:[%s4121 + $0x1b0] sm:$0xff]
    %v4155 = vld [vmem:[%s4121 + $0x1b8] sm:$0xff]
    %v4156 = vld [vmem:[%s4121 + $0x1c8] sm:$0xff]
    %v4157 = vld [vmem:[%s4121 + $0x1d0] sm:$0xff]
    %v4158 = vld [vmem:[%s4121 + $0x1e0] sm:$0xff]
    %v4159 = vld [vmem:[%s4121 + $0x1e8] sm:$0xff]
    %v4160 = vld [vmem:[%s4121 + $0x1f8] sm:$0xff]
    %v4161 = vld [vmem:[%s4121 + $0x200] sm:$0xff]
    %v4162 = vld [vmem:[%s4121 + $0x210] sm:$0xff]
    %v4163 = vld [vmem:[%s4121 + $0x218] sm:$0xff]
    %v4164 = vld [vmem:[%s4121 + $0x228] sm:$0xff]
    %v4165 = vld [vmem:[%s4121 + $0x230] sm:$0xff]
    %v4166 = vld [vmem:[%s4121 + $0x240] sm:$0xff]
    %v4167 = vld [vmem:[%s4121 + $0x248] sm:$0xff]
    %v4168 = vld [vmem:[%s4121 + $0x258] sm:$0xff]
    %v4169 = vld [vmem:[%s4121 + $0x260] sm:$0xff]
    %v4170 = vld [vmem:[%s4121 + $0x270] sm:$0xff]
    %v4171 = vld [vmem:[%s4121 + $0x278] sm:$0xff]
    %v4172 = vld [vmem:[%s4121 + $0x288] sm:$0xff]
    %v4173 = vld [vmem:[%s4121 + $0x290] sm:$0xff]
    %v4174 = vld [vmem:[%s4121 + $0x2a0] sm:$0xff]
    %v4175 = vld [vmem:[%s4121 + $0x2a8] sm:$0xff]
    %v4176 = vld [vmem:[%s4121 + $0x2b8] sm:$0xff]
    %v4177 = vld [vmem:[%s4121 + $0x2c0] sm:$0xff]
    %v4178 = vld [vmem:[%s4121 + $0x2d0] sm:$0xff]
    %v4179 = vld [vmem:[%s4121 + $0x2d8] sm:$0xff]
    %v4180 = vld [vmem:[%s4121 + $0x2e8] sm:$0xff]
    %v4181 = vld [vmem:[%s4121 + $0x2f0] sm:$0xff]
    %v4182 = vld [vmem:[%s4121 + $0x300] sm:$0xff]
    %v4183 = vld [vmem:[%s4121 + $0x308] sm:$0xff]
    %v4184 = vld [vmem:[%s4121 + $0x318] sm:$0xff]
    %v4185 = vld [vmem:[%s4121 + $0x320] sm:$0xff]
    %v4186 = vpack.c.bf16 %v4123, %v4122
    %v4187 = vpack.c.bf16 %v4125, %v4124
    %v4188 = vpack.c.bf16 %v4127, %v4126
    %v4189 = vpack.c.bf16 %v4129, %v4128
    %v4190 = vpack.c.bf16 %v4131, %v4130
    %v4191 = vpack.c.bf16 %v4133, %v4132
    %v4192 = vpack.c.bf16 %v4135, %v4134
    %v4193 = vpack.c.bf16 %v4137, %v4136
    %v4194 = vpack.c.bf16 %v4139, %v4138
    %v4195 = vpack.c.bf16 %v4141, %v4140
    %v4196 = vpack.c.bf16 %v4143, %v4142
    %v4197 = vpack.c.bf16 %v4145, %v4144
    %v4198 = vpack.c.bf16 %v4147, %v4146
    %v4199 = vpack.c.bf16 %v4149, %v4148
    %v4200 = vpack.c.bf16 %v4151, %v4150
    %v4201 = vpack.c.bf16 %v4153, %v4152
    %v4202 = vpack.c.bf16 %v4155, %v4154
    %v4203 = vpack.c.bf16 %v4157, %v4156
    %v4204 = vpack.c.bf16 %v4159, %v4158
    %v4205 = vpack.c.bf16 %v4161, %v4160
    %v4206 = vpack.c.bf16 %v4163, %v4162
    %v4207 = vpack.c.bf16 %v4165, %v4164
    %v4208 = vpack.c.bf16 %v4167, %v4166
    %v4209 = vpack.c.bf16 %v4169, %v4168
    %v4210 = vpack.c.bf16 %v4171, %v4170
    %v4211 = vpack.c.bf16 %v4173, %v4172
    %v4212 = vpack.c.bf16 %v4175, %v4174
    %v4213 = vpack.c.bf16 %v4177, %v4176
    %v4214 = vpack.c.bf16 %v4179, %v4178
    %v4215 = vpack.c.bf16 %v4181, %v4180
    %v4216 = vpack.c.bf16 %v4183, %v4182
    %v4217 = vpack.c.bf16 %v4185, %v4184
    %s4218 = scalar_lea.vmem [#allocation7], 48
    %v4219 = vld [vmem:[%s4218] sm:$0xf]
    %v4220 = vld [vmem:[%s4218 + $0x4] sm:$0xf]
    %v4223 = vunpack.c.l.b16 %v4219
    %v4224 = vunpack.c.l.b16 %v4220
    %v4225 = vpack.c.b16 %v4224, %v4223
    %v4228 = vsel %vm147, %v4186, 0
    %v4231 = vsel %vm147, %v4187, 0
    %v4234 = vsel %vm147, %v4188, 0
    %v4237 = vsel %vm147, %v4189, 0
    %v4240 = vsel %vm147, %v4190, 0
    %v4243 = vsel %vm147, %v4191, 0
    %v4246 = vsel %vm147, %v4192, 0
    %v4249 = vsel %vm147, %v4193, 0
    %v4252 = vsel %vm147, %v4194, 0
    %v4255 = vsel %vm147, %v4195, 0
    %v4258 = vsel %vm147, %v4196, 0
    %v4261 = vsel %vm147, %v4197, 0
    %v4264 = vsel %vm147, %v4198, 0
    %v4267 = vsel %vm147, %v4199, 0
    %v4270 = vsel %vm147, %v4200, 0
    %v4273 = vsel %vm147, %v4201, 0
    %v4276 = vsel %vm147, %v4202, 0
    %v4279 = vsel %vm147, %v4203, 0
    %v4282 = vsel %vm147, %v4204, 0
    %v4285 = vsel %vm147, %v4205, 0
    %v4288 = vsel %vm147, %v4206, 0
    %v4291 = vsel %vm147, %v4207, 0
    %v4294 = vsel %vm147, %v4208, 0
    %v4297 = vsel %vm147, %v4209, 0
    %v4300 = vsel %vm147, %v4210, 0
    %v4303 = vsel %vm147, %v4211, 0
    %v4306 = vsel %vm147, %v4212, 0
    %v4309 = vsel %vm147, %v4213, 0
    %v4312 = vsel %vm147, %v4214, 0
    %v4315 = vsel %vm147, %v4215, 0
    %v4318 = vsel %vm147, %v4216, 0
    %v4321 = vsel %vm147, %v4217, 0
    %4323 = vmatprep.subr.bf16.mxu0 0
    %4324 = vmatpush1.bf16.msra.mxu0 %v4225
    %4325 = vmatprep.subr.bf16.mxu0 0
    %4326 = vmatpush1.bf16.msra.mxu0 0
    %4327 = vmatprep.subr.bf16.mxu0 0
    %4328 = vmatpush1.bf16.msra.mxu0 0
    %4329 = vmatprep.subr.bf16.mxu0 0
    %4330 = vmatpush1.bf16.msra.mxu0 0
    %4331 = vmatprep.subr.bf16.mxu0 0
    %4332 = vmatpush1.bf16.msra.mxu0 0
    %4333 = vmatprep.subr.bf16.mxu0 0
    %4334 = vmatpush1.bf16.msra.mxu0 0
    %4335 = vmatprep.subr.bf16.mxu0 0
    %4336 = vmatpush1.bf16.msra.mxu0 0
    %4337 = vmatprep.subr.bf16.mxu0 0
    %4338 = vmatpush1.bf16.msra.mxu0 0
    %4339 = vmatprep.subr.bf16.mxu0 0
    %4340 = vmatpush1.bf16.msra.mxu0 0
    %4341 = vmatprep.subr.bf16.mxu0 0
    %4342 = vmatpush1.bf16.msra.mxu0 0
    %4343 = vmatprep.subr.bf16.mxu0 0
    %4344 = vmatpush1.bf16.msra.mxu0 0
    %4345 = vmatprep.subr.bf16.mxu0 0
    %4346 = vmatpush1.bf16.msra.mxu0 0
    %4347 = vmatprep.subr.bf16.mxu0 0
    %4348 = vmatpush1.bf16.msra.mxu0 0
    %4349 = vmatprep.subr.bf16.mxu0 0
    %4350 = vmatpush1.bf16.msra.mxu0 0
    %4351 = vmatprep.subr.bf16.mxu0 0
    %4352 = vmatpush1.bf16.msra.mxu0 0
    %4353 = vmatprep.subr.bf16.mxu0 0
    %4354 = vmatpush1.bf16.msra.mxu0 0
    %4355 = vmatprep.mubr.bf16.mxu0 0
    %4356 = vmatmul.mubr.bf16.gmra.mrb[0].mxu0 %v4228
    %v4357 = vpop.f32.mrb[0].mxu0
    %v4358 = vadd.f32 0.0, %v4357
    %v4359 = vpop.f32.mrb[0].mxu0
    %v4360 = vpop.f32.mrb[0].mxu0
    %v4361 = vadd.f32 0.0, %v4360
    %v4362 = vpop.f32.mrb[0].mxu0
    %4363 = vmatprep.mubr.bf16.mxu0 0
    %4364 = vmatmul.mubr.bf16.gmra.mrb[0].mxu0 %v4231
    %v4365 = vpop.f32.mrb[0].mxu0
    %v4366 = vadd.f32 0.0, %v4365
    %v4367 = vpop.f32.mrb[0].mxu0
    %v4368 = vpop.f32.mrb[0].mxu0
    %v4369 = vadd.f32 0.0, %v4368
    %v4370 = vpop.f32.mrb[0].mxu0
    %4371 = vmatprep.mubr.bf16.mxu0 0
    %4372 = vmatmul.mubr.bf16.gmra.mrb[0].mxu0 %v4234
    %v4373 = vpop.f32.mrb[0].mxu0
    %v4374 = vadd.f32 0.0, %v4373
    %v4375 = vpop.f32.mrb[0].mxu0
    %v4376 = vpop.f32.mrb[0].mxu0
    %v4377 = vadd.f32 0.0, %v4376
    %v4378 = vpop.f32.mrb[0].mxu0
    %4379 = vmatprep.mubr.bf16.mxu0 0
    %4380 = vmatmul.mubr.bf16.gmra.mrb[0].mxu0 %v4237
    %v4381 = vpop.f32.mrb[0].mxu0
    %v4382 = vadd.f32 0.0, %v4381
    %v4383 = vpop.f32.mrb[0].mxu0
    %v4384 = vpop.f32.mrb[0].mxu0
    %v4385 = vadd.f32 0.0, %v4384
    %v4386 = vpop.f32.mrb[0].mxu0
    %4387 = vmatprep.mubr.bf16.mxu0 0
    %4388 = vmatmul.mubr.bf16.gmra.mrb[0].mxu0 %v4240
    %v4389 = vpop.f32.mrb[0].mxu0
    %v4390 = vadd.f32 0.0, %v4389
    %v4391 = vpop.f32.mrb[0].mxu0
    %v4392 = vpop.f32.mrb[0].mxu0
    %v4393 = vadd.f32 0.0, %v4392
    %v4394 = vpop.f32.mrb[0].mxu0
    %4395 = vmatprep.mubr.bf16.mxu0 0
    %4396 = vmatmul.mubr.bf16.gmra.mrb[0].mxu0 %v4243
    %v4397 = vpop.f32.mrb[0].mxu0
    %v4398 = vadd.f32 0.0, %v4397
    %v4399 = vpop.f32.mrb[0].mxu0
    %v4400 = vpop.f32.mrb[0].mxu0
    %v4401 = vadd.f32 0.0, %v4400
    %v4402 = vpop.f32.mrb[0].mxu0
    %4403 = vmatprep.mubr.bf16.mxu0 0
    %4404 = vmatmul.mubr.bf16.gmra.mrb[0].mxu0 %v4246
    %v4405 = vpop.f32.mrb[0].mxu0
    %v4406 = vadd.f32 0.0, %v4405
    %v4407 = vpop.f32.mrb[0].mxu0
    %v4408 = vpop.f32.mrb[0].mxu0
    %v4409 = vadd.f32 0.0, %v4408
    %v4410 = vpop.f32.mrb[0].mxu0
    %4411 = vmatprep.mubr.bf16.mxu0 0
    %4412 = vmatmul.mubr.bf16.gmra.mrb[0].mxu0 %v4249
    %v4413 = vpop.f32.mrb[0].mxu0
    %v4414 = vadd.f32 0.0, %v4413
    %v4415 = vpop.f32.mrb[0].mxu0
    %v4416 = vpop.f32.mrb[0].mxu0
    %v4417 = vadd.f32 0.0, %v4416
    %v4418 = vpop.f32.mrb[0].mxu0
    %4419 = vmatprep.mubr.bf16.mxu0 0
    %4420 = vmatmul.mubr.bf16.gmra.mrb[0].mxu0 %v4252
    %v4421 = vpop.f32.mrb[0].mxu0
    %v4422 = vadd.f32 0.0, %v4421
    %v4423 = vpop.f32.mrb[0].mxu0
    %v4424 = vpop.f32.mrb[0].mxu0
    %v4425 = vadd.f32 0.0, %v4424
    %v4426 = vpop.f32.mrb[0].mxu0
    %4427 = vmatprep.mubr.bf16.mxu0 0
    %4428 = vmatmul.mubr.bf16.gmra.mrb[0].mxu0 %v4255
    %v4429 = vpop.f32.mrb[0].mxu0
    %v4430 = vadd.f32 0.0, %v4429
    %v4431 = vpop.f32.mrb[0].mxu0
    %v4432 = vpop.f32.mrb[0].mxu0
    %v4433 = vadd.f32 0.0, %v4432
    %v4434 = vpop.f32.mrb[0].mxu0
    %4435 = vmatprep.mubr.bf16.mxu0 0
    %4436 = vmatmul.mubr.bf16.gmra.mrb[0].mxu0 %v4258
    %v4437 = vpop.f32.mrb[0].mxu0
    %v4438 = vadd.f32 0.0, %v4437
    %v4439 = vpop.f32.mrb[0].mxu0
    %v4440 = vpop.f32.mrb[0].mxu0
    %v4441 = vadd.f32 0.0, %v4440
    %v4442 = vpop.f32.mrb[0].mxu0
    %4443 = vmatprep.mubr.bf16.mxu0 0
    %4444 = vmatmul.mubr.bf16.gmra.mrb[0].mxu0 %v4261
    %v4445 = vpop.f32.mrb[0].mxu0
    %v4446 = vadd.f32 0.0, %v4445
    %v4447 = vpop.f32.mrb[0].mxu0
    %v4448 = vpop.f32.mrb[0].mxu0
    %v4449 = vadd.f32 0.0, %v4448
    %v4450 = vpop.f32.mrb[0].mxu0
    %4451 = vmatprep.mubr.bf16.mxu0 0
    %4452 = vmatmul.mubr.bf16.gmra.mrb[0].mxu0 %v4264
    %v4453 = vpop.f32.mrb[0].mxu0
    %v4454 = vadd.f32 0.0, %v4453
    %v4455 = vpop.f32.mrb[0].mxu0
    %v4456 = vpop.f32.mrb[0].mxu0
    %v4457 = vadd.f32 0.0, %v4456
    %v4458 = vpop.f32.mrb[0].mxu0
    %4459 = vmatprep.mubr.bf16.mxu0 0
    %4460 = vmatmul.mubr.bf16.gmra.mrb[0].mxu0 %v4267
    %v4461 = vpop.f32.mrb[0].mxu0
    %v4462 = vadd.f32 0.0, %v4461
    %v4463 = vpop.f32.mrb[0].mxu0
    %v4464 = vpop.f32.mrb[0].mxu0
    %v4465 = vadd.f32 0.0, %v4464
    %v4466 = vpop.f32.mrb[0].mxu0
    %4467 = vmatprep.mubr.bf16.mxu0 0
    %4468 = vmatmul.mubr.bf16.gmra.mrb[0].mxu0 %v4270
    %v4469 = vpop.f32.mrb[0].mxu0
    %v4470 = vadd.f32 0.0, %v4469
    %v4471 = vpop.f32.mrb[0].mxu0
    %v4472 = vpop.f32.mrb[0].mxu0
    %v4473 = vadd.f32 0.0, %v4472
    %v4474 = vpop.f32.mrb[0].mxu0
    %4475 = vmatprep.mubr.bf16.mxu0 0
    %4476 = vmatmul.mubr.bf16.gmra.mrb[0].mxu0 %v4273
    %v4477 = vpop.f32.mrb[0].mxu0
    %v4478 = vadd.f32 0.0, %v4477
    %v4479 = vpop.f32.mrb[0].mxu0
    %v4480 = vpop.f32.mrb[0].mxu0
    %v4481 = vadd.f32 0.0, %v4480
    %v4482 = vpop.f32.mrb[0].mxu0
    %4483 = vmatprep.mubr.bf16.mxu0 0
    %4484 = vmatmul.mubr.bf16.gmra.mrb[0].mxu0 %v4276
    %v4485 = vpop.f32.mrb[0].mxu0
    %v4486 = vadd.f32 0.0, %v4485
    %v4487 = vpop.f32.mrb[0].mxu0
    %v4488 = vpop.f32.mrb[0].mxu0
    %v4489 = vadd.f32 0.0, %v4488
    %v4490 = vpop.f32.mrb[0].mxu0
    %4491 = vmatprep.mubr.bf16.mxu0 0
    %4492 = vmatmul.mubr.bf16.gmra.mrb[0].mxu0 %v4279
    %v4493 = vpop.f32.mrb[0].mxu0
    %v4494 = vadd.f32 0.0, %v4493
    %v4495 = vpop.f32.mrb[0].mxu0
    %v4496 = vpop.f32.mrb[0].mxu0
    %v4497 = vadd.f32 0.0, %v4496
    %v4498 = vpop.f32.mrb[0].mxu0
    %4499 = vmatprep.mubr.bf16.mxu0 0
    %4500 = vmatmul.mubr.bf16.gmra.mrb[0].mxu0 %v4282
    %v4501 = vpop.f32.mrb[0].mxu0
    %v4502 = vadd.f32 0.0, %v4501
    %v4503 = vpop.f32.mrb[0].mxu0
    %v4504 = vpop.f32.mrb[0].mxu0
    %v4505 = vadd.f32 0.0, %v4504
    %v4506 = vpop.f32.mrb[0].mxu0
    %4507 = vmatprep.mubr.bf16.mxu0 0
    %4508 = vmatmul.mubr.bf16.gmra.mrb[0].mxu0 %v4285
    %v4509 = vpop.f32.mrb[0].mxu0
    %v4510 = vadd.f32 0.0, %v4509
    %v4511 = vpop.f32.mrb[0].mxu0
    %v4512 = vpop.f32.mrb[0].mxu0
    %v4513 = vadd.f32 0.0, %v4512
    %v4514 = vpop.f32.mrb[0].mxu0
    %4515 = vmatprep.mubr.bf16.mxu0 0
    %4516 = vmatmul.mubr.bf16.gmra.mrb[0].mxu0 %v4288
    %v4517 = vpop.f32.mrb[0].mxu0
    %v4518 = vadd.f32 0.0, %v4517
    %v4519 = vpop.f32.mrb[0].mxu0
    %v4520 = vpop.f32.mrb[0].mxu0
    %v4521 = vadd.f32 0.0, %v4520
    %v4522 = vpop.f32.mrb[0].mxu0
    %4523 = vmatprep.mubr.bf16.mxu0 0
    %4524 = vmatmul.mubr.bf16.gmra.mrb[0].mxu0 %v4291
    %v4525 = vpop.f32.mrb[0].mxu0
    %v4526 = vadd.f32 0.0, %v4525
    %v4527 = vpop.f32.mrb[0].mxu0
    %v4528 = vpop.f32.mrb[0].mxu0
    %v4529 = vadd.f32 0.0, %v4528
    %v4530 = vpop.f32.mrb[0].mxu0
    %4531 = vmatprep.mubr.bf16.mxu0 0
    %4532 = vmatmul.mubr.bf16.gmra.mrb[0].mxu0 %v4294
    %v4533 = vpop.f32.mrb[0].mxu0
    %v4534 = vadd.f32 0.0, %v4533
    %v4535 = vpop.f32.mrb[0].mxu0
    %v4536 = vpop.f32.mrb[0].mxu0
    %v4537 = vadd.f32 0.0, %v4536
    %v4538 = vpop.f32.mrb[0].mxu0
    %4539 = vmatprep.mubr.bf16.mxu0 0
    %4540 = vmatmul.mubr.bf16.gmra.mrb[0].mxu0 %v4297
    %v4541 = vpop.f32.mrb[0].mxu0
    %v4542 = vadd.f32 0.0, %v4541
    %v4543 = vpop.f32.mrb[0].mxu0
    %v4544 = vpop.f32.mrb[0].mxu0
    %v4545 = vadd.f32 0.0, %v4544
    %v4546 = vpop.f32.mrb[0].mxu0
    %4547 = vmatprep.mubr.bf16.mxu0 0
    %4548 = vmatmul.mubr.bf16.gmra.mrb[0].mxu0 %v4300
    %v4549 = vpop.f32.mrb[0].mxu0
    %v4550 = vadd.f32 0.0, %v4549
    %v4551 = vpop.f32.mrb[0].mxu0
    %v4552 = vpop.f32.mrb[0].mxu0
    %v4553 = vadd.f32 0.0, %v4552
    %v4554 = vpop.f32.mrb[0].mxu0
    %4555 = vmatprep.mubr.bf16.mxu0 0
    %4556 = vmatmul.mubr.bf16.gmra.mrb[0].mxu0 %v4303
    %v4557 = vpop.f32.mrb[0].mxu0
    %v4558 = vadd.f32 0.0, %v4557
    %v4559 = vpop.f32.mrb[0].mxu0
    %v4560 = vpop.f32.mrb[0].mxu0
    %v4561 = vadd.f32 0.0, %v4560
    %v4562 = vpop.f32.mrb[0].mxu0
    %4563 = vmatprep.mubr.bf16.mxu0 0
    %4564 = vmatmul.mubr.bf16.gmra.mrb[0].mxu0 %v4306
    %v4565 = vpop.f32.mrb[0].mxu0
    %v4566 = vadd.f32 0.0, %v4565
    %v4567 = vpop.f32.mrb[0].mxu0
    %v4568 = vpop.f32.mrb[0].mxu0
    %v4569 = vadd.f32 0.0, %v4568
    %v4570 = vpop.f32.mrb[0].mxu0
    %4571 = vmatprep.mubr.bf16.mxu0 0
    %4572 = vmatmul.mubr.bf16.gmra.mrb[0].mxu0 %v4309
    %v4573 = vpop.f32.mrb[0].mxu0
    %v4574 = vadd.f32 0.0, %v4573
    %v4575 = vpop.f32.mrb[0].mxu0
    %v4576 = vpop.f32.mrb[0].mxu0
    %v4577 = vadd.f32 0.0, %v4576
    %v4578 = vpop.f32.mrb[0].mxu0
    %4579 = vmatprep.mubr.bf16.mxu0 0
    %4580 = vmatmul.mubr.bf16.gmra.mrb[0].mxu0 %v4312
    %v4581 = vpop.f32.mrb[0].mxu0
    %v4582 = vadd.f32 0.0, %v4581
    %v4583 = vpop.f32.mrb[0].mxu0
    %v4584 = vpop.f32.mrb[0].mxu0
    %v4585 = vadd.f32 0.0, %v4584
    %v4586 = vpop.f32.mrb[0].mxu0
    %4587 = vmatprep.mubr.bf16.mxu0 0
    %4588 = vmatmul.mubr.bf16.gmra.mrb[0].mxu0 %v4315
    %v4589 = vpop.f32.mrb[0].mxu0
    %v4590 = vadd.f32 0.0, %v4589
    %v4591 = vpop.f32.mrb[0].mxu0
    %v4592 = vpop.f32.mrb[0].mxu0
    %v4593 = vadd.f32 0.0, %v4592
    %v4594 = vpop.f32.mrb[0].mxu0
    %4595 = vmatprep.mubr.bf16.mxu0 0
    %4596 = vmatmul.mubr.bf16.gmra.mrb[0].mxu0 %v4318
    %v4597 = vpop.f32.mrb[0].mxu0
    %v4598 = vadd.f32 0.0, %v4597
    %v4599 = vpop.f32.mrb[0].mxu0
    %v4600 = vpop.f32.mrb[0].mxu0
    %v4601 = vadd.f32 0.0, %v4600
    %v4602 = vpop.f32.mrb[0].mxu0
    %4603 = vmatprep.mubr.bf16.mxu0 0
    %4604 = vmatmul.mubr.bf16.gmra.mrb[0].mxu0 %v4321
    %v4605 = vpop.f32.mrb[0].mxu0
    %v4606 = vadd.f32 0.0, %v4605
    %v4607 = vpop.f32.mrb[0].mxu0
    %v4608 = vpop.f32.mrb[0].mxu0
    %v4609 = vadd.f32 0.0, %v4608
    %v4610 = vpop.f32.mrb[0].mxu0
    %4611 = vdwg.mxu0
    %v4612 = vadd.f32 %v4057, %v4358
    %v4613 = vadd.f32 %v4058, %v4361
    %v4614 = vadd.f32 %v4059, %v4366
    %v4615 = vadd.f32 %v4060, %v4369
    %v4616 = vadd.f32 %v4061, %v4374
    %v4617 = vadd.f32 %v4062, %v4377
    %v4618 = vadd.f32 %v4063, %v4382
    %v4619 = vadd.f32 %v4064, %v4385
    %v4620 = vadd.f32 %v4065, %v4390
    %v4621 = vadd.f32 %v4066, %v4393
    %v4622 = vadd.f32 %v4067, %v4398
    %v4623 = vadd.f32 %v4068, %v4401
    %v4624 = vadd.f32 %v4069, %v4406
    %v4625 = vadd.f32 %v4070, %v4409
    %v4626 = vadd.f32 %v4071, %v4414
    %v4627 = vadd.f32 %v4072, %v4417
    %v4628 = vadd.f32 %v4073, %v4422
    %v4629 = vadd.f32 %v4074, %v4425
    %v4630 = vadd.f32 %v4075, %v4430
    %v4631 = vadd.f32 %v4076, %v4433
    %v4632 = vadd.f32 %v4077, %v4438
    %v4633 = vadd.f32 %v4078, %v4441
    %v4634 = vadd.f32 %v4079, %v4446
    %v4635 = vadd.f32 %v4080, %v4449
    %v4636 = vadd.f32 %v4081, %v4454
    %v4637 = vadd.f32 %v4082, %v4457
    %v4638 = vadd.f32 %v4083, %v4462
    %v4639 = vadd.f32 %v4084, %v4465
    %v4640 = vadd.f32 %v4085, %v4470
    %v4641 = vadd.f32 %v4086, %v4473
    %v4642 = vadd.f32 %v4087, %v4478
    %v4643 = vadd.f32 %v4088, %v4481
    %v4644 = vadd.f32 %v4089, %v4486
    %v4645 = vadd.f32 %v4090, %v4489
    %v4646 = vadd.f32 %v4091, %v4494
    %v4647 = vadd.f32 %v4092, %v4497
    %v4648 = vadd.f32 %v4093, %v4502
    %v4649 = vadd.f32 %v4094, %v4505
    %v4650 = vadd.f32 %v4095, %v4510
    %v4651 = vadd.f32 %v4096, %v4513
    %v4652 = vadd.f32 %v4097, %v4518
    %v4653 = vadd.f32 %v4098, %v4521
    %v4654 = vadd.f32 %v4099, %v4526
    %v4655 = vadd.f32 %v4100, %v4529
    %v4656 = vadd.f32 %v4101, %v4534
    %v4657 = vadd.f32 %v4102, %v4537
    %v4658 = vadd.f32 %v4103, %v4542
    %v4659 = vadd.f32 %v4104, %v4545
    %v4660 = vadd.f32 %v4105, %v4550
    %v4661 = vadd.f32 %v4106, %v4553
    %v4662 = vadd.f32 %v4107, %v4558
    %v4663 = vadd.f32 %v4108, %v4561
    %v4664 = vadd.f32 %v4109, %v4566
    %v4665 = vadd.f32 %v4110, %v4569
    %v4666 = vadd.f32 %v4111, %v4574
    %v4667 = vadd.f32 %v4112, %v4577
    %v4668 = vadd.f32 %v4113, %v4582
    %v4669 = vadd.f32 %v4114, %v4585
    %v4670 = vadd.f32 %v4115, %v4590
    %v4671 = vadd.f32 %v4116, %v4593
    %v4672 = vadd.f32 %v4117, %v4598
    %v4673 = vadd.f32 %v4118, %v4601
    %v4674 = vadd.f32 %v4119, %v4606
    %v4675 = vadd.f32 %v4120, %v4609
    %v4676 = vld [vmem:[%s4121 + $0x1] sm:$0xff]
    %v4677 = vld [vmem:[%s4121 + $0x9] sm:$0xff]
    %v4678 = vld [vmem:[%s4121 + $0x19] sm:$0xff]
    %v4679 = vld [vmem:[%s4121 + $0x21] sm:$0xff]
    %v4680 = vld [vmem:[%s4121 + $0x31] sm:$0xff]
    %v4681 = vld [vmem:[%s4121 + $0x39] sm:$0xff]
    %v4682 = vld [vmem:[%s4121 + $0x49] sm:$0xff]
    %v4683 = vld [vmem:[%s4121 + $0x51] sm:$0xff]
    %v4684 = vld [vmem:[%s4121 + $0x61] sm:$0xff]
    %v4685 = vld [vmem:[%s4121 + $0x69] sm:$0xff]
    %v4686 = vld [vmem:[%s4121 + $0x79] sm:$0xff]
    %v4687 = vld [vmem:[%s4121 + $0x81] sm:$0xff]
    %v4688 = vld [vmem:[%s4121 + $0x91] sm:$0xff]
    %v4689 = vld [vmem:[%s4121 + $0x99] sm:$0xff]
    %v4690 = vld [vmem:[%s4121 + $0xa9] sm:$0xff]
    %v4691 = vld [vmem:[%s4121 + $0xb1] sm:$0xff]
    %v4692 = vld [vmem:[%s4121 + $0xc1] sm:$0xff]
    %v4693 = vld [vmem:[%s4121 + $0xc9] sm:$0xff]
    %v4694 = vld [vmem:[%s4121 + $0xd9] sm:$0xff]
    %v4695 = vld [vmem:[%s4121 + $0xe1] sm:$0xff]
    %v4696 = vld [vmem:[%s4121 + $0xf1] sm:$0xff]
    %v4697 = vld [vmem:[%s4121 + $0xf9] sm:$0xff]
    %v4698 = vld [vmem:[%s4121 + $0x109] sm:$0xff]
    %v4699 = vld [vmem:[%s4121 + $0x111] sm:$0xff]
    %v4700 = vld [vmem:[%s4121 + $0x121] sm:$0xff]
    %v4701 = vld [vmem:[%s4121 + $0x129] sm:$0xff]
    %v4702 = vld [vmem:[%s4121 + $0x139] sm:$0xff]
    %v4703 = vld [vmem:[%s4121 + $0x141] sm:$0xff]
    %v4704 = vld [vmem:[%s4121 + $0x151] sm:$0xff]
    %v4705 = vld [vmem:[%s4121 + $0x159] sm:$0xff]
    %v4706 = vld [vmem:[%s4121 + $0x169] sm:$0xff]
    %v4707 = vld [vmem:[%s4121 + $0x171] sm:$0xff]
    %v4708 = vld [vmem:[%s4121 + $0x1b1] sm:$0xff]
    %v4709 = vld [vmem:[%s4121 + $0x1b9] sm:$0xff]
    %v4710 = vld [vmem:[%s4121 + $0x1c9] sm:$0xff]
    %v4711 = vld [vmem:[%s4121 + $0x1d1] sm:$0xff]
    %v4712 = vld [vmem:[%s4121 + $0x1e1] sm:$0xff]
    %v4713 = vld [vmem:[%s4121 + $0x1e9] sm:$0xff]
    %v4714 = vld [vmem:[%s4121 + $0x1f9] sm:$0xff]
    %v4715 = vld [vmem:[%s4121 + $0x201] sm:$0xff]
    %v4716 = vld [vmem:[%s4121 + $0x211] sm:$0xff]
    %v4717 = vld [vmem:[%s4121 + $0x219] sm:$0xff]
    %v4718 = vld [vmem:[%s4121 + $0x229] sm:$0xff]
    %v4719 = vld [vmem:[%s4121 + $0x231] sm:$0xff]
    %v4720 = vld [vmem:[%s4121 + $0x241] sm:$0xff]
    %v4721 = vld [vmem:[%s4121 + $0x249] sm:$0xff]
    %v4722 = vld [vmem:[%s4121 + $0x259] sm:$0xff]
    %v4723 = vld [vmem:[%s4121 + $0x261] sm:$0xff]
    %v4724 = vld [vmem:[%s4121 + $0x271] sm:$0xff]
    %v4725 = vld [vmem:[%s4121 + $0x279] sm:$0xff]
    %v4726 = vld [vmem:[%s4121 + $0x289] sm:$0xff]
    %v4727 = vld [vmem:[%s4121 + $0x291] sm:$0xff]
    %v4728 = vld [vmem:[%s4121 + $0x2a1] sm:$0xff]
    %v4729 = vld [vmem:[%s4121 + $0x2a9] sm:$0xff]
    %v4730 = vld [vmem:[%s4121 + $0x2b9] sm:$0xff]
    %v4731 = vld [vmem:[%s4121 + $0x2c1] sm:$0xff]
    %v4732 = vld [vmem:[%s4121 + $0x2d1] sm:$0xff]
    %v4733 = vld [vmem:[%s4121 + $0x2d9] sm:$0xff]
    %v4734 = vld [vmem:[%s4121 + $0x2e9] sm:$0xff]
    %v4735 = vld [vmem:[%s4121 + $0x2f1] sm:$0xff]
    %v4736 = vld [vmem:[%s4121 + $0x301] sm:$0xff]
    %v4737 = vld [vmem:[%s4121 + $0x309] sm:$0xff]
    %v4738 = vld [vmem:[%s4121 + $0x319] sm:$0xff]
    %v4739 = vld [vmem:[%s4121 + $0x321] sm:$0xff]
    %v4740 = vpack.c.bf16 %v4677, %v4676
    %v4741 = vpack.c.bf16 %v4679, %v4678
    %v4742 = vpack.c.bf16 %v4681, %v4680
    %v4743 = vpack.c.bf16 %v4683, %v4682
    %v4744 = vpack.c.bf16 %v4685, %v4684
    %v4745 = vpack.c.bf16 %v4687, %v4686
    %v4746 = vpack.c.bf16 %v4689, %v4688
    %v4747 = vpack.c.bf16 %v4691, %v4690
    %v4748 = vpack.c.bf16 %v4693, %v4692
    %v4749 = vpack.c.bf16 %v4695, %v4694
    %v4750 = vpack.c.bf16 %v4697, %v4696
    %v4751 = vpack.c.bf16 %v4699, %v4698
    %v4752 = vpack.c.bf16 %v4701, %v4700
    %v4753 = vpack.c.bf16 %v4703, %v4702
    %v4754 = vpack.c.bf16 %v4705, %v4704
    %v4755 = vpack.c.bf16 %v4707, %v4706
    %v4756 = vpack.c.bf16 %v4709, %v4708
    %v4757 = vpack.c.bf16 %v4711, %v4710
    %v4758 = vpack.c.bf16 %v4713, %v4712
    %v4759 = vpack.c.bf16 %v4715, %v4714
    %v4760 = vpack.c.bf16 %v4717, %v4716
    %v4761 = vpack.c.bf16 %v4719, %v4718
    %v4762 = vpack.c.bf16 %v4721, %v4720
    %v4763 = vpack.c.bf16 %v4723, %v4722
    %v4764 = vpack.c.bf16 %v4725, %v4724
    %v4765 = vpack.c.bf16 %v4727, %v4726
    %v4766 = vpack.c.bf16 %v4729, %v4728
    %v4767 = vpack.c.bf16 %v4731, %v4730
    %v4768 = vpack.c.bf16 %v4733, %v4732
    %v4769 = vpack.c.bf16 %v4735, %v4734
    %v4770 = vpack.c.bf16 %v4737, %v4736
    %v4771 = vpack.c.bf16 %v4739, %v4738
    %s4772 = scalar_lea.vmem [#allocation7], 56
    %v4773 = vld [vmem:[%s4772] sm:$0xf]
    %v4774 = vld [vmem:[%s4772 + $0x4] sm:$0xf]
    %v4777 = vunpack.c.l.b16 %v4773
    %v4778 = vunpack.c.l.b16 %v4774
    %v4779 = vpack.c.b16 %v4778, %v4777
    %v4782 = vsel %vm147, %v4740, 0
    %v4785 = vsel %vm147, %v4741, 0
    %v4788 = vsel %vm147, %v4742, 0
    %v4791 = vsel %vm147, %v4743, 0
    %v4794 = vsel %vm147, %v4744, 0
    %v4797 = vsel %vm147, %v4745, 0
    %v4800 = vsel %vm147, %v4746, 0
    %v4803 = vsel %vm147, %v4747, 0
    %v4806 = vsel %vm147, %v4748, 0
    %v4809 = vsel %vm147, %v4749, 0
    %v4812 = vsel %vm147, %v4750, 0
    %v4815 = vsel %vm147, %v4751, 0
    %v4818 = vsel %vm147, %v4752, 0
    %v4821 = vsel %vm147, %v4753, 0
    %v4824 = vsel %vm147, %v4754, 0
    %v4827 = vsel %vm147, %v4755, 0
    %v4830 = vsel %vm147, %v4756, 0
    %v4833 = vsel %vm147, %v4757, 0
    %v4836 = vsel %vm147, %v4758, 0
    %v4839 = vsel %vm147, %v4759, 0
    %v4842 = vsel %vm147, %v4760, 0
    %v4845 = vsel %vm147, %v4761, 0
    %v4848 = vsel %vm147, %v4762, 0
    %v4851 = vsel %vm147, %v4763, 0
    %v4854 = vsel %vm147, %v4764, 0
    %v4857 = vsel %vm147, %v4765, 0
    %v4860 = vsel %vm147, %v4766, 0
    %v4863 = vsel %vm147, %v4767, 0
    %v4866 = vsel %vm147, %v4768, 0
    %v4869 = vsel %vm147, %v4769, 0
    %v4872 = vsel %vm147, %v4770, 0
    %v4875 = vsel %vm147, %v4771, 0
    %4877 = vmatprep.subr.bf16.mxu0 0
    %4878 = vmatpush1.bf16.msra.mxu0 %v4779
    %4879 = vmatprep.subr.bf16.mxu0 0
    %4880 = vmatpush1.bf16.msra.mxu0 0
    %4881 = vmatprep.subr.bf16.mxu0 0
    %4882 = vmatpush1.bf16.msra.mxu0 0
    %4883 = vmatprep.subr.bf16.mxu0 0
    %4884 = vmatpush1.bf16.msra.mxu0 0
    %4885 = vmatprep.subr.bf16.mxu0 0
    %4886 = vmatpush1.bf16.msra.mxu0 0
    %4887 = vmatprep.subr.bf16.mxu0 0
    %4888 = vmatpush1.bf16.msra.mxu0 0
    %4889 = vmatprep.subr.bf16.mxu0 0
    %4890 = vmatpush1.bf16.msra.mxu0 0
    %4891 = vmatprep.subr.bf16.mxu0 0
    %4892 = vmatpush1.bf16.msra.mxu0 0
    %4893 = vmatprep.subr.bf16.mxu0 0
    %4894 = vmatpush1.bf16.msra.mxu0 0
    %4895 = vmatprep.subr.bf16.mxu0 0
    %4896 = vmatpush1.bf16.msra.mxu0 0
    %4897 = vmatprep.subr.bf16.mxu0 0
    %4898 = vmatpush1.bf16.msra.mxu0 0
    %4899 = vmatprep.subr.bf16.mxu0 0
    %4900 = vmatpush1.bf16.msra.mxu0 0
    %4901 = vmatprep.subr.bf16.mxu0 0
    %4902 = vmatpush1.bf16.msra.mxu0 0
    %4903 = vmatprep.subr.bf16.mxu0 0
    %4904 = vmatpush1.bf16.msra.mxu0 0
    %4905 = vmatprep.subr.bf16.mxu0 0
    %4906 = vmatpush1.bf16.msra.mxu0 0
    %4907 = vmatprep.subr.bf16.mxu0 0
    %4908 = vmatpush1.bf16.msra.mxu0 0
    %4909 = vmatprep.mubr.bf16.mxu0 0
    %4910 = vmatmul.mubr.bf16.gmra.mrb[0].mxu0 %v4782
    %v4911 = vpop.f32.mrb[0].mxu0
    %v4912 = vadd.f32 0.0, %v4911
    %v4913 = vpop.f32.mrb[0].mxu0
    %v4914 = vpop.f32.mrb[0].mxu0
    %v4915 = vadd.f32 0.0, %v4914
    %v4916 = vpop.f32.mrb[0].mxu0
    %4917 = vmatprep.mubr.bf16.mxu0 0
    %4918 = vmatmul.mubr.bf16.gmra.mrb[0].mxu0 %v4785
    %v4919 = vpop.f32.mrb[0].mxu0
    %v4920 = vadd.f32 0.0, %v4919
    %v4921 = vpop.f32.mrb[0].mxu0
    %v4922 = vpop.f32.mrb[0].mxu0
    %v4923 = vadd.f32 0.0, %v4922
    %v4924 = vpop.f32.mrb[0].mxu0
    %4925 = vmatprep.mubr.bf16.mxu0 0
    %4926 = vmatmul.mubr.bf16.gmra.mrb[0].mxu0 %v4788
    %v4927 = vpop.f32.mrb[0].mxu0
    %v4928 = vadd.f32 0.0, %v4927
    %v4929 = vpop.f32.mrb[0].mxu0
    %v4930 = vpop.f32.mrb[0].mxu0
    %v4931 = vadd.f32 0.0, %v4930
    %v4932 = vpop.f32.mrb[0].mxu0
    %4933 = vmatprep.mubr.bf16.mxu0 0
    %4934 = vmatmul.mubr.bf16.gmra.mrb[0].mxu0 %v4791
    %v4935 = vpop.f32.mrb[0].mxu0
    %v4936 = vadd.f32 0.0, %v4935
    %v4937 = vpop.f32.mrb[0].mxu0
    %v4938 = vpop.f32.mrb[0].mxu0
    %v4939 = vadd.f32 0.0, %v4938
    %v4940 = vpop.f32.mrb[0].mxu0
    %4941 = vmatprep.mubr.bf16.mxu0 0
    %4942 = vmatmul.mubr.bf16.gmra.mrb[0].mxu0 %v4794
    %v4943 = vpop.f32.mrb[0].mxu0
    %v4944 = vadd.f32 0.0, %v4943
    %v4945 = vpop.f32.mrb[0].mxu0
    %v4946 = vpop.f32.mrb[0].mxu0
    %v4947 = vadd.f32 0.0, %v4946
    %v4948 = vpop.f32.mrb[0].mxu0
    %4949 = vmatprep.mubr.bf16.mxu0 0
    %4950 = vmatmul.mubr.bf16.gmra.mrb[0].mxu0 %v4797
    %v4951 = vpop.f32.mrb[0].mxu0
    %v4952 = vadd.f32 0.0, %v4951
    %v4953 = vpop.f32.mrb[0].mxu0
    %v4954 = vpop.f32.mrb[0].mxu0
    %v4955 = vadd.f32 0.0, %v4954
    %v4956 = vpop.f32.mrb[0].mxu0
    %4957 = vmatprep.mubr.bf16.mxu0 0
    %4958 = vmatmul.mubr.bf16.gmra.mrb[0].mxu0 %v4800
    %v4959 = vpop.f32.mrb[0].mxu0
    %v4960 = vadd.f32 0.0, %v4959
    %v4961 = vpop.f32.mrb[0].mxu0
    %v4962 = vpop.f32.mrb[0].mxu0
    %v4963 = vadd.f32 0.0, %v4962
    %v4964 = vpop.f32.mrb[0].mxu0
    %4965 = vmatprep.mubr.bf16.mxu0 0
    %4966 = vmatmul.mubr.bf16.gmra.mrb[0].mxu0 %v4803
    %v4967 = vpop.f32.mrb[0].mxu0
    %v4968 = vadd.f32 0.0, %v4967
    %v4969 = vpop.f32.mrb[0].mxu0
    %v4970 = vpop.f32.mrb[0].mxu0
    %v4971 = vadd.f32 0.0, %v4970
    %v4972 = vpop.f32.mrb[0].mxu0
    %4973 = vmatprep.mubr.bf16.mxu0 0
    %4974 = vmatmul.mubr.bf16.gmra.mrb[0].mxu0 %v4806
    %v4975 = vpop.f32.mrb[0].mxu0
    %v4976 = vadd.f32 0.0, %v4975
    %v4977 = vpop.f32.mrb[0].mxu0
    %v4978 = vpop.f32.mrb[0].mxu0
    %v4979 = vadd.f32 0.0, %v4978
    %v4980 = vpop.f32.mrb[0].mxu0
    %4981 = vmatprep.mubr.bf16.mxu0 0
    %4982 = vmatmul.mubr.bf16.gmra.mrb[0].mxu0 %v4809
    %v4983 = vpop.f32.mrb[0].mxu0
    %v4984 = vadd.f32 0.0, %v4983
    %v4985 = vpop.f32.mrb[0].mxu0
    %v4986 = vpop.f32.mrb[0].mxu0
    %v4987 = vadd.f32 0.0, %v4986
    %v4988 = vpop.f32.mrb[0].mxu0
    %4989 = vmatprep.mubr.bf16.mxu0 0
    %4990 = vmatmul.mubr.bf16.gmra.mrb[0].mxu0 %v4812
    %v4991 = vpop.f32.mrb[0].mxu0
    %v4992 = vadd.f32 0.0, %v4991
    %v4993 = vpop.f32.mrb[0].mxu0
    %v4994 = vpop.f32.mrb[0].mxu0
    %v4995 = vadd.f32 0.0, %v4994
    %v4996 = vpop.f32.mrb[0].mxu0
    %4997 = vmatprep.mubr.bf16.mxu0 0
    %4998 = vmatmul.mubr.bf16.gmra.mrb[0].mxu0 %v4815
    %v4999 = vpop.f32.mrb[0].mxu0
    %v5000 = vadd.f32 0.0, %v4999
    %v5001 = vpop.f32.mrb[0].mxu0
    %v5002 = vpop.f32.mrb[0].mxu0
    %v5003 = vadd.f32 0.0, %v5002
    %v5004 = vpop.f32.mrb[0].mxu0
    %5005 = vmatprep.mubr.bf16.mxu0 0
    %5006 = vmatmul.mubr.bf16.gmra.mrb[0].mxu0 %v4818
    %v5007 = vpop.f32.mrb[0].mxu0
    %v5008 = vadd.f32 0.0, %v5007
    %v5009 = vpop.f32.mrb[0].mxu0
    %v5010 = vpop.f32.mrb[0].mxu0
    %v5011 = vadd.f32 0.0, %v5010
    %v5012 = vpop.f32.mrb[0].mxu0
    %5013 = vmatprep.mubr.bf16.mxu0 0
    %5014 = vmatmul.mubr.bf16.gmra.mrb[0].mxu0 %v4821
    %v5015 = vpop.f32.mrb[0].mxu0
    %v5016 = vadd.f32 0.0, %v5015
    %v5017 = vpop.f32.mrb[0].mxu0
    %v5018 = vpop.f32.mrb[0].mxu0
    %v5019 = vadd.f32 0.0, %v5018
    %v5020 = vpop.f32.mrb[0].mxu0
    %5021 = vmatprep.mubr.bf16.mxu0 0
    %5022 = vmatmul.mubr.bf16.gmra.mrb[0].mxu0 %v4824
    %v5023 = vpop.f32.mrb[0].mxu0
    %v5024 = vadd.f32 0.0, %v5023
    %v5025 = vpop.f32.mrb[0].mxu0
    %v5026 = vpop.f32.mrb[0].mxu0
    %v5027 = vadd.f32 0.0, %v5026
    %v5028 = vpop.f32.mrb[0].mxu0
    %5029 = vmatprep.mubr.bf16.mxu0 0
    %5030 = vmatmul.mubr.bf16.gmra.mrb[0].mxu0 %v4827
    %v5031 = vpop.f32.mrb[0].mxu0
    %v5032 = vadd.f32 0.0, %v5031
    %v5033 = vpop.f32.mrb[0].mxu0
    %v5034 = vpop.f32.mrb[0].mxu0
    %v5035 = vadd.f32 0.0, %v5034
    %v5036 = vpop.f32.mrb[0].mxu0
    %5037 = vmatprep.mubr.bf16.mxu0 0
    %5038 = vmatmul.mubr.bf16.gmra.mrb[0].mxu0 %v4830
    %v5039 = vpop.f32.mrb[0].mxu0
    %v5040 = vadd.f32 0.0, %v5039
    %v5041 = vpop.f32.mrb[0].mxu0
    %v5042 = vpop.f32.mrb[0].mxu0
    %v5043 = vadd.f32 0.0, %v5042
    %v5044 = vpop.f32.mrb[0].mxu0
    %5045 = vmatprep.mubr.bf16.mxu0 0
    %5046 = vmatmul.mubr.bf16.gmra.mrb[0].mxu0 %v4833
    %v5047 = vpop.f32.mrb[0].mxu0
    %v5048 = vadd.f32 0.0, %v5047
    %v5049 = vpop.f32.mrb[0].mxu0
    %v5050 = vpop.f32.mrb[0].mxu0
    %v5051 = vadd.f32 0.0, %v5050
    %v5052 = vpop.f32.mrb[0].mxu0
    %5053 = vmatprep.mubr.bf16.mxu0 0
    %5054 = vmatmul.mubr.bf16.gmra.mrb[0].mxu0 %v4836
    %v5055 = vpop.f32.mrb[0].mxu0
    %v5056 = vadd.f32 0.0, %v5055
    %v5057 = vpop.f32.mrb[0].mxu0
    %v5058 = vpop.f32.mrb[0].mxu0
    %v5059 = vadd.f32 0.0, %v5058
    %v5060 = vpop.f32.mrb[0].mxu0
    %5061 = vmatprep.mubr.bf16.mxu0 0
    %5062 = vmatmul.mubr.bf16.gmra.mrb[0].mxu0 %v4839
    %v5063 = vpop.f32.mrb[0].mxu0
    %v5064 = vadd.f32 0.0, %v5063
    %v5065 = vpop.f32.mrb[0].mxu0
    %v5066 = vpop.f32.mrb[0].mxu0
    %v5067 = vadd.f32 0.0, %v5066
    %v5068 = vpop.f32.mrb[0].mxu0
    %5069 = vmatprep.mubr.bf16.mxu0 0
    %5070 = vmatmul.mubr.bf16.gmra.mrb[0].mxu0 %v4842
    %v5071 = vpop.f32.mrb[0].mxu0
    %v5072 = vadd.f32 0.0, %v5071
    %v5073 = vpop.f32.mrb[0].mxu0
    %v5074 = vpop.f32.mrb[0].mxu0
    %v5075 = vadd.f32 0.0, %v5074
    %v5076 = vpop.f32.mrb[0].mxu0
    %5077 = vmatprep.mubr.bf16.mxu0 0
    %5078 = vmatmul.mubr.bf16.gmra.mrb[0].mxu0 %v4845
    %v5079 = vpop.f32.mrb[0].mxu0
    %v5080 = vadd.f32 0.0, %v5079
    %v5081 = vpop.f32.mrb[0].mxu0
    %v5082 = vpop.f32.mrb[0].mxu0
    %v5083 = vadd.f32 0.0, %v5082
    %v5084 = vpop.f32.mrb[0].mxu0
    %5085 = vmatprep.mubr.bf16.mxu0 0
    %5086 = vmatmul.mubr.bf16.gmra.mrb[0].mxu0 %v4848
    %v5087 = vpop.f32.mrb[0].mxu0
    %v5088 = vadd.f32 0.0, %v5087
    %v5089 = vpop.f32.mrb[0].mxu0
    %v5090 = vpop.f32.mrb[0].mxu0
    %v5091 = vadd.f32 0.0, %v5090
    %v5092 = vpop.f32.mrb[0].mxu0
    %5093 = vmatprep.mubr.bf16.mxu0 0
    %5094 = vmatmul.mubr.bf16.gmra.mrb[0].mxu0 %v4851
    %v5095 = vpop.f32.mrb[0].mxu0
    %v5096 = vadd.f32 0.0, %v5095
    %v5097 = vpop.f32.mrb[0].mxu0
    %v5098 = vpop.f32.mrb[0].mxu0
    %v5099 = vadd.f32 0.0, %v5098
    %v5100 = vpop.f32.mrb[0].mxu0
    %5101 = vmatprep.mubr.bf16.mxu0 0
    %5102 = vmatmul.mubr.bf16.gmra.mrb[0].mxu0 %v4854
    %v5103 = vpop.f32.mrb[0].mxu0
    %v5104 = vadd.f32 0.0, %v5103
    %v5105 = vpop.f32.mrb[0].mxu0
    %v5106 = vpop.f32.mrb[0].mxu0
    %v5107 = vadd.f32 0.0, %v5106
    %v5108 = vpop.f32.mrb[0].mxu0
    %5109 = vmatprep.mubr.bf16.mxu0 0
    %5110 = vmatmul.mubr.bf16.gmra.mrb[0].mxu0 %v4857
    %v5111 = vpop.f32.mrb[0].mxu0
    %v5112 = vadd.f32 0.0, %v5111
    %v5113 = vpop.f32.mrb[0].mxu0
    %v5114 = vpop.f32.mrb[0].mxu0
    %v5115 = vadd.f32 0.0, %v5114
    %v5116 = vpop.f32.mrb[0].mxu0
    %5117 = vmatprep.mubr.bf16.mxu0 0
    %5118 = vmatmul.mubr.bf16.gmra.mrb[0].mxu0 %v4860
    %v5119 = vpop.f32.mrb[0].mxu0
    %v5120 = vadd.f32 0.0, %v5119
    %v5121 = vpop.f32.mrb[0].mxu0
    %v5122 = vpop.f32.mrb[0].mxu0
    %v5123 = vadd.f32 0.0, %v5122
    %v5124 = vpop.f32.mrb[0].mxu0
    %5125 = vmatprep.mubr.bf16.mxu0 0
    %5126 = vmatmul.mubr.bf16.gmra.mrb[0].mxu0 %v4863
    %v5127 = vpop.f32.mrb[0].mxu0
    %v5128 = vadd.f32 0.0, %v5127
    %v5129 = vpop.f32.mrb[0].mxu0
    %v5130 = vpop.f32.mrb[0].mxu0
    %v5131 = vadd.f32 0.0, %v5130
    %v5132 = vpop.f32.mrb[0].mxu0
    %5133 = vmatprep.mubr.bf16.mxu0 0
    %5134 = vmatmul.mubr.bf16.gmra.mrb[0].mxu0 %v4866
    %v5135 = vpop.f32.mrb[0].mxu0
    %v5136 = vadd.f32 0.0, %v5135
    %v5137 = vpop.f32.mrb[0].mxu0
    %v5138 = vpop.f32.mrb[0].mxu0
    %v5139 = vadd.f32 0.0, %v5138
    %v5140 = vpop.f32.mrb[0].mxu0
    %5141 = vmatprep.mubr.bf16.mxu0 0
    %5142 = vmatmul.mubr.bf16.gmra.mrb[0].mxu0 %v4869
    %v5143 = vpop.f32.mrb[0].mxu0
    %v5144 = vadd.f32 0.0, %v5143
    %v5145 = vpop.f32.mrb[0].mxu0
    %v5146 = vpop.f32.mrb[0].mxu0
    %v5147 = vadd.f32 0.0, %v5146
    %v5148 = vpop.f32.mrb[0].mxu0
    %5149 = vmatprep.mubr.bf16.mxu0 0
    %5150 = vmatmul.mubr.bf16.gmra.mrb[0].mxu0 %v4872
    %v5151 = vpop.f32.mrb[0].mxu0
    %v5152 = vadd.f32 0.0, %v5151
    %v5153 = vpop.f32.mrb[0].mxu0
    %v5154 = vpop.f32.mrb[0].mxu0
    %v5155 = vadd.f32 0.0, %v5154
    %v5156 = vpop.f32.mrb[0].mxu0
    %5157 = vmatprep.mubr.bf16.mxu0 0
    %5158 = vmatmul.mubr.bf16.gmra.mrb[0].mxu0 %v4875
    %v5159 = vpop.f32.mrb[0].mxu0
    %v5160 = vadd.f32 0.0, %v5159
    %v5161 = vpop.f32.mrb[0].mxu0
    %v5162 = vpop.f32.mrb[0].mxu0
    %v5163 = vadd.f32 0.0, %v5162
    %v5164 = vpop.f32.mrb[0].mxu0
    %5165 = vdwg.mxu0
    %v5166 = vadd.f32 %v4612, %v4912
    %v5167 = vadd.f32 %v4613, %v4915
    %v5168 = vadd.f32 %v4614, %v4920
    %v5169 = vadd.f32 %v4615, %v4923
    %v5170 = vadd.f32 %v4616, %v4928
    %v5171 = vadd.f32 %v4617, %v4931
    %v5172 = vadd.f32 %v4618, %v4936
    %v5173 = vadd.f32 %v4619, %v4939
    %v5174 = vadd.f32 %v4620, %v4944
    %v5175 = vadd.f32 %v4621, %v4947
    %v5176 = vadd.f32 %v4622, %v4952
    %v5177 = vadd.f32 %v4623, %v4955
    %v5178 = vadd.f32 %v4624, %v4960
    %v5179 = vadd.f32 %v4625, %v4963
    %v5180 = vadd.f32 %v4626, %v4968
    %v5181 = vadd.f32 %v4627, %v4971
    %v5182 = vadd.f32 %v4628, %v4976
    %v5183 = vadd.f32 %v4629, %v4979
    %v5184 = vadd.f32 %v4630, %v4984
    %v5185 = vadd.f32 %v4631, %v4987
    %v5186 = vadd.f32 %v4632, %v4992
    %v5187 = vadd.f32 %v4633, %v4995
    %v5188 = vadd.f32 %v4634, %v5000
    %v5189 = vadd.f32 %v4635, %v5003
    %v5190 = vadd.f32 %v4636, %v5008
    %v5191 = vadd.f32 %v4637, %v5011
    %v5192 = vadd.f32 %v4638, %v5016
    %v5193 = vadd.f32 %v4639, %v5019
    %v5194 = vadd.f32 %v4640, %v5024
    %v5195 = vadd.f32 %v4641, %v5027
    %v5196 = vadd.f32 %v4642, %v5032
    %v5197 = vadd.f32 %v4643, %v5035
    %v5198 = vadd.f32 %v4644, %v5040
    %v5199 = vadd.f32 %v4645, %v5043
    %v5200 = vadd.f32 %v4646, %v5048
    %v5201 = vadd.f32 %v4647, %v5051
    %v5202 = vadd.f32 %v4648, %v5056
    %v5203 = vadd.f32 %v4649, %v5059
    %v5204 = vadd.f32 %v4650, %v5064
    %v5205 = vadd.f32 %v4651, %v5067
    %v5206 = vadd.f32 %v4652, %v5072
    %v5207 = vadd.f32 %v4653, %v5075
    %v5208 = vadd.f32 %v4654, %v5080
    %v5209 = vadd.f32 %v4655, %v5083
    %v5210 = vadd.f32 %v4656, %v5088
    %v5211 = vadd.f32 %v4657, %v5091
    %v5212 = vadd.f32 %v4658, %v5096
    %v5213 = vadd.f32 %v4659, %v5099
    %v5214 = vadd.f32 %v4660, %v5104
    %v5215 = vadd.f32 %v4661, %v5107
    %v5216 = vadd.f32 %v4662, %v5112
    %v5217 = vadd.f32 %v4663, %v5115
    %v5218 = vadd.f32 %v4664, %v5120
    %v5219 = vadd.f32 %v4665, %v5123
    %v5220 = vadd.f32 %v4666, %v5128
    %v5221 = vadd.f32 %v4667, %v5131
    %v5222 = vadd.f32 %v4668, %v5136
    %v5223 = vadd.f32 %v4669, %v5139
    %v5224 = vadd.f32 %v4670, %v5144
    %v5225 = vadd.f32 %v4671, %v5147
    %v5226 = vadd.f32 %v4672, %v5152
    %v5227 = vadd.f32 %v4673, %v5155
    %v5228 = vadd.f32 %v4674, %v5160
    %v5229 = vadd.f32 %v4675, %v5163
    %v5230 = vld [vmem:[%s4121 + $0x2] sm:$0xff]
    %v5231 = vld [vmem:[%s4121 + $0xa] sm:$0xff]
    %v5232 = vld [vmem:[%s4121 + $0x1a] sm:$0xff]
    %v5233 = vld [vmem:[%s4121 + $0x22] sm:$0xff]
    %v5234 = vld [vmem:[%s4121 + $0x32] sm:$0xff]
    %v5235 = vld [vmem:[%s4121 + $0x3a] sm:$0xff]
    %v5236 = vld [vmem:[%s4121 + $0x4a] sm:$0xff]
    %v5237 = vld [vmem:[%s4121 + $0x52] sm:$0xff]
    %v5238 = vld [vmem:[%s4121 + $0x62] sm:$0xff]
    %v5239 = vld [vmem:[%s4121 + $0x6a] sm:$0xff]
    %v5240 = vld [vmem:[%s4121 + $0x7a] sm:$0xff]
    %v5241 = vld [vmem:[%s4121 + $0x82] sm:$0xff]
    %v5242 = vld [vmem:[%s4121 + $0x92] sm:$0xff]
    %v5243 = vld [vmem:[%s4121 + $0x9a] sm:$0xff]
    %v5244 = vld [vmem:[%s4121 + $0xaa] sm:$0xff]
    %v5245 = vld [vmem:[%s4121 + $0xb2] sm:$0xff]
    %v5246 = vld [vmem:[%s4121 + $0xc2] sm:$0xff]
    %v5247 = vld [vmem:[%s4121 + $0xca] sm:$0xff]
    %v5248 = vld [vmem:[%s4121 + $0xda] sm:$0xff]
    %v5249 = vld [vmem:[%s4121 + $0xe2] sm:$0xff]
    %v5250 = vld [vmem:[%s4121 + $0xf2] sm:$0xff]
    %v5251 = vld [vmem:[%s4121 + $0xfa] sm:$0xff]
    %v5252 = vld [vmem:[%s4121 + $0x10a] sm:$0xff]
    %v5253 = vld [vmem:[%s4121 + $0x112] sm:$0xff]
    %v5254 = vld [vmem:[%s4121 + $0x122] sm:$0xff]
    %v5255 = vld [vmem:[%s4121 + $0x12a] sm:$0xff]
    %v5256 = vld [vmem:[%s4121 + $0x13a] sm:$0xff]
    %v5257 = vld [vmem:[%s4121 + $0x142] sm:$0xff]
    %v5258 = vld [vmem:[%s4121 + $0x152] sm:$0xff]
    %v5259 = vld [vmem:[%s4121 + $0x15a] sm:$0xff]
    %v5260 = vld [vmem:[%s4121 + $0x16a] sm:$0xff]
    %v5261 = vld [vmem:[%s4121 + $0x172] sm:$0xff]
    %v5262 = vld [vmem:[%s4121 + $0x1b2] sm:$0xff]
    %v5263 = vld [vmem:[%s4121 + $0x1ba] sm:$0xff]
    %v5264 = vld [vmem:[%s4121 + $0x1ca] sm:$0xff]
    %v5265 = vld [vmem:[%s4121 + $0x1d2] sm:$0xff]
    %v5266 = vld [vmem:[%s4121 + $0x1e2] sm:$0xff]
    %v5267 = vld [vmem:[%s4121 + $0x1ea] sm:$0xff]
    %v5268 = vld [vmem:[%s4121 + $0x1fa] sm:$0xff]
    %v5269 = vld [vmem:[%s4121 + $0x202] sm:$0xff]
    %v5270 = vld [vmem:[%s4121 + $0x212] sm:$0xff]
    %v5271 = vld [vmem:[%s4121 + $0x21a] sm:$0xff]
    %v5272 = vld [vmem:[%s4121 + $0x22a] sm:$0xff]
    %v5273 = vld [vmem:[%s4121 + $0x232] sm:$0xff]
    %v5274 = vld [vmem:[%s4121 + $0x242] sm:$0xff]
    %v5275 = vld [vmem:[%s4121 + $0x24a] sm:$0xff]
    %v5276 = vld [vmem:[%s4121 + $0x25a] sm:$0xff]
    %v5277 = vld [vmem:[%s4121 + $0x262] sm:$0xff]
    %v5278 = vld [vmem:[%s4121 + $0x272] sm:$0xff]
    %v5279 = vld [vmem:[%s4121 + $0x27a] sm:$0xff]
    %v5280 = vld [vmem:[%s4121 + $0x28a] sm:$0xff]
    %v5281 = vld [vmem:[%s4121 + $0x292] sm:$0xff]
    %v5282 = vld [vmem:[%s4121 + $0x2a2] sm:$0xff]
    %v5283 = vld [vmem:[%s4121 + $0x2aa] sm:$0xff]
    %v5284 = vld [vmem:[%s4121 + $0x2ba] sm:$0xff]
    %v5285 = vld [vmem:[%s4121 + $0x2c2] sm:$0xff]
    %v5286 = vld [vmem:[%s4121 + $0x2d2] sm:$0xff]
    %v5287 = vld [vmem:[%s4121 + $0x2da] sm:$0xff]
    %v5288 = vld [vmem:[%s4121 + $0x2ea] sm:$0xff]
    %v5289 = vld [vmem:[%s4121 + $0x2f2] sm:$0xff]
    %v5290 = vld [vmem:[%s4121 + $0x302] sm:$0xff]
    %v5291 = vld [vmem:[%s4121 + $0x30a] sm:$0xff]
    %v5292 = vld [vmem:[%s4121 + $0x31a] sm:$0xff]
    %v5293 = vld [vmem:[%s4121 + $0x322] sm:$0xff]
    %v5294 = vpack.c.bf16 %v5231, %v5230
    %v5295 = vpack.c.bf16 %v5233, %v5232
    %v5296 = vpack.c.bf16 %v5235, %v5234
    %v5297 = vpack.c.bf16 %v5237, %v5236
    %v5298 = vpack.c.bf16 %v5239, %v5238
    %v5299 = vpack.c.bf16 %v5241, %v5240
    %v5300 = vpack.c.bf16 %v5243, %v5242
    %v5301 = vpack.c.bf16 %v5245, %v5244
    %v5302 = vpack.c.bf16 %v5247, %v5246
    %v5303 = vpack.c.bf16 %v5249, %v5248
    %v5304 = vpack.c.bf16 %v5251, %v5250
    %v5305 = vpack.c.bf16 %v5253, %v5252
    %v5306 = vpack.c.bf16 %v5255, %v5254
    %v5307 = vpack.c.bf16 %v5257, %v5256
    %v5308 = vpack.c.bf16 %v5259, %v5258
    %v5309 = vpack.c.bf16 %v5261, %v5260
    %v5310 = vpack.c.bf16 %v5263, %v5262
    %v5311 = vpack.c.bf16 %v5265, %v5264
    %v5312 = vpack.c.bf16 %v5267, %v5266
    %v5313 = vpack.c.bf16 %v5269, %v5268
    %v5314 = vpack.c.bf16 %v5271, %v5270
    %v5315 = vpack.c.bf16 %v5273, %v5272
    %v5316 = vpack.c.bf16 %v5275, %v5274
    %v5317 = vpack.c.bf16 %v5277, %v5276
    %v5318 = vpack.c.bf16 %v5279, %v5278
    %v5319 = vpack.c.bf16 %v5281, %v5280
    %v5320 = vpack.c.bf16 %v5283, %v5282
    %v5321 = vpack.c.bf16 %v5285, %v5284
    %v5322 = vpack.c.bf16 %v5287, %v5286
    %v5323 = vpack.c.bf16 %v5289, %v5288
    %v5324 = vpack.c.bf16 %v5291, %v5290
    %v5325 = vpack.c.bf16 %v5293, %v5292
    %s5326 = scalar_lea.vmem [#allocation7], 64
    %v5327 = vld [vmem:[%s5326] sm:$0xf]
    %v5328 = vld [vmem:[%s5326 + $0x4] sm:$0xf]
    %v5331 = vunpack.c.l.b16 %v5327
    %v5332 = vunpack.c.l.b16 %v5328
    %v5333 = vpack.c.b16 %v5332, %v5331
    %v5336 = vsel %vm147, %v5294, 0
    %v5339 = vsel %vm147, %v5295, 0
    %v5342 = vsel %vm147, %v5296, 0
    %v5345 = vsel %vm147, %v5297, 0
    %v5348 = vsel %vm147, %v5298, 0
    %v5351 = vsel %vm147, %v5299, 0
    %v5354 = vsel %vm147, %v5300, 0
    %v5357 = vsel %vm147, %v5301, 0
    %v5360 = vsel %vm147, %v5302, 0
    %v5363 = vsel %vm147, %v5303, 0
    %v5366 = vsel %vm147, %v5304, 0
    %v5369 = vsel %vm147, %v5305, 0
    %v5372 = vsel %vm147, %v5306, 0
    %v5375 = vsel %vm147, %v5307, 0
    %v5378 = vsel %vm147, %v5308, 0
    %v5381 = vsel %vm147, %v5309, 0
    %v5384 = vsel %vm147, %v5310, 0
    %v5387 = vsel %vm147, %v5311, 0
    %v5390 = vsel %vm147, %v5312, 0
    %v5393 = vsel %vm147, %v5313, 0
    %v5396 = vsel %vm147, %v5314, 0
    %v5399 = vsel %vm147, %v5315, 0
    %v5402 = vsel %vm147, %v5316, 0
    %v5405 = vsel %vm147, %v5317, 0
    %v5408 = vsel %vm147, %v5318, 0
    %v5411 = vsel %vm147, %v5319, 0
    %v5414 = vsel %vm147, %v5320, 0
    %v5417 = vsel %vm147, %v5321, 0
    %v5420 = vsel %vm147, %v5322, 0
    %v5423 = vsel %vm147, %v5323, 0
    %v5426 = vsel %vm147, %v5324, 0
    %v5429 = vsel %vm147, %v5325, 0
    %5431 = vmatprep.subr.bf16.mxu0 0
    %5432 = vmatpush1.bf16.msra.mxu0 %v5333
    %5433 = vmatprep.subr.bf16.mxu0 0
    %5434 = vmatpush1.bf16.msra.mxu0 0
    %5435 = vmatprep.subr.bf16.mxu0 0
    %5436 = vmatpush1.bf16.msra.mxu0 0
    %5437 = vmatprep.subr.bf16.mxu0 0
    %5438 = vmatpush1.bf16.msra.mxu0 0
    %5439 = vmatprep.subr.bf16.mxu0 0
    %5440 = vmatpush1.bf16.msra.mxu0 0
    %5441 = vmatprep.subr.bf16.mxu0 0
    %5442 = vmatpush1.bf16.msra.mxu0 0
    %5443 = vmatprep.subr.bf16.mxu0 0
    %5444 = vmatpush1.bf16.msra.mxu0 0
    %5445 = vmatprep.subr.bf16.mxu0 0
    %5446 = vmatpush1.bf16.msra.mxu0 0
    %5447 = vmatprep.subr.bf16.mxu0 0
    %5448 = vmatpush1.bf16.msra.mxu0 0
    %5449 = vmatprep.subr.bf16.mxu0 0
    %5450 = vmatpush1.bf16.msra.mxu0 0
    %5451 = vmatprep.subr.bf16.mxu0 0
    %5452 = vmatpush1.bf16.msra.mxu0 0
    %5453 = vmatprep.subr.bf16.mxu0 0
    %5454 = vmatpush1.bf16.msra.mxu0 0
    %5455 = vmatprep.subr.bf16.mxu0 0
    %5456 = vmatpush1.bf16.msra.mxu0 0
    %5457 = vmatprep.subr.bf16.mxu0 0
    %5458 = vmatpush1.bf16.msra.mxu0 0
    %5459 = vmatprep.subr.bf16.mxu0 0
    %5460 = vmatpush1.bf16.msra.mxu0 0
    %5461 = vmatprep.subr.bf16.mxu0 0
    %5462 = vmatpush1.bf16.msra.mxu0 0
    %5463 = vmatprep.mubr.bf16.mxu0 0
    %5464 = vmatmul.mubr.bf16.gmra.mrb[0].mxu0 %v5336
    %v5465 = vpop.f32.mrb[0].mxu0
    %v5466 = vadd.f32 0.0, %v5465
    %v5467 = vpop.f32.mrb[0].mxu0
    %v5468 = vpop.f32.mrb[0].mxu0
    %v5469 = vadd.f32 0.0, %v5468
    %v5470 = vpop.f32.mrb[0].mxu0
    %5471 = vmatprep.mubr.bf16.mxu0 0
    %5472 = vmatmul.mubr.bf16.gmra.mrb[0].mxu0 %v5339
    %v5473 = vpop.f32.mrb[0].mxu0
    %v5474 = vadd.f32 0.0, %v5473
    %v5475 = vpop.f32.mrb[0].mxu0
    %v5476 = vpop.f32.mrb[0].mxu0
    %v5477 = vadd.f32 0.0, %v5476
    %v5478 = vpop.f32.mrb[0].mxu0
    %5479 = vmatprep.mubr.bf16.mxu0 0
    %5480 = vmatmul.mubr.bf16.gmra.mrb[0].mxu0 %v5342
    %v5481 = vpop.f32.mrb[0].mxu0
    %v5482 = vadd.f32 0.0, %v5481
    %v5483 = vpop.f32.mrb[0].mxu0
    %v5484 = vpop.f32.mrb[0].mxu0
    %v5485 = vadd.f32 0.0, %v5484
    %v5486 = vpop.f32.mrb[0].mxu0
    %5487 = vmatprep.mubr.bf16.mxu0 0
    %5488 = vmatmul.mubr.bf16.gmra.mrb[0].mxu0 %v5345
    %v5489 = vpop.f32.mrb[0].mxu0
    %v5490 = vadd.f32 0.0, %v5489
    %v5491 = vpop.f32.mrb[0].mxu0
    %v5492 = vpop.f32.mrb[0].mxu0
    %v5493 = vadd.f32 0.0, %v5492
    %v5494 = vpop.f32.mrb[0].mxu0
    %5495 = vmatprep.mubr.bf16.mxu0 0
    %5496 = vmatmul.mubr.bf16.gmra.mrb[0].mxu0 %v5348
    %v5497 = vpop.f32.mrb[0].mxu0
    %v5498 = vadd.f32 0.0, %v5497
    %v5499 = vpop.f32.mrb[0].mxu0
    %v5500 = vpop.f32.mrb[0].mxu0
    %v5501 = vadd.f32 0.0, %v5500
    %v5502 = vpop.f32.mrb[0].mxu0
    %5503 = vmatprep.mubr.bf16.mxu0 0
    %5504 = vmatmul.mubr.bf16.gmra.mrb[0].mxu0 %v5351
    %v5505 = vpop.f32.mrb[0].mxu0
    %v5506 = vadd.f32 0.0, %v5505
    %v5507 = vpop.f32.mrb[0].mxu0
    %v5508 = vpop.f32.mrb[0].mxu0
    %v5509 = vadd.f32 0.0, %v5508
    %v5510 = vpop.f32.mrb[0].mxu0
    %5511 = vmatprep.mubr.bf16.mxu0 0
    %5512 = vmatmul.mubr.bf16.gmra.mrb[0].mxu0 %v5354
    %v5513 = vpop.f32.mrb[0].mxu0
    %v5514 = vadd.f32 0.0, %v5513
    %v5515 = vpop.f32.mrb[0].mxu0
    %v5516 = vpop.f32.mrb[0].mxu0
    %v5517 = vadd.f32 0.0, %v5516
    %v5518 = vpop.f32.mrb[0].mxu0
    %5519 = vmatprep.mubr.bf16.mxu0 0
    %5520 = vmatmul.mubr.bf16.gmra.mrb[0].mxu0 %v5357
    %v5521 = vpop.f32.mrb[0].mxu0
    %v5522 = vadd.f32 0.0, %v5521
    %v5523 = vpop.f32.mrb[0].mxu0
    %v5524 = vpop.f32.mrb[0].mxu0
    %v5525 = vadd.f32 0.0, %v5524
    %v5526 = vpop.f32.mrb[0].mxu0
    %5527 = vmatprep.mubr.bf16.mxu0 0
    %5528 = vmatmul.mubr.bf16.gmra.mrb[0].mxu0 %v5360
    %v5529 = vpop.f32.mrb[0].mxu0
    %v5530 = vadd.f32 0.0, %v5529
    %v5531 = vpop.f32.mrb[0].mxu0
    %v5532 = vpop.f32.mrb[0].mxu0
    %v5533 = vadd.f32 0.0, %v5532
    %v5534 = vpop.f32.mrb[0].mxu0
    %5535 = vmatprep.mubr.bf16.mxu0 0
    %5536 = vmatmul.mubr.bf16.gmra.mrb[0].mxu0 %v5363
    %v5537 = vpop.f32.mrb[0].mxu0
    %v5538 = vadd.f32 0.0, %v5537
    %v5539 = vpop.f32.mrb[0].mxu0
    %v5540 = vpop.f32.mrb[0].mxu0
    %v5541 = vadd.f32 0.0, %v5540
    %v5542 = vpop.f32.mrb[0].mxu0
    %5543 = vmatprep.mubr.bf16.mxu0 0
    %5544 = vmatmul.mubr.bf16.gmra.mrb[0].mxu0 %v5366
    %v5545 = vpop.f32.mrb[0].mxu0
    %v5546 = vadd.f32 0.0, %v5545
    %v5547 = vpop.f32.mrb[0].mxu0
    %v5548 = vpop.f32.mrb[0].mxu0
    %v5549 = vadd.f32 0.0, %v5548
    %v5550 = vpop.f32.mrb[0].mxu0
    %5551 = vmatprep.mubr.bf16.mxu0 0
    %5552 = vmatmul.mubr.bf16.gmra.mrb[0].mxu0 %v5369
    %v5553 = vpop.f32.mrb[0].mxu0
    %v5554 = vadd.f32 0.0, %v5553
    %v5555 = vpop.f32.mrb[0].mxu0
    %v5556 = vpop.f32.mrb[0].mxu0
    %v5557 = vadd.f32 0.0, %v5556
    %v5558 = vpop.f32.mrb[0].mxu0
    %5559 = vmatprep.mubr.bf16.mxu0 0
    %5560 = vmatmul.mubr.bf16.gmra.mrb[0].mxu0 %v5372
    %v5561 = vpop.f32.mrb[0].mxu0
    %v5562 = vadd.f32 0.0, %v5561
    %v5563 = vpop.f32.mrb[0].mxu0
    %v5564 = vpop.f32.mrb[0].mxu0
    %v5565 = vadd.f32 0.0, %v5564
    %v5566 = vpop.f32.mrb[0].mxu0
    %5567 = vmatprep.mubr.bf16.mxu0 0
    %5568 = vmatmul.mubr.bf16.gmra.mrb[0].mxu0 %v5375
    %v5569 = vpop.f32.mrb[0].mxu0
    %v5570 = vadd.f32 0.0, %v5569
    %v5571 = vpop.f32.mrb[0].mxu0
    %v5572 = vpop.f32.mrb[0].mxu0
    %v5573 = vadd.f32 0.0, %v5572
    %v5574 = vpop.f32.mrb[0].mxu0
    %5575 = vmatprep.mubr.bf16.mxu0 0
    %5576 = vmatmul.mubr.bf16.gmra.mrb[0].mxu0 %v5378
    %v5577 = vpop.f32.mrb[0].mxu0
    %v5578 = vadd.f32 0.0, %v5577
    %v5579 = vpop.f32.mrb[0].mxu0
    %v5580 = vpop.f32.mrb[0].mxu0
    %v5581 = vadd.f32 0.0, %v5580
    %v5582 = vpop.f32.mrb[0].mxu0
    %5583 = vmatprep.mubr.bf16.mxu0 0
    %5584 = vmatmul.mubr.bf16.gmra.mrb[0].mxu0 %v5381
    %v5585 = vpop.f32.mrb[0].mxu0
    %v5586 = vadd.f32 0.0, %v5585
    %v5587 = vpop.f32.mrb[0].mxu0
    %v5588 = vpop.f32.mrb[0].mxu0
    %v5589 = vadd.f32 0.0, %v5588
    %v5590 = vpop.f32.mrb[0].mxu0
    %5591 = vmatprep.mubr.bf16.mxu0 0
    %5592 = vmatmul.mubr.bf16.gmra.mrb[0].mxu0 %v5384
    %v5593 = vpop.f32.mrb[0].mxu0
    %v5594 = vadd.f32 0.0, %v5593
    %v5595 = vpop.f32.mrb[0].mxu0
    %v5596 = vpop.f32.mrb[0].mxu0
    %v5597 = vadd.f32 0.0, %v5596
    %v5598 = vpop.f32.mrb[0].mxu0
    %5599 = vmatprep.mubr.bf16.mxu0 0
    %5600 = vmatmul.mubr.bf16.gmra.mrb[0].mxu0 %v5387
    %v5601 = vpop.f32.mrb[0].mxu0
    %v5602 = vadd.f32 0.0, %v5601
    %v5603 = vpop.f32.mrb[0].mxu0
    %v5604 = vpop.f32.mrb[0].mxu0
    %v5605 = vadd.f32 0.0, %v5604
    %v5606 = vpop.f32.mrb[0].mxu0
    %5607 = vmatprep.mubr.bf16.mxu0 0
    %5608 = vmatmul.mubr.bf16.gmra.mrb[0].mxu0 %v5390
    %v5609 = vpop.f32.mrb[0].mxu0
    %v5610 = vadd.f32 0.0, %v5609
    %v5611 = vpop.f32.mrb[0].mxu0
    %v5612 = vpop.f32.mrb[0].mxu0
    %v5613 = vadd.f32 0.0, %v5612
    %v5614 = vpop.f32.mrb[0].mxu0
    %5615 = vmatprep.mubr.bf16.mxu0 0
    %5616 = vmatmul.mubr.bf16.gmra.mrb[0].mxu0 %v5393
    %v5617 = vpop.f32.mrb[0].mxu0
    %v5618 = vadd.f32 0.0, %v5617
    %v5619 = vpop.f32.mrb[0].mxu0
    %v5620 = vpop.f32.mrb[0].mxu0
    %v5621 = vadd.f32 0.0, %v5620
    %v5622 = vpop.f32.mrb[0].mxu0
    %5623 = vmatprep.mubr.bf16.mxu0 0
    %5624 = vmatmul.mubr.bf16.gmra.mrb[0].mxu0 %v5396
    %v5625 = vpop.f32.mrb[0].mxu0
    %v5626 = vadd.f32 0.0, %v5625
    %v5627 = vpop.f32.mrb[0].mxu0
    %v5628 = vpop.f32.mrb[0].mxu0
    %v5629 = vadd.f32 0.0, %v5628
    %v5630 = vpop.f32.mrb[0].mxu0
    %5631 = vmatprep.mubr.bf16.mxu0 0
    %5632 = vmatmul.mubr.bf16.gmra.mrb[0].mxu0 %v5399
    %v5633 = vpop.f32.mrb[0].mxu0
    %v5634 = vadd.f32 0.0, %v5633
    %v5635 = vpop.f32.mrb[0].mxu0
    %v5636 = vpop.f32.mrb[0].mxu0
    %v5637 = vadd.f32 0.0, %v5636
    %v5638 = vpop.f32.mrb[0].mxu0
    %5639 = vmatprep.mubr.bf16.mxu0 0
    %5640 = vmatmul.mubr.bf16.gmra.mrb[0].mxu0 %v5402
    %v5641 = vpop.f32.mrb[0].mxu0
    %v5642 = vadd.f32 0.0, %v5641
    %v5643 = vpop.f32.mrb[0].mxu0
    %v5644 = vpop.f32.mrb[0].mxu0
    %v5645 = vadd.f32 0.0, %v5644
    %v5646 = vpop.f32.mrb[0].mxu0
    %5647 = vmatprep.mubr.bf16.mxu0 0
    %5648 = vmatmul.mubr.bf16.gmra.mrb[0].mxu0 %v5405
    %v5649 = vpop.f32.mrb[0].mxu0
    %v5650 = vadd.f32 0.0, %v5649
    %v5651 = vpop.f32.mrb[0].mxu0
    %v5652 = vpop.f32.mrb[0].mxu0
    %v5653 = vadd.f32 0.0, %v5652
    %v5654 = vpop.f32.mrb[0].mxu0
    %5655 = vmatprep.mubr.bf16.mxu0 0
    %5656 = vmatmul.mubr.bf16.gmra.mrb[0].mxu0 %v5408
    %v5657 = vpop.f32.mrb[0].mxu0
    %v5658 = vadd.f32 0.0, %v5657
    %v5659 = vpop.f32.mrb[0].mxu0
    %v5660 = vpop.f32.mrb[0].mxu0
    %v5661 = vadd.f32 0.0, %v5660
    %v5662 = vpop.f32.mrb[0].mxu0
    %5663 = vmatprep.mubr.bf16.mxu0 0
    %5664 = vmatmul.mubr.bf16.gmra.mrb[0].mxu0 %v5411
    %v5665 = vpop.f32.mrb[0].mxu0
    %v5666 = vadd.f32 0.0, %v5665
    %v5667 = vpop.f32.mrb[0].mxu0
    %v5668 = vpop.f32.mrb[0].mxu0
    %v5669 = vadd.f32 0.0, %v5668
    %v5670 = vpop.f32.mrb[0].mxu0
    %5671 = vmatprep.mubr.bf16.mxu0 0
    %5672 = vmatmul.mubr.bf16.gmra.mrb[0].mxu0 %v5414
    %v5673 = vpop.f32.mrb[0].mxu0
    %v5674 = vadd.f32 0.0, %v5673
    %v5675 = vpop.f32.mrb[0].mxu0
    %v5676 = vpop.f32.mrb[0].mxu0
    %v5677 = vadd.f32 0.0, %v5676
    %v5678 = vpop.f32.mrb[0].mxu0
    %5679 = vmatprep.mubr.bf16.mxu0 0
    %5680 = vmatmul.mubr.bf16.gmra.mrb[0].mxu0 %v5417
    %v5681 = vpop.f32.mrb[0].mxu0
    %v5682 = vadd.f32 0.0, %v5681
    %v5683 = vpop.f32.mrb[0].mxu0
    %v5684 = vpop.f32.mrb[0].mxu0
    %v5685 = vadd.f32 0.0, %v5684
    %v5686 = vpop.f32.mrb[0].mxu0
    %5687 = vmatprep.mubr.bf16.mxu0 0
    %5688 = vmatmul.mubr.bf16.gmra.mrb[0].mxu0 %v5420
    %v5689 = vpop.f32.mrb[0].mxu0
    %v5690 = vadd.f32 0.0, %v5689
    %v5691 = vpop.f32.mrb[0].mxu0
    %v5692 = vpop.f32.mrb[0].mxu0
    %v5693 = vadd.f32 0.0, %v5692
    %v5694 = vpop.f32.mrb[0].mxu0
    %5695 = vmatprep.mubr.bf16.mxu0 0
    %5696 = vmatmul.mubr.bf16.gmra.mrb[0].mxu0 %v5423
    %v5697 = vpop.f32.mrb[0].mxu0
    %v5698 = vadd.f32 0.0, %v5697
    %v5699 = vpop.f32.mrb[0].mxu0
    %v5700 = vpop.f32.mrb[0].mxu0
    %v5701 = vadd.f32 0.0, %v5700
    %v5702 = vpop.f32.mrb[0].mxu0
    %5703 = vmatprep.mubr.bf16.mxu0 0
    %5704 = vmatmul.mubr.bf16.gmra.mrb[0].mxu0 %v5426
    %v5705 = vpop.f32.mrb[0].mxu0
    %v5706 = vadd.f32 0.0, %v5705
    %v5707 = vpop.f32.mrb[0].mxu0
    %v5708 = vpop.f32.mrb[0].mxu0
    %v5709 = vadd.f32 0.0, %v5708
    %v5710 = vpop.f32.mrb[0].mxu0
    %5711 = vmatprep.mubr.bf16.mxu0 0
    %5712 = vmatmul.mubr.bf16.gmra.mrb[0].mxu0 %v5429
    %v5713 = vpop.f32.mrb[0].mxu0
    %v5714 = vadd.f32 0.0, %v5713
    %v5715 = vpop.f32.mrb[0].mxu0
    %v5716 = vpop.f32.mrb[0].mxu0
    %v5717 = vadd.f32 0.0, %v5716
    %v5718 = vpop.f32.mrb[0].mxu0
    %5719 = vdwg.mxu0
    %v5720 = vadd.f32 %v5166, %v5466
    %v5721 = vadd.f32 %v5167, %v5469
    %v5722 = vadd.f32 %v5168, %v5474
    %v5723 = vadd.f32 %v5169, %v5477
    %v5724 = vadd.f32 %v5170, %v5482
    %v5725 = vadd.f32 %v5171, %v5485
    %v5726 = vadd.f32 %v5172, %v5490
    %v5727 = vadd.f32 %v5173, %v5493
    %v5728 = vadd.f32 %v5174, %v5498
    %v5729 = vadd.f32 %v5175, %v5501
    %v5730 = vadd.f32 %v5176, %v5506
    %v5731 = vadd.f32 %v5177, %v5509
    %v5732 = vadd.f32 %v5178, %v5514
    %v5733 = vadd.f32 %v5179, %v5517
    %v5734 = vadd.f32 %v5180, %v5522
    %v5735 = vadd.f32 %v5181, %v5525
    %v5736 = vadd.f32 %v5182, %v5530
    %v5737 = vadd.f32 %v5183, %v5533
    %v5738 = vadd.f32 %v5184, %v5538
    %v5739 = vadd.f32 %v5185, %v5541
    %v5740 = vadd.f32 %v5186, %v5546
    %v5741 = vadd.f32 %v5187, %v5549
    %v5742 = vadd.f32 %v5188, %v5554
    %v5743 = vadd.f32 %v5189, %v5557
    %v5744 = vadd.f32 %v5190, %v5562
    %v5745 = vadd.f32 %v5191, %v5565
    %v5746 = vadd.f32 %v5192, %v5570
    %v5747 = vadd.f32 %v5193, %v5573
    %v5748 = vadd.f32 %v5194, %v5578
    %v5749 = vadd.f32 %v5195, %v5581
    %v5750 = vadd.f32 %v5196, %v5586
    %v5751 = vadd.f32 %v5197, %v5589
    %v5752 = vadd.f32 %v5198, %v5594
    %v5753 = vadd.f32 %v5199, %v5597
    %v5754 = vadd.f32 %v5200, %v5602
    %v5755 = vadd.f32 %v5201, %v5605
    %v5756 = vadd.f32 %v5202, %v5610
    %v5757 = vadd.f32 %v5203, %v5613
    %v5758 = vadd.f32 %v5204, %v5618
    %v5759 = vadd.f32 %v5205, %v5621
    %v5760 = vadd.f32 %v5206, %v5626
    %v5761 = vadd.f32 %v5207, %v5629
    %v5762 = vadd.f32 %v5208, %v5634
    %v5763 = vadd.f32 %v5209, %v5637
    %v5764 = vadd.f32 %v5210, %v5642
    %v5765 = vadd.f32 %v5211, %v5645
    %v5766 = vadd.f32 %v5212, %v5650
    %v5767 = vadd.f32 %v5213, %v5653
    %v5768 = vadd.f32 %v5214, %v5658
    %v5769 = vadd.f32 %v5215, %v5661
    %v5770 = vadd.f32 %v5216, %v5666
    %v5771 = vadd.f32 %v5217, %v5669
    %v5772 = vadd.f32 %v5218, %v5674
    %v5773 = vadd.f32 %v5219, %v5677
    %v5774 = vadd.f32 %v5220, %v5682
    %v5775 = vadd.f32 %v5221, %v5685
    %v5776 = vadd.f32 %v5222, %v5690
    %v5777 = vadd.f32 %v5223, %v5693
    %v5778 = vadd.f32 %v5224, %v5698
    %v5779 = vadd.f32 %v5225, %v5701
    %v5780 = vadd.f32 %v5226, %v5706
    %v5781 = vadd.f32 %v5227, %v5709
    %v5782 = vadd.f32 %v5228, %v5714
    %v5783 = vadd.f32 %v5229, %v5717
    %vm5784 = vcmp.gt.f32.partialorder %v5720, 0.0
    %vm5785 = vcmp.gt.f32.partialorder %v5721, 0.0
    %vm5786 = vcmp.gt.f32.partialorder %v5722, 0.0
    %vm5787 = vcmp.gt.f32.partialorder %v5723, 0.0
    %vm5788 = vcmp.gt.f32.partialorder %v5724, 0.0
    %vm5789 = vcmp.gt.f32.partialorder %v5725, 0.0
    %vm5790 = vcmp.gt.f32.partialorder %v5726, 0.0
    %vm5791 = vcmp.gt.f32.partialorder %v5727, 0.0
    %vm5792 = vcmp.gt.f32.partialorder %v5728, 0.0
    %vm5793 = vcmp.gt.f32.partialorder %v5729, 0.0
    %vm5794 = vcmp.gt.f32.partialorder %v5730, 0.0
    %vm5795 = vcmp.gt.f32.partialorder %v5731, 0.0
    %vm5796 = vcmp.gt.f32.partialorder %v5732, 0.0
    %vm5797 = vcmp.gt.f32.partialorder %v5733, 0.0
    %vm5798 = vcmp.gt.f32.partialorder %v5734, 0.0
    %vm5799 = vcmp.gt.f32.partialorder %v5735, 0.0
    %vm5800 = vcmp.gt.f32.partialorder %v5736, 0.0
    %vm5801 = vcmp.gt.f32.partialorder %v5737, 0.0
    %vm5802 = vcmp.gt.f32.partialorder %v5738, 0.0
    %vm5803 = vcmp.gt.f32.partialorder %v5739, 0.0
    %vm5804 = vcmp.gt.f32.partialorder %v5740, 0.0
    %vm5805 = vcmp.gt.f32.partialorder %v5741, 0.0
    %vm5806 = vcmp.gt.f32.partialorder %v5742, 0.0
    %vm5807 = vcmp.gt.f32.partialorder %v5743, 0.0
    %vm5808 = vcmp.gt.f32.partialorder %v5744, 0.0
    %vm5809 = vcmp.gt.f32.partialorder %v5745, 0.0
    %vm5810 = vcmp.gt.f32.partialorder %v5746, 0.0
    %vm5811 = vcmp.gt.f32.partialorder %v5747, 0.0
    %vm5812 = vcmp.gt.f32.partialorder %v5748, 0.0
    %vm5813 = vcmp.gt.f32.partialorder %v5749, 0.0
    %vm5814 = vcmp.gt.f32.partialorder %v5750, 0.0
    %vm5815 = vcmp.gt.f32.partialorder %v5751, 0.0
    %vm5816 = vcmp.gt.f32.partialorder %v5752, 0.0
    %vm5817 = vcmp.gt.f32.partialorder %v5753, 0.0
    %vm5818 = vcmp.gt.f32.partialorder %v5754, 0.0
    %vm5819 = vcmp.gt.f32.partialorder %v5755, 0.0
    %vm5820 = vcmp.gt.f32.partialorder %v5756, 0.0
    %vm5821 = vcmp.gt.f32.partialorder %v5757, 0.0
    %vm5822 = vcmp.gt.f32.partialorder %v5758, 0.0
    %vm5823 = vcmp.gt.f32.partialorder %v5759, 0.0
    %vm5824 = vcmp.gt.f32.partialorder %v5760, 0.0
    %vm5825 = vcmp.gt.f32.partialorder %v5761, 0.0
    %vm5826 = vcmp.gt.f32.partialorder %v5762, 0.0
    %vm5827 = vcmp.gt.f32.partialorder %v5763, 0.0
    %vm5828 = vcmp.gt.f32.partialorder %v5764, 0.0
    %vm5829 = vcmp.gt.f32.partialorder %v5765, 0.0
    %vm5830 = vcmp.gt.f32.partialorder %v5766, 0.0
    %vm5831 = vcmp.gt.f32.partialorder %v5767, 0.0
    %vm5832 = vcmp.gt.f32.partialorder %v5768, 0.0
    %vm5833 = vcmp.gt.f32.partialorder %v5769, 0.0
    %vm5834 = vcmp.gt.f32.partialorder %v5770, 0.0
    %vm5835 = vcmp.gt.f32.partialorder %v5771, 0.0
    %vm5836 = vcmp.gt.f32.partialorder %v5772, 0.0
    %vm5837 = vcmp.gt.f32.partialorder %v5773, 0.0
    %vm5838 = vcmp.gt.f32.partialorder %v5774, 0.0
    %vm5839 = vcmp.gt.f32.partialorder %v5775, 0.0
    %vm5840 = vcmp.gt.f32.partialorder %v5776, 0.0
    %vm5841 = vcmp.gt.f32.partialorder %v5777, 0.0
    %vm5842 = vcmp.gt.f32.partialorder %v5778, 0.0
    %vm5843 = vcmp.gt.f32.partialorder %v5779, 0.0
    %vm5844 = vcmp.gt.f32.partialorder %v5780, 0.0
    %vm5845 = vcmp.gt.f32.partialorder %v5781, 0.0
    %vm5846 = vcmp.gt.f32.partialorder %v5782, 0.0
    %vm5847 = vcmp.gt.f32.partialorder %v5783, 0.0
    %v5848 = vld [vmem:[%s4] sm:$0x1]
    %v5850 = vlaneseq
    %v5851 = vshrl.u32 %v5850, 7
    %v5852 = vsub.s32 0, %v5851
    %v5853 = vrot.slane %v5848, %v5852
    %v5855 = vmul.f32 %v5720, %v5853
    %v5856 = vmul.f32 %v5721, %v5853
    %v5857 = vmul.f32 %v5722, %v5853
    %v5858 = vmul.f32 %v5723, %v5853
    %v5859 = vmul.f32 %v5724, %v5853
    %v5860 = vmul.f32 %v5725, %v5853
    %v5861 = vmul.f32 %v5726, %v5853
    %v5862 = vmul.f32 %v5727, %v5853
    %v5863 = vmul.f32 %v5728, %v5853
    %v5864 = vmul.f32 %v5729, %v5853
    %v5865 = vmul.f32 %v5730, %v5853
    %v5866 = vmul.f32 %v5731, %v5853
    %v5867 = vmul.f32 %v5732, %v5853
    %v5868 = vmul.f32 %v5733, %v5853
    %v5869 = vmul.f32 %v5734, %v5853
    %v5870 = vmul.f32 %v5735, %v5853
    %v5871 = vmul.f32 %v5736, %v5853
    %v5872 = vmul.f32 %v5737, %v5853
    %v5873 = vmul.f32 %v5738, %v5853
    %v5874 = vmul.f32 %v5739, %v5853
    %v5875 = vmul.f32 %v5740, %v5853
    %v5876 = vmul.f32 %v5741, %v5853
    %v5877 = vmul.f32 %v5742, %v5853
    %v5878 = vmul.f32 %v5743, %v5853
    %v5879 = vmul.f32 %v5744, %v5853
    %v5880 = vmul.f32 %v5745, %v5853
    %v5881 = vmul.f32 %v5746, %v5853
    %v5882 = vmul.f32 %v5747, %v5853
    %v5883 = vmul.f32 %v5748, %v5853
    %v5884 = vmul.f32 %v5749, %v5853
    %v5885 = vmul.f32 %v5750, %v5853
    %v5886 = vmul.f32 %v5751, %v5853
    %v5887 = vmul.f32 %v5752, %v5853
    %v5888 = vmul.f32 %v5753, %v5853
    %v5889 = vmul.f32 %v5754, %v5853
    %v5890 = vmul.f32 %v5755, %v5853
    %v5891 = vmul.f32 %v5756, %v5853
    %v5892 = vmul.f32 %v5757, %v5853
    %v5893 = vmul.f32 %v5758, %v5853
    %v5894 = vmul.f32 %v5759, %v5853
    %v5895 = vmul.f32 %v5760, %v5853
    %v5896 = vmul.f32 %v5761, %v5853
    %v5897 = vmul.f32 %v5762, %v5853
    %v5898 = vmul.f32 %v5763, %v5853
    %v5899 = vmul.f32 %v5764, %v5853
    %v5900 = vmul.f32 %v5765, %v5853
    %v5901 = vmul.f32 %v5766, %v5853
    %v5902 = vmul.f32 %v5767, %v5853
    %v5903 = vmul.f32 %v5768, %v5853
    %v5904 = vmul.f32 %v5769, %v5853
    %v5905 = vmul.f32 %v5770, %v5853
    %v5906 = vmul.f32 %v5771, %v5853
    %v5907 = vmul.f32 %v5772, %v5853
    %v5908 = vmul.f32 %v5773, %v5853
    %v5909 = vmul.f32 %v5774, %v5853
    %v5910 = vmul.f32 %v5775, %v5853
    %v5911 = vmul.f32 %v5776, %v5853
    %v5912 = vmul.f32 %v5777, %v5853
    %v5913 = vmul.f32 %v5778, %v5853
    %v5914 = vmul.f32 %v5779, %v5853
    %v5915 = vmul.f32 %v5780, %v5853
    %v5916 = vmul.f32 %v5781, %v5853
    %v5917 = vmul.f32 %v5782, %v5853
    %v5918 = vmul.f32 %v5783, %v5853
    %v5919 = vsel %vm5784, %v5720, %v5855
    %v5920 = vsel %vm5785, %v5721, %v5856
    %v5921 = vsel %vm5786, %v5722, %v5857
    %v5922 = vsel %vm5787, %v5723, %v5858
    %v5923 = vsel %vm5788, %v5724, %v5859
    %v5924 = vsel %vm5789, %v5725, %v5860
    %v5925 = vsel %vm5790, %v5726, %v5861
    %v5926 = vsel %vm5791, %v5727, %v5862
    %v5927 = vsel %vm5792, %v5728, %v5863
    %v5928 = vsel %vm5793, %v5729, %v5864
    %v5929 = vsel %vm5794, %v5730, %v5865
    %v5930 = vsel %vm5795, %v5731, %v5866
    %v5931 = vsel %vm5796, %v5732, %v5867
    %v5932 = vsel %vm5797, %v5733, %v5868
    %v5933 = vsel %vm5798, %v5734, %v5869
    %v5934 = vsel %vm5799, %v5735, %v5870
    %v5935 = vsel %vm5800, %v5736, %v5871
    %v5936 = vsel %vm5801, %v5737, %v5872
    %v5937 = vsel %vm5802, %v5738, %v5873
    %v5938 = vsel %vm5803, %v5739, %v5874
    %v5939 = vsel %vm5804, %v5740, %v5875
    %v5940 = vsel %vm5805, %v5741, %v5876
    %v5941 = vsel %vm5806, %v5742, %v5877
    %v5942 = vsel %vm5807, %v5743, %v5878
    %v5943 = vsel %vm5808, %v5744, %v5879
    %v5944 = vsel %vm5809, %v5745, %v5880
    %v5945 = vsel %vm5810, %v5746, %v5881
    %v5946 = vsel %vm5811, %v5747, %v5882
    %v5947 = vsel %vm5812, %v5748, %v5883
    %v5948 = vsel %vm5813, %v5749, %v5884
    %v5949 = vsel %vm5814, %v5750, %v5885
    %v5950 = vsel %vm5815, %v5751, %v5886
    %v5951 = vsel %vm5816, %v5752, %v5887
    %v5952 = vsel %vm5817, %v5753, %v5888
    %v5953 = vsel %vm5818, %v5754, %v5889
    %v5954 = vsel %vm5819, %v5755, %v5890
    %v5955 = vsel %vm5820, %v5756, %v5891
    %v5956 = vsel %vm5821, %v5757, %v5892
    %v5957 = vsel %vm5822, %v5758, %v5893
    %v5958 = vsel %vm5823, %v5759, %v5894
    %v5959 = vsel %vm5824, %v5760, %v5895
    %v5960 = vsel %vm5825, %v5761, %v5896
    %v5961 = vsel %vm5826, %v5762, %v5897
    %v5962 = vsel %vm5827, %v5763, %v5898
    %v5963 = vsel %vm5828, %v5764, %v5899
    %v5964 = vsel %vm5829, %v5765, %v5900
    %v5965 = vsel %vm5830, %v5766, %v5901
    %v5966 = vsel %vm5831, %v5767, %v5902
    %v5967 = vsel %vm5832, %v5768, %v5903
    %v5968 = vsel %vm5833, %v5769, %v5904
    %v5969 = vsel %vm5834, %v5770, %v5905
    %v5970 = vsel %vm5835, %v5771, %v5906
    %v5971 = vsel %vm5836, %v5772, %v5907
    %v5972 = vsel %vm5837, %v5773, %v5908
    %v5973 = vsel %vm5838, %v5774, %v5909
    %v5974 = vsel %vm5839, %v5775, %v5910
    %v5975 = vsel %vm5840, %v5776, %v5911
    %v5976 = vsel %vm5841, %v5777, %v5912
    %v5977 = vsel %vm5842, %v5778, %v5913
    %v5978 = vsel %vm5843, %v5779, %v5914
    %v5979 = vsel %vm5844, %v5780, %v5915
    %v5980 = vsel %vm5845, %v5781, %v5916
    %v5981 = vsel %vm5846, %v5782, %v5917
    %v5982 = vsel %vm5847, %v5783, %v5918
    %vm5983 = vcmask 261120
    %5984 = vst.msk [vmem:[#allocation3] sm:$0xff] %vm5983, 0.0
    %5985 = vst.msk [vmem:[#allocation3 + $0x8] sm:$0xff] %vm5983, 0.0
    %vm5986 = vcmask 254976
    %5987 = vst.msk [vmem:[#allocation3 + $0x10] sm:$0x3] %vm5986, 0.0
    %5988 = vst.msk [vmem:[#allocation3 + $0x18] sm:$0xff] %vm5983, 0.0
    %5989 = vst.msk [vmem:[#allocation3 + $0x20] sm:$0xff] %vm5983, 0.0
    %5990 = vst.msk [vmem:[#allocation3 + $0x28] sm:$0x3] %vm5986, 0.0
    %5991 = vst.msk [vmem:[#allocation3 + $0x30] sm:$0xff] %vm5983, 0.0
    %5992 = vst.msk [vmem:[#allocation3 + $0x38] sm:$0xff] %vm5983, 0.0
    %5993 = vst.msk [vmem:[#allocation3 + $0x40] sm:$0x3] %vm5986, 0.0
    %5994 = vst.msk [vmem:[#allocation3 + $0x48] sm:$0xff] %vm5983, 0.0
    %5995 = vst.msk [vmem:[#allocation3 + $0x50] sm:$0xff] %vm5983, 0.0
    %5996 = vst.msk [vmem:[#allocation3 + $0x58] sm:$0x3] %vm5986, 0.0
    %5997 = vst.msk [vmem:[#allocation3 + $0x60] sm:$0xff] %vm5983, 0.0
    %5998 = vst.msk [vmem:[#allocation3 + $0x68] sm:$0xff] %vm5983, 0.0
    %5999 = vst.msk [vmem:[#allocation3 + $0x70] sm:$0x3] %vm5986, 0.0
    %6000 = vst.msk [vmem:[#allocation3 + $0x78] sm:$0xff] %vm5983, 0.0
    %6001 = vst.msk [vmem:[#allocation3 + $0x80] sm:$0xff] %vm5983, 0.0
    %6002 = vst.msk [vmem:[#allocation3 + $0x88] sm:$0x3] %vm5986, 0.0
    %6003 = vst.msk [vmem:[#allocation3 + $0x90] sm:$0xff] %vm5983, 0.0
    %6004 = vst.msk [vmem:[#allocation3 + $0x98] sm:$0xff] %vm5983, 0.0
    %6005 = vst.msk [vmem:[#allocation3 + $0xa0] sm:$0x3] %vm5986, 0.0
    %6006 = vst.msk [vmem:[#allocation3 + $0xa8] sm:$0xff] %vm5983, 0.0
    %6007 = vst.msk [vmem:[#allocation3 + $0xb0] sm:$0xff] %vm5983, 0.0
    %6008 = vst.msk [vmem:[#allocation3 + $0xb8] sm:$0x3] %vm5986, 0.0
    %6009 = vst.msk [vmem:[#allocation3 + $0xc0] sm:$0xff] %vm5983, 0.0
    %6010 = vst.msk [vmem:[#allocation3 + $0xc8] sm:$0xff] %vm5983, 0.0
    %6011 = vst.msk [vmem:[#allocation3 + $0xd0] sm:$0x3] %vm5986, 0.0
    %6012 = vst.msk [vmem:[#allocation3 + $0xd8] sm:$0xff] %vm5983, 0.0
    %6013 = vst.msk [vmem:[#allocation3 + $0xe0] sm:$0xff] %vm5983, 0.0
    %6014 = vst.msk [vmem:[#allocation3 + $0xe8] sm:$0x3] %vm5986, 0.0
    %6015 = vst.msk [vmem:[#allocation3 + $0xf0] sm:$0xff] %vm5983, 0.0
    %6016 = vst.msk [vmem:[#allocation3 + $0xf8] sm:$0xff] %vm5983, 0.0
    %6017 = vst.msk [vmem:[#allocation3 + $0x100] sm:$0x3] %vm5986, 0.0
    %6018 = vst.msk [vmem:[#allocation3 + $0x108] sm:$0xff] %vm5983, 0.0
    %6019 = vst.msk [vmem:[#allocation3 + $0x110] sm:$0xff] %vm5983, 0.0
    %6020 = vst.msk [vmem:[#allocation3 + $0x118] sm:$0x3] %vm5986, 0.0
    %6021 = vst.msk [vmem:[#allocation3 + $0x120] sm:$0xff] %vm5983, 0.0
    %6022 = vst.msk [vmem:[#allocation3 + $0x128] sm:$0xff] %vm5983, 0.0
    %6023 = vst.msk [vmem:[#allocation3 + $0x130] sm:$0x3] %vm5986, 0.0
    %6024 = vst.msk [vmem:[#allocation3 + $0x138] sm:$0xff] %vm5983, 0.0
    %6025 = vst.msk [vmem:[#allocation3 + $0x140] sm:$0xff] %vm5983, 0.0
    %6026 = vst.msk [vmem:[#allocation3 + $0x148] sm:$0x3] %vm5986, 0.0
    %6027 = vst.msk [vmem:[#allocation3 + $0x150] sm:$0xff] %vm5983, 0.0
    %6028 = vst.msk [vmem:[#allocation3 + $0x158] sm:$0xff] %vm5983, 0.0
    %6029 = vst.msk [vmem:[#allocation3 + $0x160] sm:$0x3] %vm5986, 0.0
    %6030 = vst.msk [vmem:[#allocation3 + $0x168] sm:$0xff] %vm5983, 0.0
    %6031 = vst.msk [vmem:[#allocation3 + $0x170] sm:$0xff] %vm5983, 0.0
    %6032 = vst.msk [vmem:[#allocation3 + $0x178] sm:$0x3] %vm5986, 0.0
    %6033 = vst.msk [vmem:[#allocation3 + $0x180] sm:$0xff] %vm5983, 0.0
    %6034 = vst.msk [vmem:[#allocation3 + $0x188] sm:$0xff] %vm5983, 0.0
    %6035 = vst.msk [vmem:[#allocation3 + $0x190] sm:$0x3] %vm5986, 0.0
    %6036 = vst.msk [vmem:[#allocation3 + $0x198] sm:$0xff] %vm5983, 0.0
    %6037 = vst.msk [vmem:[#allocation3 + $0x1a0] sm:$0xff] %vm5983, 0.0
    %6038 = vst.msk [vmem:[#allocation3 + $0x1a8] sm:$0x3] %vm5986, 0.0
    %6039 = vst.msk [vmem:[#allocation3 + $0x1b0] sm:$0xff] %vm5983, 0.0
    %6040 = vst.msk [vmem:[#allocation3 + $0x1b8] sm:$0xff] %vm5983, 0.0
    %6041 = vst.msk [vmem:[#allocation3 + $0x1c0] sm:$0x3] %vm5986, 0.0
    %6042 = vst.msk [vmem:[#allocation3 + $0x1c8] sm:$0xff] %vm5983, 0.0
    %6043 = vst.msk [vmem:[#allocation3 + $0x1d0] sm:$0xff] %vm5983, 0.0
    %6044 = vst.msk [vmem:[#allocation3 + $0x1d8] sm:$0x3] %vm5986, 0.0
    %6045 = vst.msk [vmem:[#allocation3 + $0x1e0] sm:$0xff] %vm5983, 0.0
    %6046 = vst.msk [vmem:[#allocation3 + $0x1e8] sm:$0xff] %vm5983, 0.0
    %6047 = vst.msk [vmem:[#allocation3 + $0x1f0] sm:$0x3] %vm5986, 0.0
    %6048 = vst.msk [vmem:[#allocation3 + $0x1f8] sm:$0xff] %vm5983, 0.0
    %6049 = vst.msk [vmem:[#allocation3 + $0x200] sm:$0xff] %vm5983, 0.0
    %6050 = vst.msk [vmem:[#allocation3 + $0x208] sm:$0x3] %vm5986, 0.0
    %6051 = vst.msk [vmem:[#allocation3 + $0x210] sm:$0xff] %vm5983, 0.0
    %6052 = vst.msk [vmem:[#allocation3 + $0x218] sm:$0xff] %vm5983, 0.0
    %6053 = vst.msk [vmem:[#allocation3 + $0x220] sm:$0x3] %vm5986, 0.0
    %6054 = vst.msk [vmem:[#allocation3 + $0x228] sm:$0xff] %vm5983, 0.0
    %6055 = vst.msk [vmem:[#allocation3 + $0x230] sm:$0xff] %vm5983, 0.0
    %6056 = vst.msk [vmem:[#allocation3 + $0x238] sm:$0x3] %vm5986, 0.0
    %6057 = vst.msk [vmem:[#allocation3 + $0x240] sm:$0xff] %vm5983, 0.0
    %6058 = vst.msk [vmem:[#allocation3 + $0x248] sm:$0xff] %vm5983, 0.0
    %6059 = vst.msk [vmem:[#allocation3 + $0x250] sm:$0x3] %vm5986, 0.0
    %6060 = vst.msk [vmem:[#allocation3 + $0x258] sm:$0xff] %vm5983, 0.0
    %6061 = vst.msk [vmem:[#allocation3 + $0x260] sm:$0xff] %vm5983, 0.0
    %6062 = vst.msk [vmem:[#allocation3 + $0x268] sm:$0x3] %vm5986, 0.0
    %6063 = vst.msk [vmem:[#allocation3 + $0x270] sm:$0xff] %vm5983, 0.0
    %6064 = vst.msk [vmem:[#allocation3 + $0x278] sm:$0xff] %vm5983, 0.0
    %6065 = vst.msk [vmem:[#allocation3 + $0x280] sm:$0x3] %vm5986, 0.0
    %6066 = vst.msk [vmem:[#allocation3 + $0x288] sm:$0xff] %vm5983, 0.0
    %6067 = vst.msk [vmem:[#allocation3 + $0x290] sm:$0xff] %vm5983, 0.0
    %6068 = vst.msk [vmem:[#allocation3 + $0x298] sm:$0x3] %vm5986, 0.0
    %6069 = vst.msk [vmem:[#allocation3 + $0x2a0] sm:$0xff] %vm5983, 0.0
    %6070 = vst.msk [vmem:[#allocation3 + $0x2a8] sm:$0xff] %vm5983, 0.0
    %6071 = vst.msk [vmem:[#allocation3 + $0x2b0] sm:$0x3] %vm5986, 0.0
    %6072 = vst.msk [vmem:[#allocation3 + $0x2b8] sm:$0xff] %vm5983, 0.0
    %6073 = vst.msk [vmem:[#allocation3 + $0x2c0] sm:$0xff] %vm5983, 0.0
    %6074 = vst.msk [vmem:[#allocation3 + $0x2c8] sm:$0x3] %vm5986, 0.0
    %6075 = vst.msk [vmem:[#allocation3 + $0x2d0] sm:$0xff] %vm5983, 0.0
    %6076 = vst.msk [vmem:[#allocation3 + $0x2d8] sm:$0xff] %vm5983, 0.0
    %6077 = vst.msk [vmem:[#allocation3 + $0x2e0] sm:$0x3] %vm5986, 0.0
    %6078 = vst.msk [vmem:[#allocation3 + $0x2e8] sm:$0xff] %vm5983, 0.0
    %6079 = vst.msk [vmem:[#allocation3 + $0x2f0] sm:$0xff] %vm5983, 0.0
    %6080 = vst.msk [vmem:[#allocation3 + $0x2f8] sm:$0x3] %vm5986, 0.0
    %6081 = vst.msk [vmem:[#allocation3 + $0x300] sm:$0xff] %vm5983, 0.0
    %6082 = vst.msk [vmem:[#allocation3 + $0x308] sm:$0xff] %vm5983, 0.0
    %6083 = vst.msk [vmem:[#allocation3 + $0x310] sm:$0x3] %vm5986, 0.0
    %6084 = vst.msk [vmem:[#allocation3 + $0x318] sm:$0xff] %vm5983, 0.0
    %6085 = vst.msk [vmem:[#allocation3 + $0x320] sm:$0xff] %vm5983, 0.0
    %6086 = vst.msk [vmem:[#allocation3 + $0x328] sm:$0x3] %vm5986, 0.0
    %6087 = vst.msk [vmem:[#allocation3 + $0x330] sm:$0xff] %vm5983, 0.0
    %6088 = vst.msk [vmem:[#allocation3 + $0x338] sm:$0xff] %vm5983, 0.0
    %6089 = vst.msk [vmem:[#allocation3 + $0x340] sm:$0x3] %vm5986, 0.0
    %6090 = vst.msk [vmem:[#allocation3 + $0x348] sm:$0xff] %vm5983, 0.0
    %6091 = vst.msk [vmem:[#allocation3 + $0x350] sm:$0xff] %vm5983, 0.0
    %6092 = vst.msk [vmem:[#allocation3 + $0x358] sm:$0x3] %vm5986, 0.0
    %s6093 = scalar_lea.vmem [#allocation3], 24
    %6094 = vst.msk [vmem:[%s6093 + $0x1] sm:$0xff] %vm5983, %v5919
    %6095 = vst.msk [vmem:[%s6093 + $0x9] sm:$0xff] %vm5983, %v5920
    %6096 = vst.msk [vmem:[%s6093 + $0x19] sm:$0xff] %vm5983, %v5921
    %6097 = vst.msk [vmem:[%s6093 + $0x21] sm:$0xff] %vm5983, %v5922
    %6098 = vst.msk [vmem:[%s6093 + $0x31] sm:$0xff] %vm5983, %v5923
    %6099 = vst.msk [vmem:[%s6093 + $0x39] sm:$0xff] %vm5983, %v5924
    %6100 = vst.msk [vmem:[%s6093 + $0x49] sm:$0xff] %vm5983, %v5925
    %6101 = vst.msk [vmem:[%s6093 + $0x51] sm:$0xff] %vm5983, %v5926
    %6102 = vst.msk [vmem:[%s6093 + $0x61] sm:$0xff] %vm5983, %v5927
    %6103 = vst.msk [vmem:[%s6093 + $0x69] sm:$0xff] %vm5983, %v5928
    %6104 = vst.msk [vmem:[%s6093 + $0x79] sm:$0xff] %vm5983, %v5929
    %6105 = vst.msk [vmem:[%s6093 + $0x81] sm:$0xff] %vm5983, %v5930
    %6106 = vst.msk [vmem:[%s6093 + $0x91] sm:$0xff] %vm5983, %v5931
    %6107 = vst.msk [vmem:[%s6093 + $0x99] sm:$0xff] %vm5983, %v5932
    %6108 = vst.msk [vmem:[%s6093 + $0xa9] sm:$0xff] %vm5983, %v5933
    %6109 = vst.msk [vmem:[%s6093 + $0xb1] sm:$0xff] %vm5983, %v5934
    %6110 = vst.msk [vmem:[%s6093 + $0xc1] sm:$0xff] %vm5983, %v5935
    %6111 = vst.msk [vmem:[%s6093 + $0xc9] sm:$0xff] %vm5983, %v5936
    %6112 = vst.msk [vmem:[%s6093 + $0xd9] sm:$0xff] %vm5983, %v5937
    %6113 = vst.msk [vmem:[%s6093 + $0xe1] sm:$0xff] %vm5983, %v5938
    %6114 = vst.msk [vmem:[%s6093 + $0xf1] sm:$0xff] %vm5983, %v5939
    %6115 = vst.msk [vmem:[%s6093 + $0xf9] sm:$0xff] %vm5983, %v5940
    %6116 = vst.msk [vmem:[%s6093 + $0x109] sm:$0xff] %vm5983, %v5941
    %6117 = vst.msk [vmem:[%s6093 + $0x111] sm:$0xff] %vm5983, %v5942
    %6118 = vst.msk [vmem:[%s6093 + $0x121] sm:$0xff] %vm5983, %v5943
    %6119 = vst.msk [vmem:[%s6093 + $0x129] sm:$0xff] %vm5983, %v5944
    %6120 = vst.msk [vmem:[%s6093 + $0x139] sm:$0xff] %vm5983, %v5945
    %6121 = vst.msk [vmem:[%s6093 + $0x141] sm:$0xff] %vm5983, %v5946
    %6122 = vst.msk [vmem:[%s6093 + $0x151] sm:$0xff] %vm5983, %v5947
    %6123 = vst.msk [vmem:[%s6093 + $0x159] sm:$0xff] %vm5983, %v5948
    %6124 = vst.msk [vmem:[%s6093 + $0x169] sm:$0xff] %vm5983, %v5949
    %6125 = vst.msk [vmem:[%s6093 + $0x171] sm:$0xff] %vm5983, %v5950
    %6126 = vst.msk [vmem:[%s6093 + $0x1b1] sm:$0xff] %vm5983, %v5951
    %6127 = vst.msk [vmem:[%s6093 + $0x1b9] sm:$0xff] %vm5983, %v5952
    %6128 = vst.msk [vmem:[%s6093 + $0x1c9] sm:$0xff] %vm5983, %v5953
    %6129 = vst.msk [vmem:[%s6093 + $0x1d1] sm:$0xff] %vm5983, %v5954
    %6130 = vst.msk [vmem:[%s6093 + $0x1e1] sm:$0xff] %vm5983, %v5955
    %6131 = vst.msk [vmem:[%s6093 + $0x1e9] sm:$0xff] %vm5983, %v5956
    %6132 = vst.msk [vmem:[%s6093 + $0x1f9] sm:$0xff] %vm5983, %v5957
    %6133 = vst.msk [vmem:[%s6093 + $0x201] sm:$0xff] %vm5983, %v5958
    %6134 = vst.msk [vmem:[%s6093 + $0x211] sm:$0xff] %vm5983, %v5959
    %6135 = vst.msk [vmem:[%s6093 + $0x219] sm:$0xff] %vm5983, %v5960
    %6136 = vst.msk [vmem:[%s6093 + $0x229] sm:$0xff] %vm5983, %v5961
    %6137 = vst.msk [vmem:[%s6093 + $0x231] sm:$0xff] %vm5983, %v5962
    %6138 = vst.msk [vmem:[%s6093 + $0x241] sm:$0xff] %vm5983, %v5963
    %6139 = vst.msk [vmem:[%s6093 + $0x249] sm:$0xff] %vm5983, %v5964
    %6140 = vst.msk [vmem:[%s6093 + $0x259] sm:$0xff] %vm5983, %v5965
    %6141 = vst.msk [vmem:[%s6093 + $0x261] sm:$0xff] %vm5983, %v5966
    %6142 = vst.msk [vmem:[%s6093 + $0x271] sm:$0xff] %vm5983, %v5967
    %6143 = vst.msk [vmem:[%s6093 + $0x279] sm:$0xff] %vm5983, %v5968
    %6144 = vst.msk [vmem:[%s6093 + $0x289] sm:$0xff] %vm5983, %v5969
    %6145 = vst.msk [vmem:[%s6093 + $0x291] sm:$0xff] %vm5983, %v5970
    %6146 = vst.msk [vmem:[%s6093 + $0x2a1] sm:$0xff] %vm5983, %v5971
    %6147 = vst.msk [vmem:[%s6093 + $0x2a9] sm:$0xff] %vm5983, %v5972
    %6148 = vst.msk [vmem:[%s6093 + $0x2b9] sm:$0xff] %vm5983, %v5973
    %6149 = vst.msk [vmem:[%s6093 + $0x2c1] sm:$0xff] %vm5983, %v5974
    %6150 = vst.msk [vmem:[%s6093 + $0x2d1] sm:$0xff] %vm5983, %v5975
    %6151 = vst.msk [vmem:[%s6093 + $0x2d9] sm:$0xff] %vm5983, %v5976
    %6152 = vst.msk [vmem:[%s6093 + $0x2e9] sm:$0xff] %vm5983, %v5977
    %6153 = vst.msk [vmem:[%s6093 + $0x2f1] sm:$0xff] %vm5983, %v5978
    %6154 = vst.msk [vmem:[%s6093 + $0x301] sm:$0xff] %vm5983, %v5979
    %6155 = vst.msk [vmem:[%s6093 + $0x309] sm:$0xff] %vm5983, %v5980
    %6156 = vst.msk [vmem:[%s6093 + $0x319] sm:$0xff] %vm5983, %v5981
    %6157 = vst.msk [vmem:[%s6093 + $0x321] sm:$0xff] %vm5983, %v5982
    %v6158 = vld [vmem:[#allocation3] ss:$2 sm:$0xff]
    %s6159 = scalar_lea.vmem [#allocation3], 48
    %v6160 = vld [vmem:[%s6159] ss:$2 sm:$0xff]
    %s6161 = scalar_lea.vmem [#allocation3], 96
    %v6162 = vld [vmem:[%s6161] ss:$2 sm:$0xff]
    %s6163 = scalar_lea.vmem [#allocation3], 144
    %v6164 = vld [vmem:[%s6163] ss:$2 sm:$0xff]
    %s6165 = scalar_lea.vmem [#allocation3], 192
    %v6166 = vld [vmem:[%s6165] ss:$2 sm:$0xff]
    %s6167 = scalar_lea.vmem [#allocation3], 240
    %v6168 = vld [vmem:[%s6167] ss:$2 sm:$0xff]
    %s6169 = scalar_lea.vmem [#allocation3], 288
    %v6170 = vld [vmem:[%s6169] ss:$2 sm:$0xff]
    %s6171 = scalar_lea.vmem [#allocation3], 336
    %v6172 = vld [vmem:[%s6171] ss:$2 sm:$0xff]
    %s6173 = scalar_lea.vmem [#allocation3], 432
    %v6174 = vld [vmem:[%s6173] ss:$2 sm:$0xff]
    %s6175 = scalar_lea.vmem [#allocation3], 480
    %v6176 = vld [vmem:[%s6175] ss:$2 sm:$0xff]
    %s6177 = scalar_lea.vmem [#allocation3], 528
    %v6178 = vld [vmem:[%s6177] ss:$2 sm:$0xff]
    %s6179 = scalar_lea.vmem [#allocation3], 576
    %v6180 = vld [vmem:[%s6179] ss:$2 sm:$0xff]
    %s6181 = scalar_lea.vmem [#allocation3], 624
    %v6182 = vld [vmem:[%s6181] ss:$2 sm:$0xff]
    %s6183 = scalar_lea.vmem [#allocation3], 672
    %v6184 = vld [vmem:[%s6183] ss:$2 sm:$0xff]
    %s6185 = scalar_lea.vmem [#allocation3], 720
    %v6186 = vld [vmem:[%s6185] ss:$2 sm:$0xff]
    %s6187 = scalar_lea.vmem [#allocation3], 768
    %v6188 = vld [vmem:[%s6187] ss:$2 sm:$0xff]
    %v6189 = vpack.c.bf16 %v6160, %v6158
    %v6190 = vpack.c.bf16 %v6164, %v6162
    %v6191 = vpack.c.bf16 %v6168, %v6166
    %v6192 = vpack.c.bf16 %v6172, %v6170
    %v6193 = vpack.c.bf16 %v6176, %v6174
    %v6194 = vpack.c.bf16 %v6180, %v6178
    %v6195 = vpack.c.bf16 %v6184, %v6182
    %v6196 = vpack.c.bf16 %v6188, %v6186
    %v6197 = vld [vmem:[#allocation9] sm:$0xf]
    %v6198 = vld [vmem:[#allocation9 + $0x4] sm:$0xf]
    %v6199 = vld [vmem:[#allocation9 + $0x8] sm:$0xf]
    %v6200 = vld [vmem:[#allocation9 + $0xc] sm:$0xf]
    %s6201 = scalar_lea.vmem [#allocation3], 1
    %v6202 = vld [vmem:[%s6201] ss:$2 sm:$0xff]
    %s6203 = scalar_lea.vmem [#allocation3], 49
    %v6204 = vld [vmem:[%s6203] ss:$2 sm:$0xff]
    %s6205 = scalar_lea.vmem [#allocation3], 97
    %v6206 = vld [vmem:[%s6205] ss:$2 sm:$0xff]
    %s6207 = scalar_lea.vmem [#allocation3], 145
    %v6208 = vld [vmem:[%s6207] ss:$2 sm:$0xff]
    %s6209 = scalar_lea.vmem [#allocation3], 193
    %v6210 = vld [vmem:[%s6209] ss:$2 sm:$0xff]
    %s6211 = scalar_lea.vmem [#allocation3], 241
    %v6212 = vld [vmem:[%s6211] ss:$2 sm:$0xff]
    %s6213 = scalar_lea.vmem [#allocation3], 289
    %v6214 = vld [vmem:[%s6213] ss:$2 sm:$0xff]
    %s6215 = scalar_lea.vmem [#allocation3], 337
    %v6216 = vld [vmem:[%s6215] ss:$2 sm:$0xff]
    %s6217 = scalar_lea.vmem [#allocation3], 433
    %v6218 = vld [vmem:[%s6217] ss:$2 sm:$0xff]
    %s6219 = scalar_lea.vmem [#allocation3], 481
    %v6220 = vld [vmem:[%s6219] ss:$2 sm:$0xff]
    %s6221 = scalar_lea.vmem [#allocation3], 529
    %v6222 = vld [vmem:[%s6221] ss:$2 sm:$0xff]
    %s6223 = scalar_lea.vmem [#allocation3], 577
    %v6224 = vld [vmem:[%s6223] ss:$2 sm:$0xff]
    %s6225 = scalar_lea.vmem [#allocation3], 625
    %v6226 = vld [vmem:[%s6225] ss:$2 sm:$0xff]
    %s6227 = scalar_lea.vmem [#allocation3], 673
    %v6228 = vld [vmem:[%s6227] ss:$2 sm:$0xff]
    %s6229 = scalar_lea.vmem [#allocation3], 721
    %v6230 = vld [vmem:[%s6229] ss:$2 sm:$0xff]
    %s6231 = scalar_lea.vmem [#allocation3], 769
    %v6232 = vld [vmem:[%s6231] ss:$2 sm:$0xff]
    %v6233 = vpack.c.bf16 %v6204, %v6202
    %v6234 = vpack.c.bf16 %v6208, %v6206
    %v6235 = vpack.c.bf16 %v6212, %v6210
    %v6236 = vpack.c.bf16 %v6216, %v6214
    %v6237 = vpack.c.bf16 %v6220, %v6218
    %v6238 = vpack.c.bf16 %v6224, %v6222
    %v6239 = vpack.c.bf16 %v6228, %v6226
    %v6240 = vpack.c.bf16 %v6232, %v6230
    %s6241 = scalar_lea.vmem [#allocation9], 16
    %v6242 = vld [vmem:[%s6241] sm:$0xf]
    %v6243 = vld [vmem:[%s6241 + $0x4] sm:$0xf]
    %v6244 = vld [vmem:[%s6241 + $0x8] sm:$0xf]
    %v6245 = vld [vmem:[%s6241 + $0xc] sm:$0xf]
    %v6250 = vunpack.c.l.b16 %v6242
    %v6251 = vunpack.c.l.b16 %v6243
    %v6252 = vunpack.c.l.b16 %v6244
    %v6253 = vunpack.c.l.b16 %v6245
    %v6254 = vpack.c.b16 %v6251, %v6250
    %v6255 = vpack.c.b16 %v6253, %v6252
    %v6259 = vsel %vm5983, %v6233, 0
    %v6262 = vsel %vm5983, %v6234, 0
    %v6265 = vsel %vm5983, %v6235, 0
    %v6268 = vsel %vm5983, %v6236, 0
    %v6271 = vsel %vm5983, %v6237, 0
    %v6274 = vsel %vm5983, %v6238, 0
    %v6277 = vsel %vm5983, %v6239, 0
    %v6280 = vsel %vm5983, %v6240, 0
    %6282 = vmatprep.subr.bf16.mxu0 0
    %6283 = vmatpush1.bf16.msra.mxu0 %v6254
    %6284 = vmatprep.subr.bf16.mxu0 0
    %6285 = vmatpush1.bf16.msra.mxu0 %v6255
    %6286 = vmatprep.subr.bf16.mxu0 0
    %6287 = vmatpush1.bf16.msra.mxu0 0
    %6288 = vmatprep.subr.bf16.mxu0 0
    %6289 = vmatpush1.bf16.msra.mxu0 0
    %6290 = vmatprep.subr.bf16.mxu0 0
    %6291 = vmatpush1.bf16.msra.mxu0 0
    %6292 = vmatprep.subr.bf16.mxu0 0
    %6293 = vmatpush1.bf16.msra.mxu0 0
    %6294 = vmatprep.subr.bf16.mxu0 0
    %6295 = vmatpush1.bf16.msra.mxu0 0
    %6296 = vmatprep.subr.bf16.mxu0 0
    %6297 = vmatpush1.bf16.msra.mxu0 0
    %6298 = vmatprep.subr.bf16.mxu0 0
    %6299 = vmatpush1.bf16.msra.mxu0 0
    %6300 = vmatprep.subr.bf16.mxu0 0
    %6301 = vmatpush1.bf16.msra.mxu0 0
    %6302 = vmatprep.subr.bf16.mxu0 0
    %6303 = vmatpush1.bf16.msra.mxu0 0
    %6304 = vmatprep.subr.bf16.mxu0 0
    %6305 = vmatpush1.bf16.msra.mxu0 0
    %6306 = vmatprep.subr.bf16.mxu0 0
    %6307 = vmatpush1.bf16.msra.mxu0 0
    %6308 = vmatprep.subr.bf16.mxu0 0
    %6309 = vmatpush1.bf16.msra.mxu0 0
    %6310 = vmatprep.subr.bf16.mxu0 0
    %6311 = vmatpush1.bf16.msra.mxu0 0
    %6312 = vmatprep.subr.bf16.mxu0 0
    %6313 = vmatpush1.bf16.msra.mxu0 0
    %6314 = vmatprep.mubr.bf16.mxu0 0
    %6315 = vmatmul.mubr.bf16.gmra.mrb[0].mxu0 %v6259
    %v6316 = vpop.f32.mrb[0].mxu0
    %v6317 = vadd.f32 0.0, %v6316
    %v6318 = vpop.f32.mrb[0].mxu0
    %v6319 = vpop.f32.mrb[0].mxu0
    %v6320 = vadd.f32 0.0, %v6319
    %v6321 = vpop.f32.mrb[0].mxu0
    %6322 = vmatprep.mubr.bf16.mxu0 0
    %6323 = vmatmul.mubr.bf16.gmra.mrb[0].mxu0 %v6262
    %v6324 = vpop.f32.mrb[0].mxu0
    %v6325 = vadd.f32 0.0, %v6324
    %v6326 = vpop.f32.mrb[0].mxu0
    %v6327 = vpop.f32.mrb[0].mxu0
    %v6328 = vadd.f32 0.0, %v6327
    %v6329 = vpop.f32.mrb[0].mxu0
    %6330 = vmatprep.mubr.bf16.mxu0 0
    %6331 = vmatmul.mubr.bf16.gmra.mrb[0].mxu0 %v6265
    %v6332 = vpop.f32.mrb[0].mxu0
    %v6333 = vadd.f32 0.0, %v6332
    %v6334 = vpop.f32.mrb[0].mxu0
    %v6335 = vpop.f32.mrb[0].mxu0
    %v6336 = vadd.f32 0.0, %v6335
    %v6337 = vpop.f32.mrb[0].mxu0
    %6338 = vmatprep.mubr.bf16.mxu0 0
    %6339 = vmatmul.mubr.bf16.gmra.mrb[0].mxu0 %v6268
    %v6340 = vpop.f32.mrb[0].mxu0
    %v6341 = vadd.f32 0.0, %v6340
    %v6342 = vpop.f32.mrb[0].mxu0
    %v6343 = vpop.f32.mrb[0].mxu0
    %v6344 = vadd.f32 0.0, %v6343
    %v6345 = vpop.f32.mrb[0].mxu0
    %6346 = vmatprep.mubr.bf16.mxu0 0
    %6347 = vmatmul.mubr.bf16.gmra.mrb[0].mxu0 %v6271
    %v6348 = vpop.f32.mrb[0].mxu0
    %v6349 = vadd.f32 0.0, %v6348
    %v6350 = vpop.f32.mrb[0].mxu0
    %v6351 = vpop.f32.mrb[0].mxu0
    %v6352 = vadd.f32 0.0, %v6351
    %v6353 = vpop.f32.mrb[0].mxu0
    %6354 = vmatprep.mubr.bf16.mxu0 0
    %6355 = vmatmul.mubr.bf16.gmra.mrb[0].mxu0 %v6274
    %v6356 = vpop.f32.mrb[0].mxu0
    %v6357 = vadd.f32 0.0, %v6356
    %v6358 = vpop.f32.mrb[0].mxu0
    %v6359 = vpop.f32.mrb[0].mxu0
    %v6360 = vadd.f32 0.0, %v6359
    %v6361 = vpop.f32.mrb[0].mxu0
    %6362 = vmatprep.mubr.bf16.mxu0 0
    %6363 = vmatmul.mubr.bf16.gmra.mrb[0].mxu0 %v6277
    %v6364 = vpop.f32.mrb[0].mxu0
    %v6365 = vadd.f32 0.0, %v6364
    %v6366 = vpop.f32.mrb[0].mxu0
    %v6367 = vpop.f32.mrb[0].mxu0
    %v6368 = vadd.f32 0.0, %v6367
    %v6369 = vpop.f32.mrb[0].mxu0
    %6370 = vmatprep.mubr.bf16.mxu0 0
    %6371 = vmatmul.mubr.bf16.gmra.mrb[0].mxu0 %v6280
    %v6372 = vpop.f32.mrb[0].mxu0
    %v6373 = vadd.f32 0.0, %v6372
    %v6374 = vpop.f32.mrb[0].mxu0
    %v6375 = vpop.f32.mrb[0].mxu0
    %v6376 = vadd.f32 0.0, %v6375
    %v6377 = vpop.f32.mrb[0].mxu0
    %6378 = vdwg.mxu0
    %v6383 = vunpack.c.l.b16 %v6197
    %v6384 = vunpack.c.l.b16 %v6198
    %v6385 = vunpack.c.l.b16 %v6199
    %v6386 = vunpack.c.l.b16 %v6200
    %v6387 = vpack.c.b16 %v6384, %v6383
    %v6388 = vpack.c.b16 %v6386, %v6385
    %v6392 = vsel %vm5983, %v6189, 0
    %v6395 = vsel %vm5983, %v6190, 0
    %v6398 = vsel %vm5983, %v6191, 0
    %v6401 = vsel %vm5983, %v6192, 0
    %v6404 = vsel %vm5983, %v6193, 0
    %v6407 = vsel %vm5983, %v6194, 0
    %v6410 = vsel %vm5983, %v6195, 0
    %v6413 = vsel %vm5983, %v6196, 0
    %6415 = vmatprep.subr.bf16.mxu0 0
    %6416 = vmatpush1.bf16.msra.mxu0 %v6387
    %6417 = vmatprep.subr.bf16.mxu0 0
    %6418 = vmatpush1.bf16.msra.mxu0 %v6388
    %6419 = vmatprep.subr.bf16.mxu0 0
    %6420 = vmatpush1.bf16.msra.mxu0 0
    %6421 = vmatprep.subr.bf16.mxu0 0
    %6422 = vmatpush1.bf16.msra.mxu0 0
    %6423 = vmatprep.subr.bf16.mxu0 0
    %6424 = vmatpush1.bf16.msra.mxu0 0
    %6425 = vmatprep.subr.bf16.mxu0 0
    %6426 = vmatpush1.bf16.msra.mxu0 0
    %6427 = vmatprep.subr.bf16.mxu0 0
    %6428 = vmatpush1.bf16.msra.mxu0 0
    %6429 = vmatprep.subr.bf16.mxu0 0
    %6430 = vmatpush1.bf16.msra.mxu0 0
    %6431 = vmatprep.subr.bf16.mxu0 0
    %6432 = vmatpush1.bf16.msra.mxu0 0
    %6433 = vmatprep.subr.bf16.mxu0 0
    %6434 = vmatpush1.bf16.msra.mxu0 0
    %6435 = vmatprep.subr.bf16.mxu0 0
    %6436 = vmatpush1.bf16.msra.mxu0 0
    %6437 = vmatprep.subr.bf16.mxu0 0
    %6438 = vmatpush1.bf16.msra.mxu0 0
    %6439 = vmatprep.subr.bf16.mxu0 0
    %6440 = vmatpush1.bf16.msra.mxu0 0
    %6441 = vmatprep.subr.bf16.mxu0 0
    %6442 = vmatpush1.bf16.msra.mxu0 0
    %6443 = vmatprep.subr.bf16.mxu0 0
    %6444 = vmatpush1.bf16.msra.mxu0 0
    %6445 = vmatprep.subr.bf16.mxu0 0
    %6446 = vmatpush1.bf16.msra.mxu0 0
    %6447 = vmatprep.mubr.bf16.mxu0 0
    %6448 = vmatmul.mubr.bf16.gmra.mrb[0].mxu0 %v6392
    %v6449 = vpop.f32.mrb[0].mxu0
    %v6450 = vadd.f32 %v6317, %v6449
    %v6451 = vpop.f32.mrb[0].mxu0
    %v6452 = vpop.f32.mrb[0].mxu0
    %v6453 = vadd.f32 %v6320, %v6452
    %v6454 = vpop.f32.mrb[0].mxu0
    %6455 = vmatprep.mubr.bf16.mxu0 0
    %6456 = vmatmul.mubr.bf16.gmra.mrb[0].mxu0 %v6395
    %v6457 = vpop.f32.mrb[0].mxu0
    %v6458 = vadd.f32 %v6325, %v6457
    %v6459 = vpop.f32.mrb[0].mxu0
    %v6460 = vpop.f32.mrb[0].mxu0
    %v6461 = vadd.f32 %v6328, %v6460
    %v6462 = vpop.f32.mrb[0].mxu0
    %6463 = vmatprep.mubr.bf16.mxu0 0
    %6464 = vmatmul.mubr.bf16.gmra.mrb[0].mxu0 %v6398
    %v6465 = vpop.f32.mrb[0].mxu0
    %v6466 = vadd.f32 %v6333, %v6465
    %v6467 = vpop.f32.mrb[0].mxu0
    %v6468 = vpop.f32.mrb[0].mxu0
    %v6469 = vadd.f32 %v6336, %v6468
    %v6470 = vpop.f32.mrb[0].mxu0
    %6471 = vmatprep.mubr.bf16.mxu0 0
    %6472 = vmatmul.mubr.bf16.gmra.mrb[0].mxu0 %v6401
    %v6473 = vpop.f32.mrb[0].mxu0
    %v6474 = vadd.f32 %v6341, %v6473
    %v6475 = vpop.f32.mrb[0].mxu0
    %v6476 = vpop.f32.mrb[0].mxu0
    %v6477 = vadd.f32 %v6344, %v6476
    %v6478 = vpop.f32.mrb[0].mxu0
    %6479 = vmatprep.mubr.bf16.mxu0 0
    %6480 = vmatmul.mubr.bf16.gmra.mrb[0].mxu0 %v6404
    %v6481 = vpop.f32.mrb[0].mxu0
    %v6482 = vadd.f32 %v6349, %v6481
    %v6483 = vpop.f32.mrb[0].mxu0
    %v6484 = vpop.f32.mrb[0].mxu0
    %v6485 = vadd.f32 %v6352, %v6484
    %v6486 = vpop.f32.mrb[0].mxu0
    %6487 = vmatprep.mubr.bf16.mxu0 0
    %6488 = vmatmul.mubr.bf16.gmra.mrb[0].mxu0 %v6407
    %v6489 = vpop.f32.mrb[0].mxu0
    %v6490 = vadd.f32 %v6357, %v6489
    %v6491 = vpop.f32.mrb[0].mxu0
    %v6492 = vpop.f32.mrb[0].mxu0
    %v6493 = vadd.f32 %v6360, %v6492
    %v6494 = vpop.f32.mrb[0].mxu0
    %6495 = vmatprep.mubr.bf16.mxu0 0
    %6496 = vmatmul.mubr.bf16.gmra.mrb[0].mxu0 %v6410
    %v6497 = vpop.f32.mrb[0].mxu0
    %v6498 = vadd.f32 %v6365, %v6497
    %v6499 = vpop.f32.mrb[0].mxu0
    %v6500 = vpop.f32.mrb[0].mxu0
    %v6501 = vadd.f32 %v6368, %v6500
    %v6502 = vpop.f32.mrb[0].mxu0
    %6503 = vmatprep.mubr.bf16.mxu0 0
    %6504 = vmatmul.mubr.bf16.gmra.mrb[0].mxu0 %v6413
    %v6505 = vpop.f32.mrb[0].mxu0
    %v6506 = vadd.f32 %v6373, %v6505
    %v6507 = vpop.f32.mrb[0].mxu0
    %v6508 = vpop.f32.mrb[0].mxu0
    %v6509 = vadd.f32 %v6376, %v6508
    %v6510 = vpop.f32.mrb[0].mxu0
    %6511 = vdwg.mxu0
    %s6512 = scalar_lea.vmem [#allocation3], 2
    %v6513 = vld [vmem:[%s6512] ss:$2 sm:$0xff]
    %s6514 = scalar_lea.vmem [#allocation3], 50
    %v6515 = vld [vmem:[%s6514] ss:$2 sm:$0xff]
    %s6516 = scalar_lea.vmem [#allocation3], 98
    %v6517 = vld [vmem:[%s6516] ss:$2 sm:$0xff]
    %s6518 = scalar_lea.vmem [#allocation3], 146
    %v6519 = vld [vmem:[%s6518] ss:$2 sm:$0xff]
    %s6520 = scalar_lea.vmem [#allocation3], 194
    %v6521 = vld [vmem:[%s6520] ss:$2 sm:$0xff]
    %s6522 = scalar_lea.vmem [#allocation3], 242
    %v6523 = vld [vmem:[%s6522] ss:$2 sm:$0xff]
    %s6524 = scalar_lea.vmem [#allocation3], 290
    %v6525 = vld [vmem:[%s6524] ss:$2 sm:$0xff]
    %s6526 = scalar_lea.vmem [#allocation3], 338
    %v6527 = vld [vmem:[%s6526] ss:$2 sm:$0xff]
    %s6528 = scalar_lea.vmem [#allocation3], 434
    %v6529 = vld [vmem:[%s6528] ss:$2 sm:$0xff]
    %s6530 = scalar_lea.vmem [#allocation3], 482
    %v6531 = vld [vmem:[%s6530] ss:$2 sm:$0xff]
    %s6532 = scalar_lea.vmem [#allocation3], 530
    %v6533 = vld [vmem:[%s6532] ss:$2 sm:$0xff]
    %s6534 = scalar_lea.vmem [#allocation3], 578
    %v6535 = vld [vmem:[%s6534] ss:$2 sm:$0xff]
    %s6536 = scalar_lea.vmem [#allocation3], 626
    %v6537 = vld [vmem:[%s6536] ss:$2 sm:$0xff]
    %s6538 = scalar_lea.vmem [#allocation3], 674
    %v6539 = vld [vmem:[%s6538] ss:$2 sm:$0xff]
    %s6540 = scalar_lea.vmem [#allocation3], 722
    %v6541 = vld [vmem:[%s6540] ss:$2 sm:$0xff]
    %s6542 = scalar_lea.vmem [#allocation3], 770
    %v6543 = vld [vmem:[%s6542] ss:$2 sm:$0xff]
    %v6544 = vpack.c.bf16 %v6515, %v6513
    %v6545 = vpack.c.bf16 %v6519, %v6517
    %v6546 = vpack.c.bf16 %v6523, %v6521
    %v6547 = vpack.c.bf16 %v6527, %v6525
    %v6548 = vpack.c.bf16 %v6531, %v6529
    %v6549 = vpack.c.bf16 %v6535, %v6533
    %v6550 = vpack.c.bf16 %v6539, %v6537
    %v6551 = vpack.c.bf16 %v6543, %v6541
    %s6552 = scalar_lea.vmem [#allocation9], 32
    %v6553 = vld [vmem:[%s6552] sm:$0xf]
    %v6554 = vld [vmem:[%s6552 + $0x4] sm:$0xf]
    %v6555 = vld [vmem:[%s6552 + $0x8] sm:$0xf]
    %v6556 = vld [vmem:[%s6552 + $0xc] sm:$0xf]
    %v6561 = vunpack.c.l.b16 %v6553
    %v6562 = vunpack.c.l.b16 %v6554
    %v6563 = vunpack.c.l.b16 %v6555
    %v6564 = vunpack.c.l.b16 %v6556
    %v6565 = vpack.c.b16 %v6562, %v6561
    %v6566 = vpack.c.b16 %v6564, %v6563
    %v6570 = vsel %vm5983, %v6544, 0
    %v6573 = vsel %vm5983, %v6545, 0
    %v6576 = vsel %vm5983, %v6546, 0
    %v6579 = vsel %vm5983, %v6547, 0
    %v6582 = vsel %vm5983, %v6548, 0
    %v6585 = vsel %vm5983, %v6549, 0
    %v6588 = vsel %vm5983, %v6550, 0
    %v6591 = vsel %vm5983, %v6551, 0
    %6593 = vmatprep.subr.bf16.mxu0 0
    %6594 = vmatpush1.bf16.msra.mxu0 %v6565
    %6595 = vmatprep.subr.bf16.mxu0 0
    %6596 = vmatpush1.bf16.msra.mxu0 %v6566
    %6597 = vmatprep.subr.bf16.mxu0 0
    %6598 = vmatpush1.bf16.msra.mxu0 0
    %6599 = vmatprep.subr.bf16.mxu0 0
    %6600 = vmatpush1.bf16.msra.mxu0 0
    %6601 = vmatprep.subr.bf16.mxu0 0
    %6602 = vmatpush1.bf16.msra.mxu0 0
    %6603 = vmatprep.subr.bf16.mxu0 0
    %6604 = vmatpush1.bf16.msra.mxu0 0
    %6605 = vmatprep.subr.bf16.mxu0 0
    %6606 = vmatpush1.bf16.msra.mxu0 0
    %6607 = vmatprep.subr.bf16.mxu0 0
    %6608 = vmatpush1.bf16.msra.mxu0 0
    %6609 = vmatprep.subr.bf16.mxu0 0
    %6610 = vmatpush1.bf16.msra.mxu0 0
    %6611 = vmatprep.subr.bf16.mxu0 0
    %6612 = vmatpush1.bf16.msra.mxu0 0
    %6613 = vmatprep.subr.bf16.mxu0 0
    %6614 = vmatpush1.bf16.msra.mxu0 0
    %6615 = vmatprep.subr.bf16.mxu0 0
    %6616 = vmatpush1.bf16.msra.mxu0 0
    %6617 = vmatprep.subr.bf16.mxu0 0
    %6618 = vmatpush1.bf16.msra.mxu0 0
    %6619 = vmatprep.subr.bf16.mxu0 0
    %6620 = vmatpush1.bf16.msra.mxu0 0
    %6621 = vmatprep.subr.bf16.mxu0 0
    %6622 = vmatpush1.bf16.msra.mxu0 0
    %6623 = vmatprep.subr.bf16.mxu0 0
    %6624 = vmatpush1.bf16.msra.mxu0 0
    %6625 = vmatprep.mubr.bf16.mxu0 0
    %6626 = vmatmul.mubr.bf16.gmra.mrb[0].mxu0 %v6570
    %v6627 = vpop.f32.mrb[0].mxu0
    %v6628 = vadd.f32 0.0, %v6627
    %v6629 = vpop.f32.mrb[0].mxu0
    %v6630 = vpop.f32.mrb[0].mxu0
    %v6631 = vadd.f32 0.0, %v6630
    %v6632 = vpop.f32.mrb[0].mxu0
    %6633 = vmatprep.mubr.bf16.mxu0 0
    %6634 = vmatmul.mubr.bf16.gmra.mrb[0].mxu0 %v6573
    %v6635 = vpop.f32.mrb[0].mxu0
    %v6636 = vadd.f32 0.0, %v6635
    %v6637 = vpop.f32.mrb[0].mxu0
    %v6638 = vpop.f32.mrb[0].mxu0
    %v6639 = vadd.f32 0.0, %v6638
    %v6640 = vpop.f32.mrb[0].mxu0
    %6641 = vmatprep.mubr.bf16.mxu0 0
    %6642 = vmatmul.mubr.bf16.gmra.mrb[0].mxu0 %v6576
    %v6643 = vpop.f32.mrb[0].mxu0
    %v6644 = vadd.f32 0.0, %v6643
    %v6645 = vpop.f32.mrb[0].mxu0
    %v6646 = vpop.f32.mrb[0].mxu0
    %v6647 = vadd.f32 0.0, %v6646
    %v6648 = vpop.f32.mrb[0].mxu0
    %6649 = vmatprep.mubr.bf16.mxu0 0
    %6650 = vmatmul.mubr.bf16.gmra.mrb[0].mxu0 %v6579
    %v6651 = vpop.f32.mrb[0].mxu0
    %v6652 = vadd.f32 0.0, %v6651
    %v6653 = vpop.f32.mrb[0].mxu0
    %v6654 = vpop.f32.mrb[0].mxu0
    %v6655 = vadd.f32 0.0, %v6654
    %v6656 = vpop.f32.mrb[0].mxu0
    %6657 = vmatprep.mubr.bf16.mxu0 0
    %6658 = vmatmul.mubr.bf16.gmra.mrb[0].mxu0 %v6582
    %v6659 = vpop.f32.mrb[0].mxu0
    %v6660 = vadd.f32 0.0, %v6659
    %v6661 = vpop.f32.mrb[0].mxu0
    %v6662 = vpop.f32.mrb[0].mxu0
    %v6663 = vadd.f32 0.0, %v6662
    %v6664 = vpop.f32.mrb[0].mxu0
    %6665 = vmatprep.mubr.bf16.mxu0 0
    %6666 = vmatmul.mubr.bf16.gmra.mrb[0].mxu0 %v6585
    %v6667 = vpop.f32.mrb[0].mxu0
    %v6668 = vadd.f32 0.0, %v6667
    %v6669 = vpop.f32.mrb[0].mxu0
    %v6670 = vpop.f32.mrb[0].mxu0
    %v6671 = vadd.f32 0.0, %v6670
    %v6672 = vpop.f32.mrb[0].mxu0
    %6673 = vmatprep.mubr.bf16.mxu0 0
    %6674 = vmatmul.mubr.bf16.gmra.mrb[0].mxu0 %v6588
    %v6675 = vpop.f32.mrb[0].mxu0
    %v6676 = vadd.f32 0.0, %v6675
    %v6677 = vpop.f32.mrb[0].mxu0
    %v6678 = vpop.f32.mrb[0].mxu0
    %v6679 = vadd.f32 0.0, %v6678
    %v6680 = vpop.f32.mrb[0].mxu0
    %6681 = vmatprep.mubr.bf16.mxu0 0
    %6682 = vmatmul.mubr.bf16.gmra.mrb[0].mxu0 %v6591
    %v6683 = vpop.f32.mrb[0].mxu0
    %v6684 = vadd.f32 0.0, %v6683
    %v6685 = vpop.f32.mrb[0].mxu0
    %v6686 = vpop.f32.mrb[0].mxu0
    %v6687 = vadd.f32 0.0, %v6686
    %v6688 = vpop.f32.mrb[0].mxu0
    %6689 = vdwg.mxu0
    %v6690 = vadd.f32 %v6450, %v6628
    %v6691 = vadd.f32 %v6453, %v6631
    %v6692 = vadd.f32 %v6458, %v6636
    %v6693 = vadd.f32 %v6461, %v6639
    %v6694 = vadd.f32 %v6466, %v6644
    %v6695 = vadd.f32 %v6469, %v6647
    %v6696 = vadd.f32 %v6474, %v6652
    %v6697 = vadd.f32 %v6477, %v6655
    %v6698 = vadd.f32 %v6482, %v6660
    %v6699 = vadd.f32 %v6485, %v6663
    %v6700 = vadd.f32 %v6490, %v6668
    %v6701 = vadd.f32 %v6493, %v6671
    %v6702 = vadd.f32 %v6498, %v6676
    %v6703 = vadd.f32 %v6501, %v6679
    %v6704 = vadd.f32 %v6506, %v6684
    %v6705 = vadd.f32 %v6509, %v6687
    %v6706 = vld [vmem:[%s6093] ss:$2 sm:$0xff]
    %s6707 = scalar_lea.vmem %s6093, 48 [#allocation3]
    %v6708 = vld [vmem:[%s6707] ss:$2 sm:$0xff]
    %s6709 = scalar_lea.vmem %s6093, 96 [#allocation3]
    %v6710 = vld [vmem:[%s6709] ss:$2 sm:$0xff]
    %s6711 = scalar_lea.vmem %s6093, 144 [#allocation3]
    %v6712 = vld [vmem:[%s6711] ss:$2 sm:$0xff]
    %s6713 = scalar_lea.vmem %s6093, 192 [#allocation3]
    %v6714 = vld [vmem:[%s6713] ss:$2 sm:$0xff]
    %s6715 = scalar_lea.vmem %s6093, 240 [#allocation3]
    %v6716 = vld [vmem:[%s6715] ss:$2 sm:$0xff]
    %s6717 = scalar_lea.vmem %s6093, 288 [#allocation3]
    %v6718 = vld [vmem:[%s6717] ss:$2 sm:$0xff]
    %s6719 = scalar_lea.vmem %s6093, 336 [#allocation3]
    %v6720 = vld [vmem:[%s6719] ss:$2 sm:$0xff]
    %s6721 = scalar_lea.vmem %s6093, 432 [#allocation3]
    %v6722 = vld [vmem:[%s6721] ss:$2 sm:$0xff]
    %s6723 = scalar_lea.vmem %s6093, 480 [#allocation3]
    %v6724 = vld [vmem:[%s6723] ss:$2 sm:$0xff]
    %s6725 = scalar_lea.vmem %s6093, 528 [#allocation3]
    %v6726 = vld [vmem:[%s6725] ss:$2 sm:$0xff]
    %s6727 = scalar_lea.vmem %s6093, 576 [#allocation3]
    %v6728 = vld [vmem:[%s6727] ss:$2 sm:$0xff]
    %s6729 = scalar_lea.vmem %s6093, 624 [#allocation3]
    %v6730 = vld [vmem:[%s6729] ss:$2 sm:$0xff]
    %s6731 = scalar_lea.vmem %s6093, 672 [#allocation3]
    %v6732 = vld [vmem:[%s6731] ss:$2 sm:$0xff]
    %s6733 = scalar_lea.vmem %s6093, 720 [#allocation3]
    %v6734 = vld [vmem:[%s6733] ss:$2 sm:$0xff]
    %s6735 = scalar_lea.vmem %s6093, 768 [#allocation3]
    %v6736 = vld [vmem:[%s6735] ss:$2 sm:$0xff]
    %v6737 = vpack.c.bf16 %v6708, %v6706
    %v6738 = vpack.c.bf16 %v6712, %v6710
    %v6739 = vpack.c.bf16 %v6716, %v6714
    %v6740 = vpack.c.bf16 %v6720, %v6718
    %v6741 = vpack.c.bf16 %v6724, %v6722
    %v6742 = vpack.c.bf16 %v6728, %v6726
    %v6743 = vpack.c.bf16 %v6732, %v6730
    %v6744 = vpack.c.bf16 %v6736, %v6734
    %s6745 = scalar_lea.vmem [#allocation9], 48
    %v6746 = vld [vmem:[%s6745] sm:$0xf]
    %v6747 = vld [vmem:[%s6745 + $0x4] sm:$0xf]
    %v6748 = vld [vmem:[%s6745 + $0x8] sm:$0xf]
    %v6749 = vld [vmem:[%s6745 + $0xc] sm:$0xf]
    %v6754 = vunpack.c.l.b16 %v6746
    %v6755 = vunpack.c.l.b16 %v6747
    %v6756 = vunpack.c.l.b16 %v6748
    %v6757 = vunpack.c.l.b16 %v6749
    %v6758 = vpack.c.b16 %v6755, %v6754
    %v6759 = vpack.c.b16 %v6757, %v6756
    %v6763 = vsel %vm5983, %v6737, 0
    %v6766 = vsel %vm5983, %v6738, 0
    %v6769 = vsel %vm5983, %v6739, 0
    %v6772 = vsel %vm5983, %v6740, 0
    %v6775 = vsel %vm5983, %v6741, 0
    %v6778 = vsel %vm5983, %v6742, 0
    %v6781 = vsel %vm5983, %v6743, 0
    %v6784 = vsel %vm5983, %v6744, 0
    %6786 = vmatprep.subr.bf16.mxu0 0
    %6787 = vmatpush1.bf16.msra.mxu0 %v6758
    %6788 = vmatprep.subr.bf16.mxu0 0
    %6789 = vmatpush1.bf16.msra.mxu0 %v6759
    %6790 = vmatprep.subr.bf16.mxu0 0
    %6791 = vmatpush1.bf16.msra.mxu0 0
    %6792 = vmatprep.subr.bf16.mxu0 0
    %6793 = vmatpush1.bf16.msra.mxu0 0
    %6794 = vmatprep.subr.bf16.mxu0 0
    %6795 = vmatpush1.bf16.msra.mxu0 0
    %6796 = vmatprep.subr.bf16.mxu0 0
    %6797 = vmatpush1.bf16.msra.mxu0 0
    %6798 = vmatprep.subr.bf16.mxu0 0
    %6799 = vmatpush1.bf16.msra.mxu0 0
    %6800 = vmatprep.subr.bf16.mxu0 0
    %6801 = vmatpush1.bf16.msra.mxu0 0
    %6802 = vmatprep.subr.bf16.mxu0 0
    %6803 = vmatpush1.bf16.msra.mxu0 0
    %6804 = vmatprep.subr.bf16.mxu0 0
    %6805 = vmatpush1.bf16.msra.mxu0 0
    %6806 = vmatprep.subr.bf16.mxu0 0
    %6807 = vmatpush1.bf16.msra.mxu0 0
    %6808 = vmatprep.subr.bf16.mxu0 0
    %6809 = vmatpush1.bf16.msra.mxu0 0
    %6810 = vmatprep.subr.bf16.mxu0 0
    %6811 = vmatpush1.bf16.msra.mxu0 0
    %6812 = vmatprep.subr.bf16.mxu0 0
    %6813 = vmatpush1.bf16.msra.mxu0 0
    %6814 = vmatprep.subr.bf16.mxu0 0
    %6815 = vmatpush1.bf16.msra.mxu0 0
    %6816 = vmatprep.subr.bf16.mxu0 0
    %6817 = vmatpush1.bf16.msra.mxu0 0
    %6818 = vmatprep.mubr.bf16.mxu0 0
    %6819 = vmatmul.mubr.bf16.gmra.mrb[0].mxu0 %v6763
    %v6820 = vpop.f32.mrb[0].mxu0
    %v6821 = vadd.f32 0.0, %v6820
    %v6822 = vpop.f32.mrb[0].mxu0
    %v6823 = vpop.f32.mrb[0].mxu0
    %v6824 = vadd.f32 0.0, %v6823
    %v6825 = vpop.f32.mrb[0].mxu0
    %6826 = vmatprep.mubr.bf16.mxu0 0
    %6827 = vmatmul.mubr.bf16.gmra.mrb[0].mxu0 %v6766
    %v6828 = vpop.f32.mrb[0].mxu0
    %v6829 = vadd.f32 0.0, %v6828
    %v6830 = vpop.f32.mrb[0].mxu0
    %v6831 = vpop.f32.mrb[0].mxu0
    %v6832 = vadd.f32 0.0, %v6831
    %v6833 = vpop.f32.mrb[0].mxu0
    %6834 = vmatprep.mubr.bf16.mxu0 0
    %6835 = vmatmul.mubr.bf16.gmra.mrb[0].mxu0 %v6769
    %v6836 = vpop.f32.mrb[0].mxu0
    %v6837 = vadd.f32 0.0, %v6836
    %v6838 = vpop.f32.mrb[0].mxu0
    %v6839 = vpop.f32.mrb[0].mxu0
    %v6840 = vadd.f32 0.0, %v6839
    %v6841 = vpop.f32.mrb[0].mxu0
    %6842 = vmatprep.mubr.bf16.mxu0 0
    %6843 = vmatmul.mubr.bf16.gmra.mrb[0].mxu0 %v6772
    %v6844 = vpop.f32.mrb[0].mxu0
    %v6845 = vadd.f32 0.0, %v6844
    %v6846 = vpop.f32.mrb[0].mxu0
    %v6847 = vpop.f32.mrb[0].mxu0
    %v6848 = vadd.f32 0.0, %v6847
    %v6849 = vpop.f32.mrb[0].mxu0
    %6850 = vmatprep.mubr.bf16.mxu0 0
    %6851 = vmatmul.mubr.bf16.gmra.mrb[0].mxu0 %v6775
    %v6852 = vpop.f32.mrb[0].mxu0
    %v6853 = vadd.f32 0.0, %v6852
    %v6854 = vpop.f32.mrb[0].mxu0
    %v6855 = vpop.f32.mrb[0].mxu0
    %v6856 = vadd.f32 0.0, %v6855
    %v6857 = vpop.f32.mrb[0].mxu0
    %6858 = vmatprep.mubr.bf16.mxu0 0
    %6859 = vmatmul.mubr.bf16.gmra.mrb[0].mxu0 %v6778
    %v6860 = vpop.f32.mrb[0].mxu0
    %v6861 = vadd.f32 0.0, %v6860
    %v6862 = vpop.f32.mrb[0].mxu0
    %v6863 = vpop.f32.mrb[0].mxu0
    %v6864 = vadd.f32 0.0, %v6863
    %v6865 = vpop.f32.mrb[0].mxu0
    %6866 = vmatprep.mubr.bf16.mxu0 0
    %6867 = vmatmul.mubr.bf16.gmra.mrb[0].mxu0 %v6781
    %v6868 = vpop.f32.mrb[0].mxu0
    %v6869 = vadd.f32 0.0, %v6868
    %v6870 = vpop.f32.mrb[0].mxu0
    %v6871 = vpop.f32.mrb[0].mxu0
    %v6872 = vadd.f32 0.0, %v6871
    %v6873 = vpop.f32.mrb[0].mxu0
    %6874 = vmatprep.mubr.bf16.mxu0 0
    %6875 = vmatmul.mubr.bf16.gmra.mrb[0].mxu0 %v6784
    %v6876 = vpop.f32.mrb[0].mxu0
    %v6877 = vadd.f32 0.0, %v6876
    %v6878 = vpop.f32.mrb[0].mxu0
    %v6879 = vpop.f32.mrb[0].mxu0
    %v6880 = vadd.f32 0.0, %v6879
    %v6881 = vpop.f32.mrb[0].mxu0
    %6882 = vdwg.mxu0
    %v6883 = vadd.f32 %v6690, %v6821
    %v6884 = vadd.f32 %v6691, %v6824
    %v6885 = vadd.f32 %v6692, %v6829
    %v6886 = vadd.f32 %v6693, %v6832
    %v6887 = vadd.f32 %v6694, %v6837
    %v6888 = vadd.f32 %v6695, %v6840
    %v6889 = vadd.f32 %v6696, %v6845
    %v6890 = vadd.f32 %v6697, %v6848
    %v6891 = vadd.f32 %v6698, %v6853
    %v6892 = vadd.f32 %v6699, %v6856
    %v6893 = vadd.f32 %v6700, %v6861
    %v6894 = vadd.f32 %v6701, %v6864
    %v6895 = vadd.f32 %v6702, %v6869
    %v6896 = vadd.f32 %v6703, %v6872
    %v6897 = vadd.f32 %v6704, %v6877
    %v6898 = vadd.f32 %v6705, %v6880
    %s6899 = scalar_lea.vmem %s6093, 1 [#allocation3]
    %v6900 = vld [vmem:[%s6899] ss:$2 sm:$0xff]
    %s6901 = scalar_lea.vmem %s6093, 49 [#allocation3]
    %v6902 = vld [vmem:[%s6901] ss:$2 sm:$0xff]
    %s6903 = scalar_lea.vmem %s6093, 97 [#allocation3]
    %v6904 = vld [vmem:[%s6903] ss:$2 sm:$0xff]
    %s6905 = scalar_lea.vmem %s6093, 145 [#allocation3]
    %v6906 = vld [vmem:[%s6905] ss:$2 sm:$0xff]
    %s6907 = scalar_lea.vmem %s6093, 193 [#allocation3]
    %v6908 = vld [vmem:[%s6907] ss:$2 sm:$0xff]
    %s6909 = scalar_lea.vmem %s6093, 241 [#allocation3]
    %v6910 = vld [vmem:[%s6909] ss:$2 sm:$0xff]
    %s6911 = scalar_lea.vmem %s6093, 289 [#allocation3]
    %v6912 = vld [vmem:[%s6911] ss:$2 sm:$0xff]
    %s6913 = scalar_lea.vmem %s6093, 337 [#allocation3]
    %v6914 = vld [vmem:[%s6913] ss:$2 sm:$0xff]
    %s6915 = scalar_lea.vmem %s6093, 433 [#allocation3]
    %v6916 = vld [vmem:[%s6915] ss:$2 sm:$0xff]
    %s6917 = scalar_lea.vmem %s6093, 481 [#allocation3]
    %v6918 = vld [vmem:[%s6917] ss:$2 sm:$0xff]
    %s6919 = scalar_lea.vmem %s6093, 529 [#allocation3]
    %v6920 = vld [vmem:[%s6919] ss:$2 sm:$0xff]
    %s6921 = scalar_lea.vmem %s6093, 577 [#allocation3]
    %v6922 = vld [vmem:[%s6921] ss:$2 sm:$0xff]
    %s6923 = scalar_lea.vmem %s6093, 625 [#allocation3]
    %v6924 = vld [vmem:[%s6923] ss:$2 sm:$0xff]
    %s6925 = scalar_lea.vmem %s6093, 673 [#allocation3]
    %v6926 = vld [vmem:[%s6925] ss:$2 sm:$0xff]
    %s6927 = scalar_lea.vmem %s6093, 721 [#allocation3]
    %v6928 = vld [vmem:[%s6927] ss:$2 sm:$0xff]
    %s6929 = scalar_lea.vmem %s6093, 769 [#allocation3]
    %v6930 = vld [vmem:[%s6929] ss:$2 sm:$0xff]
    %v6931 = vpack.c.bf16 %v6902, %v6900
    %v6932 = vpack.c.bf16 %v6906, %v6904
    %v6933 = vpack.c.bf16 %v6910, %v6908
    %v6934 = vpack.c.bf16 %v6914, %v6912
    %v6935 = vpack.c.bf16 %v6918, %v6916
    %v6936 = vpack.c.bf16 %v6922, %v6920
    %v6937 = vpack.c.bf16 %v6926, %v6924
    %v6938 = vpack.c.bf16 %v6930, %v6928
    %s6939 = scalar_lea.vmem [#allocation9], 64
    %v6940 = vld [vmem:[%s6939] sm:$0xf]
    %v6941 = vld [vmem:[%s6939 + $0x4] sm:$0xf]
    %v6942 = vld [vmem:[%s6939 + $0x8] sm:$0xf]
    %v6943 = vld [vmem:[%s6939 + $0xc] sm:$0xf]
    %v6948 = vunpack.c.l.b16 %v6940
    %v6949 = vunpack.c.l.b16 %v6941
    %v6950 = vunpack.c.l.b16 %v6942
    %v6951 = vunpack.c.l.b16 %v6943
    %v6952 = vpack.c.b16 %v6949, %v6948
    %v6953 = vpack.c.b16 %v6951, %v6950
    %v6957 = vsel %vm5983, %v6931, 0
    %v6960 = vsel %vm5983, %v6932, 0
    %v6963 = vsel %vm5983, %v6933, 0
    %v6966 = vsel %vm5983, %v6934, 0
    %v6969 = vsel %vm5983, %v6935, 0
    %v6972 = vsel %vm5983, %v6936, 0
    %v6975 = vsel %vm5983, %v6937, 0
    %v6978 = vsel %vm5983, %v6938, 0
    %6980 = vmatprep.subr.bf16.mxu0 0
    %6981 = vmatpush1.bf16.msra.mxu0 %v6952
    %6982 = vmatprep.subr.bf16.mxu0 0
    %6983 = vmatpush1.bf16.msra.mxu0 %v6953
    %6984 = vmatprep.subr.bf16.mxu0 0
    %6985 = vmatpush1.bf16.msra.mxu0 0
    %6986 = vmatprep.subr.bf16.mxu0 0
    %6987 = vmatpush1.bf16.msra.mxu0 0
    %6988 = vmatprep.subr.bf16.mxu0 0
    %6989 = vmatpush1.bf16.msra.mxu0 0
    %6990 = vmatprep.subr.bf16.mxu0 0
    %6991 = vmatpush1.bf16.msra.mxu0 0
    %6992 = vmatprep.subr.bf16.mxu0 0
    %6993 = vmatpush1.bf16.msra.mxu0 0
    %6994 = vmatprep.subr.bf16.mxu0 0
    %6995 = vmatpush1.bf16.msra.mxu0 0
    %6996 = vmatprep.subr.bf16.mxu0 0
    %6997 = vmatpush1.bf16.msra.mxu0 0
    %6998 = vmatprep.subr.bf16.mxu0 0
    %6999 = vmatpush1.bf16.msra.mxu0 0
    %7000 = vmatprep.subr.bf16.mxu0 0
    %7001 = vmatpush1.bf16.msra.mxu0 0
    %7002 = vmatprep.subr.bf16.mxu0 0
    %7003 = vmatpush1.bf16.msra.mxu0 0
    %7004 = vmatprep.subr.bf16.mxu0 0
    %7005 = vmatpush1.bf16.msra.mxu0 0
    %7006 = vmatprep.subr.bf16.mxu0 0
    %7007 = vmatpush1.bf16.msra.mxu0 0
    %7008 = vmatprep.subr.bf16.mxu0 0
    %7009 = vmatpush1.bf16.msra.mxu0 0
    %7010 = vmatprep.subr.bf16.mxu0 0
    %7011 = vmatpush1.bf16.msra.mxu0 0
    %7012 = vmatprep.mubr.bf16.mxu0 0
    %7013 = vmatmul.mubr.bf16.gmra.mrb[0].mxu0 %v6957
    %v7014 = vpop.f32.mrb[0].mxu0
    %v7015 = vadd.f32 0.0, %v7014
    %v7016 = vpop.f32.mrb[0].mxu0
    %v7017 = vpop.f32.mrb[0].mxu0
    %v7018 = vadd.f32 0.0, %v7017
    %v7019 = vpop.f32.mrb[0].mxu0
    %7020 = vmatprep.mubr.bf16.mxu0 0
    %7021 = vmatmul.mubr.bf16.gmra.mrb[0].mxu0 %v6960
    %v7022 = vpop.f32.mrb[0].mxu0
    %v7023 = vadd.f32 0.0, %v7022
    %v7024 = vpop.f32.mrb[0].mxu0
    %v7025 = vpop.f32.mrb[0].mxu0
    %v7026 = vadd.f32 0.0, %v7025
    %v7027 = vpop.f32.mrb[0].mxu0
    %7028 = vmatprep.mubr.bf16.mxu0 0
    %7029 = vmatmul.mubr.bf16.gmra.mrb[0].mxu0 %v6963
    %v7030 = vpop.f32.mrb[0].mxu0
    %v7031 = vadd.f32 0.0, %v7030
    %v7032 = vpop.f32.mrb[0].mxu0
    %v7033 = vpop.f32.mrb[0].mxu0
    %v7034 = vadd.f32 0.0, %v7033
    %v7035 = vpop.f32.mrb[0].mxu0
    %7036 = vmatprep.mubr.bf16.mxu0 0
    %7037 = vmatmul.mubr.bf16.gmra.mrb[0].mxu0 %v6966
    %v7038 = vpop.f32.mrb[0].mxu0
    %v7039 = vadd.f32 0.0, %v7038
    %v7040 = vpop.f32.mrb[0].mxu0
    %v7041 = vpop.f32.mrb[0].mxu0
    %v7042 = vadd.f32 0.0, %v7041
    %v7043 = vpop.f32.mrb[0].mxu0
    %7044 = vmatprep.mubr.bf16.mxu0 0
    %7045 = vmatmul.mubr.bf16.gmra.mrb[0].mxu0 %v6969
    %v7046 = vpop.f32.mrb[0].mxu0
    %v7047 = vadd.f32 0.0, %v7046
    %v7048 = vpop.f32.mrb[0].mxu0
    %v7049 = vpop.f32.mrb[0].mxu0
    %v7050 = vadd.f32 0.0, %v7049
    %v7051 = vpop.f32.mrb[0].mxu0
    %7052 = vmatprep.mubr.bf16.mxu0 0
    %7053 = vmatmul.mubr.bf16.gmra.mrb[0].mxu0 %v6972
    %v7054 = vpop.f32.mrb[0].mxu0
    %v7055 = vadd.f32 0.0, %v7054
    %v7056 = vpop.f32.mrb[0].mxu0
    %v7057 = vpop.f32.mrb[0].mxu0
    %v7058 = vadd.f32 0.0, %v7057
    %v7059 = vpop.f32.mrb[0].mxu0
    %7060 = vmatprep.mubr.bf16.mxu0 0
    %7061 = vmatmul.mubr.bf16.gmra.mrb[0].mxu0 %v6975
    %v7062 = vpop.f32.mrb[0].mxu0
    %v7063 = vadd.f32 0.0, %v7062
    %v7064 = vpop.f32.mrb[0].mxu0
    %v7065 = vpop.f32.mrb[0].mxu0
    %v7066 = vadd.f32 0.0, %v7065
    %v7067 = vpop.f32.mrb[0].mxu0
    %7068 = vmatprep.mubr.bf16.mxu0 0
    %7069 = vmatmul.mubr.bf16.gmra.mrb[0].mxu0 %v6978
    %v7070 = vpop.f32.mrb[0].mxu0
    %v7071 = vadd.f32 0.0, %v7070
    %v7072 = vpop.f32.mrb[0].mxu0
    %v7073 = vpop.f32.mrb[0].mxu0
    %v7074 = vadd.f32 0.0, %v7073
    %v7075 = vpop.f32.mrb[0].mxu0
    %7076 = vdwg.mxu0
    %v7077 = vadd.f32 %v6883, %v7015
    %v7078 = vadd.f32 %v6884, %v7018
    %v7079 = vadd.f32 %v6885, %v7023
    %v7080 = vadd.f32 %v6886, %v7026
    %v7081 = vadd.f32 %v6887, %v7031
    %v7082 = vadd.f32 %v6888, %v7034
    %v7083 = vadd.f32 %v6889, %v7039
    %v7084 = vadd.f32 %v6890, %v7042
    %v7085 = vadd.f32 %v6891, %v7047
    %v7086 = vadd.f32 %v6892, %v7050
    %v7087 = vadd.f32 %v6893, %v7055
    %v7088 = vadd.f32 %v6894, %v7058
    %v7089 = vadd.f32 %v6895, %v7063
    %v7090 = vadd.f32 %v6896, %v7066
    %v7091 = vadd.f32 %v6897, %v7071
    %v7092 = vadd.f32 %v6898, %v7074
    %s7093 = scalar_lea.vmem %s6093, 2 [#allocation3]
    %v7094 = vld [vmem:[%s7093] ss:$2 sm:$0xff]
    %s7095 = scalar_lea.vmem %s6093, 50 [#allocation3]
    %v7096 = vld [vmem:[%s7095] ss:$2 sm:$0xff]
    %s7097 = scalar_lea.vmem %s6093, 98 [#allocation3]
    %v7098 = vld [vmem:[%s7097] ss:$2 sm:$0xff]
    %s7099 = scalar_lea.vmem %s6093, 146 [#allocation3]
    %v7100 = vld [vmem:[%s7099] ss:$2 sm:$0xff]
    %s7101 = scalar_lea.vmem %s6093, 194 [#allocation3]
    %v7102 = vld [vmem:[%s7101] ss:$2 sm:$0xff]
    %s7103 = scalar_lea.vmem %s6093, 242 [#allocation3]
    %v7104 = vld [vmem:[%s7103] ss:$2 sm:$0xff]
    %s7105 = scalar_lea.vmem %s6093, 290 [#allocation3]
    %v7106 = vld [vmem:[%s7105] ss:$2 sm:$0xff]
    %s7107 = scalar_lea.vmem %s6093, 338 [#allocation3]
    %v7108 = vld [vmem:[%s7107] ss:$2 sm:$0xff]
    %s7109 = scalar_lea.vmem %s6093, 434 [#allocation3]
    %v7110 = vld [vmem:[%s7109] ss:$2 sm:$0xff]
    %s7111 = scalar_lea.vmem %s6093, 482 [#allocation3]
    %v7112 = vld [vmem:[%s7111] ss:$2 sm:$0xff]
    %s7113 = scalar_lea.vmem %s6093, 530 [#allocation3]
    %v7114 = vld [vmem:[%s7113] ss:$2 sm:$0xff]
    %s7115 = scalar_lea.vmem %s6093, 578 [#allocation3]
    %v7116 = vld [vmem:[%s7115] ss:$2 sm:$0xff]
    %s7117 = scalar_lea.vmem %s6093, 626 [#allocation3]
    %v7118 = vld [vmem:[%s7117] ss:$2 sm:$0xff]
    %s7119 = scalar_lea.vmem %s6093, 674 [#allocation3]
    %v7120 = vld [vmem:[%s7119] ss:$2 sm:$0xff]
    %s7121 = scalar_lea.vmem %s6093, 722 [#allocation3]
    %v7122 = vld [vmem:[%s7121] ss:$2 sm:$0xff]
    %s7123 = scalar_lea.vmem %s6093, 770 [#allocation3]
    %v7124 = vld [vmem:[%s7123] ss:$2 sm:$0xff]
    %v7125 = vpack.c.bf16 %v7096, %v7094
    %v7126 = vpack.c.bf16 %v7100, %v7098
    %v7127 = vpack.c.bf16 %v7104, %v7102
    %v7128 = vpack.c.bf16 %v7108, %v7106
    %v7129 = vpack.c.bf16 %v7112, %v7110
    %v7130 = vpack.c.bf16 %v7116, %v7114
    %v7131 = vpack.c.bf16 %v7120, %v7118
    %v7132 = vpack.c.bf16 %v7124, %v7122
    %s7133 = scalar_lea.vmem [#allocation9], 80
    %v7134 = vld [vmem:[%s7133] sm:$0xf]
    %v7135 = vld [vmem:[%s7133 + $0x4] sm:$0xf]
    %v7136 = vld [vmem:[%s7133 + $0x8] sm:$0xf]
    %v7137 = vld [vmem:[%s7133 + $0xc] sm:$0xf]
    %v7142 = vunpack.c.l.b16 %v7134
    %v7143 = vunpack.c.l.b16 %v7135
    %v7144 = vunpack.c.l.b16 %v7136
    %v7145 = vunpack.c.l.b16 %v7137
    %v7146 = vpack.c.b16 %v7143, %v7142
    %v7147 = vpack.c.b16 %v7145, %v7144
    %v7151 = vsel %vm5983, %v7125, 0
    %v7154 = vsel %vm5983, %v7126, 0
    %v7157 = vsel %vm5983, %v7127, 0
    %v7160 = vsel %vm5983, %v7128, 0
    %v7163 = vsel %vm5983, %v7129, 0
    %v7166 = vsel %vm5983, %v7130, 0
    %v7169 = vsel %vm5983, %v7131, 0
    %v7172 = vsel %vm5983, %v7132, 0
    %7174 = vmatprep.subr.bf16.mxu0 0
    %7175 = vmatpush1.bf16.msra.mxu0 %v7146
    %7176 = vmatprep.subr.bf16.mxu0 0
    %7177 = vmatpush1.bf16.msra.mxu0 %v7147
    %7178 = vmatprep.subr.bf16.mxu0 0
    %7179 = vmatpush1.bf16.msra.mxu0 0
    %7180 = vmatprep.subr.bf16.mxu0 0
    %7181 = vmatpush1.bf16.msra.mxu0 0
    %7182 = vmatprep.subr.bf16.mxu0 0
    %7183 = vmatpush1.bf16.msra.mxu0 0
    %7184 = vmatprep.subr.bf16.mxu0 0
    %7185 = vmatpush1.bf16.msra.mxu0 0
    %7186 = vmatprep.subr.bf16.mxu0 0
    %7187 = vmatpush1.bf16.msra.mxu0 0
    %7188 = vmatprep.subr.bf16.mxu0 0
    %7189 = vmatpush1.bf16.msra.mxu0 0
    %7190 = vmatprep.subr.bf16.mxu0 0
    %7191 = vmatpush1.bf16.msra.mxu0 0
    %7192 = vmatprep.subr.bf16.mxu0 0
    %7193 = vmatpush1.bf16.msra.mxu0 0
    %7194 = vmatprep.subr.bf16.mxu0 0
    %7195 = vmatpush1.bf16.msra.mxu0 0
    %7196 = vmatprep.subr.bf16.mxu0 0
    %7197 = vmatpush1.bf16.msra.mxu0 0
    %7198 = vmatprep.subr.bf16.mxu0 0
    %7199 = vmatpush1.bf16.msra.mxu0 0
    %7200 = vmatprep.subr.bf16.mxu0 0
    %7201 = vmatpush1.bf16.msra.mxu0 0
    %7202 = vmatprep.subr.bf16.mxu0 0
    %7203 = vmatpush1.bf16.msra.mxu0 0
    %7204 = vmatprep.subr.bf16.mxu0 0
    %7205 = vmatpush1.bf16.msra.mxu0 0
    %7206 = vmatprep.mubr.bf16.mxu0 0
    %7207 = vmatmul.mubr.bf16.gmra.mrb[0].mxu0 %v7151
    %v7208 = vpop.f32.mrb[0].mxu0
    %v7209 = vadd.f32 0.0, %v7208
    %v7210 = vpop.f32.mrb[0].mxu0
    %v7211 = vpop.f32.mrb[0].mxu0
    %v7212 = vadd.f32 0.0, %v7211
    %v7213 = vpop.f32.mrb[0].mxu0
    %7214 = vmatprep.mubr.bf16.mxu0 0
    %7215 = vmatmul.mubr.bf16.gmra.mrb[0].mxu0 %v7154
    %v7216 = vpop.f32.mrb[0].mxu0
    %v7217 = vadd.f32 0.0, %v7216
    %v7218 = vpop.f32.mrb[0].mxu0
    %v7219 = vpop.f32.mrb[0].mxu0
    %v7220 = vadd.f32 0.0, %v7219
    %v7221 = vpop.f32.mrb[0].mxu0
    %7222 = vmatprep.mubr.bf16.mxu0 0
    %7223 = vmatmul.mubr.bf16.gmra.mrb[0].mxu0 %v7157
    %v7224 = vpop.f32.mrb[0].mxu0
    %v7225 = vadd.f32 0.0, %v7224
    %v7226 = vpop.f32.mrb[0].mxu0
    %v7227 = vpop.f32.mrb[0].mxu0
    %v7228 = vadd.f32 0.0, %v7227
    %v7229 = vpop.f32.mrb[0].mxu0
    %7230 = vmatprep.mubr.bf16.mxu0 0
    %7231 = vmatmul.mubr.bf16.gmra.mrb[0].mxu0 %v7160
    %v7232 = vpop.f32.mrb[0].mxu0
    %v7233 = vadd.f32 0.0, %v7232
    %v7234 = vpop.f32.mrb[0].mxu0
    %v7235 = vpop.f32.mrb[0].mxu0
    %v7236 = vadd.f32 0.0, %v7235
    %v7237 = vpop.f32.mrb[0].mxu0
    %7238 = vmatprep.mubr.bf16.mxu0 0
    %7239 = vmatmul.mubr.bf16.gmra.mrb[0].mxu0 %v7163
    %v7240 = vpop.f32.mrb[0].mxu0
    %v7241 = vadd.f32 0.0, %v7240
    %v7242 = vpop.f32.mrb[0].mxu0
    %v7243 = vpop.f32.mrb[0].mxu0
    %v7244 = vadd.f32 0.0, %v7243
    %v7245 = vpop.f32.mrb[0].mxu0
    %7246 = vmatprep.mubr.bf16.mxu0 0
    %7247 = vmatmul.mubr.bf16.gmra.mrb[0].mxu0 %v7166
    %v7248 = vpop.f32.mrb[0].mxu0
    %v7249 = vadd.f32 0.0, %v7248
    %v7250 = vpop.f32.mrb[0].mxu0
    %v7251 = vpop.f32.mrb[0].mxu0
    %v7252 = vadd.f32 0.0, %v7251
    %v7253 = vpop.f32.mrb[0].mxu0
    %7254 = vmatprep.mubr.bf16.mxu0 0
    %7255 = vmatmul.mubr.bf16.gmra.mrb[0].mxu0 %v7169
    %v7256 = vpop.f32.mrb[0].mxu0
    %v7257 = vadd.f32 0.0, %v7256
    %v7258 = vpop.f32.mrb[0].mxu0
    %v7259 = vpop.f32.mrb[0].mxu0
    %v7260 = vadd.f32 0.0, %v7259
    %v7261 = vpop.f32.mrb[0].mxu0
    %7262 = vmatprep.mubr.bf16.mxu0 0
    %7263 = vmatmul.mubr.bf16.gmra.mrb[0].mxu0 %v7172
    %v7264 = vpop.f32.mrb[0].mxu0
    %v7265 = vadd.f32 0.0, %v7264
    %v7266 = vpop.f32.mrb[0].mxu0
    %v7267 = vpop.f32.mrb[0].mxu0
    %v7268 = vadd.f32 0.0, %v7267
    %v7269 = vpop.f32.mrb[0].mxu0
    %7270 = vdwg.mxu0
    %v7271 = vadd.f32 %v7077, %v7209
    %v7272 = vadd.f32 %v7078, %v7212
    %v7273 = vadd.f32 %v7079, %v7217
    %v7274 = vadd.f32 %v7080, %v7220
    %v7275 = vadd.f32 %v7081, %v7225
    %v7276 = vadd.f32 %v7082, %v7228
    %v7277 = vadd.f32 %v7083, %v7233
    %v7278 = vadd.f32 %v7084, %v7236
    %v7279 = vadd.f32 %v7085, %v7241
    %v7280 = vadd.f32 %v7086, %v7244
    %v7281 = vadd.f32 %v7087, %v7249
    %v7282 = vadd.f32 %v7088, %v7252
    %v7283 = vadd.f32 %v7089, %v7257
    %v7284 = vadd.f32 %v7090, %v7260
    %v7285 = vadd.f32 %v7091, %v7265
    %v7286 = vadd.f32 %v7092, %v7268
    %s7287 = scalar_lea.vmem [#allocation3], 48
    %v7288 = vld [vmem:[%s7287] ss:$2 sm:$0xff]
    %s7289 = scalar_lea.vmem %s7287, 48 [#allocation3]
    %v7290 = vld [vmem:[%s7289] ss:$2 sm:$0xff]
    %s7291 = scalar_lea.vmem %s7287, 96 [#allocation3]
    %v7292 = vld [vmem:[%s7291] ss:$2 sm:$0xff]
    %s7293 = scalar_lea.vmem %s7287, 144 [#allocation3]
    %v7294 = vld [vmem:[%s7293] ss:$2 sm:$0xff]
    %s7295 = scalar_lea.vmem %s7287, 192 [#allocation3]
    %v7296 = vld [vmem:[%s7295] ss:$2 sm:$0xff]
    %s7297 = scalar_lea.vmem %s7287, 240 [#allocation3]
    %v7298 = vld [vmem:[%s7297] ss:$2 sm:$0xff]
    %s7299 = scalar_lea.vmem %s7287, 288 [#allocation3]
    %v7300 = vld [vmem:[%s7299] ss:$2 sm:$0xff]
    %s7301 = scalar_lea.vmem %s7287, 336 [#allocation3]
    %v7302 = vld [vmem:[%s7301] ss:$2 sm:$0xff]
    %s7303 = scalar_lea.vmem %s7287, 432 [#allocation3]
    %v7304 = vld [vmem:[%s7303] ss:$2 sm:$0xff]
    %s7305 = scalar_lea.vmem %s7287, 480 [#allocation3]
    %v7306 = vld [vmem:[%s7305] ss:$2 sm:$0xff]
    %s7307 = scalar_lea.vmem %s7287, 528 [#allocation3]
    %v7308 = vld [vmem:[%s7307] ss:$2 sm:$0xff]
    %s7309 = scalar_lea.vmem %s7287, 576 [#allocation3]
    %v7310 = vld [vmem:[%s7309] ss:$2 sm:$0xff]
    %s7311 = scalar_lea.vmem %s7287, 624 [#allocation3]
    %v7312 = vld [vmem:[%s7311] ss:$2 sm:$0xff]
    %s7313 = scalar_lea.vmem %s7287, 672 [#allocation3]
    %v7314 = vld [vmem:[%s7313] ss:$2 sm:$0xff]
    %s7315 = scalar_lea.vmem %s7287, 720 [#allocation3]
    %v7316 = vld [vmem:[%s7315] ss:$2 sm:$0xff]
    %s7317 = scalar_lea.vmem %s7287, 768 [#allocation3]
    %v7318 = vld [vmem:[%s7317] ss:$2 sm:$0xff]
    %v7319 = vpack.c.bf16 %v7290, %v7288
    %v7320 = vpack.c.bf16 %v7294, %v7292
    %v7321 = vpack.c.bf16 %v7298, %v7296
    %v7322 = vpack.c.bf16 %v7302, %v7300
    %v7323 = vpack.c.bf16 %v7306, %v7304
    %v7324 = vpack.c.bf16 %v7310, %v7308
    %v7325 = vpack.c.bf16 %v7314, %v7312
    %v7326 = vpack.c.bf16 %v7318, %v7316
    %s7327 = scalar_lea.vmem [#allocation9], 96
    %v7328 = vld [vmem:[%s7327] sm:$0xf]
    %v7329 = vld [vmem:[%s7327 + $0x4] sm:$0xf]
    %v7330 = vld [vmem:[%s7327 + $0x8] sm:$0xf]
    %v7331 = vld [vmem:[%s7327 + $0xc] sm:$0xf]
    %v7336 = vunpack.c.l.b16 %v7328
    %v7337 = vunpack.c.l.b16 %v7329
    %v7338 = vunpack.c.l.b16 %v7330
    %v7339 = vunpack.c.l.b16 %v7331
    %v7340 = vpack.c.b16 %v7337, %v7336
    %v7341 = vpack.c.b16 %v7339, %v7338
    %v7345 = vsel %vm5983, %v7319, 0
    %v7348 = vsel %vm5983, %v7320, 0
    %v7351 = vsel %vm5983, %v7321, 0
    %v7354 = vsel %vm5983, %v7322, 0
    %v7357 = vsel %vm5983, %v7323, 0
    %v7360 = vsel %vm5983, %v7324, 0
    %v7363 = vsel %vm5983, %v7325, 0
    %v7366 = vsel %vm5983, %v7326, 0
    %7368 = vmatprep.subr.bf16.mxu0 0
    %7369 = vmatpush1.bf16.msra.mxu0 %v7340
    %7370 = vmatprep.subr.bf16.mxu0 0
    %7371 = vmatpush1.bf16.msra.mxu0 %v7341
    %7372 = vmatprep.subr.bf16.mxu0 0
    %7373 = vmatpush1.bf16.msra.mxu0 0
    %7374 = vmatprep.subr.bf16.mxu0 0
    %7375 = vmatpush1.bf16.msra.mxu0 0
    %7376 = vmatprep.subr.bf16.mxu0 0
    %7377 = vmatpush1.bf16.msra.mxu0 0
    %7378 = vmatprep.subr.bf16.mxu0 0
    %7379 = vmatpush1.bf16.msra.mxu0 0
    %7380 = vmatprep.subr.bf16.mxu0 0
    %7381 = vmatpush1.bf16.msra.mxu0 0
    %7382 = vmatprep.subr.bf16.mxu0 0
    %7383 = vmatpush1.bf16.msra.mxu0 0
    %7384 = vmatprep.subr.bf16.mxu0 0
    %7385 = vmatpush1.bf16.msra.mxu0 0
    %7386 = vmatprep.subr.bf16.mxu0 0
    %7387 = vmatpush1.bf16.msra.mxu0 0
    %7388 = vmatprep.subr.bf16.mxu0 0
    %7389 = vmatpush1.bf16.msra.mxu0 0
    %7390 = vmatprep.subr.bf16.mxu0 0
    %7391 = vmatpush1.bf16.msra.mxu0 0
    %7392 = vmatprep.subr.bf16.mxu0 0
    %7393 = vmatpush1.bf16.msra.mxu0 0
    %7394 = vmatprep.subr.bf16.mxu0 0
    %7395 = vmatpush1.bf16.msra.mxu0 0
    %7396 = vmatprep.subr.bf16.mxu0 0
    %7397 = vmatpush1.bf16.msra.mxu0 0
    %7398 = vmatprep.subr.bf16.mxu0 0
    %7399 = vmatpush1.bf16.msra.mxu0 0
    %7400 = vmatprep.mubr.bf16.mxu0 0
    %7401 = vmatmul.mubr.bf16.gmra.mrb[0].mxu0 %v7345
    %v7402 = vpop.f32.mrb[0].mxu0
    %v7403 = vadd.f32 0.0, %v7402
    %v7404 = vpop.f32.mrb[0].mxu0
    %v7405 = vpop.f32.mrb[0].mxu0
    %v7406 = vadd.f32 0.0, %v7405
    %v7407 = vpop.f32.mrb[0].mxu0
    %7408 = vmatprep.mubr.bf16.mxu0 0
    %7409 = vmatmul.mubr.bf16.gmra.mrb[0].mxu0 %v7348
    %v7410 = vpop.f32.mrb[0].mxu0
    %v7411 = vadd.f32 0.0, %v7410
    %v7412 = vpop.f32.mrb[0].mxu0
    %v7413 = vpop.f32.mrb[0].mxu0
    %v7414 = vadd.f32 0.0, %v7413
    %v7415 = vpop.f32.mrb[0].mxu0
    %7416 = vmatprep.mubr.bf16.mxu0 0
    %7417 = vmatmul.mubr.bf16.gmra.mrb[0].mxu0 %v7351
    %v7418 = vpop.f32.mrb[0].mxu0
    %v7419 = vadd.f32 0.0, %v7418
    %v7420 = vpop.f32.mrb[0].mxu0
    %v7421 = vpop.f32.mrb[0].mxu0
    %v7422 = vadd.f32 0.0, %v7421
    %v7423 = vpop.f32.mrb[0].mxu0
    %7424 = vmatprep.mubr.bf16.mxu0 0
    %7425 = vmatmul.mubr.bf16.gmra.mrb[0].mxu0 %v7354
    %v7426 = vpop.f32.mrb[0].mxu0
    %v7427 = vadd.f32 0.0, %v7426
    %v7428 = vpop.f32.mrb[0].mxu0
    %v7429 = vpop.f32.mrb[0].mxu0
    %v7430 = vadd.f32 0.0, %v7429
    %v7431 = vpop.f32.mrb[0].mxu0
    %7432 = vmatprep.mubr.bf16.mxu0 0
    %7433 = vmatmul.mubr.bf16.gmra.mrb[0].mxu0 %v7357
    %v7434 = vpop.f32.mrb[0].mxu0
    %v7435 = vadd.f32 0.0, %v7434
    %v7436 = vpop.f32.mrb[0].mxu0
    %v7437 = vpop.f32.mrb[0].mxu0
    %v7438 = vadd.f32 0.0, %v7437
    %v7439 = vpop.f32.mrb[0].mxu0
    %7440 = vmatprep.mubr.bf16.mxu0 0
    %7441 = vmatmul.mubr.bf16.gmra.mrb[0].mxu0 %v7360
    %v7442 = vpop.f32.mrb[0].mxu0
    %v7443 = vadd.f32 0.0, %v7442
    %v7444 = vpop.f32.mrb[0].mxu0
    %v7445 = vpop.f32.mrb[0].mxu0
    %v7446 = vadd.f32 0.0, %v7445
    %v7447 = vpop.f32.mrb[0].mxu0
    %7448 = vmatprep.mubr.bf16.mxu0 0
    %7449 = vmatmul.mubr.bf16.gmra.mrb[0].mxu0 %v7363
    %v7450 = vpop.f32.mrb[0].mxu0
    %v7451 = vadd.f32 0.0, %v7450
    %v7452 = vpop.f32.mrb[0].mxu0
    %v7453 = vpop.f32.mrb[0].mxu0
    %v7454 = vadd.f32 0.0, %v7453
    %v7455 = vpop.f32.mrb[0].mxu0
    %7456 = vmatprep.mubr.bf16.mxu0 0
    %7457 = vmatmul.mubr.bf16.gmra.mrb[0].mxu0 %v7366
    %v7458 = vpop.f32.mrb[0].mxu0
    %v7459 = vadd.f32 0.0, %v7458
    %v7460 = vpop.f32.mrb[0].mxu0
    %v7461 = vpop.f32.mrb[0].mxu0
    %v7462 = vadd.f32 0.0, %v7461
    %v7463 = vpop.f32.mrb[0].mxu0
    %7464 = vdwg.mxu0
    %v7465 = vadd.f32 %v7271, %v7403
    %v7466 = vadd.f32 %v7272, %v7406
    %v7467 = vadd.f32 %v7273, %v7411
    %v7468 = vadd.f32 %v7274, %v7414
    %v7469 = vadd.f32 %v7275, %v7419
    %v7470 = vadd.f32 %v7276, %v7422
    %v7471 = vadd.f32 %v7277, %v7427
    %v7472 = vadd.f32 %v7278, %v7430
    %v7473 = vadd.f32 %v7279, %v7435
    %v7474 = vadd.f32 %v7280, %v7438
    %v7475 = vadd.f32 %v7281, %v7443
    %v7476 = vadd.f32 %v7282, %v7446
    %v7477 = vadd.f32 %v7283, %v7451
    %v7478 = vadd.f32 %v7284, %v7454
    %v7479 = vadd.f32 %v7285, %v7459
    %v7480 = vadd.f32 %v7286, %v7462
    %s7481 = scalar_lea.vmem %s7287, 1 [#allocation3]
    %v7482 = vld [vmem:[%s7481] ss:$2 sm:$0xff]
    %s7483 = scalar_lea.vmem %s7287, 49 [#allocation3]
    %v7484 = vld [vmem:[%s7483] ss:$2 sm:$0xff]
    %s7485 = scalar_lea.vmem %s7287, 97 [#allocation3]
    %v7486 = vld [vmem:[%s7485] ss:$2 sm:$0xff]
    %s7487 = scalar_lea.vmem %s7287, 145 [#allocation3]
    %v7488 = vld [vmem:[%s7487] ss:$2 sm:$0xff]
    %s7489 = scalar_lea.vmem %s7287, 193 [#allocation3]
    %v7490 = vld [vmem:[%s7489] ss:$2 sm:$0xff]
    %s7491 = scalar_lea.vmem %s7287, 241 [#allocation3]
    %v7492 = vld [vmem:[%s7491] ss:$2 sm:$0xff]
    %s7493 = scalar_lea.vmem %s7287, 289 [#allocation3]
    %v7494 = vld [vmem:[%s7493] ss:$2 sm:$0xff]
    %s7495 = scalar_lea.vmem %s7287, 337 [#allocation3]
    %v7496 = vld [vmem:[%s7495] ss:$2 sm:$0xff]
    %s7497 = scalar_lea.vmem %s7287, 433 [#allocation3]
    %v7498 = vld [vmem:[%s7497] ss:$2 sm:$0xff]
    %s7499 = scalar_lea.vmem %s7287, 481 [#allocation3]
    %v7500 = vld [vmem:[%s7499] ss:$2 sm:$0xff]
    %s7501 = scalar_lea.vmem %s7287, 529 [#allocation3]
    %v7502 = vld [vmem:[%s7501] ss:$2 sm:$0xff]
    %s7503 = scalar_lea.vmem %s7287, 577 [#allocation3]
    %v7504 = vld [vmem:[%s7503] ss:$2 sm:$0xff]
    %s7505 = scalar_lea.vmem %s7287, 625 [#allocation3]
    %v7506 = vld [vmem:[%s7505] ss:$2 sm:$0xff]
    %s7507 = scalar_lea.vmem %s7287, 673 [#allocation3]
    %v7508 = vld [vmem:[%s7507] ss:$2 sm:$0xff]
    %s7509 = scalar_lea.vmem %s7287, 721 [#allocation3]
    %v7510 = vld [vmem:[%s7509] ss:$2 sm:$0xff]
    %s7511 = scalar_lea.vmem %s7287, 769 [#allocation3]
    %v7512 = vld [vmem:[%s7511] ss:$2 sm:$0xff]
    %v7513 = vpack.c.bf16 %v7484, %v7482
    %v7514 = vpack.c.bf16 %v7488, %v7486
    %v7515 = vpack.c.bf16 %v7492, %v7490
    %v7516 = vpack.c.bf16 %v7496, %v7494
    %v7517 = vpack.c.bf16 %v7500, %v7498
    %v7518 = vpack.c.bf16 %v7504, %v7502
    %v7519 = vpack.c.bf16 %v7508, %v7506
    %v7520 = vpack.c.bf16 %v7512, %v7510
    %s7521 = scalar_lea.vmem [#allocation9], 112
    %v7522 = vld [vmem:[%s7521] sm:$0xf]
    %v7523 = vld [vmem:[%s7521 + $0x4] sm:$0xf]
    %v7524 = vld [vmem:[%s7521 + $0x8] sm:$0xf]
    %v7525 = vld [vmem:[%s7521 + $0xc] sm:$0xf]
    %v7530 = vunpack.c.l.b16 %v7522
    %v7531 = vunpack.c.l.b16 %v7523
    %v7532 = vunpack.c.l.b16 %v7524
    %v7533 = vunpack.c.l.b16 %v7525
    %v7534 = vpack.c.b16 %v7531, %v7530
    %v7535 = vpack.c.b16 %v7533, %v7532
    %v7539 = vsel %vm5983, %v7513, 0
    %v7542 = vsel %vm5983, %v7514, 0
    %v7545 = vsel %vm5983, %v7515, 0
    %v7548 = vsel %vm5983, %v7516, 0
    %v7551 = vsel %vm5983, %v7517, 0
    %v7554 = vsel %vm5983, %v7518, 0
    %v7557 = vsel %vm5983, %v7519, 0
    %v7560 = vsel %vm5983, %v7520, 0
    %7562 = vmatprep.subr.bf16.mxu0 0
    %7563 = vmatpush1.bf16.msra.mxu0 %v7534
    %7564 = vmatprep.subr.bf16.mxu0 0
    %7565 = vmatpush1.bf16.msra.mxu0 %v7535
    %7566 = vmatprep.subr.bf16.mxu0 0
    %7567 = vmatpush1.bf16.msra.mxu0 0
    %7568 = vmatprep.subr.bf16.mxu0 0
    %7569 = vmatpush1.bf16.msra.mxu0 0
    %7570 = vmatprep.subr.bf16.mxu0 0
    %7571 = vmatpush1.bf16.msra.mxu0 0
    %7572 = vmatprep.subr.bf16.mxu0 0
    %7573 = vmatpush1.bf16.msra.mxu0 0
    %7574 = vmatprep.subr.bf16.mxu0 0
    %7575 = vmatpush1.bf16.msra.mxu0 0
    %7576 = vmatprep.subr.bf16.mxu0 0
    %7577 = vmatpush1.bf16.msra.mxu0 0
    %7578 = vmatprep.subr.bf16.mxu0 0
    %7579 = vmatpush1.bf16.msra.mxu0 0
    %7580 = vmatprep.subr.bf16.mxu0 0
    %7581 = vmatpush1.bf16.msra.mxu0 0
    %7582 = vmatprep.subr.bf16.mxu0 0
    %7583 = vmatpush1.bf16.msra.mxu0 0
    %7584 = vmatprep.subr.bf16.mxu0 0
    %7585 = vmatpush1.bf16.msra.mxu0 0
    %7586 = vmatprep.subr.bf16.mxu0 0
    %7587 = vmatpush1.bf16.msra.mxu0 0
    %7588 = vmatprep.subr.bf16.mxu0 0
    %7589 = vmatpush1.bf16.msra.mxu0 0
    %7590 = vmatprep.subr.bf16.mxu0 0
    %7591 = vmatpush1.bf16.msra.mxu0 0
    %7592 = vmatprep.subr.bf16.mxu0 0
    %7593 = vmatpush1.bf16.msra.mxu0 0
    %7594 = vmatprep.mubr.bf16.mxu0 0
    %7595 = vmatmul.mubr.bf16.gmra.mrb[0].mxu0 %v7539
    %v7596 = vpop.f32.mrb[0].mxu0
    %v7597 = vadd.f32 0.0, %v7596
    %v7598 = vpop.f32.mrb[0].mxu0
    %v7599 = vpop.f32.mrb[0].mxu0
    %v7600 = vadd.f32 0.0, %v7599
    %v7601 = vpop.f32.mrb[0].mxu0
    %7602 = vmatprep.mubr.bf16.mxu0 0
    %7603 = vmatmul.mubr.bf16.gmra.mrb[0].mxu0 %v7542
    %v7604 = vpop.f32.mrb[0].mxu0
    %v7605 = vadd.f32 0.0, %v7604
    %v7606 = vpop.f32.mrb[0].mxu0
    %v7607 = vpop.f32.mrb[0].mxu0
    %v7608 = vadd.f32 0.0, %v7607
    %v7609 = vpop.f32.mrb[0].mxu0
    %7610 = vmatprep.mubr.bf16.mxu0 0
    %7611 = vmatmul.mubr.bf16.gmra.mrb[0].mxu0 %v7545
    %v7612 = vpop.f32.mrb[0].mxu0
    %v7613 = vadd.f32 0.0, %v7612
    %v7614 = vpop.f32.mrb[0].mxu0
    %v7615 = vpop.f32.mrb[0].mxu0
    %v7616 = vadd.f32 0.0, %v7615
    %v7617 = vpop.f32.mrb[0].mxu0
    %7618 = vmatprep.mubr.bf16.mxu0 0
    %7619 = vmatmul.mubr.bf16.gmra.mrb[0].mxu0 %v7548
    %v7620 = vpop.f32.mrb[0].mxu0
    %v7621 = vadd.f32 0.0, %v7620
    %v7622 = vpop.f32.mrb[0].mxu0
    %v7623 = vpop.f32.mrb[0].mxu0
    %v7624 = vadd.f32 0.0, %v7623
    %v7625 = vpop.f32.mrb[0].mxu0
    %7626 = vmatprep.mubr.bf16.mxu0 0
    %7627 = vmatmul.mubr.bf16.gmra.mrb[0].mxu0 %v7551
    %v7628 = vpop.f32.mrb[0].mxu0
    %v7629 = vadd.f32 0.0, %v7628
    %v7630 = vpop.f32.mrb[0].mxu0
    %v7631 = vpop.f32.mrb[0].mxu0
    %v7632 = vadd.f32 0.0, %v7631
    %v7633 = vpop.f32.mrb[0].mxu0
    %7634 = vmatprep.mubr.bf16.mxu0 0
    %7635 = vmatmul.mubr.bf16.gmra.mrb[0].mxu0 %v7554
    %v7636 = vpop.f32.mrb[0].mxu0
    %v7637 = vadd.f32 0.0, %v7636
    %v7638 = vpop.f32.mrb[0].mxu0
    %v7639 = vpop.f32.mrb[0].mxu0
    %v7640 = vadd.f32 0.0, %v7639
    %v7641 = vpop.f32.mrb[0].mxu0
    %7642 = vmatprep.mubr.bf16.mxu0 0
    %7643 = vmatmul.mubr.bf16.gmra.mrb[0].mxu0 %v7557
    %v7644 = vpop.f32.mrb[0].mxu0
    %v7645 = vadd.f32 0.0, %v7644
    %v7646 = vpop.f32.mrb[0].mxu0
    %v7647 = vpop.f32.mrb[0].mxu0
    %v7648 = vadd.f32 0.0, %v7647
    %v7649 = vpop.f32.mrb[0].mxu0
    %7650 = vmatprep.mubr.bf16.mxu0 0
    %7651 = vmatmul.mubr.bf16.gmra.mrb[0].mxu0 %v7560
    %v7652 = vpop.f32.mrb[0].mxu0
    %v7653 = vadd.f32 0.0, %v7652
    %v7654 = vpop.f32.mrb[0].mxu0
    %v7655 = vpop.f32.mrb[0].mxu0
    %v7656 = vadd.f32 0.0, %v7655
    %v7657 = vpop.f32.mrb[0].mxu0
    %7658 = vdwg.mxu0
    %v7659 = vadd.f32 %v7465, %v7597
    %v7660 = vadd.f32 %v7466, %v7600
    %v7661 = vadd.f32 %v7467, %v7605
    %v7662 = vadd.f32 %v7468, %v7608
    %v7663 = vadd.f32 %v7469, %v7613
    %v7664 = vadd.f32 %v7470, %v7616
    %v7665 = vadd.f32 %v7471, %v7621
    %v7666 = vadd.f32 %v7472, %v7624
    %v7667 = vadd.f32 %v7473, %v7629
    %v7668 = vadd.f32 %v7474, %v7632
    %v7669 = vadd.f32 %v7475, %v7637
    %v7670 = vadd.f32 %v7476, %v7640
    %v7671 = vadd.f32 %v7477, %v7645
    %v7672 = vadd.f32 %v7478, %v7648
    %v7673 = vadd.f32 %v7479, %v7653
    %v7674 = vadd.f32 %v7480, %v7656
    %s7675 = scalar_lea.vmem %s7287, 2 [#allocation3]
    %v7676 = vld [vmem:[%s7675] ss:$2 sm:$0xff]
    %s7677 = scalar_lea.vmem %s7287, 50 [#allocation3]
    %v7678 = vld [vmem:[%s7677] ss:$2 sm:$0xff]
    %s7679 = scalar_lea.vmem %s7287, 98 [#allocation3]
    %v7680 = vld [vmem:[%s7679] ss:$2 sm:$0xff]
    %s7681 = scalar_lea.vmem %s7287, 146 [#allocation3]
    %v7682 = vld [vmem:[%s7681] ss:$2 sm:$0xff]
    %s7683 = scalar_lea.vmem %s7287, 194 [#allocation3]
    %v7684 = vld [vmem:[%s7683] ss:$2 sm:$0xff]
    %s7685 = scalar_lea.vmem %s7287, 242 [#allocation3]
    %v7686 = vld [vmem:[%s7685] ss:$2 sm:$0xff]
    %s7687 = scalar_lea.vmem %s7287, 290 [#allocation3]
    %v7688 = vld [vmem:[%s7687] ss:$2 sm:$0xff]
    %s7689 = scalar_lea.vmem %s7287, 338 [#allocation3]
    %v7690 = vld [vmem:[%s7689] ss:$2 sm:$0xff]
    %s7691 = scalar_lea.vmem %s7287, 434 [#allocation3]
    %v7692 = vld [vmem:[%s7691] ss:$2 sm:$0xff]
    %s7693 = scalar_lea.vmem %s7287, 482 [#allocation3]
    %v7694 = vld [vmem:[%s7693] ss:$2 sm:$0xff]
    %s7695 = scalar_lea.vmem %s7287, 530 [#allocation3]
    %v7696 = vld [vmem:[%s7695] ss:$2 sm:$0xff]
    %s7697 = scalar_lea.vmem %s7287, 578 [#allocation3]
    %v7698 = vld [vmem:[%s7697] ss:$2 sm:$0xff]
    %s7699 = scalar_lea.vmem %s7287, 626 [#allocation3]
    %v7700 = vld [vmem:[%s7699] ss:$2 sm:$0xff]
    %s7701 = scalar_lea.vmem %s7287, 674 [#allocation3]
    %v7702 = vld [vmem:[%s7701] ss:$2 sm:$0xff]
    %s7703 = scalar_lea.vmem %s7287, 722 [#allocation3]
    %v7704 = vld [vmem:[%s7703] ss:$2 sm:$0xff]
    %s7705 = scalar_lea.vmem %s7287, 770 [#allocation3]
    %v7706 = vld [vmem:[%s7705] ss:$2 sm:$0xff]
    %v7707 = vpack.c.bf16 %v7678, %v7676
    %v7708 = vpack.c.bf16 %v7682, %v7680
    %v7709 = vpack.c.bf16 %v7686, %v7684
    %v7710 = vpack.c.bf16 %v7690, %v7688
    %v7711 = vpack.c.bf16 %v7694, %v7692
    %v7712 = vpack.c.bf16 %v7698, %v7696
    %v7713 = vpack.c.bf16 %v7702, %v7700
    %v7714 = vpack.c.bf16 %v7706, %v7704
    %s7715 = scalar_lea.vmem [#allocation9], 128
    %v7716 = vld [vmem:[%s7715] sm:$0xf]
    %v7717 = vld [vmem:[%s7715 + $0x4] sm:$0xf]
    %v7718 = vld [vmem:[%s7715 + $0x8] sm:$0xf]
    %v7719 = vld [vmem:[%s7715 + $0xc] sm:$0xf]
    %v7724 = vunpack.c.l.b16 %v7716
    %v7725 = vunpack.c.l.b16 %v7717
    %v7726 = vunpack.c.l.b16 %v7718
    %v7727 = vunpack.c.l.b16 %v7719
    %v7728 = vpack.c.b16 %v7725, %v7724
    %v7729 = vpack.c.b16 %v7727, %v7726
    %v7733 = vsel %vm5983, %v7707, 0
    %v7736 = vsel %vm5983, %v7708, 0
    %v7739 = vsel %vm5983, %v7709, 0
    %v7742 = vsel %vm5983, %v7710, 0
    %v7745 = vsel %vm5983, %v7711, 0
    %v7748 = vsel %vm5983, %v7712, 0
    %v7751 = vsel %vm5983, %v7713, 0
    %v7754 = vsel %vm5983, %v7714, 0
    %7756 = vmatprep.subr.bf16.mxu0 0
    %7757 = vmatpush1.bf16.msra.mxu0 %v7728
    %7758 = vmatprep.subr.bf16.mxu0 0
    %7759 = vmatpush1.bf16.msra.mxu0 %v7729
    %7760 = vmatprep.subr.bf16.mxu0 0
    %7761 = vmatpush1.bf16.msra.mxu0 0
    %7762 = vmatprep.subr.bf16.mxu0 0
    %7763 = vmatpush1.bf16.msra.mxu0 0
    %7764 = vmatprep.subr.bf16.mxu0 0
    %7765 = vmatpush1.bf16.msra.mxu0 0
    %7766 = vmatprep.subr.bf16.mxu0 0
    %7767 = vmatpush1.bf16.msra.mxu0 0
    %7768 = vmatprep.subr.bf16.mxu0 0
    %7769 = vmatpush1.bf16.msra.mxu0 0
    %7770 = vmatprep.subr.bf16.mxu0 0
    %7771 = vmatpush1.bf16.msra.mxu0 0
    %7772 = vmatprep.subr.bf16.mxu0 0
    %7773 = vmatpush1.bf16.msra.mxu0 0
    %7774 = vmatprep.subr.bf16.mxu0 0
    %7775 = vmatpush1.bf16.msra.mxu0 0
    %7776 = vmatprep.subr.bf16.mxu0 0
    %7777 = vmatpush1.bf16.msra.mxu0 0
    %7778 = vmatprep.subr.bf16.mxu0 0
    %7779 = vmatpush1.bf16.msra.mxu0 0
    %7780 = vmatprep.subr.bf16.mxu0 0
    %7781 = vmatpush1.bf16.msra.mxu0 0
    %7782 = vmatprep.subr.bf16.mxu0 0
    %7783 = vmatpush1.bf16.msra.mxu0 0
    %7784 = vmatprep.subr.bf16.mxu0 0
    %7785 = vmatpush1.bf16.msra.mxu0 0
    %7786 = vmatprep.subr.bf16.mxu0 0
    %7787 = vmatpush1.bf16.msra.mxu0 0
    %7788 = vmatprep.mubr.bf16.mxu0 0
    %7789 = vmatmul.mubr.bf16.gmra.mrb[0].mxu0 %v7733
    %v7790 = vpop.f32.mrb[0].mxu0
    %v7791 = vadd.f32 0.0, %v7790
    %v7792 = vpop.f32.mrb[0].mxu0
    %v7793 = vpop.f32.mrb[0].mxu0
    %v7794 = vadd.f32 0.0, %v7793
    %v7795 = vpop.f32.mrb[0].mxu0
    %7796 = vmatprep.mubr.bf16.mxu0 0
    %7797 = vmatmul.mubr.bf16.gmra.mrb[0].mxu0 %v7736
    %v7798 = vpop.f32.mrb[0].mxu0
    %v7799 = vadd.f32 0.0, %v7798
    %v7800 = vpop.f32.mrb[0].mxu0
    %v7801 = vpop.f32.mrb[0].mxu0
    %v7802 = vadd.f32 0.0, %v7801
    %v7803 = vpop.f32.mrb[0].mxu0
    %7804 = vmatprep.mubr.bf16.mxu0 0
    %7805 = vmatmul.mubr.bf16.gmra.mrb[0].mxu0 %v7739
    %v7806 = vpop.f32.mrb[0].mxu0
    %v7807 = vadd.f32 0.0, %v7806
    %v7808 = vpop.f32.mrb[0].mxu0
    %v7809 = vpop.f32.mrb[0].mxu0
    %v7810 = vadd.f32 0.0, %v7809
    %v7811 = vpop.f32.mrb[0].mxu0
    %7812 = vmatprep.mubr.bf16.mxu0 0
    %7813 = vmatmul.mubr.bf16.gmra.mrb[0].mxu0 %v7742
    %v7814 = vpop.f32.mrb[0].mxu0
    %v7815 = vadd.f32 0.0, %v7814
    %v7816 = vpop.f32.mrb[0].mxu0
    %v7817 = vpop.f32.mrb[0].mxu0
    %v7818 = vadd.f32 0.0, %v7817
    %v7819 = vpop.f32.mrb[0].mxu0
    %7820 = vmatprep.mubr.bf16.mxu0 0
    %7821 = vmatmul.mubr.bf16.gmra.mrb[0].mxu0 %v7745
    %v7822 = vpop.f32.mrb[0].mxu0
    %v7823 = vadd.f32 0.0, %v7822
    %v7824 = vpop.f32.mrb[0].mxu0
    %v7825 = vpop.f32.mrb[0].mxu0
    %v7826 = vadd.f32 0.0, %v7825
    %v7827 = vpop.f32.mrb[0].mxu0
    %7828 = vmatprep.mubr.bf16.mxu0 0
    %7829 = vmatmul.mubr.bf16.gmra.mrb[0].mxu0 %v7748
    %v7830 = vpop.f32.mrb[0].mxu0
    %v7831 = vadd.f32 0.0, %v7830
    %v7832 = vpop.f32.mrb[0].mxu0
    %v7833 = vpop.f32.mrb[0].mxu0
    %v7834 = vadd.f32 0.0, %v7833
    %v7835 = vpop.f32.mrb[0].mxu0
    %7836 = vmatprep.mubr.bf16.mxu0 0
    %7837 = vmatmul.mubr.bf16.gmra.mrb[0].mxu0 %v7751
    %v7838 = vpop.f32.mrb[0].mxu0
    %v7839 = vadd.f32 0.0, %v7838
    %v7840 = vpop.f32.mrb[0].mxu0
    %v7841 = vpop.f32.mrb[0].mxu0
    %v7842 = vadd.f32 0.0, %v7841
    %v7843 = vpop.f32.mrb[0].mxu0
    %7844 = vmatprep.mubr.bf16.mxu0 0
    %7845 = vmatmul.mubr.bf16.gmra.mrb[0].mxu0 %v7754
    %v7846 = vpop.f32.mrb[0].mxu0
    %v7847 = vadd.f32 0.0, %v7846
    %v7848 = vpop.f32.mrb[0].mxu0
    %v7849 = vpop.f32.mrb[0].mxu0
    %v7850 = vadd.f32 0.0, %v7849
    %v7851 = vpop.f32.mrb[0].mxu0
    %7852 = vdwg.mxu0
    %v7853 = vadd.f32 %v7659, %v7791
    %v7854 = vadd.f32 %v7660, %v7794
    %v7855 = vadd.f32 %v7661, %v7799
    %v7856 = vadd.f32 %v7662, %v7802
    %v7857 = vadd.f32 %v7663, %v7807
    %v7858 = vadd.f32 %v7664, %v7810
    %v7859 = vadd.f32 %v7665, %v7815
    %v7860 = vadd.f32 %v7666, %v7818
    %v7861 = vadd.f32 %v7667, %v7823
    %v7862 = vadd.f32 %v7668, %v7826
    %v7863 = vadd.f32 %v7669, %v7831
    %v7864 = vadd.f32 %v7670, %v7834
    %v7865 = vadd.f32 %v7671, %v7839
    %v7866 = vadd.f32 %v7672, %v7842
    %v7867 = vadd.f32 %v7673, %v7847
    %v7868 = vadd.f32 %v7674, %v7850
    %v7869 = vld [vmem:[%s6] sm:$0x1]
    %v7870 = vld [vmem:[%s7] sm:$0x1]
    %v7871 = vsel %vm5983, %v7853, 0.0
    %v7872 = vsel %vm5983, %v7854, 0.0
    %v7873 = vadd.f32 %v7871, %v7872
    %v7874 = vsel %vm5983, %v7855, 0.0
    %v7875 = vadd.f32 %v7873, %v7874
    %v7876 = vsel %vm5983, %v7856, 0.0
    %v7877 = vadd.f32 %v7875, %v7876
    %v7878 = vsel %vm5983, %v7857, 0.0
    %v7879 = vadd.f32 %v7877, %v7878
    %v7880 = vsel %vm5983, %v7858, 0.0
    %v7881 = vadd.f32 %v7879, %v7880
    %v7882 = vsel %vm5983, %v7859, 0.0
    %v7883 = vadd.f32 %v7881, %v7882
    %v7884 = vsel %vm5983, %v7860, 0.0
    %v7885 = vadd.f32 %v7883, %v7884
    %v7886 = vsel %vm5983, %v7861, 0.0
    %v7887 = vadd.f32 %v7885, %v7886
    %v7888 = vsel %vm5983, %v7862, 0.0
    %v7889 = vadd.f32 %v7887, %v7888
    %v7890 = vsel %vm5983, %v7863, 0.0
    %v7891 = vadd.f32 %v7889, %v7890
    %v7892 = vsel %vm5983, %v7864, 0.0
    %v7893 = vadd.f32 %v7891, %v7892
    %v7894 = vsel %vm5983, %v7865, 0.0
    %v7895 = vadd.f32 %v7893, %v7894
    %v7896 = vsel %vm5983, %v7866, 0.0
    %v7897 = vadd.f32 %v7895, %v7896
    %v7898 = vsel %vm5983, %v7867, 0.0
    %v7899 = vadd.f32 %v7897, %v7898
    %v7900 = vsel %vm5983, %v7868, 0.0
    %v7901 = vadd.f32 %v7899, %v7900
    %v7902 = vrot.slane %v7901, 4
    %v7903 = vadd.f32 %v7901, %v7902
    %v7904 = vrot.slane %v7903, 2
    %v7905 = vadd.f32 %v7903, %v7904
    %v7906 = vrot.slane %v7905, 1
    %v7907 = vadd.f32 %v7905, %v7906
    %v7908 = vmul.f32 %v7853, %v7853
    %v7909 = vmul.f32 %v7854, %v7854
    %v7910 = vmul.f32 %v7855, %v7855
    %v7911 = vmul.f32 %v7856, %v7856
    %v7912 = vmul.f32 %v7857, %v7857
    %v7913 = vmul.f32 %v7858, %v7858
    %v7914 = vmul.f32 %v7859, %v7859
    %v7915 = vmul.f32 %v7860, %v7860
    %v7916 = vmul.f32 %v7861, %v7861
    %v7917 = vmul.f32 %v7862, %v7862
    %v7918 = vmul.f32 %v7863, %v7863
    %v7919 = vmul.f32 %v7864, %v7864
    %v7920 = vmul.f32 %v7865, %v7865
    %v7921 = vmul.f32 %v7866, %v7866
    %v7922 = vmul.f32 %v7867, %v7867
    %v7923 = vmul.f32 %v7868, %v7868
    %v7924 = vsel %vm5983, %v7908, 0.0
    %v7925 = vsel %vm5983, %v7909, 0.0
    %v7926 = vadd.f32 %v7924, %v7925
    %v7927 = vsel %vm5983, %v7910, 0.0
    %v7928 = vadd.f32 %v7926, %v7927
    %v7929 = vsel %vm5983, %v7911, 0.0
    %v7930 = vadd.f32 %v7928, %v7929
    %v7931 = vsel %vm5983, %v7912, 0.0
    %v7932 = vadd.f32 %v7930, %v7931
    %v7933 = vsel %vm5983, %v7913, 0.0
    %v7934 = vadd.f32 %v7932, %v7933
    %v7935 = vsel %vm5983, %v7914, 0.0
    %v7936 = vadd.f32 %v7934, %v7935
    %v7937 = vsel %vm5983, %v7915, 0.0
    %v7938 = vadd.f32 %v7936, %v7937
    %v7939 = vsel %vm5983, %v7916, 0.0
    %v7940 = vadd.f32 %v7938, %v7939
    %v7941 = vsel %vm5983, %v7917, 0.0
    %v7942 = vadd.f32 %v7940, %v7941
    %v7943 = vsel %vm5983, %v7918, 0.0
    %v7944 = vadd.f32 %v7942, %v7943
    %v7945 = vsel %vm5983, %v7919, 0.0
    %v7946 = vadd.f32 %v7944, %v7945
    %v7947 = vsel %vm5983, %v7920, 0.0
    %v7948 = vadd.f32 %v7946, %v7947
    %v7949 = vsel %vm5983, %v7921, 0.0
    %v7950 = vadd.f32 %v7948, %v7949
    %v7951 = vsel %vm5983, %v7922, 0.0
    %v7952 = vadd.f32 %v7950, %v7951
    %v7953 = vsel %vm5983, %v7923, 0.0
    %v7954 = vadd.f32 %v7952, %v7953
    %v7955 = vrot.slane %v7954, 4
    %v7956 = vadd.f32 %v7954, %v7955
    %v7957 = vrot.slane %v7956, 2
    %v7958 = vadd.f32 %v7956, %v7957
    %v7959 = vrot.slane %v7958, 1
    %v7960 = vadd.f32 %v7958, %v7959
    %v7961 = vmul.f32 %v7907, 0.0078125
    %v7962 = vmul.f32 %v7960, 0.0078125
    %v7963 = vmul.f32 %v7961, %v7961
    %v7964 = vsub.f32 %v7962, %v7963
    %v7965 = vsub.f32 %v7853, %v7961
    %v7966 = vsub.f32 %v7854, %v7961
    %v7967 = vsub.f32 %v7855, %v7961
    %v7968 = vsub.f32 %v7856, %v7961
    %v7969 = vsub.f32 %v7857, %v7961
    %v7970 = vsub.f32 %v7858, %v7961
    %v7971 = vsub.f32 %v7859, %v7961
    %v7972 = vsub.f32 %v7860, %v7961
    %v7973 = vsub.f32 %v7861, %v7961
    %v7974 = vsub.f32 %v7862, %v7961
    %v7975 = vsub.f32 %v7863, %v7961
    %v7976 = vsub.f32 %v7864, %v7961
    %v7977 = vsub.f32 %v7865, %v7961
    %v7978 = vsub.f32 %v7866, %v7961
    %v7979 = vsub.f32 %v7867, %v7961
    %v7980 = vsub.f32 %v7868, %v7961
    %v7982 = vlaneseq
    %v7983 = vshrl.u32 %v7982, 7
    %v7984 = vsub.s32 0, %v7983
    %v7985 = vrot.slane %v7869, %v7984
    %v7987 = vmul.f32 %v7985, %v7965
    %v7988 = vmul.f32 %v7985, %v7966
    %v7989 = vmul.f32 %v7985, %v7967
    %v7990 = vmul.f32 %v7985, %v7968
    %v7991 = vmul.f32 %v7985, %v7969
    %v7992 = vmul.f32 %v7985, %v7970
    %v7993 = vmul.f32 %v7985, %v7971
    %v7994 = vmul.f32 %v7985, %v7972
    %v7995 = vmul.f32 %v7985, %v7973
    %v7996 = vmul.f32 %v7985, %v7974
    %v7997 = vmul.f32 %v7985, %v7975
    %v7998 = vmul.f32 %v7985, %v7976
    %v7999 = vmul.f32 %v7985, %v7977
    %v8000 = vmul.f32 %v7985, %v7978
    %v8001 = vmul.f32 %v7985, %v7979
    %v8002 = vmul.f32 %v7985, %v7980
    %v8003 = vadd.f32 %v7964, 1e-05
    %v8004 = vrsqrt.pop %v8003
    %v8005 = vmul.f32 %v7987, %v8004
    %v8006 = vmul.f32 %v7988, %v8004
    %v8007 = vmul.f32 %v7989, %v8004
    %v8008 = vmul.f32 %v7990, %v8004
    %v8009 = vmul.f32 %v7991, %v8004
    %v8010 = vmul.f32 %v7992, %v8004
    %v8011 = vmul.f32 %v7993, %v8004
    %v8012 = vmul.f32 %v7994, %v8004
    %v8013 = vmul.f32 %v7995, %v8004
    %v8014 = vmul.f32 %v7996, %v8004
    %v8015 = vmul.f32 %v7997, %v8004
    %v8016 = vmul.f32 %v7998, %v8004
    %v8017 = vmul.f32 %v7999, %v8004
    %v8018 = vmul.f32 %v8000, %v8004
    %v8019 = vmul.f32 %v8001, %v8004
    %v8020 = vmul.f32 %v8002, %v8004
    %v8022 = vlaneseq
    %v8023 = vshrl.u32 %v8022, 7
    %v8024 = vsub.s32 0, %v8023
    %v8025 = vrot.slane %v7870, %v8024
    %v8027 = vadd.f32 %v8005, %v8025
    %v8028 = vadd.f32 %v8006, %v8025
    %v8029 = vadd.f32 %v8007, %v8025
    %v8030 = vadd.f32 %v8008, %v8025
    %v8031 = vadd.f32 %v8009, %v8025
    %v8032 = vadd.f32 %v8010, %v8025
    %v8033 = vadd.f32 %v8011, %v8025
    %v8034 = vadd.f32 %v8012, %v8025
    %v8035 = vadd.f32 %v8013, %v8025
    %v8036 = vadd.f32 %v8014, %v8025
    %v8037 = vadd.f32 %v8015, %v8025
    %v8038 = vadd.f32 %v8016, %v8025
    %v8039 = vadd.f32 %v8017, %v8025
    %v8040 = vadd.f32 %v8018, %v8025
    %v8041 = vadd.f32 %v8019, %v8025
    %v8042 = vadd.f32 %v8020, %v8025
    %v8043 = vld [vmem:[#allocation4] ss:$2 sm:$0xff]
    %s8044 = scalar_lea.vmem [#allocation4], 32
    %v8045 = vld [vmem:[%s8044] ss:$2 sm:$0xff]
    %s8046 = scalar_lea.vmem [#allocation4], 64
    %v8047 = vld [vmem:[%s8046] ss:$2 sm:$0xff]
    %s8048 = scalar_lea.vmem [#allocation4], 96
    %v8049 = vld [vmem:[%s8048] ss:$2 sm:$0xff]
    %s8050 = scalar_lea.vmem [#allocation4], 128
    %v8051 = vld [vmem:[%s8050] ss:$2 sm:$0xff]
    %s8052 = scalar_lea.vmem [#allocation4], 160
    %v8053 = vld [vmem:[%s8052] ss:$2 sm:$0xff]
    %s8054 = scalar_lea.vmem [#allocation4], 192
    %v8055 = vld [vmem:[%s8054] ss:$2 sm:$0xff]
    %s8056 = scalar_lea.vmem [#allocation4], 224
    %v8057 = vld [vmem:[%s8056] ss:$2 sm:$0xff]
    %s8058 = scalar_lea.vmem [#allocation4], 256
    %v8059 = vld [vmem:[%s8058] ss:$2 sm:$0xff]
    %s8060 = scalar_lea.vmem [#allocation4], 288
    %v8061 = vld [vmem:[%s8060] ss:$2 sm:$0xff]
    %s8062 = scalar_lea.vmem [#allocation4], 320
    %v8063 = vld [vmem:[%s8062] ss:$2 sm:$0xff]
    %s8064 = scalar_lea.vmem [#allocation4], 352
    %v8065 = vld [vmem:[%s8064] ss:$2 sm:$0xff]
    %s8066 = scalar_lea.vmem [#allocation4], 384
    %v8067 = vld [vmem:[%s8066] ss:$2 sm:$0xff]
    %s8068 = scalar_lea.vmem [#allocation4], 416
    %v8069 = vld [vmem:[%s8068] ss:$2 sm:$0xff]
    %s8070 = scalar_lea.vmem [#allocation4], 448
    %v8071 = vld [vmem:[%s8070] ss:$2 sm:$0xff]
    %s8072 = scalar_lea.vmem [#allocation4], 480
    %v8073 = vld [vmem:[%s8072] ss:$2 sm:$0xff]
    %v8074 = vpack.c.bf16 %v8045, %v8043
    %v8075 = vpack.c.bf16 %v8049, %v8047
    %v8076 = vpack.c.bf16 %v8053, %v8051
    %v8077 = vpack.c.bf16 %v8057, %v8055
    %v8078 = vpack.c.bf16 %v8061, %v8059
    %v8079 = vpack.c.bf16 %v8065, %v8063
    %v8080 = vpack.c.bf16 %v8069, %v8067
    %v8081 = vpack.c.bf16 %v8073, %v8071
    %v8082 = vld [vmem:[%s8] sm:$0xf]
    %v8083 = vld [vmem:[%s8 + $0x4] sm:$0xf]
    %v8086 = vunpack.c.l.b16 %v8082
    %v8087 = vunpack.c.l.b16 %v8083
    %v8088 = vpack.c.b16 %v8087, %v8086
    %v8091 = vsel %vm147, %v8074, 0
    %v8094 = vsel %vm147, %v8075, 0
    %v8097 = vsel %vm147, %v8076, 0
    %v8100 = vsel %vm147, %v8077, 0
    %v8103 = vsel %vm147, %v8078, 0
    %v8106 = vsel %vm147, %v8079, 0
    %v8109 = vsel %vm147, %v8080, 0
    %v8112 = vsel %vm147, %v8081, 0
    %8114 = vmatprep.subr.bf16.mxu0 0
    %8115 = vmatpush1.bf16.msra.mxu0 %v8088
    %8116 = vmatprep.subr.bf16.mxu0 0
    %8117 = vmatpush1.bf16.msra.mxu0 0
    %8118 = vmatprep.subr.bf16.mxu0 0
    %8119 = vmatpush1.bf16.msra.mxu0 0
    %8120 = vmatprep.subr.bf16.mxu0 0
    %8121 = vmatpush1.bf16.msra.mxu0 0
    %8122 = vmatprep.subr.bf16.mxu0 0
    %8123 = vmatpush1.bf16.msra.mxu0 0
    %8124 = vmatprep.subr.bf16.mxu0 0
    %8125 = vmatpush1.bf16.msra.mxu0 0
    %8126 = vmatprep.subr.bf16.mxu0 0
    %8127 = vmatpush1.bf16.msra.mxu0 0
    %8128 = vmatprep.subr.bf16.mxu0 0
    %8129 = vmatpush1.bf16.msra.mxu0 0
    %8130 = vmatprep.subr.bf16.mxu0 0
    %8131 = vmatpush1.bf16.msra.mxu0 0
    %8132 = vmatprep.subr.bf16.mxu0 0
    %8133 = vmatpush1.bf16.msra.mxu0 0
    %8134 = vmatprep.subr.bf16.mxu0 0
    %8135 = vmatpush1.bf16.msra.mxu0 0
    %8136 = vmatprep.subr.bf16.mxu0 0
    %8137 = vmatpush1.bf16.msra.mxu0 0
    %8138 = vmatprep.subr.bf16.mxu0 0
    %8139 = vmatpush1.bf16.msra.mxu0 0
    %8140 = vmatprep.subr.bf16.mxu0 0
    %8141 = vmatpush1.bf16.msra.mxu0 0
    %8142 = vmatprep.subr.bf16.mxu0 0
    %8143 = vmatpush1.bf16.msra.mxu0 0
    %8144 = vmatprep.subr.bf16.mxu0 0
    %8145 = vmatpush1.bf16.msra.mxu0 0
    %8146 = vmatprep.mubr.bf16.mxu0 0
    %8147 = vmatmul.mubr.bf16.gmra.mrb[0].mxu0 %v8091
    %v8148 = vpop.f32.mrb[0].mxu0
    %v8149 = vadd.f32 0.0, %v8148
    %v8150 = vpop.f32.mrb[0].mxu0
    %v8151 = vpop.f32.mrb[0].mxu0
    %v8152 = vadd.f32 0.0, %v8151
    %v8153 = vpop.f32.mrb[0].mxu0
    %8154 = vmatprep.mubr.bf16.mxu0 0
    %8155 = vmatmul.mubr.bf16.gmra.mrb[0].mxu0 %v8094
    %v8156 = vpop.f32.mrb[0].mxu0
    %v8157 = vadd.f32 0.0, %v8156
    %v8158 = vpop.f32.mrb[0].mxu0
    %v8159 = vpop.f32.mrb[0].mxu0
    %v8160 = vadd.f32 0.0, %v8159
    %v8161 = vpop.f32.mrb[0].mxu0
    %8162 = vmatprep.mubr.bf16.mxu0 0
    %8163 = vmatmul.mubr.bf16.gmra.mrb[0].mxu0 %v8097
    %v8164 = vpop.f32.mrb[0].mxu0
    %v8165 = vadd.f32 0.0, %v8164
    %v8166 = vpop.f32.mrb[0].mxu0
    %v8167 = vpop.f32.mrb[0].mxu0
    %v8168 = vadd.f32 0.0, %v8167
    %v8169 = vpop.f32.mrb[0].mxu0
    %8170 = vmatprep.mubr.bf16.mxu0 0
    %8171 = vmatmul.mubr.bf16.gmra.mrb[0].mxu0 %v8100
    %v8172 = vpop.f32.mrb[0].mxu0
    %v8173 = vadd.f32 0.0, %v8172
    %v8174 = vpop.f32.mrb[0].mxu0
    %v8175 = vpop.f32.mrb[0].mxu0
    %v8176 = vadd.f32 0.0, %v8175
    %v8177 = vpop.f32.mrb[0].mxu0
    %8178 = vmatprep.mubr.bf16.mxu0 0
    %8179 = vmatmul.mubr.bf16.gmra.mrb[0].mxu0 %v8103
    %v8180 = vpop.f32.mrb[0].mxu0
    %v8181 = vadd.f32 0.0, %v8180
    %v8182 = vpop.f32.mrb[0].mxu0
    %v8183 = vpop.f32.mrb[0].mxu0
    %v8184 = vadd.f32 0.0, %v8183
    %v8185 = vpop.f32.mrb[0].mxu0
    %8186 = vmatprep.mubr.bf16.mxu0 0
    %8187 = vmatmul.mubr.bf16.gmra.mrb[0].mxu0 %v8106
    %v8188 = vpop.f32.mrb[0].mxu0
    %v8189 = vadd.f32 0.0, %v8188
    %v8190 = vpop.f32.mrb[0].mxu0
    %v8191 = vpop.f32.mrb[0].mxu0
    %v8192 = vadd.f32 0.0, %v8191
    %v8193 = vpop.f32.mrb[0].mxu0
    %8194 = vmatprep.mubr.bf16.mxu0 0
    %8195 = vmatmul.mubr.bf16.gmra.mrb[0].mxu0 %v8109
    %v8196 = vpop.f32.mrb[0].mxu0
    %v8197 = vadd.f32 0.0, %v8196
    %v8198 = vpop.f32.mrb[0].mxu0
    %v8199 = vpop.f32.mrb[0].mxu0
    %v8200 = vadd.f32 0.0, %v8199
    %v8201 = vpop.f32.mrb[0].mxu0
    %8202 = vmatprep.mubr.bf16.mxu0 0
    %8203 = vmatmul.mubr.bf16.gmra.mrb[0].mxu0 %v8112
    %v8204 = vpop.f32.mrb[0].mxu0
    %v8205 = vadd.f32 0.0, %v8204
    %v8206 = vpop.f32.mrb[0].mxu0
    %v8207 = vpop.f32.mrb[0].mxu0
    %v8208 = vadd.f32 0.0, %v8207
    %v8209 = vpop.f32.mrb[0].mxu0
    %8210 = vdwg.mxu0
    %v8211 = vld [vmem:[%s9] sm:$0x1]
    %v8212 = vld [vmem:[%s10] sm:$0x1]
    %v8213 = vsel %vm5983, %v8149, 0.0
    %v8214 = vsel %vm5983, %v8152, 0.0
    %v8215 = vadd.f32 %v8213, %v8214
    %v8216 = vsel %vm5983, %v8157, 0.0
    %v8217 = vadd.f32 %v8215, %v8216
    %v8218 = vsel %vm5983, %v8160, 0.0
    %v8219 = vadd.f32 %v8217, %v8218
    %v8220 = vsel %vm5983, %v8165, 0.0
    %v8221 = vadd.f32 %v8219, %v8220
    %v8222 = vsel %vm5983, %v8168, 0.0
    %v8223 = vadd.f32 %v8221, %v8222
    %v8224 = vsel %vm5983, %v8173, 0.0
    %v8225 = vadd.f32 %v8223, %v8224
    %v8226 = vsel %vm5983, %v8176, 0.0
    %v8227 = vadd.f32 %v8225, %v8226
    %v8228 = vsel %vm5983, %v8181, 0.0
    %v8229 = vadd.f32 %v8227, %v8228
    %v8230 = vsel %vm5983, %v8184, 0.0
    %v8231 = vadd.f32 %v8229, %v8230
    %v8232 = vsel %vm5983, %v8189, 0.0
    %v8233 = vadd.f32 %v8231, %v8232
    %v8234 = vsel %vm5983, %v8192, 0.0
    %v8235 = vadd.f32 %v8233, %v8234
    %v8236 = vsel %vm5983, %v8197, 0.0
    %v8237 = vadd.f32 %v8235, %v8236
    %v8238 = vsel %vm5983, %v8200, 0.0
    %v8239 = vadd.f32 %v8237, %v8238
    %v8240 = vsel %vm5983, %v8205, 0.0
    %v8241 = vadd.f32 %v8239, %v8240
    %v8242 = vsel %vm5983, %v8208, 0.0
    %v8243 = vadd.f32 %v8241, %v8242
    %v8244 = vrot.slane %v8243, 4
    %v8245 = vadd.f32 %v8243, %v8244
    %v8246 = vrot.slane %v8245, 2
    %v8247 = vadd.f32 %v8245, %v8246
    %v8248 = vrot.slane %v8247, 1
    %v8249 = vadd.f32 %v8247, %v8248
    %v8250 = vmul.f32 %v8149, %v8149
    %v8251 = vmul.f32 %v8152, %v8152
    %v8252 = vmul.f32 %v8157, %v8157
    %v8253 = vmul.f32 %v8160, %v8160
    %v8254 = vmul.f32 %v8165, %v8165
    %v8255 = vmul.f32 %v8168, %v8168
    %v8256 = vmul.f32 %v8173, %v8173
    %v8257 = vmul.f32 %v8176, %v8176
    %v8258 = vmul.f32 %v8181, %v8181
    %v8259 = vmul.f32 %v8184, %v8184
    %v8260 = vmul.f32 %v8189, %v8189
    %v8261 = vmul.f32 %v8192, %v8192
    %v8262 = vmul.f32 %v8197, %v8197
    %v8263 = vmul.f32 %v8200, %v8200
    %v8264 = vmul.f32 %v8205, %v8205
    %v8265 = vmul.f32 %v8208, %v8208
    %v8266 = vsel %vm5983, %v8250, 0.0
    %v8267 = vsel %vm5983, %v8251, 0.0
    %v8268 = vadd.f32 %v8266, %v8267
    %v8269 = vsel %vm5983, %v8252, 0.0
    %v8270 = vadd.f32 %v8268, %v8269
    %v8271 = vsel %vm5983, %v8253, 0.0
    %v8272 = vadd.f32 %v8270, %v8271
    %v8273 = vsel %vm5983, %v8254, 0.0
    %v8274 = vadd.f32 %v8272, %v8273
    %v8275 = vsel %vm5983, %v8255, 0.0
    %v8276 = vadd.f32 %v8274, %v8275
    %v8277 = vsel %vm5983, %v8256, 0.0
    %v8278 = vadd.f32 %v8276, %v8277
    %v8279 = vsel %vm5983, %v8257, 0.0
    %v8280 = vadd.f32 %v8278, %v8279
    %v8281 = vsel %vm5983, %v8258, 0.0
    %v8282 = vadd.f32 %v8280, %v8281
    %v8283 = vsel %vm5983, %v8259, 0.0
    %v8284 = vadd.f32 %v8282, %v8283
    %v8285 = vsel %vm5983, %v8260, 0.0
    %v8286 = vadd.f32 %v8284, %v8285
    %v8287 = vsel %vm5983, %v8261, 0.0
    %v8288 = vadd.f32 %v8286, %v8287
    %v8289 = vsel %vm5983, %v8262, 0.0
    %v8290 = vadd.f32 %v8288, %v8289
    %v8291 = vsel %vm5983, %v8263, 0.0
    %v8292 = vadd.f32 %v8290, %v8291
    %v8293 = vsel %vm5983, %v8264, 0.0
    %v8294 = vadd.f32 %v8292, %v8293
    %v8295 = vsel %vm5983, %v8265, 0.0
    %v8296 = vadd.f32 %v8294, %v8295
    %v8297 = vrot.slane %v8296, 4
    %v8298 = vadd.f32 %v8296, %v8297
    %v8299 = vrot.slane %v8298, 2
    %v8300 = vadd.f32 %v8298, %v8299
    %v8301 = vrot.slane %v8300, 1
    %v8302 = vadd.f32 %v8300, %v8301
    %v8303 = vmul.f32 %v8249, 0.0078125
    %v8304 = vmul.f32 %v8302, 0.0078125
    %v8305 = vmul.f32 %v8303, %v8303
    %v8306 = vsub.f32 %v8304, %v8305
    %v8307 = vsub.f32 %v8149, %v8303
    %v8308 = vsub.f32 %v8152, %v8303
    %v8309 = vsub.f32 %v8157, %v8303
    %v8310 = vsub.f32 %v8160, %v8303
    %v8311 = vsub.f32 %v8165, %v8303
    %v8312 = vsub.f32 %v8168, %v8303
    %v8313 = vsub.f32 %v8173, %v8303
    %v8314 = vsub.f32 %v8176, %v8303
    %v8315 = vsub.f32 %v8181, %v8303
    %v8316 = vsub.f32 %v8184, %v8303
    %v8317 = vsub.f32 %v8189, %v8303
    %v8318 = vsub.f32 %v8192, %v8303
    %v8319 = vsub.f32 %v8197, %v8303
    %v8320 = vsub.f32 %v8200, %v8303
    %v8321 = vsub.f32 %v8205, %v8303
    %v8322 = vsub.f32 %v8208, %v8303
    %v8324 = vlaneseq
    %v8325 = vshrl.u32 %v8324, 7
    %v8326 = vsub.s32 0, %v8325
    %v8327 = vrot.slane %v8211, %v8326
    %v8329 = vmul.f32 %v8327, %v8307
    %v8330 = vmul.f32 %v8327, %v8308
    %v8331 = vmul.f32 %v8327, %v8309
    %v8332 = vmul.f32 %v8327, %v8310
    %v8333 = vmul.f32 %v8327, %v8311
    %v8334 = vmul.f32 %v8327, %v8312
    %v8335 = vmul.f32 %v8327, %v8313
    %v8336 = vmul.f32 %v8327, %v8314
    %v8337 = vmul.f32 %v8327, %v8315
    %v8338 = vmul.f32 %v8327, %v8316
    %v8339 = vmul.f32 %v8327, %v8317
    %v8340 = vmul.f32 %v8327, %v8318
    %v8341 = vmul.f32 %v8327, %v8319
    %v8342 = vmul.f32 %v8327, %v8320
    %v8343 = vmul.f32 %v8327, %v8321
    %v8344 = vmul.f32 %v8327, %v8322
    %v8345 = vadd.f32 %v8306, 1e-05
    %v8346 = vrsqrt.pop %v8345
    %v8347 = vmul.f32 %v8329, %v8346
    %v8348 = vmul.f32 %v8330, %v8346
    %v8349 = vmul.f32 %v8331, %v8346
    %v8350 = vmul.f32 %v8332, %v8346
    %v8351 = vmul.f32 %v8333, %v8346
    %v8352 = vmul.f32 %v8334, %v8346
    %v8353 = vmul.f32 %v8335, %v8346
    %v8354 = vmul.f32 %v8336, %v8346
    %v8355 = vmul.f32 %v8337, %v8346
    %v8356 = vmul.f32 %v8338, %v8346
    %v8357 = vmul.f32 %v8339, %v8346
    %v8358 = vmul.f32 %v8340, %v8346
    %v8359 = vmul.f32 %v8341, %v8346
    %v8360 = vmul.f32 %v8342, %v8346
    %v8361 = vmul.f32 %v8343, %v8346
    %v8362 = vmul.f32 %v8344, %v8346
    %v8364 = vlaneseq
    %v8365 = vshrl.u32 %v8364, 7
    %v8366 = vsub.s32 0, %v8365
    %v8367 = vrot.slane %v8212, %v8366
    %v8369 = vadd.f32 %v8347, %v8367
    %v8370 = vadd.f32 %v8348, %v8367
    %v8371 = vadd.f32 %v8349, %v8367
    %v8372 = vadd.f32 %v8350, %v8367
    %v8373 = vadd.f32 %v8351, %v8367
    %v8374 = vadd.f32 %v8352, %v8367
    %v8375 = vadd.f32 %v8353, %v8367
    %v8376 = vadd.f32 %v8354, %v8367
    %v8377 = vadd.f32 %v8355, %v8367
    %v8378 = vadd.f32 %v8356, %v8367
    %v8379 = vadd.f32 %v8357, %v8367
    %v8380 = vadd.f32 %v8358, %v8367
    %v8381 = vadd.f32 %v8359, %v8367
    %v8382 = vadd.f32 %v8360, %v8367
    %v8383 = vadd.f32 %v8361, %v8367
    %v8384 = vadd.f32 %v8362, %v8367
    %v8385 = vadd.f32 %v8027, %v8369
    %v8386 = vadd.f32 %v8028, %v8370
    %v8387 = vadd.f32 %v8029, %v8371
    %v8388 = vadd.f32 %v8030, %v8372
    %v8389 = vadd.f32 %v8031, %v8373
    %v8390 = vadd.f32 %v8032, %v8374
    %v8391 = vadd.f32 %v8033, %v8375
    %v8392 = vadd.f32 %v8034, %v8376
    %v8393 = vadd.f32 %v8035, %v8377
    %v8394 = vadd.f32 %v8036, %v8378
    %v8395 = vadd.f32 %v8037, %v8379
    %v8396 = vadd.f32 %v8038, %v8380
    %v8397 = vadd.f32 %v8039, %v8381
    %v8398 = vadd.f32 %v8040, %v8382
    %v8399 = vadd.f32 %v8041, %v8383
    %v8400 = vadd.f32 %v8042, %v8384
    %8401 = vst.msk [vmem:[#allocation10] sm:$0xff] %vm5983, %v8385
    %8402 = vst.msk [vmem:[#allocation10 + $0x8] sm:$0xff] %vm5983, %v8386
    %8403 = vst.msk [vmem:[#allocation10 + $0x10] sm:$0xff] %vm5983, %v8387
    %8404 = vst.msk [vmem:[#allocation10 + $0x18] sm:$0xff] %vm5983, %v8388
    %8405 = vst.msk [vmem:[#allocation10 + $0x20] sm:$0xff] %vm5983, %v8389
    %8406 = vst.msk [vmem:[#allocation10 + $0x28] sm:$0xff] %vm5983, %v8390
    %8407 = vst.msk [vmem:[#allocation10 + $0x30] sm:$0xff] %vm5983, %v8391
    %8408 = vst.msk [vmem:[#allocation10 + $0x38] sm:$0xff] %vm5983, %v8392
    %8409 = vst.msk [vmem:[#allocation10 + $0x40] sm:$0xff] %vm5983, %v8393
    %8410 = vst.msk [vmem:[#allocation10 + $0x48] sm:$0xff] %vm5983, %v8394
    %8411 = vst.msk [vmem:[#allocation10 + $0x50] sm:$0xff] %vm5983, %v8395
    %8412 = vst.msk [vmem:[#allocation10 + $0x58] sm:$0xff] %vm5983, %v8396
    %8413 = vst.msk [vmem:[#allocation10 + $0x60] sm:$0xff] %vm5983, %v8397
    %8414 = vst.msk [vmem:[#allocation10 + $0x68] sm:$0xff] %vm5983, %v8398
    %8415 = vst.msk [vmem:[#allocation10 + $0x70] sm:$0xff] %vm5983, %v8399
    %8416 = vst.msk [vmem:[#allocation10 + $0x78] sm:$0xff] %vm5983, %v8400
    // Predicated region
    $region58: #{tpu_custom_call.1} parent=1 // pred_check
      _
    $region59: #{tpu_custom_call.1} parent=1 // pred_check_branch
      %8418 = sbr.rel (0) target = $region61
    $region60: #{tpu_custom_call.1} parent=1 // pred_region
      %s8420 = ssub.s32 2048, 2048
      %8421 = vsyncadd [#allocation6], %s8420
      %s8422 = sshll.u32 [#allocation10], 4
      %s8423 = int_to_ptr.vmem [resolvable:$true] %s8422
      %8428 = dma.vmem_to_hbm [thread:$0]  %s8423, 2048, %s11, [#allocation6], 128, 128, 8
    $region61: #{tpu_custom_call.1} parent=1 // pred_fallthru
      _
    // Predicated region
    $region62: #{tpu_custom_call.1} parent=1 // pred_check
      _
    $region63: #{tpu_custom_call.1} parent=1 // pred_check_branch
      %8430 = sbr.rel (0) target = $region65
    $region64: #{tpu_custom_call.1} parent=1 // pred_region
      %8431 = dma.done [#allocation6], 2048
    $region65: #{tpu_custom_call.1} parent=1 // pred_fallthru
      _
    %8432 = vsyncpa [#allocation5], 1
    %8433 = vsyncpa [#allocation8], 1
    %8434 = vsyncpa [#allocation6], 1

</llo_original>
